<compile_context>
chip_gen: v5e
topology: v5e:2x2
jax: 0.10.0
libtpu: 0.0.40
codegen_flags: <defaults>
</compile_context>

<pallas_src>
import jax
import jax.numpy as jnp
from jax.experimental import pallas as pl
from jax.experimental.pallas import tpu as pltpu

NEG_SLOPE = 0.05
BN_EPS = 1e-5


def _round_up(x, m):
    return (x + m - 1) // m * m


# ---------------------------------------------------------------------------
# Fused kernel: conv1+BN+LeakyReLU, conv_skip+BN, conv2+BN+LeakyReLU, residual.
# ---------------------------------------------------------------------------
def _make_fused_kernel(H, W, cin_p, cout_p, nflat_h):
    Wp = W + 2
    Mp = H * Wp
    top = Wp + 1                 # row offset of h[0,0] inside padded-flat h
    delta = (-top) % 16          # align interior start for packed bf16 rows
    istart = delta + top
    iend = istart + Mp

    def kernel(x_ref, w1sk_ref, s1_ref, b1_ref, ssk_ref, bsk_ref,
               w2_ref, s2_ref, b2_ref, mask_ref,
               o_ref, patch_ref, h_ref, skip_ref):
        # ---- conv1 + conv_skip: shared im2col patches, ONE MXU matmul with
        #      N = 2*cout_p (fills the 256-wide MXU on v6e/v7x).
        for k in range(9):
            dy, dx = divmod(k, 3)
            off = dy * Wp + dx
            patch_ref[:, k * cin_p:(k + 1) * cin_p] = (
                x_ref[off:off + Mp, :].astype(jnp.bfloat16))
        acc = jnp.dot(patch_ref[...], w1sk_ref[...],
                      preferred_element_type=jnp.float32)

        # conv1 branch: folded BN + LeakyReLU(0.05); junk columns (x >= W) are
        # zeroed with a single select so they become conv2's zero padding.
        valid = mask_ref[...] > 0.0                       # (Mp, 1)
        y1 = acc[:, :cout_p] * s1_ref[...] + b1_ref[...]
        y1 = jnp.where(valid, jnp.where(y1 >= 0, y1, NEG_SLOPE * y1), 0.0)

        # h lives only in VMEM (bf16); interior store is sublane-aligned.
        h_ref[0:istart, :] = jnp.zeros((istart, cout_p), jnp.bfloat16)
        h_ref[istart:iend, :] = y1.astype(jnp.bfloat16)
        h_ref[iend:nflat_h, :] = jnp.zeros((nflat_h - iend, cout_p),
                                           jnp.bfloat16)

        # skip branch: folded BN (conv bias folded into shift); VMEM only.
        skip_ref[...] = acc[:, cout_p:] * ssk_ref[...] + bsk_ref[...]

        # ---- conv2: 9 accumulated per-tap matmuls straight off h (no im2col
        #      scratch), f32 accumulation.
        acc2 = jnp.zeros((Mp, cout_p), jnp.float32)
        for k in range(9):
            dy, dx = divmod(k, 3)
            off = delta + dy * Wp + dx
            acc2 = acc2 + jnp.dot(h_ref[off:off + Mp, :],
                                  w2_ref[k * cout_p:(k + 1) * cout_p, :],
                                  preferred_element_type=jnp.float32)

        y2 = acc2 * s2_ref[...] + b2_ref[...]
        y2 = jnp.where(y2 >= 0, y2, NEG_SLOPE * y2)
        o_ref[...] = (y2 + skip_ref[...]).astype(o_ref.dtype)

    return kernel


def _fused_call(xflat, w1sk, s1, b1, ssk, bsk, w2, s2, b2, mask,
                H, W, cin_p, cout_p, nflat_x, nflat_h):
    B = xflat.shape[0]
    Wp = W + 2
    Mp = H * Wp
    kernel = _make_fused_kernel(H, W, cin_p, cout_p, nflat_h)

    # Explicit scoped-VMEM budget from the real footprint (double-buffered
    # input/output blocks + single-buffered scratch), with 2x headroom.
    buf_bytes = 2 * (nflat_x * cin_p * 4            # x block (f32)
                     + 9 * cin_p * 2 * cout_p * 2   # w1sk (bf16)
                     + 9 * cout_p * cout_p * 2      # w2 (bf16)
                     + 6 * cout_p * 4               # affine scale/shift
                     + Mp * 4                       # mask
                     + Mp * cout_p * 4)             # out block (f32)
    scratch_bytes = (Mp * 9 * cin_p * 2             # conv1/skip patch (bf16)
                     + nflat_h * cout_p * 2         # h (bf16)
                     + Mp * cout_p * 4)             # skip (f32)
    vmem_limit = int(min(max(2 * (buf_bytes + scratch_bytes), 4 << 20),
                         64 << 20))

    return pl.pallas_call(
        kernel,
        out_shape=jax.ShapeDtypeStruct((B, Mp, cout_p), jnp.float32),
        grid_spec=pltpu.PrefetchScalarGridSpec(
            num_scalar_prefetch=0,
            grid=(B,),
            in_specs=[
                pl.BlockSpec((None, nflat_x, cin_p), lambda b: (b, 0, 0)),
                pl.BlockSpec((9 * cin_p, 2 * cout_p), lambda b: (0, 0)),
                pl.BlockSpec((1, cout_p), lambda b: (0, 0)),
                pl.BlockSpec((1, cout_p), lambda b: (0, 0)),
                pl.BlockSpec((1, cout_p), lambda b: (0, 0)),
                pl.BlockSpec((1, cout_p), lambda b: (0, 0)),
                pl.BlockSpec((9 * cout_p, cout_p), lambda b: (0, 0)),
                pl.BlockSpec((1, cout_p), lambda b: (0, 0)),
                pl.BlockSpec((1, cout_p), lambda b: (0, 0)),
                pl.BlockSpec((Mp, 1), lambda b: (0, 0)),
            ],
            out_specs=pl.BlockSpec((None, Mp, cout_p), lambda b: (b, 0, 0)),
            scratch_shapes=[
                pltpu.VMEM((Mp, 9 * cin_p), jnp.bfloat16),   # conv1 im2col
                pltpu.VMEM((nflat_h, cout_p), jnp.bfloat16),  # h (padded)
                pltpu.VMEM((Mp, cout_p), jnp.float32),        # skip
            ],
        ),
        compiler_params=pltpu.CompilerParams(
            dimension_semantics=("parallel",),
            vmem_limit_bytes=vmem_limit),
    )(xflat, w1sk, s1, b1, ssk, bsk, w2, s2, b2, mask)


# ---------------------------------------------------------------------------
# Parameter construction (deterministic, synthetic) + BN folding + packing.
# ---------------------------------------------------------------------------
def _fold_bn(gamma, beta, mean, var, bias=None):
    scale = gamma / jnp.sqrt(var + BN_EPS)
    z = bias if bias is not None else jnp.zeros_like(mean)
    shift = beta + (z - mean) * scale
    return scale, shift


def _prep_conv(w_oihw, scale, shift, cin_p, cout_p):
    """(Cout,Cin,3,3) -> (9*cin_p, cout_p) bf16 matmul weight + padded affine."""
    co, ci = w_oihw.shape[0], w_oihw.shape[1]
    w9 = jnp.transpose(w_oihw, (2, 3, 1, 0)).reshape(9, ci, co)
    w9 = jnp.pad(w9, ((0, 0), (0, cin_p - ci), (0, cout_p - co)))
    w = w9.reshape(9 * cin_p, cout_p).astype(jnp.bfloat16)
    s = jnp.pad(scale, (0, cout_p - co)).reshape(1, cout_p).astype(jnp.float32)
    b = jnp.pad(shift, (0, cout_p - co)).reshape(1, cout_p).astype(jnp.float32)
    return w, s, b


def init_params(key, cin, cout):
    ks = jax.random.split(key, 16)

    def bn_params(k0, k1, k2, k3, c):
        gamma = 1.0 + 0.1 * jax.random.normal(k0, (c,), jnp.float32)
        beta = 0.1 * jax.random.normal(k1, (c,), jnp.float32)
        mean = 0.1 * jax.random.normal(k2, (c,), jnp.float32)
        var = jnp.abs(jax.random.normal(k3, (c,), jnp.float32)) + 0.5
        return gamma, beta, mean, var

    raw = {
        "w1_oihw": 0.1 * jax.random.normal(ks[0], (cout, cin, 3, 3), jnp.float32),
        "w2_oihw": 0.1 * jax.random.normal(ks[1], (cout, cout, 3, 3), jnp.float32),
        "wsk_oihw": 0.1 * jax.random.normal(ks[2], (cout, cin, 3, 3), jnp.float32),
        "bsk_bias": 0.1 * jax.random.normal(ks[3], (cout,), jnp.float32),
        "bn1": bn_params(ks[4], ks[5], ks[6], ks[7], cout),
        "bn2": bn_params(ks[8], ks[9], ks[10], ks[11], cout),
        "bnsk": bn_params(ks[12], ks[13], ks[14], ks[15], cout),
    }

    # TODO(synk): for production channel counts pad cin_p to a multiple of 128
    # (lane-dense K / x DMA); at Cin=4 the 8-sublane pad is the right size.
    cin_p = _round_up(cin, 8)
    cout_p = _round_up(cout, 128)      # lane-dense output / full MXU N

    s1, b1 = _fold_bn(*raw["bn1"])
    s2, b2 = _fold_bn(*raw["bn2"])
    ssk, bsk = _fold_bn(*raw["bnsk"], bias=raw["bsk_bias"])

    w1, s1p, b1p = _prep_conv(raw["w1_oihw"], s1, b1, cin_p, cout_p)
    wsk, sskp, bskp = _prep_conv(raw["wsk_oihw"], ssk, bsk, cin_p, cout_p)
    w2, s2p, b2p = _prep_conv(raw["w2_oihw"], s2, b2, cout_p, cout_p)

    folded = {
        # conv1 and skip share one matmul: N = 2*cout_p.
        "w1sk": jnp.concatenate([w1, wsk], axis=1),
        "s1": s1p, "b1": b1p, "ssk": sskp, "bsk": bskp,
        "w2": w2, "s2": s2p, "b2": b2p,
        "cin": cin, "cout": cout, "cin_p": cin_p, "cout_p": cout_p,
    }
    return raw, folded


# ---------------------------------------------------------------------------
# Forward passes.
# ---------------------------------------------------------------------------
def res_conv_block(x_nchw, p):
    """Pallas implementation. x_nchw: (B, Cin, H, W) -> (B, Cout, H, W)."""
    B, Cin, H, W = x_nchw.shape
    cout, cin_p, cout_p = p["cout"], p["cin_p"], p["cout_p"]
    Hp, Wp = H + 2, W + 2
    Mp = H * Wp
    top = Wp + 1
    delta = (-top) % 16
    nflat_x = _round_up(Hp * Wp + 2, 8)            # +2: largest tap stays in-bounds
    nflat_h = _round_up(delta + Hp * Wp + 2, 16)

    # NCHW -> padded flattened NHWC rows (tiny at these shapes; see TODOs).
    x = jnp.transpose(x_nchw, (0, 2, 3, 1))
    xp = jnp.pad(x, ((0, 0), (1, 1), (1, 1), (0, cin_p - Cin)))
    xflat = jnp.pad(xp.reshape(B, Hp * Wp, cin_p),
                    ((0, 0), (0, nflat_x - Hp * Wp), (0, 0)))

    # Column-validity mask over the H*Wp output rows (x-part < W).
    mask = (jnp.arange(Mp, dtype=jnp.int32) % Wp < W).astype(
        jnp.float32).reshape(Mp, 1)

    out = _fused_call(xflat, p["w1sk"], p["s1"], p["b1"], p["ssk"], p["bsk"],
                      p["w2"], p["s2"], p["b2"], mask,
                      H, W, cin_p, cout_p, nflat_x, nflat_h)

    out = out.reshape(B, H, Wp, cout_p)[:, :, :W, :cout]
    return jnp.transpose(out, (0, 3, 1, 2))       # NHWC -> NCHW


def ref_res_conv_block(x_nchw, raw):
    """Pure-JAX reference (lax.conv) mirroring PyTorch eval-mode semantics."""
    x = jnp.transpose(x_nchw, (0, 2, 3, 1))

    def conv(v, w_oihw):
        w = jnp.transpose(w_oihw, (2, 3, 1, 0))  # HWIO
        return jax.lax.conv_general_dilated(
            v, w, (1, 1), "SAME", dimension_numbers=("NHWC", "HWIO", "NHWC"))

    def bn(v, params):
        gamma, beta, mean, var = params
        return (v - mean) * gamma / jnp.sqrt(var + BN_EPS) + beta

    def leaky(v):
        return jnp.where(v >= 0, v, NEG_SLOPE * v)

    h = leaky(bn(conv(x, raw["w1_oihw"]), raw["bn1"]))
    h = leaky(bn(conv(h, raw["w2_oihw"]), raw["bn2"]))
    s = bn(conv(x, raw["wsk_oihw"]) + raw["bsk_bias"], raw["bnsk"])
    return jnp.transpose(h + s, (0, 3, 1, 2))


if __name__ == "__main__":
    B, Cin, Cout, H, W = 2, 4, 8, 16, 16
    key = jax.random.PRNGKey(0)
    kx, kp = jax.random.split(key)
    x = jax.random.normal(kx, (B, Cin, H, W), jnp.float32)

    raw_params, folded_params = init_params(kp, Cin, Cout)

    out = jax.block_until_ready(res_conv_block(x, folded_params))
    ref = jax.block_until_ready(ref_res_conv_block(x, raw_params))

    assert out.shape == (B, Cout, H, W), out.shape
    # bf16 MXU inputs (f32 accumulation) vs. an all-f32 reference: tolerance
    # loosened accordingly (observed error ~1e-2 absolute at these scales).
    max_err = float(jnp.max(jnp.abs(out - ref)))
    assert jnp.allclose(out, ref, rtol=5e-2, atol=5e-2), max_err

    print("KERNEL_OK")
</pallas_src>

<mosaic_0001>
module attributes {stable_mosaic.version = 11 : i64} {
  func.func @kernel(%arg0: i32, %arg1: memref<1x328x8xf32, #tpu.memory_space<vmem>>, %arg2: memref<72x256xbf16, #tpu.memory_space<vmem>>, %arg3: memref<1x128xf32, #tpu.memory_space<vmem>>, %arg4: memref<1x128xf32, #tpu.memory_space<vmem>>, %arg5: memref<1x128xf32, #tpu.memory_space<vmem>>, %arg6: memref<1x128xf32, #tpu.memory_space<vmem>>, %arg7: memref<1152x128xbf16, #tpu.memory_space<vmem>>, %arg8: memref<1x128xf32, #tpu.memory_space<vmem>>, %arg9: memref<1x128xf32, #tpu.memory_space<vmem>>, %arg10: memref<288x1xf32, #tpu.memory_space<vmem>>, %arg11: memref<1x288x128xf32, #tpu.memory_space<vmem>>, %arg12: memref<288x72xbf16, #tpu.memory_space<vmem>>, %arg13: memref<352x128xbf16, #tpu.memory_space<vmem>>, %arg14: memref<288x128xf32, #tpu.memory_space<vmem>>) attributes {dimension_semantics = [#tpu.dimension_semantics<parallel>], iteration_bounds = array<i64: 2>, scalar_prefetch = 0 : i64, scratch_operands = 3 : i64, tpu.core_type = #tpu.core_type<tc>, window_params = [{transform_indices = @transform_0, window_bounds = array<i64: 1, 328, 8>}, {pipeline_mode = #tpu.pipeline_mode<synchronous>, transform_indices = @transform_1, window_bounds = array<i64: 72, 256>}, {pipeline_mode = #tpu.pipeline_mode<synchronous>, transform_indices = @transform_2, window_bounds = array<i64: 1, 128>}, {pipeline_mode = #tpu.pipeline_mode<synchronous>, transform_indices = @transform_3, window_bounds = array<i64: 1, 128>}, {pipeline_mode = #tpu.pipeline_mode<synchronous>, transform_indices = @transform_4, window_bounds = array<i64: 1, 128>}, {pipeline_mode = #tpu.pipeline_mode<synchronous>, transform_indices = @transform_5, window_bounds = array<i64: 1, 128>}, {pipeline_mode = #tpu.pipeline_mode<synchronous>, transform_indices = @transform_6, window_bounds = array<i64: 1152, 128>}, {pipeline_mode = #tpu.pipeline_mode<synchronous>, transform_indices = @transform_7, window_bounds = array<i64: 1, 128>}, {pipeline_mode = #tpu.pipeline_mode<synchronous>, transform_indices = @transform_8, window_bounds = array<i64: 1, 128>}, {pipeline_mode = #tpu.pipeline_mode<synchronous>, transform_indices = @transform_9, window_bounds = array<i64: 288, 1>}, {transform_indices = @transform_10, window_bounds = array<i64: 1, 288, 128>}]} {
    %c0 = arith.constant 0 : index
    %c0_0 = arith.constant 0 : index
    %c0_1 = arith.constant 0 : index
    %0 = vector.load %arg1[%c0, %c0_0, %c0_1] : memref<1x328x8xf32, #tpu.memory_space<vmem>>, vector<1x288x8xf32>
    %1 = vector.shape_cast %0 : vector<1x288x8xf32> to vector<288x8xf32>
    %2 = arith.truncf %1 : vector<288x8xf32> to vector<288x8xbf16>
    %c0_2 = arith.constant 0 : index
    %c0_3 = arith.constant 0 : index
    %3 = vector.load %arg12[%c0_2, %c0_3] : memref<288x72xbf16, #tpu.memory_space<vmem>>, vector<288x8xbf16>
    tpu.vector_store %arg12[%c0_2, %c0_3], %2 {strides = array<i32>} : memref<288x72xbf16, #tpu.memory_space<vmem>>, vector<288x8xbf16>,
    %c0_4 = arith.constant 0 : index
    %c1 = arith.constant 1 : index
    %c0_5 = arith.constant 0 : index
    %4 = vector.load %arg1[%c0_4, %c1, %c0_5] : memref<1x328x8xf32, #tpu.memory_space<vmem>>, vector<1x288x8xf32>
    %5 = vector.shape_cast %4 : vector<1x288x8xf32> to vector<288x8xf32>
    %6 = arith.truncf %5 : vector<288x8xf32> to vector<288x8xbf16>
    %c0_6 = arith.constant 0 : index
    %c8 = arith.constant 8 : index
    %7 = vector.load %arg12[%c0_6, %c8] : memref<288x72xbf16, #tpu.memory_space<vmem>>, vector<288x8xbf16>
    tpu.vector_store %arg12[%c0_6, %c8], %6 {strides = array<i32>} : memref<288x72xbf16, #tpu.memory_space<vmem>>, vector<288x8xbf16>,
    %c0_7 = arith.constant 0 : index
    %c2 = arith.constant 2 : index
    %c0_8 = arith.constant 0 : index
    %8 = vector.load %arg1[%c0_7, %c2, %c0_8] : memref<1x328x8xf32, #tpu.memory_space<vmem>>, vector<1x288x8xf32>
    %9 = vector.shape_cast %8 : vector<1x288x8xf32> to vector<288x8xf32>
    %10 = arith.truncf %9 : vector<288x8xf32> to vector<288x8xbf16>
    %c0_9 = arith.constant 0 : index
    %c16 = arith.constant 16 : index
    %11 = vector.load %arg12[%c0_9, %c16] : memref<288x72xbf16, #tpu.memory_space<vmem>>, vector<288x8xbf16>
    tpu.vector_store %arg12[%c0_9, %c16], %10 {strides = array<i32>} : memref<288x72xbf16, #tpu.memory_space<vmem>>, vector<288x8xbf16>,
    %c0_10 = arith.constant 0 : index
    %c18 = arith.constant 18 : index
    %c0_11 = arith.constant 0 : index
    %12 = vector.load %arg1[%c0_10, %c18, %c0_11] : memref<1x328x8xf32, #tpu.memory_space<vmem>>, vector<1x288x8xf32>
    %13 = vector.shape_cast %12 : vector<1x288x8xf32> to vector<288x8xf32>
    %14 = arith.truncf %13 : vector<288x8xf32> to vector<288x8xbf16>
    %c0_12 = arith.constant 0 : index
    %c24 = arith.constant 24 : index
    %15 = vector.load %arg12[%c0_12, %c24] : memref<288x72xbf16, #tpu.memory_space<vmem>>, vector<288x8xbf16>
    tpu.vector_store %arg12[%c0_12, %c24], %14 {strides = array<i32>} : memref<288x72xbf16, #tpu.memory_space<vmem>>, vector<288x8xbf16>,
    %c0_13 = arith.constant 0 : index
    %c19 = arith.constant 19 : index
    %c0_14 = arith.constant 0 : index
    %16 = vector.load %arg1[%c0_13, %c19, %c0_14] : memref<1x328x8xf32, #tpu.memory_space<vmem>>, vector<1x288x8xf32>
    %17 = vector.shape_cast %16 : vector<1x288x8xf32> to vector<288x8xf32>
    %18 = arith.truncf %17 : vector<288x8xf32> to vector<288x8xbf16>
    %c0_15 = arith.constant 0 : index
    %c32 = arith.constant 32 : index
    %19 = vector.load %arg12[%c0_15, %c32] : memref<288x72xbf16, #tpu.memory_space<vmem>>, vector<288x8xbf16>
    tpu.vector_store %arg12[%c0_15, %c32], %18 {strides = array<i32>} : memref<288x72xbf16, #tpu.memory_space<vmem>>, vector<288x8xbf16>,
    %c0_16 = arith.constant 0 : index
    %c20 = arith.constant 20 : index
    %c0_17 = arith.constant 0 : index
    %20 = vector.load %arg1[%c0_16, %c20, %c0_17] : memref<1x328x8xf32, #tpu.memory_space<vmem>>, vector<1x288x8xf32>
    %21 = vector.shape_cast %20 : vector<1x288x8xf32> to vector<288x8xf32>
    %22 = arith.truncf %21 : vector<288x8xf32> to vector<288x8xbf16>
    %c0_18 = arith.constant 0 : index
    %c40 = arith.constant 40 : index
    %23 = vector.load %arg12[%c0_18, %c40] : memref<288x72xbf16, #tpu.memory_space<vmem>>, vector<288x8xbf16>
    tpu.vector_store %arg12[%c0_18, %c40], %22 {strides = array<i32>} : memref<288x72xbf16, #tpu.memory_space<vmem>>, vector<288x8xbf16>,
    %c0_19 = arith.constant 0 : index
    %c36 = arith.constant 36 : index
    %c0_20 = arith.constant 0 : index
    %24 = vector.load %arg1[%c0_19, %c36, %c0_20] : memref<1x328x8xf32, #tpu.memory_space<vmem>>, vector<1x288x8xf32>
    %25 = vector.shape_cast %24 : vector<1x288x8xf32> to vector<288x8xf32>
    %26 = arith.truncf %25 : vector<288x8xf32> to vector<288x8xbf16>
    %c0_21 = arith.constant 0 : index
    %c48 = arith.constant 48 : index
    %27 = vector.load %arg12[%c0_21, %c48] : memref<288x72xbf16, #tpu.memory_space<vmem>>, vector<288x8xbf16>
    tpu.vector_store %arg12[%c0_21, %c48], %26 {strides = array<i32>} : memref<288x72xbf16, #tpu.memory_space<vmem>>, vector<288x8xbf16>,
    %c0_22 = arith.constant 0 : index
    %c37 = arith.constant 37 : index
    %c0_23 = arith.constant 0 : index
    %28 = vector.load %arg1[%c0_22, %c37, %c0_23] : memref<1x328x8xf32, #tpu.memory_space<vmem>>, vector<1x288x8xf32>
    %29 = vector.shape_cast %28 : vector<1x288x8xf32> to vector<288x8xf32>
    %30 = arith.truncf %29 : vector<288x8xf32> to vector<288x8xbf16>
    %c0_24 = arith.constant 0 : index
    %c56 = arith.constant 56 : index
    %31 = vector.load %arg12[%c0_24, %c56] : memref<288x72xbf16, #tpu.memory_space<vmem>>, vector<288x8xbf16>
    tpu.vector_store %arg12[%c0_24, %c56], %30 {strides = array<i32>} : memref<288x72xbf16, #tpu.memory_space<vmem>>, vector<288x8xbf16>,
    %c0_25 = arith.constant 0 : index
    %c38 = arith.constant 38 : index
    %c0_26 = arith.constant 0 : index
    %32 = vector.load %arg1[%c0_25, %c38, %c0_26] : memref<1x328x8xf32, #tpu.memory_space<vmem>>, vector<1x288x8xf32>
    %33 = vector.shape_cast %32 : vector<1x288x8xf32> to vector<288x8xf32>
    %34 = arith.truncf %33 : vector<288x8xf32> to vector<288x8xbf16>
    %c0_27 = arith.constant 0 : index
    %c64 = arith.constant 64 : index
    %35 = vector.load %arg12[%c0_27, %c64] : memref<288x72xbf16, #tpu.memory_space<vmem>>, vector<288x8xbf16>
    tpu.vector_store %arg12[%c0_27, %c64], %34 {strides = array<i32>} : memref<288x72xbf16, #tpu.memory_space<vmem>>, vector<288x8xbf16>,
    %c0_28 = arith.constant 0 : index
    %c0_29 = arith.constant 0 : index
    %36 = vector.load %arg12[%c0_28, %c0_29] : memref<288x72xbf16, #tpu.memory_space<vmem>>, vector<288x72xbf16>
    %c0_30 = arith.constant 0 : index
    %c0_31 = arith.constant 0 : index
    %37 = vector.load %arg2[%c0_30, %c0_31] : memref<72x256xbf16, #tpu.memory_space<vmem>>, vector<72x256xbf16>
    %cst = arith.constant dense<0.000000e+00> : vector<288x256xf32>
    %38 = tpu.matmul %36, %37, %cst {dimension_numbers = #tpu.dot_dimension_numbers<[1], [0], [0], [1], [0, 0, 1, 1], [], []>} : vector<288x72xbf16>, vector<72x256xbf16>, vector<288x256xf32> -> vector<288x256xf32>
    %c0_32 = arith.constant 0 : index
    %c0_33 = arith.constant 0 : index
    %39 = vector.load %arg10[%c0_32, %c0_33] : memref<288x1xf32, #tpu.memory_space<vmem>>, vector<288x1xf32>
    %cst_34 = arith.constant 0.000000e+00 : f32
    %40 = vector.broadcast %cst_34 : f32 to vector<288x1xf32>
    %41 = arith.cmpf ogt, %39, %40 : vector<288x1xf32>
    %42 = vector.extract_strided_slice %38 {offsets = [0, 0], sizes = [288, 128], strides = [1, 1]} : vector<288x256xf32> to vector<288x128xf32>
    %c0_35 = arith.constant 0 : index
    %c0_36 = arith.constant 0 : index
    %43 = vector.load %arg3[%c0_35, %c0_36] : memref<1x128xf32, #tpu.memory_space<vmem>>, vector<1x128xf32>
    %44 = vector.broadcast %43 : vector<1x128xf32> to vector<288x128xf32>
    %45 = arith.mulf %42, %44 : vector<288x128xf32>
    %c0_37 = arith.constant 0 : index
    %c0_38 = arith.constant 0 : index
    %46 = vector.load %arg4[%c0_37, %c0_38] : memref<1x128xf32, #tpu.memory_space<vmem>>, vector<1x128xf32>
    %47 = vector.broadcast %46 : vector<1x128xf32> to vector<288x128xf32>
    %48 = arith.addf %45, %47 : vector<288x128xf32>
    %cst_39 = arith.constant 0.000000e+00 : f32
    %49 = vector.broadcast %cst_39 : f32 to vector<288x128xf32>
    %50 = arith.cmpf oge, %48, %49 : vector<288x128xf32>
    %cst_40 = arith.constant 5.000000e-02 : f32
    %51 = vector.broadcast %cst_40 : f32 to vector<288x128xf32>
    %52 = arith.mulf %51, %48 : vector<288x128xf32>
    %53 = arith.select %50, %48, %52 : vector<288x128xi1>, vector<288x128xf32>
    %cst_41 = arith.constant 0.000000e+00 : f32
    %54 = vector.shape_cast %41 : vector<288x1xi1> to vector<288x1xi1>
    %55 = vector.broadcast %54 : vector<288x1xi1> to vector<288x128xi1>
    %56 = vector.broadcast %cst_41 : f32 to vector<288x128xf32>
    %57 = arith.select %55, %53, %56 : vector<288x128xi1>, vector<288x128xf32>
    %cst_42 = arith.constant 0.000000e+00 : bf16
    %58 = vector.broadcast %cst_42 : bf16 to vector<32x128xbf16>
    %c0_43 = arith.constant 0 : index
    %c0_44 = arith.constant 0 : index
    %59 = vector.load %arg13[%c0_43, %c0_44] : memref<352x128xbf16, #tpu.memory_space<vmem>>, vector<32x128xbf16>
    tpu.vector_store %arg13[%c0_43, %c0_44], %58 {strides = array<i32>} : memref<352x128xbf16, #tpu.memory_space<vmem>>, vector<32x128xbf16>,
    %60 = arith.truncf %57 : vector<288x128xf32> to vector<288x128xbf16>
    %c32_45 = arith.constant 32 : index
    %c0_46 = arith.constant 0 : index
    %61 = vector.load %arg13[%c32_45, %c0_46] : memref<352x128xbf16, #tpu.memory_space<vmem>>, vector<288x128xbf16>
    tpu.vector_store %arg13[%c32_45, %c0_46], %60 {strides = array<i32>} : memref<352x128xbf16, #tpu.memory_space<vmem>>, vector<288x128xbf16>,
    %cst_47 = arith.constant 0.000000e+00 : bf16
    %62 = vector.broadcast %cst_47 : bf16 to vector<32x128xbf16>
    %c320 = arith.constant 320 : index
    %c0_48 = arith.constant 0 : index
    %63 = vector.load %arg13[%c320, %c0_48] : memref<352x128xbf16, #tpu.memory_space<vmem>>, vector<32x128xbf16>
    tpu.vector_store %arg13[%c320, %c0_48], %62 {strides = array<i32>} : memref<352x128xbf16, #tpu.memory_space<vmem>>, vector<32x128xbf16>,
    %64 = vector.extract_strided_slice %38 {offsets = [0, 128], sizes = [288, 128], strides = [1, 1]} : vector<288x256xf32> to vector<288x128xf32>
    %c0_49 = arith.constant 0 : index
    %c0_50 = arith.constant 0 : index
    %65 = vector.load %arg5[%c0_49, %c0_50] : memref<1x128xf32, #tpu.memory_space<vmem>>, vector<1x128xf32>
    %66 = vector.broadcast %65 : vector<1x128xf32> to vector<288x128xf32>
    %67 = arith.mulf %64, %66 : vector<288x128xf32>
    %c0_51 = arith.constant 0 : index
    %c0_52 = arith.constant 0 : index
    %68 = vector.load %arg6[%c0_51, %c0_52] : memref<1x128xf32, #tpu.memory_space<vmem>>, vector<1x128xf32>
    %69 = vector.broadcast %68 : vector<1x128xf32> to vector<288x128xf32>
    %70 = arith.addf %67, %69 : vector<288x128xf32>
    %c0_53 = arith.constant 0 : index
    %c0_54 = arith.constant 0 : index
    %71 = vector.load %arg14[%c0_53, %c0_54] : memref<288x128xf32, #tpu.memory_space<vmem>>, vector<288x128xf32>
    tpu.vector_store %arg14[%c0_53, %c0_54], %70 {strides = array<i32>} : memref<288x128xf32, #tpu.memory_space<vmem>>, vector<288x128xf32>,
    %cst_55 = arith.constant 0.000000e+00 : f32
    %72 = vector.broadcast %cst_55 : f32 to vector<288x128xf32>
    %c13 = arith.constant 13 : index
    %c0_56 = arith.constant 0 : index
    %73 = vector.load %arg13[%c13, %c0_56] : memref<352x128xbf16, #tpu.memory_space<vmem>>, vector<288x128xbf16>
    %c0_57 = arith.constant 0 : index
    %c0_58 = arith.constant 0 : index
    %74 = vector.load %arg7[%c0_57, %c0_58] : memref<1152x128xbf16, #tpu.memory_space<vmem>>, vector<128x128xbf16>
    %cst_59 = arith.constant dense<0.000000e+00> : vector<288x128xf32>
    %75 = tpu.matmul %73, %74, %cst_59 {dimension_numbers = #tpu.dot_dimension_numbers<[1], [0], [0], [1], [0, 0, 1, 1], [], []>} : vector<288x128xbf16>, vector<128x128xbf16>, vector<288x128xf32> -> vector<288x128xf32>
    %76 = arith.addf %72, %75 : vector<288x128xf32>
    %c14 = arith.constant 14 : index
    %c0_60 = arith.constant 0 : index
    %77 = vector.load %arg13[%c14, %c0_60] : memref<352x128xbf16, #tpu.memory_space<vmem>>, vector<288x128xbf16>
    %c128 = arith.constant 128 : index
    %c0_61 = arith.constant 0 : index
    %78 = vector.load %arg7[%c128, %c0_61] : memref<1152x128xbf16, #tpu.memory_space<vmem>>, vector<128x128xbf16>
    %cst_62 = arith.constant dense<0.000000e+00> : vector<288x128xf32>
    %79 = tpu.matmul %77, %78, %cst_62 {dimension_numbers = #tpu.dot_dimension_numbers<[1], [0], [0], [1], [0, 0, 1, 1], [], []>} : vector<288x128xbf16>, vector<128x128xbf16>, vector<288x128xf32> -> vector<288x128xf32>
    %80 = arith.addf %76, %79 : vector<288x128xf32>
    %c15 = arith.constant 15 : index
    %c0_63 = arith.constant 0 : index
    %81 = vector.load %arg13[%c15, %c0_63] : memref<352x128xbf16, #tpu.memory_space<vmem>>, vector<288x128xbf16>
    %c256 = arith.constant 256 : index
    %c0_64 = arith.constant 0 : index
    %82 = vector.load %arg7[%c256, %c0_64] : memref<1152x128xbf16, #tpu.memory_space<vmem>>, vector<128x128xbf16>
    %cst_65 = arith.constant dense<0.000000e+00> : vector<288x128xf32>
    %83 = tpu.matmul %81, %82, %cst_65 {dimension_numbers = #tpu.dot_dimension_numbers<[1], [0], [0], [1], [0, 0, 1, 1], [], []>} : vector<288x128xbf16>, vector<128x128xbf16>, vector<288x128xf32> -> vector<288x128xf32>
    %84 = arith.addf %80, %83 : vector<288x128xf32>
    %c31 = arith.constant 31 : index
    %c0_66 = arith.constant 0 : index
    %85 = vector.load %arg13[%c31, %c0_66] : memref<352x128xbf16, #tpu.memory_space<vmem>>, vector<288x128xbf16>
    %c384 = arith.constant 384 : index
    %c0_67 = arith.constant 0 : index
    %86 = vector.load %arg7[%c384, %c0_67] : memref<1152x128xbf16, #tpu.memory_space<vmem>>, vector<128x128xbf16>
    %cst_68 = arith.constant dense<0.000000e+00> : vector<288x128xf32>
    %87 = tpu.matmul %85, %86, %cst_68 {dimension_numbers = #tpu.dot_dimension_numbers<[1], [0], [0], [1], [0, 0, 1, 1], [], []>} : vector<288x128xbf16>, vector<128x128xbf16>, vector<288x128xf32> -> vector<288x128xf32>
    %88 = arith.addf %84, %87 : vector<288x128xf32>
    %c32_69 = arith.constant 32 : index
    %c0_70 = arith.constant 0 : index
    %89 = vector.load %arg13[%c32_69, %c0_70] : memref<352x128xbf16, #tpu.memory_space<vmem>>, vector<288x128xbf16>
    %c512 = arith.constant 512 : index
    %c0_71 = arith.constant 0 : index
    %90 = vector.load %arg7[%c512, %c0_71] : memref<1152x128xbf16, #tpu.memory_space<vmem>>, vector<128x128xbf16>
    %cst_72 = arith.constant dense<0.000000e+00> : vector<288x128xf32>
    %91 = tpu.matmul %89, %90, %cst_72 {dimension_numbers = #tpu.dot_dimension_numbers<[1], [0], [0], [1], [0, 0, 1, 1], [], []>} : vector<288x128xbf16>, vector<128x128xbf16>, vector<288x128xf32> -> vector<288x128xf32>
    %92 = arith.addf %88, %91 : vector<288x128xf32>
    %c33 = arith.constant 33 : index
    %c0_73 = arith.constant 0 : index
    %93 = vector.load %arg13[%c33, %c0_73] : memref<352x128xbf16, #tpu.memory_space<vmem>>, vector<288x128xbf16>
    %c640 = arith.constant 640 : index
    %c0_74 = arith.constant 0 : index
    %94 = vector.load %arg7[%c640, %c0_74] : memref<1152x128xbf16, #tpu.memory_space<vmem>>, vector<128x128xbf16>
    %cst_75 = arith.constant dense<0.000000e+00> : vector<288x128xf32>
    %95 = tpu.matmul %93, %94, %cst_75 {dimension_numbers = #tpu.dot_dimension_numbers<[1], [0], [0], [1], [0, 0, 1, 1], [], []>} : vector<288x128xbf16>, vector<128x128xbf16>, vector<288x128xf32> -> vector<288x128xf32>
    %96 = arith.addf %92, %95 : vector<288x128xf32>
    %c49 = arith.constant 49 : index
    %c0_76 = arith.constant 0 : index
    %97 = vector.load %arg13[%c49, %c0_76] : memref<352x128xbf16, #tpu.memory_space<vmem>>, vector<288x128xbf16>
    %c768 = arith.constant 768 : index
    %c0_77 = arith.constant 0 : index
    %98 = vector.load %arg7[%c768, %c0_77] : memref<1152x128xbf16, #tpu.memory_space<vmem>>, vector<128x128xbf16>
    %cst_78 = arith.constant dense<0.000000e+00> : vector<288x128xf32>
    %99 = tpu.matmul %97, %98, %cst_78 {dimension_numbers = #tpu.dot_dimension_numbers<[1], [0], [0], [1], [0, 0, 1, 1], [], []>} : vector<288x128xbf16>, vector<128x128xbf16>, vector<288x128xf32> -> vector<288x128xf32>
    %100 = arith.addf %96, %99 : vector<288x128xf32>
    %c50 = arith.constant 50 : index
    %c0_79 = arith.constant 0 : index
    %101 = vector.load %arg13[%c50, %c0_79] : memref<352x128xbf16, #tpu.memory_space<vmem>>, vector<288x128xbf16>
    %c896 = arith.constant 896 : index
    %c0_80 = arith.constant 0 : index
    %102 = vector.load %arg7[%c896, %c0_80] : memref<1152x128xbf16, #tpu.memory_space<vmem>>, vector<128x128xbf16>
    %cst_81 = arith.constant dense<0.000000e+00> : vector<288x128xf32>
    %103 = tpu.matmul %101, %102, %cst_81 {dimension_numbers = #tpu.dot_dimension_numbers<[1], [0], [0], [1], [0, 0, 1, 1], [], []>} : vector<288x128xbf16>, vector<128x128xbf16>, vector<288x128xf32> -> vector<288x128xf32>
    %104 = arith.addf %100, %103 : vector<288x128xf32>
    %c51 = arith.constant 51 : index
    %c0_82 = arith.constant 0 : index
    %105 = vector.load %arg13[%c51, %c0_82] : memref<352x128xbf16, #tpu.memory_space<vmem>>, vector<288x128xbf16>
    %c1024 = arith.constant 1024 : index
    %c0_83 = arith.constant 0 : index
    %106 = vector.load %arg7[%c1024, %c0_83] : memref<1152x128xbf16, #tpu.memory_space<vmem>>, vector<128x128xbf16>
    %cst_84 = arith.constant dense<0.000000e+00> : vector<288x128xf32>
    %107 = tpu.matmul %105, %106, %cst_84 {dimension_numbers = #tpu.dot_dimension_numbers<[1], [0], [0], [1], [0, 0, 1, 1], [], []>} : vector<288x128xbf16>, vector<128x128xbf16>, vector<288x128xf32> -> vector<288x128xf32>
    %108 = arith.addf %104, %107 : vector<288x128xf32>
    %c0_85 = arith.constant 0 : index
    %c0_86 = arith.constant 0 : index
    %109 = vector.load %arg8[%c0_85, %c0_86] : memref<1x128xf32, #tpu.memory_space<vmem>>, vector<1x128xf32>
    %110 = vector.broadcast %109 : vector<1x128xf32> to vector<288x128xf32>
    %111 = arith.mulf %108, %110 : vector<288x128xf32>
    %c0_87 = arith.constant 0 : index
    %c0_88 = arith.constant 0 : index
    %112 = vector.load %arg9[%c0_87, %c0_88] : memref<1x128xf32, #tpu.memory_space<vmem>>, vector<1x128xf32>
    %113 = vector.broadcast %112 : vector<1x128xf32> to vector<288x128xf32>
    %114 = arith.addf %111, %113 : vector<288x128xf32>
    %cst_89 = arith.constant 0.000000e+00 : f32
    %115 = vector.broadcast %cst_89 : f32 to vector<288x128xf32>
    %116 = arith.cmpf oge, %114, %115 : vector<288x128xf32>
    %cst_90 = arith.constant 5.000000e-02 : f32
    %117 = vector.broadcast %cst_90 : f32 to vector<288x128xf32>
    %118 = arith.mulf %117, %114 : vector<288x128xf32>
    %119 = arith.select %116, %114, %118 : vector<288x128xi1>, vector<288x128xf32>
    %c0_91 = arith.constant 0 : index
    %c0_92 = arith.constant 0 : index
    %120 = vector.load %arg14[%c0_91, %c0_92] : memref<288x128xf32, #tpu.memory_space<vmem>>, vector<288x128xf32>
    %121 = arith.addf %119, %120 : vector<288x128xf32>
    %c0_93 = arith.constant 0 : index
    %c0_94 = arith.constant 0 : index
    %c0_95 = arith.constant 0 : index
    %122 = vector.load %arg11[%c0_93, %c0_94, %c0_95] : memref<1x288x128xf32, #tpu.memory_space<vmem>>, vector<1x288x128xf32>
    %123 = vector.shape_cast %122 : vector<1x288x128xf32> to vector<288x128xf32>
    %124 = vector.shape_cast %121 : vector<288x128xf32> to vector<1x288x128xf32>
    tpu.vector_store %arg11[%c0_93, %c0_94, %c0_95], %124 {strides = array<i32>} : memref<1x288x128xf32, #tpu.memory_space<vmem>>, vector<1x288x128xf32>,
    return
  }
  func.func @transform_0(%arg0: i32) -> (i32, i32, i32) {
    %c0_i32 = arith.constant 0 : i32
    %c0_i32_0 = arith.constant 0 : i32
    %c0_i32_1 = arith.constant 0 : i32
    return %arg0, %c0_i32, %c0_i32_0 : i32, i32, i32
  }
  func.func @transform_1(%arg0: i32) -> (i32, i32) {
    %c0_i32 = arith.constant 0 : i32
    %c0_i32_0 = arith.constant 0 : i32
    %c0_i32_1 = arith.constant 0 : i32
    return %c0_i32, %c0_i32_0 : i32, i32
  }
  func.func @transform_2(%arg0: i32) -> (i32, i32) {
    %c0_i32 = arith.constant 0 : i32
    %c0_i32_0 = arith.constant 0 : i32
    %c0_i32_1 = arith.constant 0 : i32
    return %c0_i32, %c0_i32_0 : i32, i32
  }
  func.func @transform_3(%arg0: i32) -> (i32, i32) {
    %c0_i32 = arith.constant 0 : i32
    %c0_i32_0 = arith.constant 0 : i32
    %c0_i32_1 = arith.constant 0 : i32
    return %c0_i32, %c0_i32_0 : i32, i32
  }
  func.func @transform_4(%arg0: i32) -> (i32, i32) {
    %c0_i32 = arith.constant 0 : i32
    %c0_i32_0 = arith.constant 0 : i32
    %c0_i32_1 = arith.constant 0 : i32
    return %c0_i32, %c0_i32_0 : i32, i32
  }
  func.func @transform_5(%arg0: i32) -> (i32, i32) {
    %c0_i32 = arith.constant 0 : i32
    %c0_i32_0 = arith.constant 0 : i32
    %c0_i32_1 = arith.constant 0 : i32
    return %c0_i32, %c0_i32_0 : i32, i32
  }
  func.func @transform_6(%arg0: i32) -> (i32, i32) {
    %c0_i32 = arith.constant 0 : i32
    %c0_i32_0 = arith.constant 0 : i32
    %c0_i32_1 = arith.constant 0 : i32
    return %c0_i32, %c0_i32_0 : i32, i32
  }
  func.func @transform_7(%arg0: i32) -> (i32, i32) {
    %c0_i32 = arith.constant 0 : i32
    %c0_i32_0 = arith.constant 0 : i32
    %c0_i32_1 = arith.constant 0 : i32
    return %c0_i32, %c0_i32_0 : i32, i32
  }
  func.func @transform_8(%arg0: i32) -> (i32, i32) {
    %c0_i32 = arith.constant 0 : i32
    %c0_i32_0 = arith.constant 0 : i32
    %c0_i32_1 = arith.constant 0 : i32
    return %c0_i32, %c0_i32_0 : i32, i32
  }
  func.func @transform_9(%arg0: i32) -> (i32, i32) {
    %c0_i32 = arith.constant 0 : i32
    %c0_i32_0 = arith.constant 0 : i32
    %c0_i32_1 = arith.constant 0 : i32
    return %c0_i32, %c0_i32_0 : i32, i32
  }
  func.func @transform_10(%arg0: i32) -> (i32, i32, i32) {
    %c0_i32 = arith.constant 0 : i32
    %c0_i32_0 = arith.constant 0 : i32
    %c0_i32_1 = arith.constant 0 : i32
    return %arg0, %c0_i32, %c0_i32_0 : i32, i32, i32
  }
}

</mosaic_0001>

<llo_original>
// kernel: tpu_custom_call.1
$region0: #{tpu_custom_call.1}
  #allocation0 [shape = 'u32[]', space=smem, size = 0x4, offset = 0x4, fixed_abs, tag = 'smem constant byte address 0x4 - core index']
  #allocation1 [shape = 'u32[72,128]{1,0:T(1,128)}', space=vmem, size = 0x9000, scoped, tag = 'internal scratch']
  #allocation2 [shape = 'bf16[288,72]{1,0:T(8,128)(2,1)}', space=vmem, size = 0x12000, scoped, tag = 'scratch operand']
  #allocation3 [shape = 'bf16[352,128]{1,0:T(8,128)(2,1)}', space=vmem, size = 0x16000, scoped, tag = 'scratch operand']
  #allocation4 [shape = 'f32[288,128]{1,0:T(8,128)}', space=vmem, size = 0x24000, scoped, tag = 'scratch operand']
  %s0 = inlined_call_operand.vmem [shape: f32[2,328,8], index: 0, kind: input, shape index: {}]
  %s1 = inlined_call_operand.vmem [shape: bf16[72,256], index: 1, kind: input, shape index: {}]
  %s2 = inlined_call_operand.vmem [shape: f32[1,128], index: 2, kind: input, shape index: {}]
  %s3 = inlined_call_operand.vmem [shape: f32[1,128], index: 3, kind: input, shape index: {}]
  %s4 = inlined_call_operand.vmem [shape: f32[1,128], index: 4, kind: input, shape index: {}]
  %s5 = inlined_call_operand.vmem [shape: f32[1,128], index: 5, kind: input, shape index: {}]
  %s6 = inlined_call_operand.vmem [shape: bf16[1152,128], index: 6, kind: input, shape index: {}]
  %s7 = inlined_call_operand.vmem [shape: f32[1,128], index: 7, kind: input, shape index: {}]
  %s8 = inlined_call_operand.vmem [shape: f32[1,128], index: 8, kind: input, shape index: {}]
  %s9 = inlined_call_operand.vmem [shape: f32[288,1], index: 9, kind: input, shape index: {}]
  %s10 = inlined_call_operand.hbm [shape: f32[2,288,128], index: 10, kind: output, shape index: {}]
  %s11 = sld [smem:[#allocation0]]
  $region73: #{tpu_custom_call.1} parent=0
    _
  %s13 = ssub.s32 1, %s11
  %s14 = scalar_select 0, %s13, %s11
  $region1: #{tpu_custom_call.1} parent=0
    #allocation5 [shape = 'u8[294912]{0}', space=vmem, size = 0x48000, scoped, tag = 'output window, operand 0']
    #allocation6 [shape = 's32[2]{0}', space=sflag, size = 0x8, scoped, tag = 'scoped memory for tpu_custom_call.1']
    %15 = vsyncpa [#allocation6], 0
    %s16 = scalar_lea.sflag [#allocation6], 1
    %17 = vsyncpa %s16, 0
    loop: start=0, step=1, limit=4
    $region2: #{tpu_custom_call.1} parent=1 // loop_pre_header
      _
    $region3: #{tpu_custom_call.1} parent=1 // loop_header
      %s19 = sphi 0, %s23
      %p20 = scmp.ge.s32.totalorder %s19, 4
      %s29 = sphi 0, %s31
      %s32 = sphi 0, %s29
      %s33 = sphi 0, %s32
      %s49 = sphi 0, %s33
      %s53 = sphi 0, %s53
      %s55 = sphi 0, %s53
      %s56 = sphi 0, %s55
      %s70 = sphi 0, %s56
      %s74 = sphi 0, %s74
      %s76 = sphi 0, %s74
      %s77 = sphi 0, %s76
      %s91 = sphi 0, %s77
      %s95 = sphi 0, %s95
      %s97 = sphi 0, %s95
      %s98 = sphi 0, %s97
      %s112 = sphi 0, %s98
      %s116 = sphi 0, %s116
      %s118 = sphi 0, %s116
      %s119 = sphi 0, %s118
      %s133 = sphi 0, %s119
      %s137 = sphi 0, %s137
      %s139 = sphi 0, %s137
      %s140 = sphi 0, %s139
      %s154 = sphi 0, %s140
      %s158 = sphi 0, %s158
      %s160 = sphi 0, %s158
      %s161 = sphi 0, %s160
      %s175 = sphi 0, %s161
      %s179 = sphi 0, %s179
      %s181 = sphi 0, %s179
      %s182 = sphi 0, %s181
      %s196 = sphi 0, %s182
      %s200 = sphi 0, %s200
      %s202 = sphi 0, %s200
      %s203 = sphi 0, %s202
      %s217 = sphi 0, %s203
      %s221 = sphi 0, %s221
      %s223 = sphi 0, %s221
      %s224 = sphi 0, %s223
      %s238 = sphi 0, %s224
      %s244 = sphi 0, %s246
      %s247 = sphi 0, %s244
      %s248 = sphi 0, %s247
      %s264 = sphi 0, %s248
    $region4: #{tpu_custom_call.1} parent=1 // loop_header_branch
      %22 = sbr.rel (%p20) target = $region8
    $region5: #{tpu_custom_call.1} parent=1 // loop_body
      %s24 = ssub.s32 %s19, 1
      %s25 = ssub.s32 %s19, 2
      %s26 = sadd.s32 %s19, 1
      %s27 = ssub.s32 %s19, %s26
      %p28 = scmp.eq.s32.totalorder %s27, 0
      %s30 = sadd.s32 %s29, 1
      %s31 = scalar_select %p28, %s29, %s30
      %p34 = pneg %p28
      %p35 = scmp.eq.s32.totalorder %s19, 1
      %p36 = por %p34, %p35
      %p37 = scmp.ne.s32.totalorder %s29, %s32
      %p38 = scmp.eq.s32.totalorder %s19, 0
      %p39 = por %p37, %p38
      %p40 = scmp.ne.s32.totalorder %s29, %s32
      %p41 = scmp.eq.s32.totalorder %s24, 1
      %p42 = por %p40, %p41
      %p43 = scmp.ne.s32.totalorder %s32, %s33
      %p44 = scmp.eq.s32.totalorder %s24, 0
      %p45 = por %p43, %p44
      %p46 = scmp.ne.s32.totalorder %s32, %s33
      %p47 = scmp.eq.s32.totalorder %s25, 1
      %p48 = por %p46, %p47
      %p50 = scmp.ne.s32.totalorder %s33, %s49
      %p51 = scmp.eq.s32.totalorder %s25, 0
      %p52 = por %p50, %p51
      %s54 = sadd.s32 %s53, 1
      %p57 = scmp.eq.s32.totalorder %s19, 1
      %p58 = scmp.ne.s32.totalorder %s53, %s55
      %p59 = scmp.eq.s32.totalorder %s19, 0
      %p60 = por %p58, %p59
      %p61 = scmp.ne.s32.totalorder %s53, %s55
      %p62 = scmp.eq.s32.totalorder %s24, 1
      %p63 = por %p61, %p62
      %p64 = scmp.ne.s32.totalorder %s55, %s56
      %p65 = scmp.eq.s32.totalorder %s24, 0
      %p66 = por %p64, %p65
      %p67 = scmp.ne.s32.totalorder %s55, %s56
      %p68 = scmp.eq.s32.totalorder %s25, 1
      %p69 = por %p67, %p68
      %p71 = scmp.ne.s32.totalorder %s56, %s70
      %p72 = scmp.eq.s32.totalorder %s25, 0
      %p73 = por %p71, %p72
      %s75 = sadd.s32 %s74, 1
      %p78 = scmp.eq.s32.totalorder %s19, 1
      %p79 = scmp.ne.s32.totalorder %s74, %s76
      %p80 = scmp.eq.s32.totalorder %s19, 0
      %p81 = por %p79, %p80
      %p82 = scmp.ne.s32.totalorder %s74, %s76
      %p83 = scmp.eq.s32.totalorder %s24, 1
      %p84 = por %p82, %p83
      %p85 = scmp.ne.s32.totalorder %s76, %s77
      %p86 = scmp.eq.s32.totalorder %s24, 0
      %p87 = por %p85, %p86
      %p88 = scmp.ne.s32.totalorder %s76, %s77
      %p89 = scmp.eq.s32.totalorder %s25, 1
      %p90 = por %p88, %p89
      %p92 = scmp.ne.s32.totalorder %s77, %s91
      %p93 = scmp.eq.s32.totalorder %s25, 0
      %p94 = por %p92, %p93
      %s96 = sadd.s32 %s95, 1
      %p99 = scmp.eq.s32.totalorder %s19, 1
      %p100 = scmp.ne.s32.totalorder %s95, %s97
      %p101 = scmp.eq.s32.totalorder %s19, 0
      %p102 = por %p100, %p101
      %p103 = scmp.ne.s32.totalorder %s95, %s97
      %p104 = scmp.eq.s32.totalorder %s24, 1
      %p105 = por %p103, %p104
      %p106 = scmp.ne.s32.totalorder %s97, %s98
      %p107 = scmp.eq.s32.totalorder %s24, 0
      %p108 = por %p106, %p107
      %p109 = scmp.ne.s32.totalorder %s97, %s98
      %p110 = scmp.eq.s32.totalorder %s25, 1
      %p111 = por %p109, %p110
      %p113 = scmp.ne.s32.totalorder %s98, %s112
      %p114 = scmp.eq.s32.totalorder %s25, 0
      %p115 = por %p113, %p114
      %s117 = sadd.s32 %s116, 1
      %p120 = scmp.eq.s32.totalorder %s19, 1
      %p121 = scmp.ne.s32.totalorder %s116, %s118
      %p122 = scmp.eq.s32.totalorder %s19, 0
      %p123 = por %p121, %p122
      %p124 = scmp.ne.s32.totalorder %s116, %s118
      %p125 = scmp.eq.s32.totalorder %s24, 1
      %p126 = por %p124, %p125
      %p127 = scmp.ne.s32.totalorder %s118, %s119
      %p128 = scmp.eq.s32.totalorder %s24, 0
      %p129 = por %p127, %p128
      %p130 = scmp.ne.s32.totalorder %s118, %s119
      %p131 = scmp.eq.s32.totalorder %s25, 1
      %p132 = por %p130, %p131
      %p134 = scmp.ne.s32.totalorder %s119, %s133
      %p135 = scmp.eq.s32.totalorder %s25, 0
      %p136 = por %p134, %p135
      %s138 = sadd.s32 %s137, 1
      %p141 = scmp.eq.s32.totalorder %s19, 1
      %p142 = scmp.ne.s32.totalorder %s137, %s139
      %p143 = scmp.eq.s32.totalorder %s19, 0
      %p144 = por %p142, %p143
      %p145 = scmp.ne.s32.totalorder %s137, %s139
      %p146 = scmp.eq.s32.totalorder %s24, 1
      %p147 = por %p145, %p146
      %p148 = scmp.ne.s32.totalorder %s139, %s140
      %p149 = scmp.eq.s32.totalorder %s24, 0
      %p150 = por %p148, %p149
      %p151 = scmp.ne.s32.totalorder %s139, %s140
      %p152 = scmp.eq.s32.totalorder %s25, 1
      %p153 = por %p151, %p152
      %p155 = scmp.ne.s32.totalorder %s140, %s154
      %p156 = scmp.eq.s32.totalorder %s25, 0
      %p157 = por %p155, %p156
      %s159 = sadd.s32 %s158, 1
      %p162 = scmp.eq.s32.totalorder %s19, 1
      %p163 = scmp.ne.s32.totalorder %s158, %s160
      %p164 = scmp.eq.s32.totalorder %s19, 0
      %p165 = por %p163, %p164
      %p166 = scmp.ne.s32.totalorder %s158, %s160
      %p167 = scmp.eq.s32.totalorder %s24, 1
      %p168 = por %p166, %p167
      %p169 = scmp.ne.s32.totalorder %s160, %s161
      %p170 = scmp.eq.s32.totalorder %s24, 0
      %p171 = por %p169, %p170
      %p172 = scmp.ne.s32.totalorder %s160, %s161
      %p173 = scmp.eq.s32.totalorder %s25, 1
      %p174 = por %p172, %p173
      %p176 = scmp.ne.s32.totalorder %s161, %s175
      %p177 = scmp.eq.s32.totalorder %s25, 0
      %p178 = por %p176, %p177
      %s180 = sadd.s32 %s179, 1
      %p183 = scmp.eq.s32.totalorder %s19, 1
      %p184 = scmp.ne.s32.totalorder %s179, %s181
      %p185 = scmp.eq.s32.totalorder %s19, 0
      %p186 = por %p184, %p185
      %p187 = scmp.ne.s32.totalorder %s179, %s181
      %p188 = scmp.eq.s32.totalorder %s24, 1
      %p189 = por %p187, %p188
      %p190 = scmp.ne.s32.totalorder %s181, %s182
      %p191 = scmp.eq.s32.totalorder %s24, 0
      %p192 = por %p190, %p191
      %p193 = scmp.ne.s32.totalorder %s181, %s182
      %p194 = scmp.eq.s32.totalorder %s25, 1
      %p195 = por %p193, %p194
      %p197 = scmp.ne.s32.totalorder %s182, %s196
      %p198 = scmp.eq.s32.totalorder %s25, 0
      %p199 = por %p197, %p198
      %s201 = sadd.s32 %s200, 1
      %p204 = scmp.eq.s32.totalorder %s19, 1
      %p205 = scmp.ne.s32.totalorder %s200, %s202
      %p206 = scmp.eq.s32.totalorder %s19, 0
      %p207 = por %p205, %p206
      %p208 = scmp.ne.s32.totalorder %s200, %s202
      %p209 = scmp.eq.s32.totalorder %s24, 1
      %p210 = por %p208, %p209
      %p211 = scmp.ne.s32.totalorder %s202, %s203
      %p212 = scmp.eq.s32.totalorder %s24, 0
      %p213 = por %p211, %p212
      %p214 = scmp.ne.s32.totalorder %s202, %s203
      %p215 = scmp.eq.s32.totalorder %s25, 1
      %p216 = por %p214, %p215
      %p218 = scmp.ne.s32.totalorder %s203, %s217
      %p219 = scmp.eq.s32.totalorder %s25, 0
      %p220 = por %p218, %p219
      %s222 = sadd.s32 %s221, 1
      %p225 = scmp.eq.s32.totalorder %s19, 1
      %p226 = scmp.ne.s32.totalorder %s221, %s223
      %p227 = scmp.eq.s32.totalorder %s19, 0
      %p228 = por %p226, %p227
      %p229 = scmp.ne.s32.totalorder %s221, %s223
      %p230 = scmp.eq.s32.totalorder %s24, 1
      %p231 = por %p229, %p230
      %p232 = scmp.ne.s32.totalorder %s223, %s224
      %p233 = scmp.eq.s32.totalorder %s24, 0
      %p234 = por %p232, %p233
      %p235 = scmp.ne.s32.totalorder %s223, %s224
      %p236 = scmp.eq.s32.totalorder %s25, 1
      %p237 = por %p235, %p236
      %p239 = scmp.ne.s32.totalorder %s224, %s238
      %p240 = scmp.eq.s32.totalorder %s25, 0
      %p241 = por %p239, %p240
      %s242 = ssub.s32 %s19, %s26
      %p243 = scmp.eq.s32.totalorder %s242, 0
      %s245 = sadd.s32 %s244, 1
      %s246 = scalar_select %p243, %s244, %s245
      %p249 = pneg %p243
      %p250 = scmp.eq.s32.totalorder %s19, 1
      %p251 = por %p249, %p250
      %p252 = scmp.ne.s32.totalorder %s244, %s247
      %p253 = scmp.eq.s32.totalorder %s19, 0
      %p254 = por %p252, %p253
      %p255 = scmp.ne.s32.totalorder %s244, %s247
      %p256 = scmp.eq.s32.totalorder %s24, 1
      %p257 = por %p255, %p256
      %p258 = scmp.ne.s32.totalorder %s247, %s248
      %p259 = scmp.eq.s32.totalorder %s24, 0
      %p260 = por %p258, %p259
      %p261 = scmp.ne.s32.totalorder %s247, %s248
      %p262 = scmp.eq.s32.totalorder %s25, 1
      %p263 = por %p261, %p262
      %p265 = scmp.ne.s32.totalorder %s248, %s264
      %p266 = scmp.eq.s32.totalorder %s25, 0
      %p267 = por %p265, %p266
      %p268 = scmp.le.s32.totalorder 1, %s19
      %p269 = scmp.lt.s32.totalorder %s19, 3
      %p270 = pnand %p268, %p269
      %p271 = pneg %p270
      // Predicated region
      $region9: #{tpu_custom_call.1} parent=5 // pred_check
        _
      $region10: #{tpu_custom_call.1} parent=5 // pred_check_branch
        %273 = sbr.rel (%p270) target = $region12
      $region11: #{tpu_custom_call.1} parent=5 // pred_region
        %s274 = ssub.s32 %s19, 1
        // Predicated region
        $region13: #{tpu_custom_call.1} parent=11 // pred_check
          %p275 = pneg %p66
        $region14: #{tpu_custom_call.1} parent=11 // pred_check_branch
          %277 = sbr.rel (%p275) target = $region16
        $region15: #{tpu_custom_call.1} parent=11 // pred_region
          _
        $region16: #{tpu_custom_call.1} parent=11 // pred_fallthru
          _
        // Predicated region
        $region17: #{tpu_custom_call.1} parent=11 // pred_check
          %p278 = pneg %p87
        $region18: #{tpu_custom_call.1} parent=11 // pred_check_branch
          %280 = sbr.rel (%p278) target = $region20
        $region19: #{tpu_custom_call.1} parent=11 // pred_region
          _
        $region20: #{tpu_custom_call.1} parent=11 // pred_fallthru
          _
        // Predicated region
        $region21: #{tpu_custom_call.1} parent=11 // pred_check
          %p281 = pneg %p108
        $region22: #{tpu_custom_call.1} parent=11 // pred_check_branch
          %283 = sbr.rel (%p281) target = $region24
        $region23: #{tpu_custom_call.1} parent=11 // pred_region
          _
        $region24: #{tpu_custom_call.1} parent=11 // pred_fallthru
          _
        // Predicated region
        $region25: #{tpu_custom_call.1} parent=11 // pred_check
          %p284 = pneg %p129
        $region26: #{tpu_custom_call.1} parent=11 // pred_check_branch
          %286 = sbr.rel (%p284) target = $region28
        $region27: #{tpu_custom_call.1} parent=11 // pred_region
          _
        $region28: #{tpu_custom_call.1} parent=11 // pred_fallthru
          _
        // Predicated region
        $region29: #{tpu_custom_call.1} parent=11 // pred_check
          %p287 = pneg %p150
        $region30: #{tpu_custom_call.1} parent=11 // pred_check_branch
          %289 = sbr.rel (%p287) target = $region32
        $region31: #{tpu_custom_call.1} parent=11 // pred_region
          _
        $region32: #{tpu_custom_call.1} parent=11 // pred_fallthru
          _
        // Predicated region
        $region33: #{tpu_custom_call.1} parent=11 // pred_check
          %p290 = pneg %p171
        $region34: #{tpu_custom_call.1} parent=11 // pred_check_branch
          %292 = sbr.rel (%p290) target = $region36
        $region35: #{tpu_custom_call.1} parent=11 // pred_region
          _
        $region36: #{tpu_custom_call.1} parent=11 // pred_fallthru
          _
        // Predicated region
        $region37: #{tpu_custom_call.1} parent=11 // pred_check
          %p293 = pneg %p192
        $region38: #{tpu_custom_call.1} parent=11 // pred_check_branch
          %295 = sbr.rel (%p293) target = $region40
        $region39: #{tpu_custom_call.1} parent=11 // pred_region
          _
        $region40: #{tpu_custom_call.1} parent=11 // pred_fallthru
          _
        // Predicated region
        $region41: #{tpu_custom_call.1} parent=11 // pred_check
          %p296 = pneg %p213
        $region42: #{tpu_custom_call.1} parent=11 // pred_check_branch
          %298 = sbr.rel (%p296) target = $region44
        $region43: #{tpu_custom_call.1} parent=11 // pred_region
          _
        $region44: #{tpu_custom_call.1} parent=11 // pred_fallthru
          _
        // Predicated region
        $region45: #{tpu_custom_call.1} parent=11 // pred_check
          %p299 = pneg %p234
        $region46: #{tpu_custom_call.1} parent=11 // pred_check_branch
          %301 = sbr.rel (%p299) target = $region48
        $region47: #{tpu_custom_call.1} parent=11 // pred_region
          _
        $region48: #{tpu_custom_call.1} parent=11 // pred_fallthru
          _
      $region12: #{tpu_custom_call.1} parent=5 // pred_fallthru
        _
      %p302 = scmp.lt.s32.totalorder %s19, 2
      // Predicated region
      $region49: #{tpu_custom_call.1} parent=5 // pred_check
        %p303 = pneg %p302
      $region50: #{tpu_custom_call.1} parent=5 // pred_check_branch
        %305 = sbr.rel (%p303) target = $region52
      $region51: #{tpu_custom_call.1} parent=5 // pred_region
        // Predicated region
        $region53: #{tpu_custom_call.1} parent=51 // pred_check
          %p306 = pneg %p39
        $region54: #{tpu_custom_call.1} parent=51 // pred_check_branch
          %308 = sbr.rel (%p306) target = $region56
        $region55: #{tpu_custom_call.1} parent=51 // pred_region
          %p309 = scmp.lt.s32.totalorder %s19, 1
          %s310 = scalar_select %p309, %s19, 1
          %s311 = smul.addr %s310, 41
          %s312 = smul.addr %s311, 8
          %s313 = scalar_lea.vmem %s0, %s312
        $region56: #{tpu_custom_call.1} parent=51 // pred_fallthru
          _
      $region52: #{tpu_custom_call.1} parent=5 // pred_fallthru
        _
      %p314 = scmp.le.s32.totalorder 1, %s19
      %p315 = scmp.lt.s32.totalorder %s19, 3
      %p316 = pnand %p314, %p315
      %p317 = pneg %p316
      // Predicated region
      $region57: #{tpu_custom_call.1} parent=5 // pred_check
        _
      $region58: #{tpu_custom_call.1} parent=5 // pred_check_branch
        %319 = sbr.rel (%p316) target = $region60
      $region59: #{tpu_custom_call.1} parent=5 // pred_region
        %s320 = ssub.s32 %s19, 1
        %p321 = scmp.lt.s32.totalorder %s24, 1
        %s322 = scalar_select %p321, %s24, 1
        %s323 = smul.addr %s322, 41
        %s324 = smul.addr %s323, 8
        %s325 = scalar_lea.vmem %s0, %s324
        %p326 = pneg %p45
        %p327 = pneg %p42
        %p328 = pneg %p66
        %p329 = pneg %p63
        %p330 = pneg %p87
        %p331 = pneg %p84
        %p332 = pneg %p108
        %p333 = pneg %p105
        %p334 = pneg %p129
        %p335 = pneg %p126
        %p336 = pneg %p150
        %p337 = pneg %p147
        %p338 = pneg %p171
        %p339 = pneg %p168
        %p340 = pneg %p192
        %p341 = pneg %p189
        %p342 = pneg %p213
        %p343 = pneg %p210
        %p344 = pneg %p234
        %p345 = pneg %p231
        %p346 = pneg %p260
        %p347 = pneg %p257
        %s348 = sand.u32 %s247, 1
        %s349 = scalar_lea.sflag [#allocation6], %s348
        %s350 = sand.u32 %s247, 1
        %s351 = smul.addr %s350, 288
        %s352 = scalar_lea.vmem [#allocation5], %s351
        %p353 = scmp.lt.s32.totalorder %s24, 1
        %s354 = scalar_select %p353, %s24, 1
        %s355 = smul.addr %s354, 41
        %s356 = smul.addr %s355, 8
        %s357 = scalar_lea.vmem %s0, %s356
        %v359 = vld [vmem:[%s357] sm:$0xff]
        %v360 = vld [vmem:[%s357 + $0x8] sm:$0xff]
        %v361 = vld [vmem:[%s357 + $0x10] sm:$0xff]
        %v362 = vld [vmem:[%s357 + $0x18] sm:$0xff]
        %v363 = vld [vmem:[%s357 + $0x20] sm:$0xff]
        %v364 = vld [vmem:[%s357 + $0x28] sm:$0xff]
        %v365 = vld [vmem:[%s357 + $0x30] sm:$0xff]
        %v366 = vld [vmem:[%s357 + $0x38] sm:$0xff]
        %v367 = vld [vmem:[%s357 + $0x40] sm:$0xff]
        %v368 = vld [vmem:[%s357 + $0x48] sm:$0xff]
        %v369 = vld [vmem:[%s357 + $0x50] sm:$0xff]
        %v370 = vld [vmem:[%s357 + $0x58] sm:$0xff]
        %v371 = vld [vmem:[%s357 + $0x60] sm:$0xff]
        %v372 = vld [vmem:[%s357 + $0x68] sm:$0xff]
        %v373 = vld [vmem:[%s357 + $0x70] sm:$0xff]
        %v374 = vld [vmem:[%s357 + $0x78] sm:$0xff]
        %v375 = vld [vmem:[%s357 + $0x80] sm:$0xff]
        %v376 = vld [vmem:[%s357 + $0x88] sm:$0xff]
        %v377 = vld [vmem:[%s357 + $0x90] sm:$0xff]
        %v378 = vld [vmem:[%s357 + $0x98] sm:$0xff]
        %v379 = vld [vmem:[%s357 + $0xa0] sm:$0xff]
        %v380 = vld [vmem:[%s357 + $0xa8] sm:$0xff]
        %v381 = vld [vmem:[%s357 + $0xb0] sm:$0xff]
        %v382 = vld [vmem:[%s357 + $0xb8] sm:$0xff]
        %v383 = vld [vmem:[%s357 + $0xc0] sm:$0xff]
        %v384 = vld [vmem:[%s357 + $0xc8] sm:$0xff]
        %v385 = vld [vmem:[%s357 + $0xd0] sm:$0xff]
        %v386 = vld [vmem:[%s357 + $0xd8] sm:$0xff]
        %v387 = vld [vmem:[%s357 + $0xe0] sm:$0xff]
        %v388 = vld [vmem:[%s357 + $0xe8] sm:$0xff]
        %v389 = vld [vmem:[%s357 + $0xf0] sm:$0xff]
        %v390 = vld [vmem:[%s357 + $0xf8] sm:$0xff]
        %v391 = vld [vmem:[%s357 + $0x100] sm:$0xff]
        %v392 = vld [vmem:[%s357 + $0x108] sm:$0xff]
        %v393 = vld [vmem:[%s357 + $0x110] sm:$0xff]
        %v394 = vld [vmem:[%s357 + $0x118] sm:$0xff]
        %v395 = vpack.c.bf16 %v359, %v359
        %v396 = vpack.c.bf16 %v360, %v360
        %v397 = vpack.c.bf16 %v361, %v361
        %v398 = vpack.c.bf16 %v362, %v362
        %v399 = vpack.c.bf16 %v363, %v363
        %v400 = vpack.c.bf16 %v364, %v364
        %v401 = vpack.c.bf16 %v365, %v365
        %v402 = vpack.c.bf16 %v366, %v366
        %v403 = vpack.c.bf16 %v367, %v367
        %v404 = vpack.c.bf16 %v368, %v368
        %v405 = vpack.c.bf16 %v369, %v369
        %v406 = vpack.c.bf16 %v370, %v370
        %v407 = vpack.c.bf16 %v371, %v371
        %v408 = vpack.c.bf16 %v372, %v372
        %v409 = vpack.c.bf16 %v373, %v373
        %v410 = vpack.c.bf16 %v374, %v374
        %v411 = vpack.c.bf16 %v375, %v375
        %v412 = vpack.c.bf16 %v376, %v376
        %v413 = vpack.c.bf16 %v377, %v377
        %v414 = vpack.c.bf16 %v378, %v378
        %v415 = vpack.c.bf16 %v379, %v379
        %v416 = vpack.c.bf16 %v380, %v380
        %v417 = vpack.c.bf16 %v381, %v381
        %v418 = vpack.c.bf16 %v382, %v382
        %v419 = vpack.c.bf16 %v383, %v383
        %v420 = vpack.c.bf16 %v384, %v384
        %v421 = vpack.c.bf16 %v385, %v385
        %v422 = vpack.c.bf16 %v386, %v386
        %v423 = vpack.c.bf16 %v387, %v387
        %v424 = vpack.c.bf16 %v388, %v388
        %v425 = vpack.c.bf16 %v389, %v389
        %v426 = vpack.c.bf16 %v390, %v390
        %v427 = vpack.c.bf16 %v391, %v391
        %v428 = vpack.c.bf16 %v392, %v392
        %v429 = vpack.c.bf16 %v393, %v393
        %v430 = vpack.c.bf16 %v394, %v394
        %vm431 = vcmask 60416
        %432 = vst.msk [vmem:[#allocation2] sm:$0xf] %vm431, %v395
        %433 = vst.msk [vmem:[#allocation2 + $0x4] sm:$0xf] %vm431, %v396
        %434 = vst.msk [vmem:[#allocation2 + $0x8] sm:$0xf] %vm431, %v397
        %435 = vst.msk [vmem:[#allocation2 + $0xc] sm:$0xf] %vm431, %v398
        %436 = vst.msk [vmem:[#allocation2 + $0x10] sm:$0xf] %vm431, %v399
        %437 = vst.msk [vmem:[#allocation2 + $0x14] sm:$0xf] %vm431, %v400
        %438 = vst.msk [vmem:[#allocation2 + $0x18] sm:$0xf] %vm431, %v401
        %439 = vst.msk [vmem:[#allocation2 + $0x1c] sm:$0xf] %vm431, %v402
        %440 = vst.msk [vmem:[#allocation2 + $0x20] sm:$0xf] %vm431, %v403
        %441 = vst.msk [vmem:[#allocation2 + $0x24] sm:$0xf] %vm431, %v404
        %442 = vst.msk [vmem:[#allocation2 + $0x28] sm:$0xf] %vm431, %v405
        %443 = vst.msk [vmem:[#allocation2 + $0x2c] sm:$0xf] %vm431, %v406
        %444 = vst.msk [vmem:[#allocation2 + $0x30] sm:$0xf] %vm431, %v407
        %445 = vst.msk [vmem:[#allocation2 + $0x34] sm:$0xf] %vm431, %v408
        %446 = vst.msk [vmem:[#allocation2 + $0x38] sm:$0xf] %vm431, %v409
        %447 = vst.msk [vmem:[#allocation2 + $0x3c] sm:$0xf] %vm431, %v410
        %448 = vst.msk [vmem:[#allocation2 + $0x40] sm:$0xf] %vm431, %v411
        %449 = vst.msk [vmem:[#allocation2 + $0x44] sm:$0xf] %vm431, %v412
        %450 = vst.msk [vmem:[#allocation2 + $0x48] sm:$0xf] %vm431, %v413
        %451 = vst.msk [vmem:[#allocation2 + $0x4c] sm:$0xf] %vm431, %v414
        %452 = vst.msk [vmem:[#allocation2 + $0x50] sm:$0xf] %vm431, %v415
        %453 = vst.msk [vmem:[#allocation2 + $0x54] sm:$0xf] %vm431, %v416
        %454 = vst.msk [vmem:[#allocation2 + $0x58] sm:$0xf] %vm431, %v417
        %455 = vst.msk [vmem:[#allocation2 + $0x5c] sm:$0xf] %vm431, %v418
        %456 = vst.msk [vmem:[#allocation2 + $0x60] sm:$0xf] %vm431, %v419
        %457 = vst.msk [vmem:[#allocation2 + $0x64] sm:$0xf] %vm431, %v420
        %458 = vst.msk [vmem:[#allocation2 + $0x68] sm:$0xf] %vm431, %v421
        %459 = vst.msk [vmem:[#allocation2 + $0x6c] sm:$0xf] %vm431, %v422
        %460 = vst.msk [vmem:[#allocation2 + $0x70] sm:$0xf] %vm431, %v423
        %461 = vst.msk [vmem:[#allocation2 + $0x74] sm:$0xf] %vm431, %v424
        %462 = vst.msk [vmem:[#allocation2 + $0x78] sm:$0xf] %vm431, %v425
        %463 = vst.msk [vmem:[#allocation2 + $0x7c] sm:$0xf] %vm431, %v426
        %464 = vst.msk [vmem:[#allocation2 + $0x80] sm:$0xf] %vm431, %v427
        %465 = vst.msk [vmem:[#allocation2 + $0x84] sm:$0xf] %vm431, %v428
        %466 = vst.msk [vmem:[#allocation2 + $0x88] sm:$0xf] %vm431, %v429
        %467 = vst.msk [vmem:[#allocation2 + $0x8c] sm:$0xf] %vm431, %v430
        %v468 = vld [vmem:[%s357 + $0x1] sm:$0xff]
        %v469 = vld [vmem:[%s357 + $0x9] sm:$0xff]
        %v470 = vld [vmem:[%s357 + $0x11] sm:$0xff]
        %v471 = vld [vmem:[%s357 + $0x19] sm:$0xff]
        %v472 = vld [vmem:[%s357 + $0x21] sm:$0xff]
        %v473 = vld [vmem:[%s357 + $0x29] sm:$0xff]
        %v474 = vld [vmem:[%s357 + $0x31] sm:$0xff]
        %v475 = vld [vmem:[%s357 + $0x39] sm:$0xff]
        %v476 = vld [vmem:[%s357 + $0x41] sm:$0xff]
        %v477 = vld [vmem:[%s357 + $0x49] sm:$0xff]
        %v478 = vld [vmem:[%s357 + $0x51] sm:$0xff]
        %v479 = vld [vmem:[%s357 + $0x59] sm:$0xff]
        %v480 = vld [vmem:[%s357 + $0x61] sm:$0xff]
        %v481 = vld [vmem:[%s357 + $0x69] sm:$0xff]
        %v482 = vld [vmem:[%s357 + $0x71] sm:$0xff]
        %v483 = vld [vmem:[%s357 + $0x79] sm:$0xff]
        %v484 = vld [vmem:[%s357 + $0x81] sm:$0xff]
        %v485 = vld [vmem:[%s357 + $0x89] sm:$0xff]
        %v486 = vld [vmem:[%s357 + $0x91] sm:$0xff]
        %v487 = vld [vmem:[%s357 + $0x99] sm:$0xff]
        %v488 = vld [vmem:[%s357 + $0xa1] sm:$0xff]
        %v489 = vld [vmem:[%s357 + $0xa9] sm:$0xff]
        %v490 = vld [vmem:[%s357 + $0xb1] sm:$0xff]
        %v491 = vld [vmem:[%s357 + $0xb9] sm:$0xff]
        %v492 = vld [vmem:[%s357 + $0xc1] sm:$0xff]
        %v493 = vld [vmem:[%s357 + $0xc9] sm:$0xff]
        %v494 = vld [vmem:[%s357 + $0xd1] sm:$0xff]
        %v495 = vld [vmem:[%s357 + $0xd9] sm:$0xff]
        %v496 = vld [vmem:[%s357 + $0xe1] sm:$0xff]
        %v497 = vld [vmem:[%s357 + $0xe9] sm:$0xff]
        %v498 = vld [vmem:[%s357 + $0xf1] sm:$0xff]
        %v499 = vld [vmem:[%s357 + $0xf9] sm:$0xff]
        %v500 = vld [vmem:[%s357 + $0x101] sm:$0xff]
        %v501 = vld [vmem:[%s357 + $0x109] sm:$0xff]
        %v502 = vld [vmem:[%s357 + $0x111] sm:$0xff]
        %v503 = vld [vmem:[%s357 + $0x119] sm:$0xff]
        %v504 = vpack.c.bf16 %v468, %v468
        %v505 = vpack.c.bf16 %v469, %v469
        %v506 = vpack.c.bf16 %v470, %v470
        %v507 = vpack.c.bf16 %v471, %v471
        %v508 = vpack.c.bf16 %v472, %v472
        %v509 = vpack.c.bf16 %v473, %v473
        %v510 = vpack.c.bf16 %v474, %v474
        %v511 = vpack.c.bf16 %v475, %v475
        %v512 = vpack.c.bf16 %v476, %v476
        %v513 = vpack.c.bf16 %v477, %v477
        %v514 = vpack.c.bf16 %v478, %v478
        %v515 = vpack.c.bf16 %v479, %v479
        %v516 = vpack.c.bf16 %v480, %v480
        %v517 = vpack.c.bf16 %v481, %v481
        %v518 = vpack.c.bf16 %v482, %v482
        %v519 = vpack.c.bf16 %v483, %v483
        %v520 = vpack.c.bf16 %v484, %v484
        %v521 = vpack.c.bf16 %v485, %v485
        %v522 = vpack.c.bf16 %v486, %v486
        %v523 = vpack.c.bf16 %v487, %v487
        %v524 = vpack.c.bf16 %v488, %v488
        %v525 = vpack.c.bf16 %v489, %v489
        %v526 = vpack.c.bf16 %v490, %v490
        %v527 = vpack.c.bf16 %v491, %v491
        %v528 = vpack.c.bf16 %v492, %v492
        %v529 = vpack.c.bf16 %v493, %v493
        %v530 = vpack.c.bf16 %v494, %v494
        %v531 = vpack.c.bf16 %v495, %v495
        %v532 = vpack.c.bf16 %v496, %v496
        %v533 = vpack.c.bf16 %v497, %v497
        %v534 = vpack.c.bf16 %v498, %v498
        %v535 = vpack.c.bf16 %v499, %v499
        %v536 = vpack.c.bf16 %v500, %v500
        %v537 = vpack.c.bf16 %v501, %v501
        %v538 = vpack.c.bf16 %v502, %v502
        %v539 = vpack.c.bf16 %v503, %v503
        %576 = vrot.lane.b32.xlu0 %v504, 8
        %v577 = vpop.permute.xlu0 %576
        %578 = vrot.lane.b32.xlu0 %v505, 8
        %v579 = vpop.permute.xlu0 %578
        %580 = vrot.lane.b32.xlu0 %v506, 8
        %v581 = vpop.permute.xlu0 %580
        %582 = vrot.lane.b32.xlu0 %v507, 8
        %v583 = vpop.permute.xlu0 %582
        %584 = vrot.lane.b32.xlu0 %v508, 8
        %v585 = vpop.permute.xlu0 %584
        %586 = vrot.lane.b32.xlu0 %v509, 8
        %v587 = vpop.permute.xlu0 %586
        %588 = vrot.lane.b32.xlu0 %v510, 8
        %v589 = vpop.permute.xlu0 %588
        %590 = vrot.lane.b32.xlu0 %v511, 8
        %v591 = vpop.permute.xlu0 %590
        %592 = vrot.lane.b32.xlu0 %v512, 8
        %v593 = vpop.permute.xlu0 %592
        %594 = vrot.lane.b32.xlu0 %v513, 8
        %v595 = vpop.permute.xlu0 %594
        %596 = vrot.lane.b32.xlu0 %v514, 8
        %v597 = vpop.permute.xlu0 %596
        %598 = vrot.lane.b32.xlu0 %v515, 8
        %v599 = vpop.permute.xlu0 %598
        %600 = vrot.lane.b32.xlu0 %v516, 8
        %v601 = vpop.permute.xlu0 %600
        %602 = vrot.lane.b32.xlu0 %v517, 8
        %v603 = vpop.permute.xlu0 %602
        %604 = vrot.lane.b32.xlu0 %v518, 8
        %v605 = vpop.permute.xlu0 %604
        %606 = vrot.lane.b32.xlu0 %v519, 8
        %v607 = vpop.permute.xlu0 %606
        %608 = vrot.lane.b32.xlu0 %v520, 8
        %v609 = vpop.permute.xlu0 %608
        %610 = vrot.lane.b32.xlu0 %v521, 8
        %v611 = vpop.permute.xlu0 %610
        %612 = vrot.lane.b32.xlu0 %v522, 8
        %v613 = vpop.permute.xlu0 %612
        %614 = vrot.lane.b32.xlu0 %v523, 8
        %v615 = vpop.permute.xlu0 %614
        %616 = vrot.lane.b32.xlu0 %v524, 8
        %v617 = vpop.permute.xlu0 %616
        %618 = vrot.lane.b32.xlu0 %v525, 8
        %v619 = vpop.permute.xlu0 %618
        %620 = vrot.lane.b32.xlu0 %v526, 8
        %v621 = vpop.permute.xlu0 %620
        %622 = vrot.lane.b32.xlu0 %v527, 8
        %v623 = vpop.permute.xlu0 %622
        %624 = vrot.lane.b32.xlu0 %v528, 8
        %v625 = vpop.permute.xlu0 %624
        %626 = vrot.lane.b32.xlu0 %v529, 8
        %v627 = vpop.permute.xlu0 %626
        %628 = vrot.lane.b32.xlu0 %v530, 8
        %v629 = vpop.permute.xlu0 %628
        %630 = vrot.lane.b32.xlu0 %v531, 8
        %v631 = vpop.permute.xlu0 %630
        %632 = vrot.lane.b32.xlu0 %v532, 8
        %v633 = vpop.permute.xlu0 %632
        %634 = vrot.lane.b32.xlu0 %v533, 8
        %v635 = vpop.permute.xlu0 %634
        %636 = vrot.lane.b32.xlu0 %v534, 8
        %v637 = vpop.permute.xlu0 %636
        %638 = vrot.lane.b32.xlu0 %v535, 8
        %v639 = vpop.permute.xlu0 %638
        %640 = vrot.lane.b32.xlu0 %v536, 8
        %v641 = vpop.permute.xlu0 %640
        %642 = vrot.lane.b32.xlu0 %v537, 8
        %v643 = vpop.permute.xlu0 %642
        %644 = vrot.lane.b32.xlu0 %v538, 8
        %v645 = vpop.permute.xlu0 %644
        %646 = vrot.lane.b32.xlu0 %v539, 8
        %v647 = vpop.permute.xlu0 %646
        %vm684 = vcmask 126016
        %685 = vst.msk [vmem:[#allocation2] sm:$0xf] %vm684, %v577
        %686 = vst.msk [vmem:[#allocation2 + $0x4] sm:$0xf] %vm684, %v579
        %687 = vst.msk [vmem:[#allocation2 + $0x8] sm:$0xf] %vm684, %v581
        %688 = vst.msk [vmem:[#allocation2 + $0xc] sm:$0xf] %vm684, %v583
        %689 = vst.msk [vmem:[#allocation2 + $0x10] sm:$0xf] %vm684, %v585
        %690 = vst.msk [vmem:[#allocation2 + $0x14] sm:$0xf] %vm684, %v587
        %691 = vst.msk [vmem:[#allocation2 + $0x18] sm:$0xf] %vm684, %v589
        %692 = vst.msk [vmem:[#allocation2 + $0x1c] sm:$0xf] %vm684, %v591
        %693 = vst.msk [vmem:[#allocation2 + $0x20] sm:$0xf] %vm684, %v593
        %694 = vst.msk [vmem:[#allocation2 + $0x24] sm:$0xf] %vm684, %v595
        %695 = vst.msk [vmem:[#allocation2 + $0x28] sm:$0xf] %vm684, %v597
        %696 = vst.msk [vmem:[#allocation2 + $0x2c] sm:$0xf] %vm684, %v599
        %697 = vst.msk [vmem:[#allocation2 + $0x30] sm:$0xf] %vm684, %v601
        %698 = vst.msk [vmem:[#allocation2 + $0x34] sm:$0xf] %vm684, %v603
        %699 = vst.msk [vmem:[#allocation2 + $0x38] sm:$0xf] %vm684, %v605
        %700 = vst.msk [vmem:[#allocation2 + $0x3c] sm:$0xf] %vm684, %v607
        %701 = vst.msk [vmem:[#allocation2 + $0x40] sm:$0xf] %vm684, %v609
        %702 = vst.msk [vmem:[#allocation2 + $0x44] sm:$0xf] %vm684, %v611
        %703 = vst.msk [vmem:[#allocation2 + $0x48] sm:$0xf] %vm684, %v613
        %704 = vst.msk [vmem:[#allocation2 + $0x4c] sm:$0xf] %vm684, %v615
        %705 = vst.msk [vmem:[#allocation2 + $0x50] sm:$0xf] %vm684, %v617
        %706 = vst.msk [vmem:[#allocation2 + $0x54] sm:$0xf] %vm684, %v619
        %707 = vst.msk [vmem:[#allocation2 + $0x58] sm:$0xf] %vm684, %v621
        %708 = vst.msk [vmem:[#allocation2 + $0x5c] sm:$0xf] %vm684, %v623
        %709 = vst.msk [vmem:[#allocation2 + $0x60] sm:$0xf] %vm684, %v625
        %710 = vst.msk [vmem:[#allocation2 + $0x64] sm:$0xf] %vm684, %v627
        %711 = vst.msk [vmem:[#allocation2 + $0x68] sm:$0xf] %vm684, %v629
        %712 = vst.msk [vmem:[#allocation2 + $0x6c] sm:$0xf] %vm684, %v631
        %713 = vst.msk [vmem:[#allocation2 + $0x70] sm:$0xf] %vm684, %v633
        %714 = vst.msk [vmem:[#allocation2 + $0x74] sm:$0xf] %vm684, %v635
        %715 = vst.msk [vmem:[#allocation2 + $0x78] sm:$0xf] %vm684, %v637
        %716 = vst.msk [vmem:[#allocation2 + $0x7c] sm:$0xf] %vm684, %v639
        %717 = vst.msk [vmem:[#allocation2 + $0x80] sm:$0xf] %vm684, %v641
        %718 = vst.msk [vmem:[#allocation2 + $0x84] sm:$0xf] %vm684, %v643
        %719 = vst.msk [vmem:[#allocation2 + $0x88] sm:$0xf] %vm684, %v645
        %720 = vst.msk [vmem:[#allocation2 + $0x8c] sm:$0xf] %vm684, %v647
        %v721 = vld [vmem:[%s357 + $0x2] sm:$0xff]
        %v722 = vld [vmem:[%s357 + $0xa] sm:$0xff]
        %v723 = vld [vmem:[%s357 + $0x12] sm:$0xff]
        %v724 = vld [vmem:[%s357 + $0x1a] sm:$0xff]
        %v725 = vld [vmem:[%s357 + $0x22] sm:$0xff]
        %v726 = vld [vmem:[%s357 + $0x2a] sm:$0xff]
        %v727 = vld [vmem:[%s357 + $0x32] sm:$0xff]
        %v728 = vld [vmem:[%s357 + $0x3a] sm:$0xff]
        %v729 = vld [vmem:[%s357 + $0x42] sm:$0xff]
        %v730 = vld [vmem:[%s357 + $0x4a] sm:$0xff]
        %v731 = vld [vmem:[%s357 + $0x52] sm:$0xff]
        %v732 = vld [vmem:[%s357 + $0x5a] sm:$0xff]
        %v733 = vld [vmem:[%s357 + $0x62] sm:$0xff]
        %v734 = vld [vmem:[%s357 + $0x6a] sm:$0xff]
        %v735 = vld [vmem:[%s357 + $0x72] sm:$0xff]
        %v736 = vld [vmem:[%s357 + $0x7a] sm:$0xff]
        %v737 = vld [vmem:[%s357 + $0x82] sm:$0xff]
        %v738 = vld [vmem:[%s357 + $0x8a] sm:$0xff]
        %v739 = vld [vmem:[%s357 + $0x92] sm:$0xff]
        %v740 = vld [vmem:[%s357 + $0x9a] sm:$0xff]
        %v741 = vld [vmem:[%s357 + $0xa2] sm:$0xff]
        %v742 = vld [vmem:[%s357 + $0xaa] sm:$0xff]
        %v743 = vld [vmem:[%s357 + $0xb2] sm:$0xff]
        %v744 = vld [vmem:[%s357 + $0xba] sm:$0xff]
        %v745 = vld [vmem:[%s357 + $0xc2] sm:$0xff]
        %v746 = vld [vmem:[%s357 + $0xca] sm:$0xff]
        %v747 = vld [vmem:[%s357 + $0xd2] sm:$0xff]
        %v748 = vld [vmem:[%s357 + $0xda] sm:$0xff]
        %v749 = vld [vmem:[%s357 + $0xe2] sm:$0xff]
        %v750 = vld [vmem:[%s357 + $0xea] sm:$0xff]
        %v751 = vld [vmem:[%s357 + $0xf2] sm:$0xff]
        %v752 = vld [vmem:[%s357 + $0xfa] sm:$0xff]
        %v753 = vld [vmem:[%s357 + $0x102] sm:$0xff]
        %v754 = vld [vmem:[%s357 + $0x10a] sm:$0xff]
        %v755 = vld [vmem:[%s357 + $0x112] sm:$0xff]
        %v756 = vld [vmem:[%s357 + $0x11a] sm:$0xff]
        %v757 = vpack.c.bf16 %v721, %v721
        %v758 = vpack.c.bf16 %v722, %v722
        %v759 = vpack.c.bf16 %v723, %v723
        %v760 = vpack.c.bf16 %v724, %v724
        %v761 = vpack.c.bf16 %v725, %v725
        %v762 = vpack.c.bf16 %v726, %v726
        %v763 = vpack.c.bf16 %v727, %v727
        %v764 = vpack.c.bf16 %v728, %v728
        %v765 = vpack.c.bf16 %v729, %v729
        %v766 = vpack.c.bf16 %v730, %v730
        %v767 = vpack.c.bf16 %v731, %v731
        %v768 = vpack.c.bf16 %v732, %v732
        %v769 = vpack.c.bf16 %v733, %v733
        %v770 = vpack.c.bf16 %v734, %v734
        %v771 = vpack.c.bf16 %v735, %v735
        %v772 = vpack.c.bf16 %v736, %v736
        %v773 = vpack.c.bf16 %v737, %v737
        %v774 = vpack.c.bf16 %v738, %v738
        %v775 = vpack.c.bf16 %v739, %v739
        %v776 = vpack.c.bf16 %v740, %v740
        %v777 = vpack.c.bf16 %v741, %v741
        %v778 = vpack.c.bf16 %v742, %v742
        %v779 = vpack.c.bf16 %v743, %v743
        %v780 = vpack.c.bf16 %v744, %v744
        %v781 = vpack.c.bf16 %v745, %v745
        %v782 = vpack.c.bf16 %v746, %v746
        %v783 = vpack.c.bf16 %v747, %v747
        %v784 = vpack.c.bf16 %v748, %v748
        %v785 = vpack.c.bf16 %v749, %v749
        %v786 = vpack.c.bf16 %v750, %v750
        %v787 = vpack.c.bf16 %v751, %v751
        %v788 = vpack.c.bf16 %v752, %v752
        %v789 = vpack.c.bf16 %v753, %v753
        %v790 = vpack.c.bf16 %v754, %v754
        %v791 = vpack.c.bf16 %v755, %v755
        %v792 = vpack.c.bf16 %v756, %v756
        %829 = vrot.lane.b32.xlu0 %v757, 16
        %v830 = vpop.permute.xlu0 %829
        %831 = vrot.lane.b32.xlu0 %v758, 16
        %v832 = vpop.permute.xlu0 %831
        %833 = vrot.lane.b32.xlu0 %v759, 16
        %v834 = vpop.permute.xlu0 %833
        %835 = vrot.lane.b32.xlu0 %v760, 16
        %v836 = vpop.permute.xlu0 %835
        %837 = vrot.lane.b32.xlu0 %v761, 16
        %v838 = vpop.permute.xlu0 %837
        %839 = vrot.lane.b32.xlu0 %v762, 16
        %v840 = vpop.permute.xlu0 %839
        %841 = vrot.lane.b32.xlu0 %v763, 16
        %v842 = vpop.permute.xlu0 %841
        %843 = vrot.lane.b32.xlu0 %v764, 16
        %v844 = vpop.permute.xlu0 %843
        %845 = vrot.lane.b32.xlu0 %v765, 16
        %v846 = vpop.permute.xlu0 %845
        %847 = vrot.lane.b32.xlu0 %v766, 16
        %v848 = vpop.permute.xlu0 %847
        %849 = vrot.lane.b32.xlu0 %v767, 16
        %v850 = vpop.permute.xlu0 %849
        %851 = vrot.lane.b32.xlu0 %v768, 16
        %v852 = vpop.permute.xlu0 %851
        %853 = vrot.lane.b32.xlu0 %v769, 16
        %v854 = vpop.permute.xlu0 %853
        %855 = vrot.lane.b32.xlu0 %v770, 16
        %v856 = vpop.permute.xlu0 %855
        %857 = vrot.lane.b32.xlu0 %v771, 16
        %v858 = vpop.permute.xlu0 %857
        %859 = vrot.lane.b32.xlu0 %v772, 16
        %v860 = vpop.permute.xlu0 %859
        %861 = vrot.lane.b32.xlu0 %v773, 16
        %v862 = vpop.permute.xlu0 %861
        %863 = vrot.lane.b32.xlu0 %v774, 16
        %v864 = vpop.permute.xlu0 %863
        %865 = vrot.lane.b32.xlu0 %v775, 16
        %v866 = vpop.permute.xlu0 %865
        %867 = vrot.lane.b32.xlu0 %v776, 16
        %v868 = vpop.permute.xlu0 %867
        %869 = vrot.lane.b32.xlu0 %v777, 16
        %v870 = vpop.permute.xlu0 %869
        %871 = vrot.lane.b32.xlu0 %v778, 16
        %v872 = vpop.permute.xlu0 %871
        %873 = vrot.lane.b32.xlu0 %v779, 16
        %v874 = vpop.permute.xlu0 %873
        %875 = vrot.lane.b32.xlu0 %v780, 16
        %v876 = vpop.permute.xlu0 %875
        %877 = vrot.lane.b32.xlu0 %v781, 16
        %v878 = vpop.permute.xlu0 %877
        %879 = vrot.lane.b32.xlu0 %v782, 16
        %v880 = vpop.permute.xlu0 %879
        %881 = vrot.lane.b32.xlu0 %v783, 16
        %v882 = vpop.permute.xlu0 %881
        %883 = vrot.lane.b32.xlu0 %v784, 16
        %v884 = vpop.permute.xlu0 %883
        %885 = vrot.lane.b32.xlu0 %v785, 16
        %v886 = vpop.permute.xlu0 %885
        %887 = vrot.lane.b32.xlu0 %v786, 16
        %v888 = vpop.permute.xlu0 %887
        %889 = vrot.lane.b32.xlu0 %v787, 16
        %v890 = vpop.permute.xlu0 %889
        %891 = vrot.lane.b32.xlu0 %v788, 16
        %v892 = vpop.permute.xlu0 %891
        %893 = vrot.lane.b32.xlu0 %v789, 16
        %v894 = vpop.permute.xlu0 %893
        %895 = vrot.lane.b32.xlu0 %v790, 16
        %v896 = vpop.permute.xlu0 %895
        %897 = vrot.lane.b32.xlu0 %v791, 16
        %v898 = vpop.permute.xlu0 %897
        %899 = vrot.lane.b32.xlu0 %v792, 16
        %v900 = vpop.permute.xlu0 %899
        %vm937 = vcmask 191616
        %938 = vst.msk [vmem:[#allocation2] sm:$0xf] %vm937, %v830
        %939 = vst.msk [vmem:[#allocation2 + $0x4] sm:$0xf] %vm937, %v832
        %940 = vst.msk [vmem:[#allocation2 + $0x8] sm:$0xf] %vm937, %v834
        %941 = vst.msk [vmem:[#allocation2 + $0xc] sm:$0xf] %vm937, %v836
        %942 = vst.msk [vmem:[#allocation2 + $0x10] sm:$0xf] %vm937, %v838
        %943 = vst.msk [vmem:[#allocation2 + $0x14] sm:$0xf] %vm937, %v840
        %944 = vst.msk [vmem:[#allocation2 + $0x18] sm:$0xf] %vm937, %v842
        %945 = vst.msk [vmem:[#allocation2 + $0x1c] sm:$0xf] %vm937, %v844
        %946 = vst.msk [vmem:[#allocation2 + $0x20] sm:$0xf] %vm937, %v846
        %947 = vst.msk [vmem:[#allocation2 + $0x24] sm:$0xf] %vm937, %v848
        %948 = vst.msk [vmem:[#allocation2 + $0x28] sm:$0xf] %vm937, %v850
        %949 = vst.msk [vmem:[#allocation2 + $0x2c] sm:$0xf] %vm937, %v852
        %950 = vst.msk [vmem:[#allocation2 + $0x30] sm:$0xf] %vm937, %v854
        %951 = vst.msk [vmem:[#allocation2 + $0x34] sm:$0xf] %vm937, %v856
        %952 = vst.msk [vmem:[#allocation2 + $0x38] sm:$0xf] %vm937, %v858
        %953 = vst.msk [vmem:[#allocation2 + $0x3c] sm:$0xf] %vm937, %v860
        %954 = vst.msk [vmem:[#allocation2 + $0x40] sm:$0xf] %vm937, %v862
        %955 = vst.msk [vmem:[#allocation2 + $0x44] sm:$0xf] %vm937, %v864
        %956 = vst.msk [vmem:[#allocation2 + $0x48] sm:$0xf] %vm937, %v866
        %957 = vst.msk [vmem:[#allocation2 + $0x4c] sm:$0xf] %vm937, %v868
        %958 = vst.msk [vmem:[#allocation2 + $0x50] sm:$0xf] %vm937, %v870
        %959 = vst.msk [vmem:[#allocation2 + $0x54] sm:$0xf] %vm937, %v872
        %960 = vst.msk [vmem:[#allocation2 + $0x58] sm:$0xf] %vm937, %v874
        %961 = vst.msk [vmem:[#allocation2 + $0x5c] sm:$0xf] %vm937, %v876
        %962 = vst.msk [vmem:[#allocation2 + $0x60] sm:$0xf] %vm937, %v878
        %963 = vst.msk [vmem:[#allocation2 + $0x64] sm:$0xf] %vm937, %v880
        %964 = vst.msk [vmem:[#allocation2 + $0x68] sm:$0xf] %vm937, %v882
        %965 = vst.msk [vmem:[#allocation2 + $0x6c] sm:$0xf] %vm937, %v884
        %966 = vst.msk [vmem:[#allocation2 + $0x70] sm:$0xf] %vm937, %v886
        %967 = vst.msk [vmem:[#allocation2 + $0x74] sm:$0xf] %vm937, %v888
        %968 = vst.msk [vmem:[#allocation2 + $0x78] sm:$0xf] %vm937, %v890
        %969 = vst.msk [vmem:[#allocation2 + $0x7c] sm:$0xf] %vm937, %v892
        %970 = vst.msk [vmem:[#allocation2 + $0x80] sm:$0xf] %vm937, %v894
        %971 = vst.msk [vmem:[#allocation2 + $0x84] sm:$0xf] %vm937, %v896
        %972 = vst.msk [vmem:[#allocation2 + $0x88] sm:$0xf] %vm937, %v898
        %973 = vst.msk [vmem:[#allocation2 + $0x8c] sm:$0xf] %vm937, %v900
        %v974 = vld [vmem:[%s357 + $0x12] sm:$0xff]
        %v975 = vld [vmem:[%s357 + $0x1a] sm:$0xff]
        %v976 = vld [vmem:[%s357 + $0x22] sm:$0xff]
        %v977 = vld [vmem:[%s357 + $0x2a] sm:$0xff]
        %v978 = vld [vmem:[%s357 + $0x32] sm:$0xff]
        %v979 = vld [vmem:[%s357 + $0x3a] sm:$0xff]
        %v980 = vld [vmem:[%s357 + $0x42] sm:$0xff]
        %v981 = vld [vmem:[%s357 + $0x4a] sm:$0xff]
        %v982 = vld [vmem:[%s357 + $0x52] sm:$0xff]
        %v983 = vld [vmem:[%s357 + $0x5a] sm:$0xff]
        %v984 = vld [vmem:[%s357 + $0x62] sm:$0xff]
        %v985 = vld [vmem:[%s357 + $0x6a] sm:$0xff]
        %v986 = vld [vmem:[%s357 + $0x72] sm:$0xff]
        %v987 = vld [vmem:[%s357 + $0x7a] sm:$0xff]
        %v988 = vld [vmem:[%s357 + $0x82] sm:$0xff]
        %v989 = vld [vmem:[%s357 + $0x8a] sm:$0xff]
        %v990 = vld [vmem:[%s357 + $0x92] sm:$0xff]
        %v991 = vld [vmem:[%s357 + $0x9a] sm:$0xff]
        %v992 = vld [vmem:[%s357 + $0xa2] sm:$0xff]
        %v993 = vld [vmem:[%s357 + $0xaa] sm:$0xff]
        %v994 = vld [vmem:[%s357 + $0xb2] sm:$0xff]
        %v995 = vld [vmem:[%s357 + $0xba] sm:$0xff]
        %v996 = vld [vmem:[%s357 + $0xc2] sm:$0xff]
        %v997 = vld [vmem:[%s357 + $0xca] sm:$0xff]
        %v998 = vld [vmem:[%s357 + $0xd2] sm:$0xff]
        %v999 = vld [vmem:[%s357 + $0xda] sm:$0xff]
        %v1000 = vld [vmem:[%s357 + $0xe2] sm:$0xff]
        %v1001 = vld [vmem:[%s357 + $0xea] sm:$0xff]
        %v1002 = vld [vmem:[%s357 + $0xf2] sm:$0xff]
        %v1003 = vld [vmem:[%s357 + $0xfa] sm:$0xff]
        %v1004 = vld [vmem:[%s357 + $0x102] sm:$0xff]
        %v1005 = vld [vmem:[%s357 + $0x10a] sm:$0xff]
        %v1006 = vld [vmem:[%s357 + $0x112] sm:$0xff]
        %v1007 = vld [vmem:[%s357 + $0x11a] sm:$0xff]
        %v1008 = vld [vmem:[%s357 + $0x122] sm:$0xff]
        %v1009 = vld [vmem:[%s357 + $0x12a] sm:$0xff]
        %v1010 = vpack.c.bf16 %v974, %v974
        %v1011 = vpack.c.bf16 %v975, %v975
        %v1012 = vpack.c.bf16 %v976, %v976
        %v1013 = vpack.c.bf16 %v977, %v977
        %v1014 = vpack.c.bf16 %v978, %v978
        %v1015 = vpack.c.bf16 %v979, %v979
        %v1016 = vpack.c.bf16 %v980, %v980
        %v1017 = vpack.c.bf16 %v981, %v981
        %v1018 = vpack.c.bf16 %v982, %v982
        %v1019 = vpack.c.bf16 %v983, %v983
        %v1020 = vpack.c.bf16 %v984, %v984
        %v1021 = vpack.c.bf16 %v985, %v985
        %v1022 = vpack.c.bf16 %v986, %v986
        %v1023 = vpack.c.bf16 %v987, %v987
        %v1024 = vpack.c.bf16 %v988, %v988
        %v1025 = vpack.c.bf16 %v989, %v989
        %v1026 = vpack.c.bf16 %v990, %v990
        %v1027 = vpack.c.bf16 %v991, %v991
        %v1028 = vpack.c.bf16 %v992, %v992
        %v1029 = vpack.c.bf16 %v993, %v993
        %v1030 = vpack.c.bf16 %v994, %v994
        %v1031 = vpack.c.bf16 %v995, %v995
        %v1032 = vpack.c.bf16 %v996, %v996
        %v1033 = vpack.c.bf16 %v997, %v997
        %v1034 = vpack.c.bf16 %v998, %v998
        %v1035 = vpack.c.bf16 %v999, %v999
        %v1036 = vpack.c.bf16 %v1000, %v1000
        %v1037 = vpack.c.bf16 %v1001, %v1001
        %v1038 = vpack.c.bf16 %v1002, %v1002
        %v1039 = vpack.c.bf16 %v1003, %v1003
        %v1040 = vpack.c.bf16 %v1004, %v1004
        %v1041 = vpack.c.bf16 %v1005, %v1005
        %v1042 = vpack.c.bf16 %v1006, %v1006
        %v1043 = vpack.c.bf16 %v1007, %v1007
        %v1044 = vpack.c.bf16 %v1008, %v1008
        %v1045 = vpack.c.bf16 %v1009, %v1009
        %1082 = vrot.lane.b32.xlu0 %v1010, 24
        %v1083 = vpop.permute.xlu0 %1082
        %1084 = vrot.lane.b32.xlu0 %v1011, 24
        %v1085 = vpop.permute.xlu0 %1084
        %1086 = vrot.lane.b32.xlu0 %v1012, 24
        %v1087 = vpop.permute.xlu0 %1086
        %1088 = vrot.lane.b32.xlu0 %v1013, 24
        %v1089 = vpop.permute.xlu0 %1088
        %1090 = vrot.lane.b32.xlu0 %v1014, 24
        %v1091 = vpop.permute.xlu0 %1090
        %1092 = vrot.lane.b32.xlu0 %v1015, 24
        %v1093 = vpop.permute.xlu0 %1092
        %1094 = vrot.lane.b32.xlu0 %v1016, 24
        %v1095 = vpop.permute.xlu0 %1094
        %1096 = vrot.lane.b32.xlu0 %v1017, 24
        %v1097 = vpop.permute.xlu0 %1096
        %1098 = vrot.lane.b32.xlu0 %v1018, 24
        %v1099 = vpop.permute.xlu0 %1098
        %1100 = vrot.lane.b32.xlu0 %v1019, 24
        %v1101 = vpop.permute.xlu0 %1100
        %1102 = vrot.lane.b32.xlu0 %v1020, 24
        %v1103 = vpop.permute.xlu0 %1102
        %1104 = vrot.lane.b32.xlu0 %v1021, 24
        %v1105 = vpop.permute.xlu0 %1104
        %1106 = vrot.lane.b32.xlu0 %v1022, 24
        %v1107 = vpop.permute.xlu0 %1106
        %1108 = vrot.lane.b32.xlu0 %v1023, 24
        %v1109 = vpop.permute.xlu0 %1108
        %1110 = vrot.lane.b32.xlu0 %v1024, 24
        %v1111 = vpop.permute.xlu0 %1110
        %1112 = vrot.lane.b32.xlu0 %v1025, 24
        %v1113 = vpop.permute.xlu0 %1112
        %1114 = vrot.lane.b32.xlu0 %v1026, 24
        %v1115 = vpop.permute.xlu0 %1114
        %1116 = vrot.lane.b32.xlu0 %v1027, 24
        %v1117 = vpop.permute.xlu0 %1116
        %1118 = vrot.lane.b32.xlu0 %v1028, 24
        %v1119 = vpop.permute.xlu0 %1118
        %1120 = vrot.lane.b32.xlu0 %v1029, 24
        %v1121 = vpop.permute.xlu0 %1120
        %1122 = vrot.lane.b32.xlu0 %v1030, 24
        %v1123 = vpop.permute.xlu0 %1122
        %1124 = vrot.lane.b32.xlu0 %v1031, 24
        %v1125 = vpop.permute.xlu0 %1124
        %1126 = vrot.lane.b32.xlu0 %v1032, 24
        %v1127 = vpop.permute.xlu0 %1126
        %1128 = vrot.lane.b32.xlu0 %v1033, 24
        %v1129 = vpop.permute.xlu0 %1128
        %1130 = vrot.lane.b32.xlu0 %v1034, 24
        %v1131 = vpop.permute.xlu0 %1130
        %1132 = vrot.lane.b32.xlu0 %v1035, 24
        %v1133 = vpop.permute.xlu0 %1132
        %1134 = vrot.lane.b32.xlu0 %v1036, 24
        %v1135 = vpop.permute.xlu0 %1134
        %1136 = vrot.lane.b32.xlu0 %v1037, 24
        %v1137 = vpop.permute.xlu0 %1136
        %1138 = vrot.lane.b32.xlu0 %v1038, 24
        %v1139 = vpop.permute.xlu0 %1138
        %1140 = vrot.lane.b32.xlu0 %v1039, 24
        %v1141 = vpop.permute.xlu0 %1140
        %1142 = vrot.lane.b32.xlu0 %v1040, 24
        %v1143 = vpop.permute.xlu0 %1142
        %1144 = vrot.lane.b32.xlu0 %v1041, 24
        %v1145 = vpop.permute.xlu0 %1144
        %1146 = vrot.lane.b32.xlu0 %v1042, 24
        %v1147 = vpop.permute.xlu0 %1146
        %1148 = vrot.lane.b32.xlu0 %v1043, 24
        %v1149 = vpop.permute.xlu0 %1148
        %1150 = vrot.lane.b32.xlu0 %v1044, 24
        %v1151 = vpop.permute.xlu0 %1150
        %1152 = vrot.lane.b32.xlu0 %v1045, 24
        %v1153 = vpop.permute.xlu0 %1152
        %vm1190 = vcmask 257216
        %1191 = vst.msk [vmem:[#allocation2] sm:$0xf] %vm1190, %v1083
        %1192 = vst.msk [vmem:[#allocation2 + $0x4] sm:$0xf] %vm1190, %v1085
        %1193 = vst.msk [vmem:[#allocation2 + $0x8] sm:$0xf] %vm1190, %v1087
        %1194 = vst.msk [vmem:[#allocation2 + $0xc] sm:$0xf] %vm1190, %v1089
        %1195 = vst.msk [vmem:[#allocation2 + $0x10] sm:$0xf] %vm1190, %v1091
        %1196 = vst.msk [vmem:[#allocation2 + $0x14] sm:$0xf] %vm1190, %v1093
        %1197 = vst.msk [vmem:[#allocation2 + $0x18] sm:$0xf] %vm1190, %v1095
        %1198 = vst.msk [vmem:[#allocation2 + $0x1c] sm:$0xf] %vm1190, %v1097
        %1199 = vst.msk [vmem:[#allocation2 + $0x20] sm:$0xf] %vm1190, %v1099
        %1200 = vst.msk [vmem:[#allocation2 + $0x24] sm:$0xf] %vm1190, %v1101
        %1201 = vst.msk [vmem:[#allocation2 + $0x28] sm:$0xf] %vm1190, %v1103
        %1202 = vst.msk [vmem:[#allocation2 + $0x2c] sm:$0xf] %vm1190, %v1105
        %1203 = vst.msk [vmem:[#allocation2 + $0x30] sm:$0xf] %vm1190, %v1107
        %1204 = vst.msk [vmem:[#allocation2 + $0x34] sm:$0xf] %vm1190, %v1109
        %1205 = vst.msk [vmem:[#allocation2 + $0x38] sm:$0xf] %vm1190, %v1111
        %1206 = vst.msk [vmem:[#allocation2 + $0x3c] sm:$0xf] %vm1190, %v1113
        %1207 = vst.msk [vmem:[#allocation2 + $0x40] sm:$0xf] %vm1190, %v1115
        %1208 = vst.msk [vmem:[#allocation2 + $0x44] sm:$0xf] %vm1190, %v1117
        %1209 = vst.msk [vmem:[#allocation2 + $0x48] sm:$0xf] %vm1190, %v1119
        %1210 = vst.msk [vmem:[#allocation2 + $0x4c] sm:$0xf] %vm1190, %v1121
        %1211 = vst.msk [vmem:[#allocation2 + $0x50] sm:$0xf] %vm1190, %v1123
        %1212 = vst.msk [vmem:[#allocation2 + $0x54] sm:$0xf] %vm1190, %v1125
        %1213 = vst.msk [vmem:[#allocation2 + $0x58] sm:$0xf] %vm1190, %v1127
        %1214 = vst.msk [vmem:[#allocation2 + $0x5c] sm:$0xf] %vm1190, %v1129
        %1215 = vst.msk [vmem:[#allocation2 + $0x60] sm:$0xf] %vm1190, %v1131
        %1216 = vst.msk [vmem:[#allocation2 + $0x64] sm:$0xf] %vm1190, %v1133
        %1217 = vst.msk [vmem:[#allocation2 + $0x68] sm:$0xf] %vm1190, %v1135
        %1218 = vst.msk [vmem:[#allocation2 + $0x6c] sm:$0xf] %vm1190, %v1137
        %1219 = vst.msk [vmem:[#allocation2 + $0x70] sm:$0xf] %vm1190, %v1139
        %1220 = vst.msk [vmem:[#allocation2 + $0x74] sm:$0xf] %vm1190, %v1141
        %1221 = vst.msk [vmem:[#allocation2 + $0x78] sm:$0xf] %vm1190, %v1143
        %1222 = vst.msk [vmem:[#allocation2 + $0x7c] sm:$0xf] %vm1190, %v1145
        %1223 = vst.msk [vmem:[#allocation2 + $0x80] sm:$0xf] %vm1190, %v1147
        %1224 = vst.msk [vmem:[#allocation2 + $0x84] sm:$0xf] %vm1190, %v1149
        %1225 = vst.msk [vmem:[#allocation2 + $0x88] sm:$0xf] %vm1190, %v1151
        %1226 = vst.msk [vmem:[#allocation2 + $0x8c] sm:$0xf] %vm1190, %v1153
        %v1227 = vld [vmem:[%s357 + $0x13] sm:$0xff]
        %v1228 = vld [vmem:[%s357 + $0x1b] sm:$0xff]
        %v1229 = vld [vmem:[%s357 + $0x23] sm:$0xff]
        %v1230 = vld [vmem:[%s357 + $0x2b] sm:$0xff]
        %v1231 = vld [vmem:[%s357 + $0x33] sm:$0xff]
        %v1232 = vld [vmem:[%s357 + $0x3b] sm:$0xff]
        %v1233 = vld [vmem:[%s357 + $0x43] sm:$0xff]
        %v1234 = vld [vmem:[%s357 + $0x4b] sm:$0xff]
        %v1235 = vld [vmem:[%s357 + $0x53] sm:$0xff]
        %v1236 = vld [vmem:[%s357 + $0x5b] sm:$0xff]
        %v1237 = vld [vmem:[%s357 + $0x63] sm:$0xff]
        %v1238 = vld [vmem:[%s357 + $0x6b] sm:$0xff]
        %v1239 = vld [vmem:[%s357 + $0x73] sm:$0xff]
        %v1240 = vld [vmem:[%s357 + $0x7b] sm:$0xff]
        %v1241 = vld [vmem:[%s357 + $0x83] sm:$0xff]
        %v1242 = vld [vmem:[%s357 + $0x8b] sm:$0xff]
        %v1243 = vld [vmem:[%s357 + $0x93] sm:$0xff]
        %v1244 = vld [vmem:[%s357 + $0x9b] sm:$0xff]
        %v1245 = vld [vmem:[%s357 + $0xa3] sm:$0xff]
        %v1246 = vld [vmem:[%s357 + $0xab] sm:$0xff]
        %v1247 = vld [vmem:[%s357 + $0xb3] sm:$0xff]
        %v1248 = vld [vmem:[%s357 + $0xbb] sm:$0xff]
        %v1249 = vld [vmem:[%s357 + $0xc3] sm:$0xff]
        %v1250 = vld [vmem:[%s357 + $0xcb] sm:$0xff]
        %v1251 = vld [vmem:[%s357 + $0xd3] sm:$0xff]
        %v1252 = vld [vmem:[%s357 + $0xdb] sm:$0xff]
        %v1253 = vld [vmem:[%s357 + $0xe3] sm:$0xff]
        %v1254 = vld [vmem:[%s357 + $0xeb] sm:$0xff]
        %v1255 = vld [vmem:[%s357 + $0xf3] sm:$0xff]
        %v1256 = vld [vmem:[%s357 + $0xfb] sm:$0xff]
        %v1257 = vld [vmem:[%s357 + $0x103] sm:$0xff]
        %v1258 = vld [vmem:[%s357 + $0x10b] sm:$0xff]
        %v1259 = vld [vmem:[%s357 + $0x113] sm:$0xff]
        %v1260 = vld [vmem:[%s357 + $0x11b] sm:$0xff]
        %v1261 = vld [vmem:[%s357 + $0x123] sm:$0xff]
        %v1262 = vld [vmem:[%s357 + $0x12b] sm:$0xff]
        %v1263 = vpack.c.bf16 %v1227, %v1227
        %v1264 = vpack.c.bf16 %v1228, %v1228
        %v1265 = vpack.c.bf16 %v1229, %v1229
        %v1266 = vpack.c.bf16 %v1230, %v1230
        %v1267 = vpack.c.bf16 %v1231, %v1231
        %v1268 = vpack.c.bf16 %v1232, %v1232
        %v1269 = vpack.c.bf16 %v1233, %v1233
        %v1270 = vpack.c.bf16 %v1234, %v1234
        %v1271 = vpack.c.bf16 %v1235, %v1235
        %v1272 = vpack.c.bf16 %v1236, %v1236
        %v1273 = vpack.c.bf16 %v1237, %v1237
        %v1274 = vpack.c.bf16 %v1238, %v1238
        %v1275 = vpack.c.bf16 %v1239, %v1239
        %v1276 = vpack.c.bf16 %v1240, %v1240
        %v1277 = vpack.c.bf16 %v1241, %v1241
        %v1278 = vpack.c.bf16 %v1242, %v1242
        %v1279 = vpack.c.bf16 %v1243, %v1243
        %v1280 = vpack.c.bf16 %v1244, %v1244
        %v1281 = vpack.c.bf16 %v1245, %v1245
        %v1282 = vpack.c.bf16 %v1246, %v1246
        %v1283 = vpack.c.bf16 %v1247, %v1247
        %v1284 = vpack.c.bf16 %v1248, %v1248
        %v1285 = vpack.c.bf16 %v1249, %v1249
        %v1286 = vpack.c.bf16 %v1250, %v1250
        %v1287 = vpack.c.bf16 %v1251, %v1251
        %v1288 = vpack.c.bf16 %v1252, %v1252
        %v1289 = vpack.c.bf16 %v1253, %v1253
        %v1290 = vpack.c.bf16 %v1254, %v1254
        %v1291 = vpack.c.bf16 %v1255, %v1255
        %v1292 = vpack.c.bf16 %v1256, %v1256
        %v1293 = vpack.c.bf16 %v1257, %v1257
        %v1294 = vpack.c.bf16 %v1258, %v1258
        %v1295 = vpack.c.bf16 %v1259, %v1259
        %v1296 = vpack.c.bf16 %v1260, %v1260
        %v1297 = vpack.c.bf16 %v1261, %v1261
        %v1298 = vpack.c.bf16 %v1262, %v1262
        %1335 = vrot.lane.b32.xlu0 %v1263, 32
        %v1336 = vpop.permute.xlu0 %1335
        %1337 = vrot.lane.b32.xlu0 %v1264, 32
        %v1338 = vpop.permute.xlu0 %1337
        %1339 = vrot.lane.b32.xlu0 %v1265, 32
        %v1340 = vpop.permute.xlu0 %1339
        %1341 = vrot.lane.b32.xlu0 %v1266, 32
        %v1342 = vpop.permute.xlu0 %1341
        %1343 = vrot.lane.b32.xlu0 %v1267, 32
        %v1344 = vpop.permute.xlu0 %1343
        %1345 = vrot.lane.b32.xlu0 %v1268, 32
        %v1346 = vpop.permute.xlu0 %1345
        %1347 = vrot.lane.b32.xlu0 %v1269, 32
        %v1348 = vpop.permute.xlu0 %1347
        %1349 = vrot.lane.b32.xlu0 %v1270, 32
        %v1350 = vpop.permute.xlu0 %1349
        %1351 = vrot.lane.b32.xlu0 %v1271, 32
        %v1352 = vpop.permute.xlu0 %1351
        %1353 = vrot.lane.b32.xlu0 %v1272, 32
        %v1354 = vpop.permute.xlu0 %1353
        %1355 = vrot.lane.b32.xlu0 %v1273, 32
        %v1356 = vpop.permute.xlu0 %1355
        %1357 = vrot.lane.b32.xlu0 %v1274, 32
        %v1358 = vpop.permute.xlu0 %1357
        %1359 = vrot.lane.b32.xlu0 %v1275, 32
        %v1360 = vpop.permute.xlu0 %1359
        %1361 = vrot.lane.b32.xlu0 %v1276, 32
        %v1362 = vpop.permute.xlu0 %1361
        %1363 = vrot.lane.b32.xlu0 %v1277, 32
        %v1364 = vpop.permute.xlu0 %1363
        %1365 = vrot.lane.b32.xlu0 %v1278, 32
        %v1366 = vpop.permute.xlu0 %1365
        %1367 = vrot.lane.b32.xlu0 %v1279, 32
        %v1368 = vpop.permute.xlu0 %1367
        %1369 = vrot.lane.b32.xlu0 %v1280, 32
        %v1370 = vpop.permute.xlu0 %1369
        %1371 = vrot.lane.b32.xlu0 %v1281, 32
        %v1372 = vpop.permute.xlu0 %1371
        %1373 = vrot.lane.b32.xlu0 %v1282, 32
        %v1374 = vpop.permute.xlu0 %1373
        %1375 = vrot.lane.b32.xlu0 %v1283, 32
        %v1376 = vpop.permute.xlu0 %1375
        %1377 = vrot.lane.b32.xlu0 %v1284, 32
        %v1378 = vpop.permute.xlu0 %1377
        %1379 = vrot.lane.b32.xlu0 %v1285, 32
        %v1380 = vpop.permute.xlu0 %1379
        %1381 = vrot.lane.b32.xlu0 %v1286, 32
        %v1382 = vpop.permute.xlu0 %1381
        %1383 = vrot.lane.b32.xlu0 %v1287, 32
        %v1384 = vpop.permute.xlu0 %1383
        %1385 = vrot.lane.b32.xlu0 %v1288, 32
        %v1386 = vpop.permute.xlu0 %1385
        %1387 = vrot.lane.b32.xlu0 %v1289, 32
        %v1388 = vpop.permute.xlu0 %1387
        %1389 = vrot.lane.b32.xlu0 %v1290, 32
        %v1390 = vpop.permute.xlu0 %1389
        %1391 = vrot.lane.b32.xlu0 %v1291, 32
        %v1392 = vpop.permute.xlu0 %1391
        %1393 = vrot.lane.b32.xlu0 %v1292, 32
        %v1394 = vpop.permute.xlu0 %1393
        %1395 = vrot.lane.b32.xlu0 %v1293, 32
        %v1396 = vpop.permute.xlu0 %1395
        %1397 = vrot.lane.b32.xlu0 %v1294, 32
        %v1398 = vpop.permute.xlu0 %1397
        %1399 = vrot.lane.b32.xlu0 %v1295, 32
        %v1400 = vpop.permute.xlu0 %1399
        %1401 = vrot.lane.b32.xlu0 %v1296, 32
        %v1402 = vpop.permute.xlu0 %1401
        %1403 = vrot.lane.b32.xlu0 %v1297, 32
        %v1404 = vpop.permute.xlu0 %1403
        %1405 = vrot.lane.b32.xlu0 %v1298, 32
        %v1406 = vpop.permute.xlu0 %1405
        %vm1443 = vcmask 322816
        %1444 = vst.msk [vmem:[#allocation2] sm:$0xf] %vm1443, %v1336
        %1445 = vst.msk [vmem:[#allocation2 + $0x4] sm:$0xf] %vm1443, %v1338
        %1446 = vst.msk [vmem:[#allocation2 + $0x8] sm:$0xf] %vm1443, %v1340
        %1447 = vst.msk [vmem:[#allocation2 + $0xc] sm:$0xf] %vm1443, %v1342
        %1448 = vst.msk [vmem:[#allocation2 + $0x10] sm:$0xf] %vm1443, %v1344
        %1449 = vst.msk [vmem:[#allocation2 + $0x14] sm:$0xf] %vm1443, %v1346
        %1450 = vst.msk [vmem:[#allocation2 + $0x18] sm:$0xf] %vm1443, %v1348
        %1451 = vst.msk [vmem:[#allocation2 + $0x1c] sm:$0xf] %vm1443, %v1350
        %1452 = vst.msk [vmem:[#allocation2 + $0x20] sm:$0xf] %vm1443, %v1352
        %1453 = vst.msk [vmem:[#allocation2 + $0x24] sm:$0xf] %vm1443, %v1354
        %1454 = vst.msk [vmem:[#allocation2 + $0x28] sm:$0xf] %vm1443, %v1356
        %1455 = vst.msk [vmem:[#allocation2 + $0x2c] sm:$0xf] %vm1443, %v1358
        %1456 = vst.msk [vmem:[#allocation2 + $0x30] sm:$0xf] %vm1443, %v1360
        %1457 = vst.msk [vmem:[#allocation2 + $0x34] sm:$0xf] %vm1443, %v1362
        %1458 = vst.msk [vmem:[#allocation2 + $0x38] sm:$0xf] %vm1443, %v1364
        %1459 = vst.msk [vmem:[#allocation2 + $0x3c] sm:$0xf] %vm1443, %v1366
        %1460 = vst.msk [vmem:[#allocation2 + $0x40] sm:$0xf] %vm1443, %v1368
        %1461 = vst.msk [vmem:[#allocation2 + $0x44] sm:$0xf] %vm1443, %v1370
        %1462 = vst.msk [vmem:[#allocation2 + $0x48] sm:$0xf] %vm1443, %v1372
        %1463 = vst.msk [vmem:[#allocation2 + $0x4c] sm:$0xf] %vm1443, %v1374
        %1464 = vst.msk [vmem:[#allocation2 + $0x50] sm:$0xf] %vm1443, %v1376
        %1465 = vst.msk [vmem:[#allocation2 + $0x54] sm:$0xf] %vm1443, %v1378
        %1466 = vst.msk [vmem:[#allocation2 + $0x58] sm:$0xf] %vm1443, %v1380
        %1467 = vst.msk [vmem:[#allocation2 + $0x5c] sm:$0xf] %vm1443, %v1382
        %1468 = vst.msk [vmem:[#allocation2 + $0x60] sm:$0xf] %vm1443, %v1384
        %1469 = vst.msk [vmem:[#allocation2 + $0x64] sm:$0xf] %vm1443, %v1386
        %1470 = vst.msk [vmem:[#allocation2 + $0x68] sm:$0xf] %vm1443, %v1388
        %1471 = vst.msk [vmem:[#allocation2 + $0x6c] sm:$0xf] %vm1443, %v1390
        %1472 = vst.msk [vmem:[#allocation2 + $0x70] sm:$0xf] %vm1443, %v1392
        %1473 = vst.msk [vmem:[#allocation2 + $0x74] sm:$0xf] %vm1443, %v1394
        %1474 = vst.msk [vmem:[#allocation2 + $0x78] sm:$0xf] %vm1443, %v1396
        %1475 = vst.msk [vmem:[#allocation2 + $0x7c] sm:$0xf] %vm1443, %v1398
        %1476 = vst.msk [vmem:[#allocation2 + $0x80] sm:$0xf] %vm1443, %v1400
        %1477 = vst.msk [vmem:[#allocation2 + $0x84] sm:$0xf] %vm1443, %v1402
        %1478 = vst.msk [vmem:[#allocation2 + $0x88] sm:$0xf] %vm1443, %v1404
        %1479 = vst.msk [vmem:[#allocation2 + $0x8c] sm:$0xf] %vm1443, %v1406
        %v1480 = vld [vmem:[%s357 + $0x14] sm:$0xff]
        %v1481 = vld [vmem:[%s357 + $0x1c] sm:$0xff]
        %v1482 = vld [vmem:[%s357 + $0x24] sm:$0xff]
        %v1483 = vld [vmem:[%s357 + $0x2c] sm:$0xff]
        %v1484 = vld [vmem:[%s357 + $0x34] sm:$0xff]
        %v1485 = vld [vmem:[%s357 + $0x3c] sm:$0xff]
        %v1486 = vld [vmem:[%s357 + $0x44] sm:$0xff]
        %v1487 = vld [vmem:[%s357 + $0x4c] sm:$0xff]
        %v1488 = vld [vmem:[%s357 + $0x54] sm:$0xff]
        %v1489 = vld [vmem:[%s357 + $0x5c] sm:$0xff]
        %v1490 = vld [vmem:[%s357 + $0x64] sm:$0xff]
        %v1491 = vld [vmem:[%s357 + $0x6c] sm:$0xff]
        %v1492 = vld [vmem:[%s357 + $0x74] sm:$0xff]
        %v1493 = vld [vmem:[%s357 + $0x7c] sm:$0xff]
        %v1494 = vld [vmem:[%s357 + $0x84] sm:$0xff]
        %v1495 = vld [vmem:[%s357 + $0x8c] sm:$0xff]
        %v1496 = vld [vmem:[%s357 + $0x94] sm:$0xff]
        %v1497 = vld [vmem:[%s357 + $0x9c] sm:$0xff]
        %v1498 = vld [vmem:[%s357 + $0xa4] sm:$0xff]
        %v1499 = vld [vmem:[%s357 + $0xac] sm:$0xff]
        %v1500 = vld [vmem:[%s357 + $0xb4] sm:$0xff]
        %v1501 = vld [vmem:[%s357 + $0xbc] sm:$0xff]
        %v1502 = vld [vmem:[%s357 + $0xc4] sm:$0xff]
        %v1503 = vld [vmem:[%s357 + $0xcc] sm:$0xff]
        %v1504 = vld [vmem:[%s357 + $0xd4] sm:$0xff]
        %v1505 = vld [vmem:[%s357 + $0xdc] sm:$0xff]
        %v1506 = vld [vmem:[%s357 + $0xe4] sm:$0xff]
        %v1507 = vld [vmem:[%s357 + $0xec] sm:$0xff]
        %v1508 = vld [vmem:[%s357 + $0xf4] sm:$0xff]
        %v1509 = vld [vmem:[%s357 + $0xfc] sm:$0xff]
        %v1510 = vld [vmem:[%s357 + $0x104] sm:$0xff]
        %v1511 = vld [vmem:[%s357 + $0x10c] sm:$0xff]
        %v1512 = vld [vmem:[%s357 + $0x114] sm:$0xff]
        %v1513 = vld [vmem:[%s357 + $0x11c] sm:$0xff]
        %v1514 = vld [vmem:[%s357 + $0x124] sm:$0xff]
        %v1515 = vld [vmem:[%s357 + $0x12c] sm:$0xff]
        %v1516 = vpack.c.bf16 %v1480, %v1480
        %v1517 = vpack.c.bf16 %v1481, %v1481
        %v1518 = vpack.c.bf16 %v1482, %v1482
        %v1519 = vpack.c.bf16 %v1483, %v1483
        %v1520 = vpack.c.bf16 %v1484, %v1484
        %v1521 = vpack.c.bf16 %v1485, %v1485
        %v1522 = vpack.c.bf16 %v1486, %v1486
        %v1523 = vpack.c.bf16 %v1487, %v1487
        %v1524 = vpack.c.bf16 %v1488, %v1488
        %v1525 = vpack.c.bf16 %v1489, %v1489
        %v1526 = vpack.c.bf16 %v1490, %v1490
        %v1527 = vpack.c.bf16 %v1491, %v1491
        %v1528 = vpack.c.bf16 %v1492, %v1492
        %v1529 = vpack.c.bf16 %v1493, %v1493
        %v1530 = vpack.c.bf16 %v1494, %v1494
        %v1531 = vpack.c.bf16 %v1495, %v1495
        %v1532 = vpack.c.bf16 %v1496, %v1496
        %v1533 = vpack.c.bf16 %v1497, %v1497
        %v1534 = vpack.c.bf16 %v1498, %v1498
        %v1535 = vpack.c.bf16 %v1499, %v1499
        %v1536 = vpack.c.bf16 %v1500, %v1500
        %v1537 = vpack.c.bf16 %v1501, %v1501
        %v1538 = vpack.c.bf16 %v1502, %v1502
        %v1539 = vpack.c.bf16 %v1503, %v1503
        %v1540 = vpack.c.bf16 %v1504, %v1504
        %v1541 = vpack.c.bf16 %v1505, %v1505
        %v1542 = vpack.c.bf16 %v1506, %v1506
        %v1543 = vpack.c.bf16 %v1507, %v1507
        %v1544 = vpack.c.bf16 %v1508, %v1508
        %v1545 = vpack.c.bf16 %v1509, %v1509
        %v1546 = vpack.c.bf16 %v1510, %v1510
        %v1547 = vpack.c.bf16 %v1511, %v1511
        %v1548 = vpack.c.bf16 %v1512, %v1512
        %v1549 = vpack.c.bf16 %v1513, %v1513
        %v1550 = vpack.c.bf16 %v1514, %v1514
        %v1551 = vpack.c.bf16 %v1515, %v1515
        %1588 = vrot.lane.b32.xlu0 %v1516, 40
        %v1589 = vpop.permute.xlu0 %1588
        %1590 = vrot.lane.b32.xlu0 %v1517, 40
        %v1591 = vpop.permute.xlu0 %1590
        %1592 = vrot.lane.b32.xlu0 %v1518, 40
        %v1593 = vpop.permute.xlu0 %1592
        %1594 = vrot.lane.b32.xlu0 %v1519, 40
        %v1595 = vpop.permute.xlu0 %1594
        %1596 = vrot.lane.b32.xlu0 %v1520, 40
        %v1597 = vpop.permute.xlu0 %1596
        %1598 = vrot.lane.b32.xlu0 %v1521, 40
        %v1599 = vpop.permute.xlu0 %1598
        %1600 = vrot.lane.b32.xlu0 %v1522, 40
        %v1601 = vpop.permute.xlu0 %1600
        %1602 = vrot.lane.b32.xlu0 %v1523, 40
        %v1603 = vpop.permute.xlu0 %1602
        %1604 = vrot.lane.b32.xlu0 %v1524, 40
        %v1605 = vpop.permute.xlu0 %1604
        %1606 = vrot.lane.b32.xlu0 %v1525, 40
        %v1607 = vpop.permute.xlu0 %1606
        %1608 = vrot.lane.b32.xlu0 %v1526, 40
        %v1609 = vpop.permute.xlu0 %1608
        %1610 = vrot.lane.b32.xlu0 %v1527, 40
        %v1611 = vpop.permute.xlu0 %1610
        %1612 = vrot.lane.b32.xlu0 %v1528, 40
        %v1613 = vpop.permute.xlu0 %1612
        %1614 = vrot.lane.b32.xlu0 %v1529, 40
        %v1615 = vpop.permute.xlu0 %1614
        %1616 = vrot.lane.b32.xlu0 %v1530, 40
        %v1617 = vpop.permute.xlu0 %1616
        %1618 = vrot.lane.b32.xlu0 %v1531, 40
        %v1619 = vpop.permute.xlu0 %1618
        %1620 = vrot.lane.b32.xlu0 %v1532, 40
        %v1621 = vpop.permute.xlu0 %1620
        %1622 = vrot.lane.b32.xlu0 %v1533, 40
        %v1623 = vpop.permute.xlu0 %1622
        %1624 = vrot.lane.b32.xlu0 %v1534, 40
        %v1625 = vpop.permute.xlu0 %1624
        %1626 = vrot.lane.b32.xlu0 %v1535, 40
        %v1627 = vpop.permute.xlu0 %1626
        %1628 = vrot.lane.b32.xlu0 %v1536, 40
        %v1629 = vpop.permute.xlu0 %1628
        %1630 = vrot.lane.b32.xlu0 %v1537, 40
        %v1631 = vpop.permute.xlu0 %1630
        %1632 = vrot.lane.b32.xlu0 %v1538, 40
        %v1633 = vpop.permute.xlu0 %1632
        %1634 = vrot.lane.b32.xlu0 %v1539, 40
        %v1635 = vpop.permute.xlu0 %1634
        %1636 = vrot.lane.b32.xlu0 %v1540, 40
        %v1637 = vpop.permute.xlu0 %1636
        %1638 = vrot.lane.b32.xlu0 %v1541, 40
        %v1639 = vpop.permute.xlu0 %1638
        %1640 = vrot.lane.b32.xlu0 %v1542, 40
        %v1641 = vpop.permute.xlu0 %1640
        %1642 = vrot.lane.b32.xlu0 %v1543, 40
        %v1643 = vpop.permute.xlu0 %1642
        %1644 = vrot.lane.b32.xlu0 %v1544, 40
        %v1645 = vpop.permute.xlu0 %1644
        %1646 = vrot.lane.b32.xlu0 %v1545, 40
        %v1647 = vpop.permute.xlu0 %1646
        %1648 = vrot.lane.b32.xlu0 %v1546, 40
        %v1649 = vpop.permute.xlu0 %1648
        %1650 = vrot.lane.b32.xlu0 %v1547, 40
        %v1651 = vpop.permute.xlu0 %1650
        %1652 = vrot.lane.b32.xlu0 %v1548, 40
        %v1653 = vpop.permute.xlu0 %1652
        %1654 = vrot.lane.b32.xlu0 %v1549, 40
        %v1655 = vpop.permute.xlu0 %1654
        %1656 = vrot.lane.b32.xlu0 %v1550, 40
        %v1657 = vpop.permute.xlu0 %1656
        %1658 = vrot.lane.b32.xlu0 %v1551, 40
        %v1659 = vpop.permute.xlu0 %1658
        %vm1696 = vcmask 388416
        %1697 = vst.msk [vmem:[#allocation2] sm:$0xf] %vm1696, %v1589
        %1698 = vst.msk [vmem:[#allocation2 + $0x4] sm:$0xf] %vm1696, %v1591
        %1699 = vst.msk [vmem:[#allocation2 + $0x8] sm:$0xf] %vm1696, %v1593
        %1700 = vst.msk [vmem:[#allocation2 + $0xc] sm:$0xf] %vm1696, %v1595
        %1701 = vst.msk [vmem:[#allocation2 + $0x10] sm:$0xf] %vm1696, %v1597
        %1702 = vst.msk [vmem:[#allocation2 + $0x14] sm:$0xf] %vm1696, %v1599
        %1703 = vst.msk [vmem:[#allocation2 + $0x18] sm:$0xf] %vm1696, %v1601
        %1704 = vst.msk [vmem:[#allocation2 + $0x1c] sm:$0xf] %vm1696, %v1603
        %1705 = vst.msk [vmem:[#allocation2 + $0x20] sm:$0xf] %vm1696, %v1605
        %1706 = vst.msk [vmem:[#allocation2 + $0x24] sm:$0xf] %vm1696, %v1607
        %1707 = vst.msk [vmem:[#allocation2 + $0x28] sm:$0xf] %vm1696, %v1609
        %1708 = vst.msk [vmem:[#allocation2 + $0x2c] sm:$0xf] %vm1696, %v1611
        %1709 = vst.msk [vmem:[#allocation2 + $0x30] sm:$0xf] %vm1696, %v1613
        %1710 = vst.msk [vmem:[#allocation2 + $0x34] sm:$0xf] %vm1696, %v1615
        %1711 = vst.msk [vmem:[#allocation2 + $0x38] sm:$0xf] %vm1696, %v1617
        %1712 = vst.msk [vmem:[#allocation2 + $0x3c] sm:$0xf] %vm1696, %v1619
        %1713 = vst.msk [vmem:[#allocation2 + $0x40] sm:$0xf] %vm1696, %v1621
        %1714 = vst.msk [vmem:[#allocation2 + $0x44] sm:$0xf] %vm1696, %v1623
        %1715 = vst.msk [vmem:[#allocation2 + $0x48] sm:$0xf] %vm1696, %v1625
        %1716 = vst.msk [vmem:[#allocation2 + $0x4c] sm:$0xf] %vm1696, %v1627
        %1717 = vst.msk [vmem:[#allocation2 + $0x50] sm:$0xf] %vm1696, %v1629
        %1718 = vst.msk [vmem:[#allocation2 + $0x54] sm:$0xf] %vm1696, %v1631
        %1719 = vst.msk [vmem:[#allocation2 + $0x58] sm:$0xf] %vm1696, %v1633
        %1720 = vst.msk [vmem:[#allocation2 + $0x5c] sm:$0xf] %vm1696, %v1635
        %1721 = vst.msk [vmem:[#allocation2 + $0x60] sm:$0xf] %vm1696, %v1637
        %1722 = vst.msk [vmem:[#allocation2 + $0x64] sm:$0xf] %vm1696, %v1639
        %1723 = vst.msk [vmem:[#allocation2 + $0x68] sm:$0xf] %vm1696, %v1641
        %1724 = vst.msk [vmem:[#allocation2 + $0x6c] sm:$0xf] %vm1696, %v1643
        %1725 = vst.msk [vmem:[#allocation2 + $0x70] sm:$0xf] %vm1696, %v1645
        %1726 = vst.msk [vmem:[#allocation2 + $0x74] sm:$0xf] %vm1696, %v1647
        %1727 = vst.msk [vmem:[#allocation2 + $0x78] sm:$0xf] %vm1696, %v1649
        %1728 = vst.msk [vmem:[#allocation2 + $0x7c] sm:$0xf] %vm1696, %v1651
        %1729 = vst.msk [vmem:[#allocation2 + $0x80] sm:$0xf] %vm1696, %v1653
        %1730 = vst.msk [vmem:[#allocation2 + $0x84] sm:$0xf] %vm1696, %v1655
        %1731 = vst.msk [vmem:[#allocation2 + $0x88] sm:$0xf] %vm1696, %v1657
        %1732 = vst.msk [vmem:[#allocation2 + $0x8c] sm:$0xf] %vm1696, %v1659
        %v1733 = vld [vmem:[%s357 + $0x24] sm:$0xff]
        %v1734 = vld [vmem:[%s357 + $0x2c] sm:$0xff]
        %v1735 = vld [vmem:[%s357 + $0x34] sm:$0xff]
        %v1736 = vld [vmem:[%s357 + $0x3c] sm:$0xff]
        %v1737 = vld [vmem:[%s357 + $0x44] sm:$0xff]
        %v1738 = vld [vmem:[%s357 + $0x4c] sm:$0xff]
        %v1739 = vld [vmem:[%s357 + $0x54] sm:$0xff]
        %v1740 = vld [vmem:[%s357 + $0x5c] sm:$0xff]
        %v1741 = vld [vmem:[%s357 + $0x64] sm:$0xff]
        %v1742 = vld [vmem:[%s357 + $0x6c] sm:$0xff]
        %v1743 = vld [vmem:[%s357 + $0x74] sm:$0xff]
        %v1744 = vld [vmem:[%s357 + $0x7c] sm:$0xff]
        %v1745 = vld [vmem:[%s357 + $0x84] sm:$0xff]
        %v1746 = vld [vmem:[%s357 + $0x8c] sm:$0xff]
        %v1747 = vld [vmem:[%s357 + $0x94] sm:$0xff]
        %v1748 = vld [vmem:[%s357 + $0x9c] sm:$0xff]
        %v1749 = vld [vmem:[%s357 + $0xa4] sm:$0xff]
        %v1750 = vld [vmem:[%s357 + $0xac] sm:$0xff]
        %v1751 = vld [vmem:[%s357 + $0xb4] sm:$0xff]
        %v1752 = vld [vmem:[%s357 + $0xbc] sm:$0xff]
        %v1753 = vld [vmem:[%s357 + $0xc4] sm:$0xff]
        %v1754 = vld [vmem:[%s357 + $0xcc] sm:$0xff]
        %v1755 = vld [vmem:[%s357 + $0xd4] sm:$0xff]
        %v1756 = vld [vmem:[%s357 + $0xdc] sm:$0xff]
        %v1757 = vld [vmem:[%s357 + $0xe4] sm:$0xff]
        %v1758 = vld [vmem:[%s357 + $0xec] sm:$0xff]
        %v1759 = vld [vmem:[%s357 + $0xf4] sm:$0xff]
        %v1760 = vld [vmem:[%s357 + $0xfc] sm:$0xff]
        %v1761 = vld [vmem:[%s357 + $0x104] sm:$0xff]
        %v1762 = vld [vmem:[%s357 + $0x10c] sm:$0xff]
        %v1763 = vld [vmem:[%s357 + $0x114] sm:$0xff]
        %v1764 = vld [vmem:[%s357 + $0x11c] sm:$0xff]
        %v1765 = vld [vmem:[%s357 + $0x124] sm:$0xff]
        %v1766 = vld [vmem:[%s357 + $0x12c] sm:$0xff]
        %v1767 = vld [vmem:[%s357 + $0x134] sm:$0xff]
        %v1768 = vld [vmem:[%s357 + $0x13c] sm:$0xff]
        %v1769 = vpack.c.bf16 %v1733, %v1733
        %v1770 = vpack.c.bf16 %v1734, %v1734
        %v1771 = vpack.c.bf16 %v1735, %v1735
        %v1772 = vpack.c.bf16 %v1736, %v1736
        %v1773 = vpack.c.bf16 %v1737, %v1737
        %v1774 = vpack.c.bf16 %v1738, %v1738
        %v1775 = vpack.c.bf16 %v1739, %v1739
        %v1776 = vpack.c.bf16 %v1740, %v1740
        %v1777 = vpack.c.bf16 %v1741, %v1741
        %v1778 = vpack.c.bf16 %v1742, %v1742
        %v1779 = vpack.c.bf16 %v1743, %v1743
        %v1780 = vpack.c.bf16 %v1744, %v1744
        %v1781 = vpack.c.bf16 %v1745, %v1745
        %v1782 = vpack.c.bf16 %v1746, %v1746
        %v1783 = vpack.c.bf16 %v1747, %v1747
        %v1784 = vpack.c.bf16 %v1748, %v1748
        %v1785 = vpack.c.bf16 %v1749, %v1749
        %v1786 = vpack.c.bf16 %v1750, %v1750
        %v1787 = vpack.c.bf16 %v1751, %v1751
        %v1788 = vpack.c.bf16 %v1752, %v1752
        %v1789 = vpack.c.bf16 %v1753, %v1753
        %v1790 = vpack.c.bf16 %v1754, %v1754
        %v1791 = vpack.c.bf16 %v1755, %v1755
        %v1792 = vpack.c.bf16 %v1756, %v1756
        %v1793 = vpack.c.bf16 %v1757, %v1757
        %v1794 = vpack.c.bf16 %v1758, %v1758
        %v1795 = vpack.c.bf16 %v1759, %v1759
        %v1796 = vpack.c.bf16 %v1760, %v1760
        %v1797 = vpack.c.bf16 %v1761, %v1761
        %v1798 = vpack.c.bf16 %v1762, %v1762
        %v1799 = vpack.c.bf16 %v1763, %v1763
        %v1800 = vpack.c.bf16 %v1764, %v1764
        %v1801 = vpack.c.bf16 %v1765, %v1765
        %v1802 = vpack.c.bf16 %v1766, %v1766
        %v1803 = vpack.c.bf16 %v1767, %v1767
        %v1804 = vpack.c.bf16 %v1768, %v1768
        %1841 = vrot.lane.b32.xlu0 %v1769, 48
        %v1842 = vpop.permute.xlu0 %1841
        %1843 = vrot.lane.b32.xlu0 %v1770, 48
        %v1844 = vpop.permute.xlu0 %1843
        %1845 = vrot.lane.b32.xlu0 %v1771, 48
        %v1846 = vpop.permute.xlu0 %1845
        %1847 = vrot.lane.b32.xlu0 %v1772, 48
        %v1848 = vpop.permute.xlu0 %1847
        %1849 = vrot.lane.b32.xlu0 %v1773, 48
        %v1850 = vpop.permute.xlu0 %1849
        %1851 = vrot.lane.b32.xlu0 %v1774, 48
        %v1852 = vpop.permute.xlu0 %1851
        %1853 = vrot.lane.b32.xlu0 %v1775, 48
        %v1854 = vpop.permute.xlu0 %1853
        %1855 = vrot.lane.b32.xlu0 %v1776, 48
        %v1856 = vpop.permute.xlu0 %1855
        %1857 = vrot.lane.b32.xlu0 %v1777, 48
        %v1858 = vpop.permute.xlu0 %1857
        %1859 = vrot.lane.b32.xlu0 %v1778, 48
        %v1860 = vpop.permute.xlu0 %1859
        %1861 = vrot.lane.b32.xlu0 %v1779, 48
        %v1862 = vpop.permute.xlu0 %1861
        %1863 = vrot.lane.b32.xlu0 %v1780, 48
        %v1864 = vpop.permute.xlu0 %1863
        %1865 = vrot.lane.b32.xlu0 %v1781, 48
        %v1866 = vpop.permute.xlu0 %1865
        %1867 = vrot.lane.b32.xlu0 %v1782, 48
        %v1868 = vpop.permute.xlu0 %1867
        %1869 = vrot.lane.b32.xlu0 %v1783, 48
        %v1870 = vpop.permute.xlu0 %1869
        %1871 = vrot.lane.b32.xlu0 %v1784, 48
        %v1872 = vpop.permute.xlu0 %1871
        %1873 = vrot.lane.b32.xlu0 %v1785, 48
        %v1874 = vpop.permute.xlu0 %1873
        %1875 = vrot.lane.b32.xlu0 %v1786, 48
        %v1876 = vpop.permute.xlu0 %1875
        %1877 = vrot.lane.b32.xlu0 %v1787, 48
        %v1878 = vpop.permute.xlu0 %1877
        %1879 = vrot.lane.b32.xlu0 %v1788, 48
        %v1880 = vpop.permute.xlu0 %1879
        %1881 = vrot.lane.b32.xlu0 %v1789, 48
        %v1882 = vpop.permute.xlu0 %1881
        %1883 = vrot.lane.b32.xlu0 %v1790, 48
        %v1884 = vpop.permute.xlu0 %1883
        %1885 = vrot.lane.b32.xlu0 %v1791, 48
        %v1886 = vpop.permute.xlu0 %1885
        %1887 = vrot.lane.b32.xlu0 %v1792, 48
        %v1888 = vpop.permute.xlu0 %1887
        %1889 = vrot.lane.b32.xlu0 %v1793, 48
        %v1890 = vpop.permute.xlu0 %1889
        %1891 = vrot.lane.b32.xlu0 %v1794, 48
        %v1892 = vpop.permute.xlu0 %1891
        %1893 = vrot.lane.b32.xlu0 %v1795, 48
        %v1894 = vpop.permute.xlu0 %1893
        %1895 = vrot.lane.b32.xlu0 %v1796, 48
        %v1896 = vpop.permute.xlu0 %1895
        %1897 = vrot.lane.b32.xlu0 %v1797, 48
        %v1898 = vpop.permute.xlu0 %1897
        %1899 = vrot.lane.b32.xlu0 %v1798, 48
        %v1900 = vpop.permute.xlu0 %1899
        %1901 = vrot.lane.b32.xlu0 %v1799, 48
        %v1902 = vpop.permute.xlu0 %1901
        %1903 = vrot.lane.b32.xlu0 %v1800, 48
        %v1904 = vpop.permute.xlu0 %1903
        %1905 = vrot.lane.b32.xlu0 %v1801, 48
        %v1906 = vpop.permute.xlu0 %1905
        %1907 = vrot.lane.b32.xlu0 %v1802, 48
        %v1908 = vpop.permute.xlu0 %1907
        %1909 = vrot.lane.b32.xlu0 %v1803, 48
        %v1910 = vpop.permute.xlu0 %1909
        %1911 = vrot.lane.b32.xlu0 %v1804, 48
        %v1912 = vpop.permute.xlu0 %1911
        %vm1949 = vcmask 454016
        %1950 = vst.msk [vmem:[#allocation2] sm:$0xf] %vm1949, %v1842
        %1951 = vst.msk [vmem:[#allocation2 + $0x4] sm:$0xf] %vm1949, %v1844
        %1952 = vst.msk [vmem:[#allocation2 + $0x8] sm:$0xf] %vm1949, %v1846
        %1953 = vst.msk [vmem:[#allocation2 + $0xc] sm:$0xf] %vm1949, %v1848
        %1954 = vst.msk [vmem:[#allocation2 + $0x10] sm:$0xf] %vm1949, %v1850
        %1955 = vst.msk [vmem:[#allocation2 + $0x14] sm:$0xf] %vm1949, %v1852
        %1956 = vst.msk [vmem:[#allocation2 + $0x18] sm:$0xf] %vm1949, %v1854
        %1957 = vst.msk [vmem:[#allocation2 + $0x1c] sm:$0xf] %vm1949, %v1856
        %1958 = vst.msk [vmem:[#allocation2 + $0x20] sm:$0xf] %vm1949, %v1858
        %1959 = vst.msk [vmem:[#allocation2 + $0x24] sm:$0xf] %vm1949, %v1860
        %1960 = vst.msk [vmem:[#allocation2 + $0x28] sm:$0xf] %vm1949, %v1862
        %1961 = vst.msk [vmem:[#allocation2 + $0x2c] sm:$0xf] %vm1949, %v1864
        %1962 = vst.msk [vmem:[#allocation2 + $0x30] sm:$0xf] %vm1949, %v1866
        %1963 = vst.msk [vmem:[#allocation2 + $0x34] sm:$0xf] %vm1949, %v1868
        %1964 = vst.msk [vmem:[#allocation2 + $0x38] sm:$0xf] %vm1949, %v1870
        %1965 = vst.msk [vmem:[#allocation2 + $0x3c] sm:$0xf] %vm1949, %v1872
        %1966 = vst.msk [vmem:[#allocation2 + $0x40] sm:$0xf] %vm1949, %v1874
        %1967 = vst.msk [vmem:[#allocation2 + $0x44] sm:$0xf] %vm1949, %v1876
        %1968 = vst.msk [vmem:[#allocation2 + $0x48] sm:$0xf] %vm1949, %v1878
        %1969 = vst.msk [vmem:[#allocation2 + $0x4c] sm:$0xf] %vm1949, %v1880
        %1970 = vst.msk [vmem:[#allocation2 + $0x50] sm:$0xf] %vm1949, %v1882
        %1971 = vst.msk [vmem:[#allocation2 + $0x54] sm:$0xf] %vm1949, %v1884
        %1972 = vst.msk [vmem:[#allocation2 + $0x58] sm:$0xf] %vm1949, %v1886
        %1973 = vst.msk [vmem:[#allocation2 + $0x5c] sm:$0xf] %vm1949, %v1888
        %1974 = vst.msk [vmem:[#allocation2 + $0x60] sm:$0xf] %vm1949, %v1890
        %1975 = vst.msk [vmem:[#allocation2 + $0x64] sm:$0xf] %vm1949, %v1892
        %1976 = vst.msk [vmem:[#allocation2 + $0x68] sm:$0xf] %vm1949, %v1894
        %1977 = vst.msk [vmem:[#allocation2 + $0x6c] sm:$0xf] %vm1949, %v1896
        %1978 = vst.msk [vmem:[#allocation2 + $0x70] sm:$0xf] %vm1949, %v1898
        %1979 = vst.msk [vmem:[#allocation2 + $0x74] sm:$0xf] %vm1949, %v1900
        %1980 = vst.msk [vmem:[#allocation2 + $0x78] sm:$0xf] %vm1949, %v1902
        %1981 = vst.msk [vmem:[#allocation2 + $0x7c] sm:$0xf] %vm1949, %v1904
        %1982 = vst.msk [vmem:[#allocation2 + $0x80] sm:$0xf] %vm1949, %v1906
        %1983 = vst.msk [vmem:[#allocation2 + $0x84] sm:$0xf] %vm1949, %v1908
        %1984 = vst.msk [vmem:[#allocation2 + $0x88] sm:$0xf] %vm1949, %v1910
        %1985 = vst.msk [vmem:[#allocation2 + $0x8c] sm:$0xf] %vm1949, %v1912
        %v1986 = vld [vmem:[%s357 + $0x25] sm:$0xff]
        %v1987 = vld [vmem:[%s357 + $0x2d] sm:$0xff]
        %v1988 = vld [vmem:[%s357 + $0x35] sm:$0xff]
        %v1989 = vld [vmem:[%s357 + $0x3d] sm:$0xff]
        %v1990 = vld [vmem:[%s357 + $0x45] sm:$0xff]
        %v1991 = vld [vmem:[%s357 + $0x4d] sm:$0xff]
        %v1992 = vld [vmem:[%s357 + $0x55] sm:$0xff]
        %v1993 = vld [vmem:[%s357 + $0x5d] sm:$0xff]
        %v1994 = vld [vmem:[%s357 + $0x65] sm:$0xff]
        %v1995 = vld [vmem:[%s357 + $0x6d] sm:$0xff]
        %v1996 = vld [vmem:[%s357 + $0x75] sm:$0xff]
        %v1997 = vld [vmem:[%s357 + $0x7d] sm:$0xff]
        %v1998 = vld [vmem:[%s357 + $0x85] sm:$0xff]
        %v1999 = vld [vmem:[%s357 + $0x8d] sm:$0xff]
        %v2000 = vld [vmem:[%s357 + $0x95] sm:$0xff]
        %v2001 = vld [vmem:[%s357 + $0x9d] sm:$0xff]
        %v2002 = vld [vmem:[%s357 + $0xa5] sm:$0xff]
        %v2003 = vld [vmem:[%s357 + $0xad] sm:$0xff]
        %v2004 = vld [vmem:[%s357 + $0xb5] sm:$0xff]
        %v2005 = vld [vmem:[%s357 + $0xbd] sm:$0xff]
        %v2006 = vld [vmem:[%s357 + $0xc5] sm:$0xff]
        %v2007 = vld [vmem:[%s357 + $0xcd] sm:$0xff]
        %v2008 = vld [vmem:[%s357 + $0xd5] sm:$0xff]
        %v2009 = vld [vmem:[%s357 + $0xdd] sm:$0xff]
        %v2010 = vld [vmem:[%s357 + $0xe5] sm:$0xff]
        %v2011 = vld [vmem:[%s357 + $0xed] sm:$0xff]
        %v2012 = vld [vmem:[%s357 + $0xf5] sm:$0xff]
        %v2013 = vld [vmem:[%s357 + $0xfd] sm:$0xff]
        %v2014 = vld [vmem:[%s357 + $0x105] sm:$0xff]
        %v2015 = vld [vmem:[%s357 + $0x10d] sm:$0xff]
        %v2016 = vld [vmem:[%s357 + $0x115] sm:$0xff]
        %v2017 = vld [vmem:[%s357 + $0x11d] sm:$0xff]
        %v2018 = vld [vmem:[%s357 + $0x125] sm:$0xff]
        %v2019 = vld [vmem:[%s357 + $0x12d] sm:$0xff]
        %v2020 = vld [vmem:[%s357 + $0x135] sm:$0xff]
        %v2021 = vld [vmem:[%s357 + $0x13d] sm:$0xff]
        %v2022 = vpack.c.bf16 %v1986, %v1986
        %v2023 = vpack.c.bf16 %v1987, %v1987
        %v2024 = vpack.c.bf16 %v1988, %v1988
        %v2025 = vpack.c.bf16 %v1989, %v1989
        %v2026 = vpack.c.bf16 %v1990, %v1990
        %v2027 = vpack.c.bf16 %v1991, %v1991
        %v2028 = vpack.c.bf16 %v1992, %v1992
        %v2029 = vpack.c.bf16 %v1993, %v1993
        %v2030 = vpack.c.bf16 %v1994, %v1994
        %v2031 = vpack.c.bf16 %v1995, %v1995
        %v2032 = vpack.c.bf16 %v1996, %v1996
        %v2033 = vpack.c.bf16 %v1997, %v1997
        %v2034 = vpack.c.bf16 %v1998, %v1998
        %v2035 = vpack.c.bf16 %v1999, %v1999
        %v2036 = vpack.c.bf16 %v2000, %v2000
        %v2037 = vpack.c.bf16 %v2001, %v2001
        %v2038 = vpack.c.bf16 %v2002, %v2002
        %v2039 = vpack.c.bf16 %v2003, %v2003
        %v2040 = vpack.c.bf16 %v2004, %v2004
        %v2041 = vpack.c.bf16 %v2005, %v2005
        %v2042 = vpack.c.bf16 %v2006, %v2006
        %v2043 = vpack.c.bf16 %v2007, %v2007
        %v2044 = vpack.c.bf16 %v2008, %v2008
        %v2045 = vpack.c.bf16 %v2009, %v2009
        %v2046 = vpack.c.bf16 %v2010, %v2010
        %v2047 = vpack.c.bf16 %v2011, %v2011
        %v2048 = vpack.c.bf16 %v2012, %v2012
        %v2049 = vpack.c.bf16 %v2013, %v2013
        %v2050 = vpack.c.bf16 %v2014, %v2014
        %v2051 = vpack.c.bf16 %v2015, %v2015
        %v2052 = vpack.c.bf16 %v2016, %v2016
        %v2053 = vpack.c.bf16 %v2017, %v2017
        %v2054 = vpack.c.bf16 %v2018, %v2018
        %v2055 = vpack.c.bf16 %v2019, %v2019
        %v2056 = vpack.c.bf16 %v2020, %v2020
        %v2057 = vpack.c.bf16 %v2021, %v2021
        %2094 = vrot.lane.b32.xlu0 %v2022, 56
        %v2095 = vpop.permute.xlu0 %2094
        %2096 = vrot.lane.b32.xlu0 %v2023, 56
        %v2097 = vpop.permute.xlu0 %2096
        %2098 = vrot.lane.b32.xlu0 %v2024, 56
        %v2099 = vpop.permute.xlu0 %2098
        %2100 = vrot.lane.b32.xlu0 %v2025, 56
        %v2101 = vpop.permute.xlu0 %2100
        %2102 = vrot.lane.b32.xlu0 %v2026, 56
        %v2103 = vpop.permute.xlu0 %2102
        %2104 = vrot.lane.b32.xlu0 %v2027, 56
        %v2105 = vpop.permute.xlu0 %2104
        %2106 = vrot.lane.b32.xlu0 %v2028, 56
        %v2107 = vpop.permute.xlu0 %2106
        %2108 = vrot.lane.b32.xlu0 %v2029, 56
        %v2109 = vpop.permute.xlu0 %2108
        %2110 = vrot.lane.b32.xlu0 %v2030, 56
        %v2111 = vpop.permute.xlu0 %2110
        %2112 = vrot.lane.b32.xlu0 %v2031, 56
        %v2113 = vpop.permute.xlu0 %2112
        %2114 = vrot.lane.b32.xlu0 %v2032, 56
        %v2115 = vpop.permute.xlu0 %2114
        %2116 = vrot.lane.b32.xlu0 %v2033, 56
        %v2117 = vpop.permute.xlu0 %2116
        %2118 = vrot.lane.b32.xlu0 %v2034, 56
        %v2119 = vpop.permute.xlu0 %2118
        %2120 = vrot.lane.b32.xlu0 %v2035, 56
        %v2121 = vpop.permute.xlu0 %2120
        %2122 = vrot.lane.b32.xlu0 %v2036, 56
        %v2123 = vpop.permute.xlu0 %2122
        %2124 = vrot.lane.b32.xlu0 %v2037, 56
        %v2125 = vpop.permute.xlu0 %2124
        %2126 = vrot.lane.b32.xlu0 %v2038, 56
        %v2127 = vpop.permute.xlu0 %2126
        %2128 = vrot.lane.b32.xlu0 %v2039, 56
        %v2129 = vpop.permute.xlu0 %2128
        %2130 = vrot.lane.b32.xlu0 %v2040, 56
        %v2131 = vpop.permute.xlu0 %2130
        %2132 = vrot.lane.b32.xlu0 %v2041, 56
        %v2133 = vpop.permute.xlu0 %2132
        %2134 = vrot.lane.b32.xlu0 %v2042, 56
        %v2135 = vpop.permute.xlu0 %2134
        %2136 = vrot.lane.b32.xlu0 %v2043, 56
        %v2137 = vpop.permute.xlu0 %2136
        %2138 = vrot.lane.b32.xlu0 %v2044, 56
        %v2139 = vpop.permute.xlu0 %2138
        %2140 = vrot.lane.b32.xlu0 %v2045, 56
        %v2141 = vpop.permute.xlu0 %2140
        %2142 = vrot.lane.b32.xlu0 %v2046, 56
        %v2143 = vpop.permute.xlu0 %2142
        %2144 = vrot.lane.b32.xlu0 %v2047, 56
        %v2145 = vpop.permute.xlu0 %2144
        %2146 = vrot.lane.b32.xlu0 %v2048, 56
        %v2147 = vpop.permute.xlu0 %2146
        %2148 = vrot.lane.b32.xlu0 %v2049, 56
        %v2149 = vpop.permute.xlu0 %2148
        %2150 = vrot.lane.b32.xlu0 %v2050, 56
        %v2151 = vpop.permute.xlu0 %2150
        %2152 = vrot.lane.b32.xlu0 %v2051, 56
        %v2153 = vpop.permute.xlu0 %2152
        %2154 = vrot.lane.b32.xlu0 %v2052, 56
        %v2155 = vpop.permute.xlu0 %2154
        %2156 = vrot.lane.b32.xlu0 %v2053, 56
        %v2157 = vpop.permute.xlu0 %2156
        %2158 = vrot.lane.b32.xlu0 %v2054, 56
        %v2159 = vpop.permute.xlu0 %2158
        %2160 = vrot.lane.b32.xlu0 %v2055, 56
        %v2161 = vpop.permute.xlu0 %2160
        %2162 = vrot.lane.b32.xlu0 %v2056, 56
        %v2163 = vpop.permute.xlu0 %2162
        %2164 = vrot.lane.b32.xlu0 %v2057, 56
        %v2165 = vpop.permute.xlu0 %2164
        %vm2202 = vcmask 519616
        %2203 = vst.msk [vmem:[#allocation2] sm:$0xf] %vm2202, %v2095
        %2204 = vst.msk [vmem:[#allocation2 + $0x4] sm:$0xf] %vm2202, %v2097
        %2205 = vst.msk [vmem:[#allocation2 + $0x8] sm:$0xf] %vm2202, %v2099
        %2206 = vst.msk [vmem:[#allocation2 + $0xc] sm:$0xf] %vm2202, %v2101
        %2207 = vst.msk [vmem:[#allocation2 + $0x10] sm:$0xf] %vm2202, %v2103
        %2208 = vst.msk [vmem:[#allocation2 + $0x14] sm:$0xf] %vm2202, %v2105
        %2209 = vst.msk [vmem:[#allocation2 + $0x18] sm:$0xf] %vm2202, %v2107
        %2210 = vst.msk [vmem:[#allocation2 + $0x1c] sm:$0xf] %vm2202, %v2109
        %2211 = vst.msk [vmem:[#allocation2 + $0x20] sm:$0xf] %vm2202, %v2111
        %2212 = vst.msk [vmem:[#allocation2 + $0x24] sm:$0xf] %vm2202, %v2113
        %2213 = vst.msk [vmem:[#allocation2 + $0x28] sm:$0xf] %vm2202, %v2115
        %2214 = vst.msk [vmem:[#allocation2 + $0x2c] sm:$0xf] %vm2202, %v2117
        %2215 = vst.msk [vmem:[#allocation2 + $0x30] sm:$0xf] %vm2202, %v2119
        %2216 = vst.msk [vmem:[#allocation2 + $0x34] sm:$0xf] %vm2202, %v2121
        %2217 = vst.msk [vmem:[#allocation2 + $0x38] sm:$0xf] %vm2202, %v2123
        %2218 = vst.msk [vmem:[#allocation2 + $0x3c] sm:$0xf] %vm2202, %v2125
        %2219 = vst.msk [vmem:[#allocation2 + $0x40] sm:$0xf] %vm2202, %v2127
        %2220 = vst.msk [vmem:[#allocation2 + $0x44] sm:$0xf] %vm2202, %v2129
        %2221 = vst.msk [vmem:[#allocation2 + $0x48] sm:$0xf] %vm2202, %v2131
        %2222 = vst.msk [vmem:[#allocation2 + $0x4c] sm:$0xf] %vm2202, %v2133
        %2223 = vst.msk [vmem:[#allocation2 + $0x50] sm:$0xf] %vm2202, %v2135
        %2224 = vst.msk [vmem:[#allocation2 + $0x54] sm:$0xf] %vm2202, %v2137
        %2225 = vst.msk [vmem:[#allocation2 + $0x58] sm:$0xf] %vm2202, %v2139
        %2226 = vst.msk [vmem:[#allocation2 + $0x5c] sm:$0xf] %vm2202, %v2141
        %2227 = vst.msk [vmem:[#allocation2 + $0x60] sm:$0xf] %vm2202, %v2143
        %2228 = vst.msk [vmem:[#allocation2 + $0x64] sm:$0xf] %vm2202, %v2145
        %2229 = vst.msk [vmem:[#allocation2 + $0x68] sm:$0xf] %vm2202, %v2147
        %2230 = vst.msk [vmem:[#allocation2 + $0x6c] sm:$0xf] %vm2202, %v2149
        %2231 = vst.msk [vmem:[#allocation2 + $0x70] sm:$0xf] %vm2202, %v2151
        %2232 = vst.msk [vmem:[#allocation2 + $0x74] sm:$0xf] %vm2202, %v2153
        %2233 = vst.msk [vmem:[#allocation2 + $0x78] sm:$0xf] %vm2202, %v2155
        %2234 = vst.msk [vmem:[#allocation2 + $0x7c] sm:$0xf] %vm2202, %v2157
        %2235 = vst.msk [vmem:[#allocation2 + $0x80] sm:$0xf] %vm2202, %v2159
        %2236 = vst.msk [vmem:[#allocation2 + $0x84] sm:$0xf] %vm2202, %v2161
        %2237 = vst.msk [vmem:[#allocation2 + $0x88] sm:$0xf] %vm2202, %v2163
        %2238 = vst.msk [vmem:[#allocation2 + $0x8c] sm:$0xf] %vm2202, %v2165
        %v2239 = vld [vmem:[%s357 + $0x26] sm:$0xff]
        %v2240 = vld [vmem:[%s357 + $0x2e] sm:$0xff]
        %v2241 = vld [vmem:[%s357 + $0x36] sm:$0xff]
        %v2242 = vld [vmem:[%s357 + $0x3e] sm:$0xff]
        %v2243 = vld [vmem:[%s357 + $0x46] sm:$0xff]
        %v2244 = vld [vmem:[%s357 + $0x4e] sm:$0xff]
        %v2245 = vld [vmem:[%s357 + $0x56] sm:$0xff]
        %v2246 = vld [vmem:[%s357 + $0x5e] sm:$0xff]
        %v2247 = vld [vmem:[%s357 + $0x66] sm:$0xff]
        %v2248 = vld [vmem:[%s357 + $0x6e] sm:$0xff]
        %v2249 = vld [vmem:[%s357 + $0x76] sm:$0xff]
        %v2250 = vld [vmem:[%s357 + $0x7e] sm:$0xff]
        %v2251 = vld [vmem:[%s357 + $0x86] sm:$0xff]
        %v2252 = vld [vmem:[%s357 + $0x8e] sm:$0xff]
        %v2253 = vld [vmem:[%s357 + $0x96] sm:$0xff]
        %v2254 = vld [vmem:[%s357 + $0x9e] sm:$0xff]
        %v2255 = vld [vmem:[%s357 + $0xa6] sm:$0xff]
        %v2256 = vld [vmem:[%s357 + $0xae] sm:$0xff]
        %v2257 = vld [vmem:[%s357 + $0xb6] sm:$0xff]
        %v2258 = vld [vmem:[%s357 + $0xbe] sm:$0xff]
        %v2259 = vld [vmem:[%s357 + $0xc6] sm:$0xff]
        %v2260 = vld [vmem:[%s357 + $0xce] sm:$0xff]
        %v2261 = vld [vmem:[%s357 + $0xd6] sm:$0xff]
        %v2262 = vld [vmem:[%s357 + $0xde] sm:$0xff]
        %v2263 = vld [vmem:[%s357 + $0xe6] sm:$0xff]
        %v2264 = vld [vmem:[%s357 + $0xee] sm:$0xff]
        %v2265 = vld [vmem:[%s357 + $0xf6] sm:$0xff]
        %v2266 = vld [vmem:[%s357 + $0xfe] sm:$0xff]
        %v2267 = vld [vmem:[%s357 + $0x106] sm:$0xff]
        %v2268 = vld [vmem:[%s357 + $0x10e] sm:$0xff]
        %v2269 = vld [vmem:[%s357 + $0x116] sm:$0xff]
        %v2270 = vld [vmem:[%s357 + $0x11e] sm:$0xff]
        %v2271 = vld [vmem:[%s357 + $0x126] sm:$0xff]
        %v2272 = vld [vmem:[%s357 + $0x12e] sm:$0xff]
        %v2273 = vld [vmem:[%s357 + $0x136] sm:$0xff]
        %v2274 = vld [vmem:[%s357 + $0x13e] sm:$0xff]
        %v2275 = vpack.c.bf16 %v2239, %v2239
        %v2276 = vpack.c.bf16 %v2240, %v2240
        %v2277 = vpack.c.bf16 %v2241, %v2241
        %v2278 = vpack.c.bf16 %v2242, %v2242
        %v2279 = vpack.c.bf16 %v2243, %v2243
        %v2280 = vpack.c.bf16 %v2244, %v2244
        %v2281 = vpack.c.bf16 %v2245, %v2245
        %v2282 = vpack.c.bf16 %v2246, %v2246
        %v2283 = vpack.c.bf16 %v2247, %v2247
        %v2284 = vpack.c.bf16 %v2248, %v2248
        %v2285 = vpack.c.bf16 %v2249, %v2249
        %v2286 = vpack.c.bf16 %v2250, %v2250
        %v2287 = vpack.c.bf16 %v2251, %v2251
        %v2288 = vpack.c.bf16 %v2252, %v2252
        %v2289 = vpack.c.bf16 %v2253, %v2253
        %v2290 = vpack.c.bf16 %v2254, %v2254
        %v2291 = vpack.c.bf16 %v2255, %v2255
        %v2292 = vpack.c.bf16 %v2256, %v2256
        %v2293 = vpack.c.bf16 %v2257, %v2257
        %v2294 = vpack.c.bf16 %v2258, %v2258
        %v2295 = vpack.c.bf16 %v2259, %v2259
        %v2296 = vpack.c.bf16 %v2260, %v2260
        %v2297 = vpack.c.bf16 %v2261, %v2261
        %v2298 = vpack.c.bf16 %v2262, %v2262
        %v2299 = vpack.c.bf16 %v2263, %v2263
        %v2300 = vpack.c.bf16 %v2264, %v2264
        %v2301 = vpack.c.bf16 %v2265, %v2265
        %v2302 = vpack.c.bf16 %v2266, %v2266
        %v2303 = vpack.c.bf16 %v2267, %v2267
        %v2304 = vpack.c.bf16 %v2268, %v2268
        %v2305 = vpack.c.bf16 %v2269, %v2269
        %v2306 = vpack.c.bf16 %v2270, %v2270
        %v2307 = vpack.c.bf16 %v2271, %v2271
        %v2308 = vpack.c.bf16 %v2272, %v2272
        %v2309 = vpack.c.bf16 %v2273, %v2273
        %v2310 = vpack.c.bf16 %v2274, %v2274
        %2347 = vrot.lane.b32.xlu0 %v2275, 64
        %v2348 = vpop.permute.xlu0 %2347
        %2349 = vrot.lane.b32.xlu0 %v2276, 64
        %v2350 = vpop.permute.xlu0 %2349
        %2351 = vrot.lane.b32.xlu0 %v2277, 64
        %v2352 = vpop.permute.xlu0 %2351
        %2353 = vrot.lane.b32.xlu0 %v2278, 64
        %v2354 = vpop.permute.xlu0 %2353
        %2355 = vrot.lane.b32.xlu0 %v2279, 64
        %v2356 = vpop.permute.xlu0 %2355
        %2357 = vrot.lane.b32.xlu0 %v2280, 64
        %v2358 = vpop.permute.xlu0 %2357
        %2359 = vrot.lane.b32.xlu0 %v2281, 64
        %v2360 = vpop.permute.xlu0 %2359
        %2361 = vrot.lane.b32.xlu0 %v2282, 64
        %v2362 = vpop.permute.xlu0 %2361
        %2363 = vrot.lane.b32.xlu0 %v2283, 64
        %v2364 = vpop.permute.xlu0 %2363
        %2365 = vrot.lane.b32.xlu0 %v2284, 64
        %v2366 = vpop.permute.xlu0 %2365
        %2367 = vrot.lane.b32.xlu0 %v2285, 64
        %v2368 = vpop.permute.xlu0 %2367
        %2369 = vrot.lane.b32.xlu0 %v2286, 64
        %v2370 = vpop.permute.xlu0 %2369
        %2371 = vrot.lane.b32.xlu0 %v2287, 64
        %v2372 = vpop.permute.xlu0 %2371
        %2373 = vrot.lane.b32.xlu0 %v2288, 64
        %v2374 = vpop.permute.xlu0 %2373
        %2375 = vrot.lane.b32.xlu0 %v2289, 64
        %v2376 = vpop.permute.xlu0 %2375
        %2377 = vrot.lane.b32.xlu0 %v2290, 64
        %v2378 = vpop.permute.xlu0 %2377
        %2379 = vrot.lane.b32.xlu0 %v2291, 64
        %v2380 = vpop.permute.xlu0 %2379
        %2381 = vrot.lane.b32.xlu0 %v2292, 64
        %v2382 = vpop.permute.xlu0 %2381
        %2383 = vrot.lane.b32.xlu0 %v2293, 64
        %v2384 = vpop.permute.xlu0 %2383
        %2385 = vrot.lane.b32.xlu0 %v2294, 64
        %v2386 = vpop.permute.xlu0 %2385
        %2387 = vrot.lane.b32.xlu0 %v2295, 64
        %v2388 = vpop.permute.xlu0 %2387
        %2389 = vrot.lane.b32.xlu0 %v2296, 64
        %v2390 = vpop.permute.xlu0 %2389
        %2391 = vrot.lane.b32.xlu0 %v2297, 64
        %v2392 = vpop.permute.xlu0 %2391
        %2393 = vrot.lane.b32.xlu0 %v2298, 64
        %v2394 = vpop.permute.xlu0 %2393
        %2395 = vrot.lane.b32.xlu0 %v2299, 64
        %v2396 = vpop.permute.xlu0 %2395
        %2397 = vrot.lane.b32.xlu0 %v2300, 64
        %v2398 = vpop.permute.xlu0 %2397
        %2399 = vrot.lane.b32.xlu0 %v2301, 64
        %v2400 = vpop.permute.xlu0 %2399
        %2401 = vrot.lane.b32.xlu0 %v2302, 64
        %v2402 = vpop.permute.xlu0 %2401
        %2403 = vrot.lane.b32.xlu0 %v2303, 64
        %v2404 = vpop.permute.xlu0 %2403
        %2405 = vrot.lane.b32.xlu0 %v2304, 64
        %v2406 = vpop.permute.xlu0 %2405
        %2407 = vrot.lane.b32.xlu0 %v2305, 64
        %v2408 = vpop.permute.xlu0 %2407
        %2409 = vrot.lane.b32.xlu0 %v2306, 64
        %v2410 = vpop.permute.xlu0 %2409
        %2411 = vrot.lane.b32.xlu0 %v2307, 64
        %v2412 = vpop.permute.xlu0 %2411
        %2413 = vrot.lane.b32.xlu0 %v2308, 64
        %v2414 = vpop.permute.xlu0 %2413
        %2415 = vrot.lane.b32.xlu0 %v2309, 64
        %v2416 = vpop.permute.xlu0 %2415
        %2417 = vrot.lane.b32.xlu0 %v2310, 64
        %v2418 = vpop.permute.xlu0 %2417
        %vm2455 = vcmask 585216
        %2456 = vst.msk [vmem:[#allocation2] sm:$0xf] %vm2455, %v2348
        %2457 = vst.msk [vmem:[#allocation2 + $0x4] sm:$0xf] %vm2455, %v2350
        %2458 = vst.msk [vmem:[#allocation2 + $0x8] sm:$0xf] %vm2455, %v2352
        %2459 = vst.msk [vmem:[#allocation2 + $0xc] sm:$0xf] %vm2455, %v2354
        %2460 = vst.msk [vmem:[#allocation2 + $0x10] sm:$0xf] %vm2455, %v2356
        %2461 = vst.msk [vmem:[#allocation2 + $0x14] sm:$0xf] %vm2455, %v2358
        %2462 = vst.msk [vmem:[#allocation2 + $0x18] sm:$0xf] %vm2455, %v2360
        %2463 = vst.msk [vmem:[#allocation2 + $0x1c] sm:$0xf] %vm2455, %v2362
        %2464 = vst.msk [vmem:[#allocation2 + $0x20] sm:$0xf] %vm2455, %v2364
        %2465 = vst.msk [vmem:[#allocation2 + $0x24] sm:$0xf] %vm2455, %v2366
        %2466 = vst.msk [vmem:[#allocation2 + $0x28] sm:$0xf] %vm2455, %v2368
        %2467 = vst.msk [vmem:[#allocation2 + $0x2c] sm:$0xf] %vm2455, %v2370
        %2468 = vst.msk [vmem:[#allocation2 + $0x30] sm:$0xf] %vm2455, %v2372
        %2469 = vst.msk [vmem:[#allocation2 + $0x34] sm:$0xf] %vm2455, %v2374
        %2470 = vst.msk [vmem:[#allocation2 + $0x38] sm:$0xf] %vm2455, %v2376
        %2471 = vst.msk [vmem:[#allocation2 + $0x3c] sm:$0xf] %vm2455, %v2378
        %2472 = vst.msk [vmem:[#allocation2 + $0x40] sm:$0xf] %vm2455, %v2380
        %2473 = vst.msk [vmem:[#allocation2 + $0x44] sm:$0xf] %vm2455, %v2382
        %2474 = vst.msk [vmem:[#allocation2 + $0x48] sm:$0xf] %vm2455, %v2384
        %2475 = vst.msk [vmem:[#allocation2 + $0x4c] sm:$0xf] %vm2455, %v2386
        %2476 = vst.msk [vmem:[#allocation2 + $0x50] sm:$0xf] %vm2455, %v2388
        %2477 = vst.msk [vmem:[#allocation2 + $0x54] sm:$0xf] %vm2455, %v2390
        %2478 = vst.msk [vmem:[#allocation2 + $0x58] sm:$0xf] %vm2455, %v2392
        %2479 = vst.msk [vmem:[#allocation2 + $0x5c] sm:$0xf] %vm2455, %v2394
        %2480 = vst.msk [vmem:[#allocation2 + $0x60] sm:$0xf] %vm2455, %v2396
        %2481 = vst.msk [vmem:[#allocation2 + $0x64] sm:$0xf] %vm2455, %v2398
        %2482 = vst.msk [vmem:[#allocation2 + $0x68] sm:$0xf] %vm2455, %v2400
        %2483 = vst.msk [vmem:[#allocation2 + $0x6c] sm:$0xf] %vm2455, %v2402
        %2484 = vst.msk [vmem:[#allocation2 + $0x70] sm:$0xf] %vm2455, %v2404
        %2485 = vst.msk [vmem:[#allocation2 + $0x74] sm:$0xf] %vm2455, %v2406
        %2486 = vst.msk [vmem:[#allocation2 + $0x78] sm:$0xf] %vm2455, %v2408
        %2487 = vst.msk [vmem:[#allocation2 + $0x7c] sm:$0xf] %vm2455, %v2410
        %2488 = vst.msk [vmem:[#allocation2 + $0x80] sm:$0xf] %vm2455, %v2412
        %2489 = vst.msk [vmem:[#allocation2 + $0x84] sm:$0xf] %vm2455, %v2414
        %2490 = vst.msk [vmem:[#allocation2 + $0x88] sm:$0xf] %vm2455, %v2416
        %2491 = vst.msk [vmem:[#allocation2 + $0x8c] sm:$0xf] %vm2455, %v2418
        %v2492 = vld [vmem:[#allocation2] sm:$0xf]
        %v2493 = vld [vmem:[#allocation2 + $0x4] sm:$0xf]
        %v2494 = vld [vmem:[#allocation2 + $0x8] sm:$0xf]
        %v2495 = vld [vmem:[#allocation2 + $0xc] sm:$0xf]
        %v2496 = vld [vmem:[#allocation2 + $0x10] sm:$0xf]
        %v2497 = vld [vmem:[#allocation2 + $0x14] sm:$0xf]
        %v2498 = vld [vmem:[#allocation2 + $0x18] sm:$0xf]
        %v2499 = vld [vmem:[#allocation2 + $0x1c] sm:$0xf]
        %v2500 = vld [vmem:[#allocation2 + $0x20] sm:$0xf]
        %v2501 = vld [vmem:[#allocation2 + $0x24] sm:$0xf]
        %v2502 = vld [vmem:[#allocation2 + $0x28] sm:$0xf]
        %v2503 = vld [vmem:[#allocation2 + $0x2c] sm:$0xf]
        %v2504 = vld [vmem:[#allocation2 + $0x30] sm:$0xf]
        %v2505 = vld [vmem:[#allocation2 + $0x34] sm:$0xf]
        %v2506 = vld [vmem:[#allocation2 + $0x38] sm:$0xf]
        %v2507 = vld [vmem:[#allocation2 + $0x3c] sm:$0xf]
        %v2508 = vld [vmem:[#allocation2 + $0x40] sm:$0xf]
        %v2509 = vld [vmem:[#allocation2 + $0x44] sm:$0xf]
        %v2510 = vld [vmem:[#allocation2 + $0x48] sm:$0xf]
        %v2511 = vld [vmem:[#allocation2 + $0x4c] sm:$0xf]
        %v2512 = vld [vmem:[#allocation2 + $0x50] sm:$0xf]
        %v2513 = vld [vmem:[#allocation2 + $0x54] sm:$0xf]
        %v2514 = vld [vmem:[#allocation2 + $0x58] sm:$0xf]
        %v2515 = vld [vmem:[#allocation2 + $0x5c] sm:$0xf]
        %v2516 = vld [vmem:[#allocation2 + $0x60] sm:$0xf]
        %v2517 = vld [vmem:[#allocation2 + $0x64] sm:$0xf]
        %v2518 = vld [vmem:[#allocation2 + $0x68] sm:$0xf]
        %v2519 = vld [vmem:[#allocation2 + $0x6c] sm:$0xf]
        %v2520 = vld [vmem:[#allocation2 + $0x70] sm:$0xf]
        %v2521 = vld [vmem:[#allocation2 + $0x74] sm:$0xf]
        %v2522 = vld [vmem:[#allocation2 + $0x78] sm:$0xf]
        %v2523 = vld [vmem:[#allocation2 + $0x7c] sm:$0xf]
        %v2524 = vld [vmem:[#allocation2 + $0x80] sm:$0xf]
        %v2525 = vld [vmem:[#allocation2 + $0x84] sm:$0xf]
        %v2526 = vld [vmem:[#allocation2 + $0x88] sm:$0xf]
        %v2527 = vld [vmem:[#allocation2 + $0x8c] sm:$0xf]
        %v2528 = vld [vmem:[%s1] sm:$0xff]
        %v2529 = vld [vmem:[%s1 + $0x8] sm:$0xff]
        %v2530 = vld [vmem:[%s1 + $0x10] sm:$0xff]
        %v2531 = vld [vmem:[%s1 + $0x18] sm:$0xff]
        %v2532 = vld [vmem:[%s1 + $0x20] sm:$0xff]
        %v2533 = vld [vmem:[%s1 + $0x28] sm:$0xff]
        %v2534 = vld [vmem:[%s1 + $0x30] sm:$0xff]
        %v2535 = vld [vmem:[%s1 + $0x38] sm:$0xff]
        %v2536 = vld [vmem:[%s1 + $0x40] sm:$0xff]
        %v2573 = vunpack.c.l.b16 %v2492
        %v2574 = vunpack.c.l.b16 %v2493
        %v2575 = vunpack.c.l.b16 %v2494
        %v2576 = vunpack.c.l.b16 %v2495
        %v2577 = vunpack.c.l.b16 %v2496
        %v2578 = vunpack.c.l.b16 %v2497
        %v2579 = vunpack.c.l.b16 %v2498
        %v2580 = vunpack.c.l.b16 %v2499
        %v2581 = vunpack.c.l.b16 %v2500
        %v2582 = vunpack.c.l.b16 %v2501
        %v2583 = vunpack.c.l.b16 %v2502
        %v2584 = vunpack.c.l.b16 %v2503
        %v2585 = vunpack.c.l.b16 %v2504
        %v2586 = vunpack.c.l.b16 %v2505
        %v2587 = vunpack.c.l.b16 %v2506
        %v2588 = vunpack.c.l.b16 %v2507
        %v2589 = vunpack.c.l.b16 %v2508
        %v2590 = vunpack.c.l.b16 %v2509
        %v2591 = vunpack.c.l.b16 %v2510
        %v2592 = vunpack.c.l.b16 %v2511
        %v2593 = vunpack.c.l.b16 %v2512
        %v2594 = vunpack.c.l.b16 %v2513
        %v2595 = vunpack.c.l.b16 %v2514
        %v2596 = vunpack.c.l.b16 %v2515
        %v2597 = vunpack.c.l.b16 %v2516
        %v2598 = vunpack.c.l.b16 %v2517
        %v2599 = vunpack.c.l.b16 %v2518
        %v2600 = vunpack.c.l.b16 %v2519
        %v2601 = vunpack.c.l.b16 %v2520
        %v2602 = vunpack.c.l.b16 %v2521
        %v2603 = vunpack.c.l.b16 %v2522
        %v2604 = vunpack.c.l.b16 %v2523
        %v2605 = vunpack.c.l.b16 %v2524
        %v2606 = vunpack.c.l.b16 %v2525
        %v2607 = vunpack.c.l.b16 %v2526
        %v2608 = vunpack.c.l.b16 %v2527
        %v2609 = vpack.c.b16 %v2574, %v2573
        %v2610 = vpack.c.b16 %v2576, %v2575
        %v2611 = vpack.c.b16 %v2578, %v2577
        %v2612 = vpack.c.b16 %v2580, %v2579
        %v2613 = vpack.c.b16 %v2582, %v2581
        %v2614 = vpack.c.b16 %v2584, %v2583
        %v2615 = vpack.c.b16 %v2586, %v2585
        %v2616 = vpack.c.b16 %v2588, %v2587
        %v2617 = vpack.c.b16 %v2590, %v2589
        %v2618 = vpack.c.b16 %v2592, %v2591
        %v2619 = vpack.c.b16 %v2594, %v2593
        %v2620 = vpack.c.b16 %v2596, %v2595
        %v2621 = vpack.c.b16 %v2598, %v2597
        %v2622 = vpack.c.b16 %v2600, %v2599
        %v2623 = vpack.c.b16 %v2602, %v2601
        %v2624 = vpack.c.b16 %v2604, %v2603
        %v2625 = vpack.c.b16 %v2606, %v2605
        %v2626 = vpack.c.b16 %v2608, %v2607
        %v2636 = vunpack.c.l.b16 %v2528
        %v2637 = vunpack.c.h.b16 %v2528
        %v2638 = vunpack.c.l.b16 %v2529
        %v2639 = vunpack.c.h.b16 %v2529
        %v2640 = vunpack.c.l.b16 %v2530
        %v2641 = vunpack.c.h.b16 %v2530
        %v2642 = vunpack.c.l.b16 %v2531
        %v2643 = vunpack.c.h.b16 %v2531
        %v2644 = vunpack.c.l.b16 %v2532
        %v2645 = vunpack.c.h.b16 %v2532
        %v2646 = vunpack.c.l.b16 %v2533
        %v2647 = vunpack.c.h.b16 %v2533
        %v2648 = vunpack.c.l.b16 %v2534
        %v2649 = vunpack.c.h.b16 %v2534
        %v2650 = vunpack.c.l.b16 %v2535
        %v2651 = vunpack.c.h.b16 %v2535
        %v2652 = vunpack.c.l.b16 %v2536
        %v2653 = vunpack.c.h.b16 %v2536
        %v2654 = vpack.c.b16 %v2638, %v2636
        %v2655 = vpack.c.b16 %v2639, %v2637
        %v2656 = vpack.c.b16 %v2642, %v2640
        %v2657 = vpack.c.b16 %v2643, %v2641
        %v2658 = vpack.c.b16 %v2646, %v2644
        %v2659 = vpack.c.b16 %v2647, %v2645
        %v2660 = vpack.c.b16 %v2650, %v2648
        %v2661 = vpack.c.b16 %v2651, %v2649
        %v2662 = vpack.c.b16 %v2652, %v2652
        %v2663 = vpack.c.b16 %v2653, %v2653
        %vm2672 = vcmask 588800
        %v2674 = vsel %vm2672, %v2609, 0
        %v2677 = vsel %vm2672, %v2610, 0
        %v2680 = vsel %vm2672, %v2611, 0
        %v2683 = vsel %vm2672, %v2612, 0
        %v2686 = vsel %vm2672, %v2613, 0
        %v2689 = vsel %vm2672, %v2614, 0
        %v2692 = vsel %vm2672, %v2615, 0
        %v2695 = vsel %vm2672, %v2616, 0
        %v2698 = vsel %vm2672, %v2617, 0
        %v2701 = vsel %vm2672, %v2618, 0
        %v2704 = vsel %vm2672, %v2619, 0
        %v2707 = vsel %vm2672, %v2620, 0
        %v2710 = vsel %vm2672, %v2621, 0
        %v2713 = vsel %vm2672, %v2622, 0
        %v2716 = vsel %vm2672, %v2623, 0
        %v2719 = vsel %vm2672, %v2624, 0
        %v2722 = vsel %vm2672, %v2625, 0
        %v2725 = vsel %vm2672, %v2626, 0
        %vm2727 = vcmask 1043456
        %v2729 = vsel %vm2727, %v2662, 0
        %v2732 = vsel %vm2727, %v2663, 0
        %2734 = vmatpush.bf16.msra.mxu0 0
        %2735 = vmatpush.bf16.msra.mxu0 0
        %2736 = vmatpush.bf16.msra.mxu0 0
        %2737 = vmatpush.bf16.msra.mxu0 %v2729
        %2738 = vmatpush.bf16.msra.mxu0 %v2660
        %2739 = vmatpush.bf16.msra.mxu0 %v2658
        %2740 = vmatpush.bf16.msra.mxu0 %v2656
        %2741 = vmatpush.bf16.msra.mxu0 %v2654
        %2742 = vmatmul.bf16.gmra.mxu0 %v2674
        %v2743 = vpop.f32.mrf.mxu0
        %v2744 = vadd.f32 0.0, %v2743
        %v2745 = vpop.f32.mrf.mxu0
        %v2746 = vadd.f32 0.0, %v2745
        %2747 = vmatmul.bf16.gmra.mxu0 %v2677
        %v2748 = vpop.f32.mrf.mxu0
        %v2749 = vadd.f32 0.0, %v2748
        %v2750 = vpop.f32.mrf.mxu0
        %v2751 = vadd.f32 0.0, %v2750
        %2752 = vmatmul.bf16.gmra.mxu0 %v2680
        %v2753 = vpop.f32.mrf.mxu0
        %v2754 = vadd.f32 0.0, %v2753
        %v2755 = vpop.f32.mrf.mxu0
        %v2756 = vadd.f32 0.0, %v2755
        %2757 = vmatmul.bf16.gmra.mxu0 %v2683
        %v2758 = vpop.f32.mrf.mxu0
        %v2759 = vadd.f32 0.0, %v2758
        %v2760 = vpop.f32.mrf.mxu0
        %v2761 = vadd.f32 0.0, %v2760
        %2762 = vmatmul.bf16.gmra.mxu0 %v2686
        %v2763 = vpop.f32.mrf.mxu0
        %v2764 = vadd.f32 0.0, %v2763
        %v2765 = vpop.f32.mrf.mxu0
        %v2766 = vadd.f32 0.0, %v2765
        %2767 = vmatmul.bf16.gmra.mxu0 %v2689
        %v2768 = vpop.f32.mrf.mxu0
        %v2769 = vadd.f32 0.0, %v2768
        %v2770 = vpop.f32.mrf.mxu0
        %v2771 = vadd.f32 0.0, %v2770
        %2772 = vmatmul.bf16.gmra.mxu0 %v2692
        %v2773 = vpop.f32.mrf.mxu0
        %v2774 = vadd.f32 0.0, %v2773
        %v2775 = vpop.f32.mrf.mxu0
        %v2776 = vadd.f32 0.0, %v2775
        %2777 = vmatmul.bf16.gmra.mxu0 %v2695
        %v2778 = vpop.f32.mrf.mxu0
        %v2779 = vadd.f32 0.0, %v2778
        %v2780 = vpop.f32.mrf.mxu0
        %v2781 = vadd.f32 0.0, %v2780
        %2782 = vmatmul.bf16.gmra.mxu0 %v2698
        %v2783 = vpop.f32.mrf.mxu0
        %v2784 = vadd.f32 0.0, %v2783
        %v2785 = vpop.f32.mrf.mxu0
        %v2786 = vadd.f32 0.0, %v2785
        %2787 = vmatmul.bf16.gmra.mxu0 %v2701
        %v2788 = vpop.f32.mrf.mxu0
        %v2789 = vadd.f32 0.0, %v2788
        %v2790 = vpop.f32.mrf.mxu0
        %v2791 = vadd.f32 0.0, %v2790
        %2792 = vmatmul.bf16.gmra.mxu0 %v2704
        %v2793 = vpop.f32.mrf.mxu0
        %v2794 = vadd.f32 0.0, %v2793
        %v2795 = vpop.f32.mrf.mxu0
        %v2796 = vadd.f32 0.0, %v2795
        %2797 = vmatmul.bf16.gmra.mxu0 %v2707
        %v2798 = vpop.f32.mrf.mxu0
        %v2799 = vadd.f32 0.0, %v2798
        %v2800 = vpop.f32.mrf.mxu0
        %v2801 = vadd.f32 0.0, %v2800
        %2802 = vmatmul.bf16.gmra.mxu0 %v2710
        %v2803 = vpop.f32.mrf.mxu0
        %v2804 = vadd.f32 0.0, %v2803
        %v2805 = vpop.f32.mrf.mxu0
        %v2806 = vadd.f32 0.0, %v2805
        %2807 = vmatmul.bf16.gmra.mxu0 %v2713
        %v2808 = vpop.f32.mrf.mxu0
        %v2809 = vadd.f32 0.0, %v2808
        %v2810 = vpop.f32.mrf.mxu0
        %v2811 = vadd.f32 0.0, %v2810
        %2812 = vmatmul.bf16.gmra.mxu0 %v2716
        %v2813 = vpop.f32.mrf.mxu0
        %v2814 = vadd.f32 0.0, %v2813
        %v2815 = vpop.f32.mrf.mxu0
        %v2816 = vadd.f32 0.0, %v2815
        %2817 = vmatmul.bf16.gmra.mxu0 %v2719
        %v2818 = vpop.f32.mrf.mxu0
        %v2819 = vadd.f32 0.0, %v2818
        %v2820 = vpop.f32.mrf.mxu0
        %v2821 = vadd.f32 0.0, %v2820
        %2822 = vmatmul.bf16.gmra.mxu0 %v2722
        %v2823 = vpop.f32.mrf.mxu0
        %v2824 = vadd.f32 0.0, %v2823
        %v2825 = vpop.f32.mrf.mxu0
        %v2826 = vadd.f32 0.0, %v2825
        %2827 = vmatmul.bf16.gmra.mxu0 %v2725
        %v2828 = vpop.f32.mrf.mxu0
        %v2829 = vadd.f32 0.0, %v2828
        %v2830 = vpop.f32.mrf.mxu0
        %v2831 = vadd.f32 0.0, %v2830
        %2832 = vdwg.mxu0
        %2833 = vmatpush.bf16.msra.mxu0 0
        %2834 = vmatpush.bf16.msra.mxu0 0
        %2835 = vmatpush.bf16.msra.mxu0 0
        %2836 = vmatpush.bf16.msra.mxu0 %v2732
        %2837 = vmatpush.bf16.msra.mxu0 %v2661
        %2838 = vmatpush.bf16.msra.mxu0 %v2659
        %2839 = vmatpush.bf16.msra.mxu0 %v2657
        %2840 = vmatpush.bf16.msra.mxu0 %v2655
        %2841 = vmatmul.bf16.gmra.mxu0 %v2674
        %v2842 = vpop.f32.mrf.mxu0
        %v2843 = vadd.f32 0.0, %v2842
        %v2844 = vpop.f32.mrf.mxu0
        %v2845 = vadd.f32 0.0, %v2844
        %2846 = vmatmul.bf16.gmra.mxu0 %v2677
        %v2847 = vpop.f32.mrf.mxu0
        %v2848 = vadd.f32 0.0, %v2847
        %v2849 = vpop.f32.mrf.mxu0
        %v2850 = vadd.f32 0.0, %v2849
        %2851 = vmatmul.bf16.gmra.mxu0 %v2680
        %v2852 = vpop.f32.mrf.mxu0
        %v2853 = vadd.f32 0.0, %v2852
        %v2854 = vpop.f32.mrf.mxu0
        %v2855 = vadd.f32 0.0, %v2854
        %2856 = vmatmul.bf16.gmra.mxu0 %v2683
        %v2857 = vpop.f32.mrf.mxu0
        %v2858 = vadd.f32 0.0, %v2857
        %v2859 = vpop.f32.mrf.mxu0
        %v2860 = vadd.f32 0.0, %v2859
        %2861 = vmatmul.bf16.gmra.mxu0 %v2686
        %v2862 = vpop.f32.mrf.mxu0
        %v2863 = vadd.f32 0.0, %v2862
        %v2864 = vpop.f32.mrf.mxu0
        %v2865 = vadd.f32 0.0, %v2864
        %2866 = vmatmul.bf16.gmra.mxu0 %v2689
        %v2867 = vpop.f32.mrf.mxu0
        %v2868 = vadd.f32 0.0, %v2867
        %v2869 = vpop.f32.mrf.mxu0
        %v2870 = vadd.f32 0.0, %v2869
        %2871 = vmatmul.bf16.gmra.mxu0 %v2692
        %v2872 = vpop.f32.mrf.mxu0
        %v2873 = vadd.f32 0.0, %v2872
        %v2874 = vpop.f32.mrf.mxu0
        %v2875 = vadd.f32 0.0, %v2874
        %2876 = vmatmul.bf16.gmra.mxu0 %v2695
        %v2877 = vpop.f32.mrf.mxu0
        %v2878 = vadd.f32 0.0, %v2877
        %v2879 = vpop.f32.mrf.mxu0
        %v2880 = vadd.f32 0.0, %v2879
        %2881 = vmatmul.bf16.gmra.mxu0 %v2698
        %v2882 = vpop.f32.mrf.mxu0
        %v2883 = vadd.f32 0.0, %v2882
        %v2884 = vpop.f32.mrf.mxu0
        %v2885 = vadd.f32 0.0, %v2884
        %2886 = vmatmul.bf16.gmra.mxu0 %v2701
        %v2887 = vpop.f32.mrf.mxu0
        %v2888 = vadd.f32 0.0, %v2887
        %v2889 = vpop.f32.mrf.mxu0
        %v2890 = vadd.f32 0.0, %v2889
        %2891 = vmatmul.bf16.gmra.mxu0 %v2704
        %v2892 = vpop.f32.mrf.mxu0
        %v2893 = vadd.f32 0.0, %v2892
        %v2894 = vpop.f32.mrf.mxu0
        %v2895 = vadd.f32 0.0, %v2894
        %2896 = vmatmul.bf16.gmra.mxu0 %v2707
        %v2897 = vpop.f32.mrf.mxu0
        %v2898 = vadd.f32 0.0, %v2897
        %v2899 = vpop.f32.mrf.mxu0
        %v2900 = vadd.f32 0.0, %v2899
        %2901 = vmatmul.bf16.gmra.mxu0 %v2710
        %v2902 = vpop.f32.mrf.mxu0
        %v2903 = vadd.f32 0.0, %v2902
        %v2904 = vpop.f32.mrf.mxu0
        %v2905 = vadd.f32 0.0, %v2904
        %2906 = vmatmul.bf16.gmra.mxu0 %v2713
        %v2907 = vpop.f32.mrf.mxu0
        %v2908 = vadd.f32 0.0, %v2907
        %v2909 = vpop.f32.mrf.mxu0
        %v2910 = vadd.f32 0.0, %v2909
        %2911 = vmatmul.bf16.gmra.mxu0 %v2716
        %v2912 = vpop.f32.mrf.mxu0
        %v2913 = vadd.f32 0.0, %v2912
        %v2914 = vpop.f32.mrf.mxu0
        %v2915 = vadd.f32 0.0, %v2914
        %2916 = vmatmul.bf16.gmra.mxu0 %v2719
        %v2917 = vpop.f32.mrf.mxu0
        %v2918 = vadd.f32 0.0, %v2917
        %v2919 = vpop.f32.mrf.mxu0
        %v2920 = vadd.f32 0.0, %v2919
        %2921 = vmatmul.bf16.gmra.mxu0 %v2722
        %v2922 = vpop.f32.mrf.mxu0
        %v2923 = vadd.f32 0.0, %v2922
        %v2924 = vpop.f32.mrf.mxu0
        %v2925 = vadd.f32 0.0, %v2924
        %2926 = vmatmul.bf16.gmra.mxu0 %v2725
        %v2927 = vpop.f32.mrf.mxu0
        %v2928 = vadd.f32 0.0, %v2927
        %v2929 = vpop.f32.mrf.mxu0
        %v2930 = vadd.f32 0.0, %v2929
        %2931 = vdwg.mxu0
        %v2932 = vld [vmem:[%s9] sm:$0xff]
        %v2933 = vld [vmem:[%s9 + $0x8] sm:$0xff]
        %v2934 = vld [vmem:[%s9 + $0x10] sm:$0xff]
        %v2935 = vld [vmem:[%s9 + $0x18] sm:$0xff]
        %v2936 = vld [vmem:[%s9 + $0x20] sm:$0xff]
        %v2937 = vld [vmem:[%s9 + $0x28] sm:$0xff]
        %v2938 = vld [vmem:[%s9 + $0x30] sm:$0xff]
        %v2939 = vld [vmem:[%s9 + $0x38] sm:$0xff]
        %v2940 = vld [vmem:[%s9 + $0x40] sm:$0xff]
        %v2941 = vld [vmem:[%s9 + $0x48] sm:$0xff]
        %v2942 = vld [vmem:[%s9 + $0x50] sm:$0xff]
        %v2943 = vld [vmem:[%s9 + $0x58] sm:$0xff]
        %v2944 = vld [vmem:[%s9 + $0x60] sm:$0xff]
        %v2945 = vld [vmem:[%s9 + $0x68] sm:$0xff]
        %v2946 = vld [vmem:[%s9 + $0x70] sm:$0xff]
        %v2947 = vld [vmem:[%s9 + $0x78] sm:$0xff]
        %v2948 = vld [vmem:[%s9 + $0x80] sm:$0xff]
        %v2949 = vld [vmem:[%s9 + $0x88] sm:$0xff]
        %v2950 = vld [vmem:[%s9 + $0x90] sm:$0xff]
        %v2951 = vld [vmem:[%s9 + $0x98] sm:$0xff]
        %v2952 = vld [vmem:[%s9 + $0xa0] sm:$0xff]
        %v2953 = vld [vmem:[%s9 + $0xa8] sm:$0xff]
        %v2954 = vld [vmem:[%s9 + $0xb0] sm:$0xff]
        %v2955 = vld [vmem:[%s9 + $0xb8] sm:$0xff]
        %v2956 = vld [vmem:[%s9 + $0xc0] sm:$0xff]
        %v2957 = vld [vmem:[%s9 + $0xc8] sm:$0xff]
        %v2958 = vld [vmem:[%s9 + $0xd0] sm:$0xff]
        %v2959 = vld [vmem:[%s9 + $0xd8] sm:$0xff]
        %v2960 = vld [vmem:[%s9 + $0xe0] sm:$0xff]
        %v2961 = vld [vmem:[%s9 + $0xe8] sm:$0xff]
        %v2962 = vld [vmem:[%s9 + $0xf0] sm:$0xff]
        %v2963 = vld [vmem:[%s9 + $0xf8] sm:$0xff]
        %v2964 = vld [vmem:[%s9 + $0x100] sm:$0xff]
        %v2965 = vld [vmem:[%s9 + $0x108] sm:$0xff]
        %v2966 = vld [vmem:[%s9 + $0x110] sm:$0xff]
        %v2967 = vld [vmem:[%s9 + $0x118] sm:$0xff]
        %vm2968 = vcmp.gt.f32.partialorder %v2932, 0.0
        %vm2969 = vcmp.gt.f32.partialorder %v2933, 0.0
        %vm2970 = vcmp.gt.f32.partialorder %v2934, 0.0
        %vm2971 = vcmp.gt.f32.partialorder %v2935, 0.0
        %vm2972 = vcmp.gt.f32.partialorder %v2936, 0.0
        %vm2973 = vcmp.gt.f32.partialorder %v2937, 0.0
        %vm2974 = vcmp.gt.f32.partialorder %v2938, 0.0
        %vm2975 = vcmp.gt.f32.partialorder %v2939, 0.0
        %vm2976 = vcmp.gt.f32.partialorder %v2940, 0.0
        %vm2977 = vcmp.gt.f32.partialorder %v2941, 0.0
        %vm2978 = vcmp.gt.f32.partialorder %v2942, 0.0
        %vm2979 = vcmp.gt.f32.partialorder %v2943, 0.0
        %vm2980 = vcmp.gt.f32.partialorder %v2944, 0.0
        %vm2981 = vcmp.gt.f32.partialorder %v2945, 0.0
        %vm2982 = vcmp.gt.f32.partialorder %v2946, 0.0
        %vm2983 = vcmp.gt.f32.partialorder %v2947, 0.0
        %vm2984 = vcmp.gt.f32.partialorder %v2948, 0.0
        %vm2985 = vcmp.gt.f32.partialorder %v2949, 0.0
        %vm2986 = vcmp.gt.f32.partialorder %v2950, 0.0
        %vm2987 = vcmp.gt.f32.partialorder %v2951, 0.0
        %vm2988 = vcmp.gt.f32.partialorder %v2952, 0.0
        %vm2989 = vcmp.gt.f32.partialorder %v2953, 0.0
        %vm2990 = vcmp.gt.f32.partialorder %v2954, 0.0
        %vm2991 = vcmp.gt.f32.partialorder %v2955, 0.0
        %vm2992 = vcmp.gt.f32.partialorder %v2956, 0.0
        %vm2993 = vcmp.gt.f32.partialorder %v2957, 0.0
        %vm2994 = vcmp.gt.f32.partialorder %v2958, 0.0
        %vm2995 = vcmp.gt.f32.partialorder %v2959, 0.0
        %vm2996 = vcmp.gt.f32.partialorder %v2960, 0.0
        %vm2997 = vcmp.gt.f32.partialorder %v2961, 0.0
        %vm2998 = vcmp.gt.f32.partialorder %v2962, 0.0
        %vm2999 = vcmp.gt.f32.partialorder %v2963, 0.0
        %vm3000 = vcmp.gt.f32.partialorder %v2964, 0.0
        %vm3001 = vcmp.gt.f32.partialorder %v2965, 0.0
        %vm3002 = vcmp.gt.f32.partialorder %v2966, 0.0
        %vm3003 = vcmp.gt.f32.partialorder %v2967, 0.0
        %v3004 = vld [vmem:[%s2] sm:$0x1]
        %v3006 = vperm.slane %v3004, 0
        %v3008 = vmul.f32 %v2744, %v3006
        %v3009 = vmul.f32 %v2746, %v3006
        %v3010 = vmul.f32 %v2749, %v3006
        %v3011 = vmul.f32 %v2751, %v3006
        %v3012 = vmul.f32 %v2754, %v3006
        %v3013 = vmul.f32 %v2756, %v3006
        %v3014 = vmul.f32 %v2759, %v3006
        %v3015 = vmul.f32 %v2761, %v3006
        %v3016 = vmul.f32 %v2764, %v3006
        %v3017 = vmul.f32 %v2766, %v3006
        %v3018 = vmul.f32 %v2769, %v3006
        %v3019 = vmul.f32 %v2771, %v3006
        %v3020 = vmul.f32 %v2774, %v3006
        %v3021 = vmul.f32 %v2776, %v3006
        %v3022 = vmul.f32 %v2779, %v3006
        %v3023 = vmul.f32 %v2781, %v3006
        %v3024 = vmul.f32 %v2784, %v3006
        %v3025 = vmul.f32 %v2786, %v3006
        %v3026 = vmul.f32 %v2789, %v3006
        %v3027 = vmul.f32 %v2791, %v3006
        %v3028 = vmul.f32 %v2794, %v3006
        %v3029 = vmul.f32 %v2796, %v3006
        %v3030 = vmul.f32 %v2799, %v3006
        %v3031 = vmul.f32 %v2801, %v3006
        %v3032 = vmul.f32 %v2804, %v3006
        %v3033 = vmul.f32 %v2806, %v3006
        %v3034 = vmul.f32 %v2809, %v3006
        %v3035 = vmul.f32 %v2811, %v3006
        %v3036 = vmul.f32 %v2814, %v3006
        %v3037 = vmul.f32 %v2816, %v3006
        %v3038 = vmul.f32 %v2819, %v3006
        %v3039 = vmul.f32 %v2821, %v3006
        %v3040 = vmul.f32 %v2824, %v3006
        %v3041 = vmul.f32 %v2826, %v3006
        %v3042 = vmul.f32 %v2829, %v3006
        %v3043 = vmul.f32 %v2831, %v3006
        %v3044 = vld [vmem:[%s3] sm:$0x1]
        %v3046 = vperm.slane %v3044, 0
        %v3048 = vadd.f32 %v3008, %v3046
        %v3049 = vadd.f32 %v3009, %v3046
        %v3050 = vadd.f32 %v3010, %v3046
        %v3051 = vadd.f32 %v3011, %v3046
        %v3052 = vadd.f32 %v3012, %v3046
        %v3053 = vadd.f32 %v3013, %v3046
        %v3054 = vadd.f32 %v3014, %v3046
        %v3055 = vadd.f32 %v3015, %v3046
        %v3056 = vadd.f32 %v3016, %v3046
        %v3057 = vadd.f32 %v3017, %v3046
        %v3058 = vadd.f32 %v3018, %v3046
        %v3059 = vadd.f32 %v3019, %v3046
        %v3060 = vadd.f32 %v3020, %v3046
        %v3061 = vadd.f32 %v3021, %v3046
        %v3062 = vadd.f32 %v3022, %v3046
        %v3063 = vadd.f32 %v3023, %v3046
        %v3064 = vadd.f32 %v3024, %v3046
        %v3065 = vadd.f32 %v3025, %v3046
        %v3066 = vadd.f32 %v3026, %v3046
        %v3067 = vadd.f32 %v3027, %v3046
        %v3068 = vadd.f32 %v3028, %v3046
        %v3069 = vadd.f32 %v3029, %v3046
        %v3070 = vadd.f32 %v3030, %v3046
        %v3071 = vadd.f32 %v3031, %v3046
        %v3072 = vadd.f32 %v3032, %v3046
        %v3073 = vadd.f32 %v3033, %v3046
        %v3074 = vadd.f32 %v3034, %v3046
        %v3075 = vadd.f32 %v3035, %v3046
        %v3076 = vadd.f32 %v3036, %v3046
        %v3077 = vadd.f32 %v3037, %v3046
        %v3078 = vadd.f32 %v3038, %v3046
        %v3079 = vadd.f32 %v3039, %v3046
        %v3080 = vadd.f32 %v3040, %v3046
        %v3081 = vadd.f32 %v3041, %v3046
        %v3082 = vadd.f32 %v3042, %v3046
        %v3083 = vadd.f32 %v3043, %v3046
        %vm3084 = vcmp.ge.f32.partialorder %v3048, 0.0
        %vm3085 = vcmp.ge.f32.partialorder %v3049, 0.0
        %vm3086 = vcmp.ge.f32.partialorder %v3050, 0.0
        %vm3087 = vcmp.ge.f32.partialorder %v3051, 0.0
        %vm3088 = vcmp.ge.f32.partialorder %v3052, 0.0
        %vm3089 = vcmp.ge.f32.partialorder %v3053, 0.0
        %vm3090 = vcmp.ge.f32.partialorder %v3054, 0.0
        %vm3091 = vcmp.ge.f32.partialorder %v3055, 0.0
        %vm3092 = vcmp.ge.f32.partialorder %v3056, 0.0
        %vm3093 = vcmp.ge.f32.partialorder %v3057, 0.0
        %vm3094 = vcmp.ge.f32.partialorder %v3058, 0.0
        %vm3095 = vcmp.ge.f32.partialorder %v3059, 0.0
        %vm3096 = vcmp.ge.f32.partialorder %v3060, 0.0
        %vm3097 = vcmp.ge.f32.partialorder %v3061, 0.0
        %vm3098 = vcmp.ge.f32.partialorder %v3062, 0.0
        %vm3099 = vcmp.ge.f32.partialorder %v3063, 0.0
        %vm3100 = vcmp.ge.f32.partialorder %v3064, 0.0
        %vm3101 = vcmp.ge.f32.partialorder %v3065, 0.0
        %vm3102 = vcmp.ge.f32.partialorder %v3066, 0.0
        %vm3103 = vcmp.ge.f32.partialorder %v3067, 0.0
        %vm3104 = vcmp.ge.f32.partialorder %v3068, 0.0
        %vm3105 = vcmp.ge.f32.partialorder %v3069, 0.0
        %vm3106 = vcmp.ge.f32.partialorder %v3070, 0.0
        %vm3107 = vcmp.ge.f32.partialorder %v3071, 0.0
        %vm3108 = vcmp.ge.f32.partialorder %v3072, 0.0
        %vm3109 = vcmp.ge.f32.partialorder %v3073, 0.0
        %vm3110 = vcmp.ge.f32.partialorder %v3074, 0.0
        %vm3111 = vcmp.ge.f32.partialorder %v3075, 0.0
        %vm3112 = vcmp.ge.f32.partialorder %v3076, 0.0
        %vm3113 = vcmp.ge.f32.partialorder %v3077, 0.0
        %vm3114 = vcmp.ge.f32.partialorder %v3078, 0.0
        %vm3115 = vcmp.ge.f32.partialorder %v3079, 0.0
        %vm3116 = vcmp.ge.f32.partialorder %v3080, 0.0
        %vm3117 = vcmp.ge.f32.partialorder %v3081, 0.0
        %vm3118 = vcmp.ge.f32.partialorder %v3082, 0.0
        %vm3119 = vcmp.ge.f32.partialorder %v3083, 0.0
        %v3120 = vmul.f32 %v3048, 0.05
        %v3121 = vmul.f32 %v3049, 0.05
        %v3122 = vmul.f32 %v3050, 0.05
        %v3123 = vmul.f32 %v3051, 0.05
        %v3124 = vmul.f32 %v3052, 0.05
        %v3125 = vmul.f32 %v3053, 0.05
        %v3126 = vmul.f32 %v3054, 0.05
        %v3127 = vmul.f32 %v3055, 0.05
        %v3128 = vmul.f32 %v3056, 0.05
        %v3129 = vmul.f32 %v3057, 0.05
        %v3130 = vmul.f32 %v3058, 0.05
        %v3131 = vmul.f32 %v3059, 0.05
        %v3132 = vmul.f32 %v3060, 0.05
        %v3133 = vmul.f32 %v3061, 0.05
        %v3134 = vmul.f32 %v3062, 0.05
        %v3135 = vmul.f32 %v3063, 0.05
        %v3136 = vmul.f32 %v3064, 0.05
        %v3137 = vmul.f32 %v3065, 0.05
        %v3138 = vmul.f32 %v3066, 0.05
        %v3139 = vmul.f32 %v3067, 0.05
        %v3140 = vmul.f32 %v3068, 0.05
        %v3141 = vmul.f32 %v3069, 0.05
        %v3142 = vmul.f32 %v3070, 0.05
        %v3143 = vmul.f32 %v3071, 0.05
        %v3144 = vmul.f32 %v3072, 0.05
        %v3145 = vmul.f32 %v3073, 0.05
        %v3146 = vmul.f32 %v3074, 0.05
        %v3147 = vmul.f32 %v3075, 0.05
        %v3148 = vmul.f32 %v3076, 0.05
        %v3149 = vmul.f32 %v3077, 0.05
        %v3150 = vmul.f32 %v3078, 0.05
        %v3151 = vmul.f32 %v3079, 0.05
        %v3152 = vmul.f32 %v3080, 0.05
        %v3153 = vmul.f32 %v3081, 0.05
        %v3154 = vmul.f32 %v3082, 0.05
        %v3155 = vmul.f32 %v3083, 0.05
        %v3156 = vsel %vm3084, %v3048, %v3120
        %v3157 = vsel %vm3085, %v3049, %v3121
        %v3158 = vsel %vm3086, %v3050, %v3122
        %v3159 = vsel %vm3087, %v3051, %v3123
        %v3160 = vsel %vm3088, %v3052, %v3124
        %v3161 = vsel %vm3089, %v3053, %v3125
        %v3162 = vsel %vm3090, %v3054, %v3126
        %v3163 = vsel %vm3091, %v3055, %v3127
        %v3164 = vsel %vm3092, %v3056, %v3128
        %v3165 = vsel %vm3093, %v3057, %v3129
        %v3166 = vsel %vm3094, %v3058, %v3130
        %v3167 = vsel %vm3095, %v3059, %v3131
        %v3168 = vsel %vm3096, %v3060, %v3132
        %v3169 = vsel %vm3097, %v3061, %v3133
        %v3170 = vsel %vm3098, %v3062, %v3134
        %v3171 = vsel %vm3099, %v3063, %v3135
        %v3172 = vsel %vm3100, %v3064, %v3136
        %v3173 = vsel %vm3101, %v3065, %v3137
        %v3174 = vsel %vm3102, %v3066, %v3138
        %v3175 = vsel %vm3103, %v3067, %v3139
        %v3176 = vsel %vm3104, %v3068, %v3140
        %v3177 = vsel %vm3105, %v3069, %v3141
        %v3178 = vsel %vm3106, %v3070, %v3142
        %v3179 = vsel %vm3107, %v3071, %v3143
        %v3180 = vsel %vm3108, %v3072, %v3144
        %v3181 = vsel %vm3109, %v3073, %v3145
        %v3182 = vsel %vm3110, %v3074, %v3146
        %v3183 = vsel %vm3111, %v3075, %v3147
        %v3184 = vsel %vm3112, %v3076, %v3148
        %v3185 = vsel %vm3113, %v3077, %v3149
        %v3186 = vsel %vm3114, %v3078, %v3150
        %v3187 = vsel %vm3115, %v3079, %v3151
        %v3188 = vsel %vm3116, %v3080, %v3152
        %v3189 = vsel %vm3117, %v3081, %v3153
        %v3190 = vsel %vm3118, %v3082, %v3154
        %v3191 = vsel %vm3119, %v3083, %v3155
        %v3192 = vsel %vm2968, 1, 0
        %v3193 = vsel %vm2969, 1, 0
        %v3194 = vsel %vm2970, 1, 0
        %v3195 = vsel %vm2971, 1, 0
        %v3196 = vsel %vm2972, 1, 0
        %v3197 = vsel %vm2973, 1, 0
        %v3198 = vsel %vm2974, 1, 0
        %v3199 = vsel %vm2975, 1, 0
        %v3200 = vsel %vm2976, 1, 0
        %v3201 = vsel %vm2977, 1, 0
        %v3202 = vsel %vm2978, 1, 0
        %v3203 = vsel %vm2979, 1, 0
        %v3204 = vsel %vm2980, 1, 0
        %v3205 = vsel %vm2981, 1, 0
        %v3206 = vsel %vm2982, 1, 0
        %v3207 = vsel %vm2983, 1, 0
        %v3208 = vsel %vm2984, 1, 0
        %v3209 = vsel %vm2985, 1, 0
        %v3210 = vsel %vm2986, 1, 0
        %v3211 = vsel %vm2987, 1, 0
        %v3212 = vsel %vm2988, 1, 0
        %v3213 = vsel %vm2989, 1, 0
        %v3214 = vsel %vm2990, 1, 0
        %v3215 = vsel %vm2991, 1, 0
        %v3216 = vsel %vm2992, 1, 0
        %v3217 = vsel %vm2993, 1, 0
        %v3218 = vsel %vm2994, 1, 0
        %v3219 = vsel %vm2995, 1, 0
        %v3220 = vsel %vm2996, 1, 0
        %v3221 = vsel %vm2997, 1, 0
        %v3222 = vsel %vm2998, 1, 0
        %v3223 = vsel %vm2999, 1, 0
        %v3224 = vsel %vm3000, 1, 0
        %v3225 = vsel %vm3001, 1, 0
        %v3226 = vsel %vm3002, 1, 0
        %v3227 = vsel %vm3003, 1, 0
        %3228 = vset.pattern.permute.xlu0 0
        %3229 = vperm.xlu0 %3228, %v3192
        %v3230 = vpop.permute.xlu0 %3229
        %3231 = vset.pattern.permute.xlu0 0
        %3232 = vperm.xlu0 %3231, %v3193
        %v3233 = vpop.permute.xlu0 %3232
        %3234 = vset.pattern.permute.xlu0 0
        %3235 = vperm.xlu0 %3234, %v3194
        %v3236 = vpop.permute.xlu0 %3235
        %3237 = vset.pattern.permute.xlu0 0
        %3238 = vperm.xlu0 %3237, %v3195
        %v3239 = vpop.permute.xlu0 %3238
        %3240 = vset.pattern.permute.xlu0 0
        %3241 = vperm.xlu0 %3240, %v3196
        %v3242 = vpop.permute.xlu0 %3241
        %3243 = vset.pattern.permute.xlu0 0
        %3244 = vperm.xlu0 %3243, %v3197
        %v3245 = vpop.permute.xlu0 %3244
        %3246 = vset.pattern.permute.xlu0 0
        %3247 = vperm.xlu0 %3246, %v3198
        %v3248 = vpop.permute.xlu0 %3247
        %3249 = vset.pattern.permute.xlu0 0
        %3250 = vperm.xlu0 %3249, %v3199
        %v3251 = vpop.permute.xlu0 %3250
        %3252 = vset.pattern.permute.xlu0 0
        %3253 = vperm.xlu0 %3252, %v3200
        %v3254 = vpop.permute.xlu0 %3253
        %3255 = vset.pattern.permute.xlu0 0
        %3256 = vperm.xlu0 %3255, %v3201
        %v3257 = vpop.permute.xlu0 %3256
        %3258 = vset.pattern.permute.xlu0 0
        %3259 = vperm.xlu0 %3258, %v3202
        %v3260 = vpop.permute.xlu0 %3259
        %3261 = vset.pattern.permute.xlu0 0
        %3262 = vperm.xlu0 %3261, %v3203
        %v3263 = vpop.permute.xlu0 %3262
        %3264 = vset.pattern.permute.xlu0 0
        %3265 = vperm.xlu0 %3264, %v3204
        %v3266 = vpop.permute.xlu0 %3265
        %3267 = vset.pattern.permute.xlu0 0
        %3268 = vperm.xlu0 %3267, %v3205
        %v3269 = vpop.permute.xlu0 %3268
        %3270 = vset.pattern.permute.xlu0 0
        %3271 = vperm.xlu0 %3270, %v3206
        %v3272 = vpop.permute.xlu0 %3271
        %3273 = vset.pattern.permute.xlu0 0
        %3274 = vperm.xlu0 %3273, %v3207
        %v3275 = vpop.permute.xlu0 %3274
        %3276 = vset.pattern.permute.xlu0 0
        %3277 = vperm.xlu0 %3276, %v3208
        %v3278 = vpop.permute.xlu0 %3277
        %3279 = vset.pattern.permute.xlu0 0
        %3280 = vperm.xlu0 %3279, %v3209
        %v3281 = vpop.permute.xlu0 %3280
        %3282 = vset.pattern.permute.xlu0 0
        %3283 = vperm.xlu0 %3282, %v3210
        %v3284 = vpop.permute.xlu0 %3283
        %3285 = vset.pattern.permute.xlu0 0
        %3286 = vperm.xlu0 %3285, %v3211
        %v3287 = vpop.permute.xlu0 %3286
        %3288 = vset.pattern.permute.xlu0 0
        %3289 = vperm.xlu0 %3288, %v3212
        %v3290 = vpop.permute.xlu0 %3289
        %3291 = vset.pattern.permute.xlu0 0
        %3292 = vperm.xlu0 %3291, %v3213
        %v3293 = vpop.permute.xlu0 %3292
        %3294 = vset.pattern.permute.xlu0 0
        %3295 = vperm.xlu0 %3294, %v3214
        %v3296 = vpop.permute.xlu0 %3295
        %3297 = vset.pattern.permute.xlu0 0
        %3298 = vperm.xlu0 %3297, %v3215
        %v3299 = vpop.permute.xlu0 %3298
        %3300 = vset.pattern.permute.xlu0 0
        %3301 = vperm.xlu0 %3300, %v3216
        %v3302 = vpop.permute.xlu0 %3301
        %3303 = vset.pattern.permute.xlu0 0
        %3304 = vperm.xlu0 %3303, %v3217
        %v3305 = vpop.permute.xlu0 %3304
        %3306 = vset.pattern.permute.xlu0 0
        %3307 = vperm.xlu0 %3306, %v3218
        %v3308 = vpop.permute.xlu0 %3307
        %3309 = vset.pattern.permute.xlu0 0
        %3310 = vperm.xlu0 %3309, %v3219
        %v3311 = vpop.permute.xlu0 %3310
        %3312 = vset.pattern.permute.xlu0 0
        %3313 = vperm.xlu0 %3312, %v3220
        %v3314 = vpop.permute.xlu0 %3313
        %3315 = vset.pattern.permute.xlu0 0
        %3316 = vperm.xlu0 %3315, %v3221
        %v3317 = vpop.permute.xlu0 %3316
        %3318 = vset.pattern.permute.xlu0 0
        %3319 = vperm.xlu0 %3318, %v3222
        %v3320 = vpop.permute.xlu0 %3319
        %3321 = vset.pattern.permute.xlu0 0
        %3322 = vperm.xlu0 %3321, %v3223
        %v3323 = vpop.permute.xlu0 %3322
        %3324 = vset.pattern.permute.xlu0 0
        %3325 = vperm.xlu0 %3324, %v3224
        %v3326 = vpop.permute.xlu0 %3325
        %3327 = vset.pattern.permute.xlu0 0
        %3328 = vperm.xlu0 %3327, %v3225
        %v3329 = vpop.permute.xlu0 %3328
        %3330 = vset.pattern.permute.xlu0 0
        %3331 = vperm.xlu0 %3330, %v3226
        %v3332 = vpop.permute.xlu0 %3331
        %3333 = vset.pattern.permute.xlu0 0
        %3334 = vperm.xlu0 %3333, %v3227
        %v3335 = vpop.permute.xlu0 %3334
        %vm3336 = vcmp.eq.s32.totalorder %v3230, 1
        %vm3337 = vcmp.eq.s32.totalorder %v3233, 1
        %vm3338 = vcmp.eq.s32.totalorder %v3236, 1
        %vm3339 = vcmp.eq.s32.totalorder %v3239, 1
        %vm3340 = vcmp.eq.s32.totalorder %v3242, 1
        %vm3341 = vcmp.eq.s32.totalorder %v3245, 1
        %vm3342 = vcmp.eq.s32.totalorder %v3248, 1
        %vm3343 = vcmp.eq.s32.totalorder %v3251, 1
        %vm3344 = vcmp.eq.s32.totalorder %v3254, 1
        %vm3345 = vcmp.eq.s32.totalorder %v3257, 1
        %vm3346 = vcmp.eq.s32.totalorder %v3260, 1
        %vm3347 = vcmp.eq.s32.totalorder %v3263, 1
        %vm3348 = vcmp.eq.s32.totalorder %v3266, 1
        %vm3349 = vcmp.eq.s32.totalorder %v3269, 1
        %vm3350 = vcmp.eq.s32.totalorder %v3272, 1
        %vm3351 = vcmp.eq.s32.totalorder %v3275, 1
        %vm3352 = vcmp.eq.s32.totalorder %v3278, 1
        %vm3353 = vcmp.eq.s32.totalorder %v3281, 1
        %vm3354 = vcmp.eq.s32.totalorder %v3284, 1
        %vm3355 = vcmp.eq.s32.totalorder %v3287, 1
        %vm3356 = vcmp.eq.s32.totalorder %v3290, 1
        %vm3357 = vcmp.eq.s32.totalorder %v3293, 1
        %vm3358 = vcmp.eq.s32.totalorder %v3296, 1
        %vm3359 = vcmp.eq.s32.totalorder %v3299, 1
        %vm3360 = vcmp.eq.s32.totalorder %v3302, 1
        %vm3361 = vcmp.eq.s32.totalorder %v3305, 1
        %vm3362 = vcmp.eq.s32.totalorder %v3308, 1
        %vm3363 = vcmp.eq.s32.totalorder %v3311, 1
        %vm3364 = vcmp.eq.s32.totalorder %v3314, 1
        %vm3365 = vcmp.eq.s32.totalorder %v3317, 1
        %vm3366 = vcmp.eq.s32.totalorder %v3320, 1
        %vm3367 = vcmp.eq.s32.totalorder %v3323, 1
        %vm3368 = vcmp.eq.s32.totalorder %v3326, 1
        %vm3369 = vcmp.eq.s32.totalorder %v3329, 1
        %vm3370 = vcmp.eq.s32.totalorder %v3332, 1
        %vm3371 = vcmp.eq.s32.totalorder %v3335, 1
        %v3372 = vsel %vm3336, %v3156, 0.0
        %v3373 = vsel %vm3337, %v3157, 0.0
        %v3374 = vsel %vm3338, %v3158, 0.0
        %v3375 = vsel %vm3339, %v3159, 0.0
        %v3376 = vsel %vm3340, %v3160, 0.0
        %v3377 = vsel %vm3341, %v3161, 0.0
        %v3378 = vsel %vm3342, %v3162, 0.0
        %v3379 = vsel %vm3343, %v3163, 0.0
        %v3380 = vsel %vm3344, %v3164, 0.0
        %v3381 = vsel %vm3345, %v3165, 0.0
        %v3382 = vsel %vm3346, %v3166, 0.0
        %v3383 = vsel %vm3347, %v3167, 0.0
        %v3384 = vsel %vm3348, %v3168, 0.0
        %v3385 = vsel %vm3349, %v3169, 0.0
        %v3386 = vsel %vm3350, %v3170, 0.0
        %v3387 = vsel %vm3351, %v3171, 0.0
        %v3388 = vsel %vm3352, %v3172, 0.0
        %v3389 = vsel %vm3353, %v3173, 0.0
        %v3390 = vsel %vm3354, %v3174, 0.0
        %v3391 = vsel %vm3355, %v3175, 0.0
        %v3392 = vsel %vm3356, %v3176, 0.0
        %v3393 = vsel %vm3357, %v3177, 0.0
        %v3394 = vsel %vm3358, %v3178, 0.0
        %v3395 = vsel %vm3359, %v3179, 0.0
        %v3396 = vsel %vm3360, %v3180, 0.0
        %v3397 = vsel %vm3361, %v3181, 0.0
        %v3398 = vsel %vm3362, %v3182, 0.0
        %v3399 = vsel %vm3363, %v3183, 0.0
        %v3400 = vsel %vm3364, %v3184, 0.0
        %v3401 = vsel %vm3365, %v3185, 0.0
        %v3402 = vsel %vm3366, %v3186, 0.0
        %v3403 = vsel %vm3367, %v3187, 0.0
        %v3404 = vsel %vm3368, %v3188, 0.0
        %v3405 = vsel %vm3369, %v3189, 0.0
        %v3406 = vsel %vm3370, %v3190, 0.0
        %v3407 = vsel %vm3371, %v3191, 0.0
        %3408 = vst [vmem:[#allocation3] sm:$0xf] 0
        %3409 = vst [vmem:[#allocation3 + $0x4] sm:$0xf] 0
        %3410 = vst [vmem:[#allocation3 + $0x8] sm:$0xf] 0
        %3411 = vst [vmem:[#allocation3 + $0xc] sm:$0xf] 0
        %v3412 = vpack.c.bf16 %v3372, %v3372
        %v3413 = vpack.c.bf16 %v3373, %v3373
        %v3414 = vpack.c.bf16 %v3374, %v3374
        %v3415 = vpack.c.bf16 %v3375, %v3375
        %v3416 = vpack.c.bf16 %v3376, %v3376
        %v3417 = vpack.c.bf16 %v3377, %v3377
        %v3418 = vpack.c.bf16 %v3378, %v3378
        %v3419 = vpack.c.bf16 %v3379, %v3379
        %v3420 = vpack.c.bf16 %v3380, %v3380
        %v3421 = vpack.c.bf16 %v3381, %v3381
        %v3422 = vpack.c.bf16 %v3382, %v3382
        %v3423 = vpack.c.bf16 %v3383, %v3383
        %v3424 = vpack.c.bf16 %v3384, %v3384
        %v3425 = vpack.c.bf16 %v3385, %v3385
        %v3426 = vpack.c.bf16 %v3386, %v3386
        %v3427 = vpack.c.bf16 %v3387, %v3387
        %v3428 = vpack.c.bf16 %v3388, %v3388
        %v3429 = vpack.c.bf16 %v3389, %v3389
        %v3430 = vpack.c.bf16 %v3390, %v3390
        %v3431 = vpack.c.bf16 %v3391, %v3391
        %v3432 = vpack.c.bf16 %v3392, %v3392
        %v3433 = vpack.c.bf16 %v3393, %v3393
        %v3434 = vpack.c.bf16 %v3394, %v3394
        %v3435 = vpack.c.bf16 %v3395, %v3395
        %v3436 = vpack.c.bf16 %v3396, %v3396
        %v3437 = vpack.c.bf16 %v3397, %v3397
        %v3438 = vpack.c.bf16 %v3398, %v3398
        %v3439 = vpack.c.bf16 %v3399, %v3399
        %v3440 = vpack.c.bf16 %v3400, %v3400
        %v3441 = vpack.c.bf16 %v3401, %v3401
        %v3442 = vpack.c.bf16 %v3402, %v3402
        %v3443 = vpack.c.bf16 %v3403, %v3403
        %v3444 = vpack.c.bf16 %v3404, %v3404
        %v3445 = vpack.c.bf16 %v3405, %v3405
        %v3446 = vpack.c.bf16 %v3406, %v3406
        %v3447 = vpack.c.bf16 %v3407, %v3407
        %3448 = vst [vmem:[#allocation3 + $0x10] sm:$0xf] %v3412
        %3449 = vst [vmem:[#allocation3 + $0x14] sm:$0xf] %v3413
        %3450 = vst [vmem:[#allocation3 + $0x18] sm:$0xf] %v3414
        %3451 = vst [vmem:[#allocation3 + $0x1c] sm:$0xf] %v3415
        %3452 = vst [vmem:[#allocation3 + $0x20] sm:$0xf] %v3416
        %3453 = vst [vmem:[#allocation3 + $0x24] sm:$0xf] %v3417
        %3454 = vst [vmem:[#allocation3 + $0x28] sm:$0xf] %v3418
        %3455 = vst [vmem:[#allocation3 + $0x2c] sm:$0xf] %v3419
        %3456 = vst [vmem:[#allocation3 + $0x30] sm:$0xf] %v3420
        %3457 = vst [vmem:[#allocation3 + $0x34] sm:$0xf] %v3421
        %3458 = vst [vmem:[#allocation3 + $0x38] sm:$0xf] %v3422
        %3459 = vst [vmem:[#allocation3 + $0x3c] sm:$0xf] %v3423
        %3460 = vst [vmem:[#allocation3 + $0x40] sm:$0xf] %v3424
        %3461 = vst [vmem:[#allocation3 + $0x44] sm:$0xf] %v3425
        %3462 = vst [vmem:[#allocation3 + $0x48] sm:$0xf] %v3426
        %3463 = vst [vmem:[#allocation3 + $0x4c] sm:$0xf] %v3427
        %3464 = vst [vmem:[#allocation3 + $0x50] sm:$0xf] %v3428
        %3465 = vst [vmem:[#allocation3 + $0x54] sm:$0xf] %v3429
        %3466 = vst [vmem:[#allocation3 + $0x58] sm:$0xf] %v3430
        %3467 = vst [vmem:[#allocation3 + $0x5c] sm:$0xf] %v3431
        %3468 = vst [vmem:[#allocation3 + $0x60] sm:$0xf] %v3432
        %3469 = vst [vmem:[#allocation3 + $0x64] sm:$0xf] %v3433
        %3470 = vst [vmem:[#allocation3 + $0x68] sm:$0xf] %v3434
        %3471 = vst [vmem:[#allocation3 + $0x6c] sm:$0xf] %v3435
        %3472 = vst [vmem:[#allocation3 + $0x70] sm:$0xf] %v3436
        %3473 = vst [vmem:[#allocation3 + $0x74] sm:$0xf] %v3437
        %3474 = vst [vmem:[#allocation3 + $0x78] sm:$0xf] %v3438
        %3475 = vst [vmem:[#allocation3 + $0x7c] sm:$0xf] %v3439
        %3476 = vst [vmem:[#allocation3 + $0x80] sm:$0xf] %v3440
        %3477 = vst [vmem:[#allocation3 + $0x84] sm:$0xf] %v3441
        %3478 = vst [vmem:[#allocation3 + $0x88] sm:$0xf] %v3442
        %3479 = vst [vmem:[#allocation3 + $0x8c] sm:$0xf] %v3443
        %3480 = vst [vmem:[#allocation3 + $0x90] sm:$0xf] %v3444
        %3481 = vst [vmem:[#allocation3 + $0x94] sm:$0xf] %v3445
        %3482 = vst [vmem:[#allocation3 + $0x98] sm:$0xf] %v3446
        %3483 = vst [vmem:[#allocation3 + $0x9c] sm:$0xf] %v3447
        %3484 = vst [vmem:[#allocation3 + $0xa0] sm:$0xf] 0
        %3485 = vst [vmem:[#allocation3 + $0xa4] sm:$0xf] 0
        %3486 = vst [vmem:[#allocation3 + $0xa8] sm:$0xf] 0
        %3487 = vst [vmem:[#allocation3 + $0xac] sm:$0xf] 0
        %v3488 = vld [vmem:[%s4] sm:$0x1]
        %v3490 = vperm.slane %v3488, 0
        %v3492 = vmul.f32 %v2843, %v3490
        %v3493 = vmul.f32 %v2845, %v3490
        %v3494 = vmul.f32 %v2848, %v3490
        %v3495 = vmul.f32 %v2850, %v3490
        %v3496 = vmul.f32 %v2853, %v3490
        %v3497 = vmul.f32 %v2855, %v3490
        %v3498 = vmul.f32 %v2858, %v3490
        %v3499 = vmul.f32 %v2860, %v3490
        %v3500 = vmul.f32 %v2863, %v3490
        %v3501 = vmul.f32 %v2865, %v3490
        %v3502 = vmul.f32 %v2868, %v3490
        %v3503 = vmul.f32 %v2870, %v3490
        %v3504 = vmul.f32 %v2873, %v3490
        %v3505 = vmul.f32 %v2875, %v3490
        %v3506 = vmul.f32 %v2878, %v3490
        %v3507 = vmul.f32 %v2880, %v3490
        %v3508 = vmul.f32 %v2883, %v3490
        %v3509 = vmul.f32 %v2885, %v3490
        %v3510 = vmul.f32 %v2888, %v3490
        %v3511 = vmul.f32 %v2890, %v3490
        %v3512 = vmul.f32 %v2893, %v3490
        %v3513 = vmul.f32 %v2895, %v3490
        %v3514 = vmul.f32 %v2898, %v3490
        %v3515 = vmul.f32 %v2900, %v3490
        %v3516 = vmul.f32 %v2903, %v3490
        %v3517 = vmul.f32 %v2905, %v3490
        %v3518 = vmul.f32 %v2908, %v3490
        %v3519 = vmul.f32 %v2910, %v3490
        %v3520 = vmul.f32 %v2913, %v3490
        %v3521 = vmul.f32 %v2915, %v3490
        %v3522 = vmul.f32 %v2918, %v3490
        %v3523 = vmul.f32 %v2920, %v3490
        %v3524 = vmul.f32 %v2923, %v3490
        %v3525 = vmul.f32 %v2925, %v3490
        %v3526 = vmul.f32 %v2928, %v3490
        %v3527 = vmul.f32 %v2930, %v3490
        %v3528 = vld [vmem:[%s5] sm:$0x1]
        %v3530 = vperm.slane %v3528, 0
        %v3532 = vadd.f32 %v3492, %v3530
        %v3533 = vadd.f32 %v3493, %v3530
        %v3534 = vadd.f32 %v3494, %v3530
        %v3535 = vadd.f32 %v3495, %v3530
        %v3536 = vadd.f32 %v3496, %v3530
        %v3537 = vadd.f32 %v3497, %v3530
        %v3538 = vadd.f32 %v3498, %v3530
        %v3539 = vadd.f32 %v3499, %v3530
        %v3540 = vadd.f32 %v3500, %v3530
        %v3541 = vadd.f32 %v3501, %v3530
        %v3542 = vadd.f32 %v3502, %v3530
        %v3543 = vadd.f32 %v3503, %v3530
        %v3544 = vadd.f32 %v3504, %v3530
        %v3545 = vadd.f32 %v3505, %v3530
        %v3546 = vadd.f32 %v3506, %v3530
        %v3547 = vadd.f32 %v3507, %v3530
        %v3548 = vadd.f32 %v3508, %v3530
        %v3549 = vadd.f32 %v3509, %v3530
        %v3550 = vadd.f32 %v3510, %v3530
        %v3551 = vadd.f32 %v3511, %v3530
        %v3552 = vadd.f32 %v3512, %v3530
        %v3553 = vadd.f32 %v3513, %v3530
        %v3554 = vadd.f32 %v3514, %v3530
        %v3555 = vadd.f32 %v3515, %v3530
        %v3556 = vadd.f32 %v3516, %v3530
        %v3557 = vadd.f32 %v3517, %v3530
        %v3558 = vadd.f32 %v3518, %v3530
        %v3559 = vadd.f32 %v3519, %v3530
        %v3560 = vadd.f32 %v3520, %v3530
        %v3561 = vadd.f32 %v3521, %v3530
        %v3562 = vadd.f32 %v3522, %v3530
        %v3563 = vadd.f32 %v3523, %v3530
        %v3564 = vadd.f32 %v3524, %v3530
        %v3565 = vadd.f32 %v3525, %v3530
        %v3566 = vadd.f32 %v3526, %v3530
        %v3567 = vadd.f32 %v3527, %v3530
        %3568 = vst [vmem:[#allocation4] sm:$0xff] %v3532
        %3569 = vst [vmem:[#allocation4 + $0x8] sm:$0xff] %v3533
        %3570 = vst [vmem:[#allocation4 + $0x10] sm:$0xff] %v3534
        %3571 = vst [vmem:[#allocation4 + $0x18] sm:$0xff] %v3535
        %3572 = vst [vmem:[#allocation4 + $0x20] sm:$0xff] %v3536
        %3573 = vst [vmem:[#allocation4 + $0x28] sm:$0xff] %v3537
        %3574 = vst [vmem:[#allocation4 + $0x30] sm:$0xff] %v3538
        %3575 = vst [vmem:[#allocation4 + $0x38] sm:$0xff] %v3539
        %3576 = vst [vmem:[#allocation4 + $0x40] sm:$0xff] %v3540
        %3577 = vst [vmem:[#allocation4 + $0x48] sm:$0xff] %v3541
        %3578 = vst [vmem:[#allocation4 + $0x50] sm:$0xff] %v3542
        %3579 = vst [vmem:[#allocation4 + $0x58] sm:$0xff] %v3543
        %3580 = vst [vmem:[#allocation4 + $0x60] sm:$0xff] %v3544
        %3581 = vst [vmem:[#allocation4 + $0x68] sm:$0xff] %v3545
        %3582 = vst [vmem:[#allocation4 + $0x70] sm:$0xff] %v3546
        %3583 = vst [vmem:[#allocation4 + $0x78] sm:$0xff] %v3547
        %3584 = vst [vmem:[#allocation4 + $0x80] sm:$0xff] %v3548
        %3585 = vst [vmem:[#allocation4 + $0x88] sm:$0xff] %v3549
        %3586 = vst [vmem:[#allocation4 + $0x90] sm:$0xff] %v3550
        %3587 = vst [vmem:[#allocation4 + $0x98] sm:$0xff] %v3551
        %3588 = vst [vmem:[#allocation4 + $0xa0] sm:$0xff] %v3552
        %3589 = vst [vmem:[#allocation4 + $0xa8] sm:$0xff] %v3553
        %3590 = vst [vmem:[#allocation4 + $0xb0] sm:$0xff] %v3554
        %3591 = vst [vmem:[#allocation4 + $0xb8] sm:$0xff] %v3555
        %3592 = vst [vmem:[#allocation4 + $0xc0] sm:$0xff] %v3556
        %3593 = vst [vmem:[#allocation4 + $0xc8] sm:$0xff] %v3557
        %3594 = vst [vmem:[#allocation4 + $0xd0] sm:$0xff] %v3558
        %3595 = vst [vmem:[#allocation4 + $0xd8] sm:$0xff] %v3559
        %3596 = vst [vmem:[#allocation4 + $0xe0] sm:$0xff] %v3560
        %3597 = vst [vmem:[#allocation4 + $0xe8] sm:$0xff] %v3561
        %3598 = vst [vmem:[#allocation4 + $0xf0] sm:$0xff] %v3562
        %3599 = vst [vmem:[#allocation4 + $0xf8] sm:$0xff] %v3563
        %3600 = vst [vmem:[#allocation4 + $0x100] sm:$0xff] %v3564
        %3601 = vst [vmem:[#allocation4 + $0x108] sm:$0xff] %v3565
        %3602 = vst [vmem:[#allocation4 + $0x110] sm:$0xff] %v3566
        %3603 = vst [vmem:[#allocation4 + $0x118] sm:$0xff] %v3567
        %v3604 = vld [vmem:[#allocation3 + $0x4] sm:$0xc]
        %v3605 = vld [vmem:[#allocation3 + $0x8] sm:$0xf]
        %v3606 = vld [vmem:[#allocation3 + $0xc] sm:$0xf]
        %v3607 = vld [vmem:[#allocation3 + $0x10] sm:$0xf]
        %v3608 = vld [vmem:[#allocation3 + $0x14] sm:$0xf]
        %v3609 = vld [vmem:[#allocation3 + $0x18] sm:$0xf]
        %v3610 = vld [vmem:[#allocation3 + $0x1c] sm:$0xf]
        %v3611 = vld [vmem:[#allocation3 + $0x20] sm:$0xf]
        %v3612 = vld [vmem:[#allocation3 + $0x24] sm:$0xf]
        %v3613 = vld [vmem:[#allocation3 + $0x28] sm:$0xf]
        %v3614 = vld [vmem:[#allocation3 + $0x2c] sm:$0xf]
        %v3615 = vld [vmem:[#allocation3 + $0x30] sm:$0xf]
        %v3616 = vld [vmem:[#allocation3 + $0x34] sm:$0xf]
        %v3617 = vld [vmem:[#allocation3 + $0x38] sm:$0xf]
        %v3618 = vld [vmem:[#allocation3 + $0x3c] sm:$0xf]
        %v3619 = vld [vmem:[#allocation3 + $0x40] sm:$0xf]
        %v3620 = vld [vmem:[#allocation3 + $0x44] sm:$0xf]
        %v3621 = vld [vmem:[#allocation3 + $0x48] sm:$0xf]
        %v3622 = vld [vmem:[#allocation3 + $0x4c] sm:$0xf]
        %v3623 = vld [vmem:[#allocation3 + $0x50] sm:$0xf]
        %v3624 = vld [vmem:[#allocation3 + $0x54] sm:$0xf]
        %v3625 = vld [vmem:[#allocation3 + $0x58] sm:$0xf]
        %v3626 = vld [vmem:[#allocation3 + $0x5c] sm:$0xf]
        %v3627 = vld [vmem:[#allocation3 + $0x60] sm:$0xf]
        %v3628 = vld [vmem:[#allocation3 + $0x64] sm:$0xf]
        %v3629 = vld [vmem:[#allocation3 + $0x68] sm:$0xf]
        %v3630 = vld [vmem:[#allocation3 + $0x6c] sm:$0xf]
        %v3631 = vld [vmem:[#allocation3 + $0x70] sm:$0xf]
        %v3632 = vld [vmem:[#allocation3 + $0x74] sm:$0xf]
        %v3633 = vld [vmem:[#allocation3 + $0x78] sm:$0xf]
        %v3634 = vld [vmem:[#allocation3 + $0x7c] sm:$0xf]
        %v3635 = vld [vmem:[#allocation3 + $0x80] sm:$0xf]
        %v3636 = vld [vmem:[#allocation3 + $0x84] sm:$0xf]
        %v3637 = vld [vmem:[#allocation3 + $0x88] sm:$0xf]
        %v3638 = vld [vmem:[#allocation3 + $0x8c] sm:$0xf]
        %v3639 = vld [vmem:[#allocation3 + $0x90] sm:$0xf]
        %v3640 = vld [vmem:[#allocation3 + $0x94] sm:$0x7]
        %v3641 = vld [vmem:[%s6] sm:$0xf]
        %v3642 = vld [vmem:[%s6 + $0x4] sm:$0xf]
        %v3643 = vld [vmem:[%s6 + $0x8] sm:$0xf]
        %v3644 = vld [vmem:[%s6 + $0xc] sm:$0xf]
        %v3645 = vld [vmem:[%s6 + $0x10] sm:$0xf]
        %v3646 = vld [vmem:[%s6 + $0x14] sm:$0xf]
        %v3647 = vld [vmem:[%s6 + $0x18] sm:$0xf]
        %v3648 = vld [vmem:[%s6 + $0x1c] sm:$0xf]
        %v3649 = vld [vmem:[%s6 + $0x20] sm:$0xf]
        %v3650 = vld [vmem:[%s6 + $0x24] sm:$0xf]
        %v3651 = vld [vmem:[%s6 + $0x28] sm:$0xf]
        %v3652 = vld [vmem:[%s6 + $0x2c] sm:$0xf]
        %v3653 = vld [vmem:[%s6 + $0x30] sm:$0xf]
        %v3654 = vld [vmem:[%s6 + $0x34] sm:$0xf]
        %v3655 = vld [vmem:[%s6 + $0x38] sm:$0xf]
        %v3656 = vld [vmem:[%s6 + $0x3c] sm:$0xf]
        %v3657 = vld [vmem:[#allocation3 + $0x4] sm:$0x8]
        %v3658 = vld [vmem:[%s6 + $0x40] sm:$0xf]
        %v3659 = vld [vmem:[%s6 + $0x44] sm:$0xf]
        %v3660 = vld [vmem:[%s6 + $0x48] sm:$0xf]
        %v3661 = vld [vmem:[%s6 + $0x4c] sm:$0xf]
        %v3662 = vld [vmem:[%s6 + $0x50] sm:$0xf]
        %v3663 = vld [vmem:[%s6 + $0x54] sm:$0xf]
        %v3664 = vld [vmem:[%s6 + $0x58] sm:$0xf]
        %v3665 = vld [vmem:[%s6 + $0x5c] sm:$0xf]
        %v3666 = vld [vmem:[%s6 + $0x60] sm:$0xf]
        %v3667 = vld [vmem:[%s6 + $0x64] sm:$0xf]
        %v3668 = vld [vmem:[%s6 + $0x68] sm:$0xf]
        %v3669 = vld [vmem:[%s6 + $0x6c] sm:$0xf]
        %v3670 = vld [vmem:[%s6 + $0x70] sm:$0xf]
        %v3671 = vld [vmem:[%s6 + $0x74] sm:$0xf]
        %v3672 = vld [vmem:[%s6 + $0x78] sm:$0xf]
        %v3673 = vld [vmem:[%s6 + $0x7c] sm:$0xf]
        %v3711 = vunpack.c.l.b16 %v3657
        %v3712 = vunpack.c.l.b16 %v3605
        %v3713 = vunpack.c.l.b16 %v3606
        %v3714 = vunpack.c.l.b16 %v3607
        %v3715 = vunpack.c.l.b16 %v3608
        %v3716 = vunpack.c.l.b16 %v3609
        %v3717 = vunpack.c.l.b16 %v3610
        %v3718 = vunpack.c.l.b16 %v3611
        %v3719 = vunpack.c.l.b16 %v3612
        %v3720 = vunpack.c.l.b16 %v3613
        %v3721 = vunpack.c.l.b16 %v3614
        %v3722 = vunpack.c.l.b16 %v3615
        %v3723 = vunpack.c.l.b16 %v3616
        %v3724 = vunpack.c.l.b16 %v3617
        %v3725 = vunpack.c.l.b16 %v3618
        %v3726 = vunpack.c.l.b16 %v3619
        %v3727 = vunpack.c.l.b16 %v3620
        %v3728 = vunpack.c.l.b16 %v3621
        %v3729 = vunpack.c.l.b16 %v3622
        %v3730 = vunpack.c.l.b16 %v3623
        %v3731 = vunpack.c.l.b16 %v3624
        %v3732 = vunpack.c.l.b16 %v3625
        %v3733 = vunpack.c.l.b16 %v3626
        %v3734 = vunpack.c.l.b16 %v3627
        %v3735 = vunpack.c.l.b16 %v3628
        %v3736 = vunpack.c.l.b16 %v3629
        %v3737 = vunpack.c.l.b16 %v3630
        %v3738 = vunpack.c.l.b16 %v3631
        %v3739 = vunpack.c.l.b16 %v3632
        %v3740 = vunpack.c.l.b16 %v3633
        %v3741 = vunpack.c.l.b16 %v3634
        %v3742 = vunpack.c.l.b16 %v3635
        %v3743 = vunpack.c.l.b16 %v3636
        %v3744 = vunpack.c.l.b16 %v3637
        %v3745 = vunpack.c.l.b16 %v3638
        %v3746 = vunpack.c.l.b16 %v3639
        %v3747 = vunpack.c.l.b16 %v3640
        %v3748 = vpack.c.b16 %v3712, %v3711
        %v3749 = vpack.c.b16 %v3714, %v3713
        %v3750 = vpack.c.b16 %v3716, %v3715
        %v3751 = vpack.c.b16 %v3718, %v3717
        %v3752 = vpack.c.b16 %v3720, %v3719
        %v3753 = vpack.c.b16 %v3722, %v3721
        %v3754 = vpack.c.b16 %v3724, %v3723
        %v3755 = vpack.c.b16 %v3726, %v3725
        %v3756 = vpack.c.b16 %v3728, %v3727
        %v3757 = vpack.c.b16 %v3730, %v3729
        %v3758 = vpack.c.b16 %v3732, %v3731
        %v3759 = vpack.c.b16 %v3734, %v3733
        %v3760 = vpack.c.b16 %v3736, %v3735
        %v3761 = vpack.c.b16 %v3738, %v3737
        %v3762 = vpack.c.b16 %v3740, %v3739
        %v3763 = vpack.c.b16 %v3742, %v3741
        %v3764 = vpack.c.b16 %v3744, %v3743
        %v3765 = vpack.c.b16 %v3746, %v3745
        %v3766 = vpack.c.b16 %v3747, %v3747
        %vm3767 = vcmask 1044480
        %v3768 = vrot.slane %v3748, 3
        %v3769 = vrot.slane %v3749, 3
        %v3770 = vsel %vm3767, %v3768, %v3769
        %v3771 = vrot.slane %v3750, 3
        %v3772 = vsel %vm3767, %v3769, %v3771
        %v3773 = vrot.slane %v3751, 3
        %v3774 = vsel %vm3767, %v3771, %v3773
        %v3775 = vrot.slane %v3752, 3
        %v3776 = vsel %vm3767, %v3773, %v3775
        %v3777 = vrot.slane %v3753, 3
        %v3778 = vsel %vm3767, %v3775, %v3777
        %v3779 = vrot.slane %v3754, 3
        %v3780 = vsel %vm3767, %v3777, %v3779
        %v3781 = vrot.slane %v3755, 3
        %v3782 = vsel %vm3767, %v3779, %v3781
        %v3783 = vrot.slane %v3756, 3
        %v3784 = vsel %vm3767, %v3781, %v3783
        %v3785 = vrot.slane %v3757, 3
        %v3786 = vsel %vm3767, %v3783, %v3785
        %v3787 = vrot.slane %v3758, 3
        %v3788 = vsel %vm3767, %v3785, %v3787
        %v3789 = vrot.slane %v3759, 3
        %v3790 = vsel %vm3767, %v3787, %v3789
        %v3791 = vrot.slane %v3760, 3
        %v3792 = vsel %vm3767, %v3789, %v3791
        %v3793 = vrot.slane %v3761, 3
        %v3794 = vsel %vm3767, %v3791, %v3793
        %v3795 = vrot.slane %v3762, 3
        %v3796 = vsel %vm3767, %v3793, %v3795
        %v3797 = vrot.slane %v3763, 3
        %v3798 = vsel %vm3767, %v3795, %v3797
        %v3799 = vrot.slane %v3764, 3
        %v3800 = vsel %vm3767, %v3797, %v3799
        %v3801 = vrot.slane %v3765, 3
        %v3802 = vsel %vm3767, %v3799, %v3801
        %v3803 = vrot.slane %v3766, 3
        %v3804 = vsel %vm3767, %v3801, %v3803
        %v3839 = vunpack.c.l.b16 %v3658
        %v3840 = vunpack.c.l.b16 %v3659
        %v3841 = vunpack.c.l.b16 %v3660
        %v3842 = vunpack.c.l.b16 %v3661
        %v3843 = vunpack.c.l.b16 %v3662
        %v3844 = vunpack.c.l.b16 %v3663
        %v3845 = vunpack.c.l.b16 %v3664
        %v3846 = vunpack.c.l.b16 %v3665
        %v3847 = vunpack.c.l.b16 %v3666
        %v3848 = vunpack.c.l.b16 %v3667
        %v3849 = vunpack.c.l.b16 %v3668
        %v3850 = vunpack.c.l.b16 %v3669
        %v3851 = vunpack.c.l.b16 %v3670
        %v3852 = vunpack.c.l.b16 %v3671
        %v3853 = vunpack.c.l.b16 %v3672
        %v3854 = vunpack.c.l.b16 %v3673
        %v3855 = vpack.c.b16 %v3840, %v3839
        %v3856 = vpack.c.b16 %v3842, %v3841
        %v3857 = vpack.c.b16 %v3844, %v3843
        %v3858 = vpack.c.b16 %v3846, %v3845
        %v3859 = vpack.c.b16 %v3848, %v3847
        %v3860 = vpack.c.b16 %v3850, %v3849
        %v3861 = vpack.c.b16 %v3852, %v3851
        %v3862 = vpack.c.b16 %v3854, %v3853
        %3871 = vmatpush.bf16.msra.mxu0 %v3862
        %3872 = vmatpush.bf16.msra.mxu0 %v3861
        %3873 = vmatpush.bf16.msra.mxu0 %v3860
        %3874 = vmatpush.bf16.msra.mxu0 %v3859
        %3875 = vmatpush.bf16.msra.mxu0 %v3858
        %3876 = vmatpush.bf16.msra.mxu0 %v3857
        %3877 = vmatpush.bf16.msra.mxu0 %v3856
        %3878 = vmatpush.bf16.msra.mxu0 %v3855
        %3879 = vmatmul.bf16.gmra.mxu0 %v3770
        %v3880 = vpop.f32.mrf.mxu0
        %v3881 = vadd.f32 0.0, %v3880
        %v3882 = vpop.f32.mrf.mxu0
        %v3883 = vadd.f32 0.0, %v3882
        %3884 = vmatmul.bf16.gmra.mxu0 %v3772
        %v3885 = vpop.f32.mrf.mxu0
        %v3886 = vadd.f32 0.0, %v3885
        %v3887 = vpop.f32.mrf.mxu0
        %v3888 = vadd.f32 0.0, %v3887
        %3889 = vmatmul.bf16.gmra.mxu0 %v3774
        %v3890 = vpop.f32.mrf.mxu0
        %v3891 = vadd.f32 0.0, %v3890
        %v3892 = vpop.f32.mrf.mxu0
        %v3893 = vadd.f32 0.0, %v3892
        %3894 = vmatmul.bf16.gmra.mxu0 %v3776
        %v3895 = vpop.f32.mrf.mxu0
        %v3896 = vadd.f32 0.0, %v3895
        %v3897 = vpop.f32.mrf.mxu0
        %v3898 = vadd.f32 0.0, %v3897
        %3899 = vmatmul.bf16.gmra.mxu0 %v3778
        %v3900 = vpop.f32.mrf.mxu0
        %v3901 = vadd.f32 0.0, %v3900
        %v3902 = vpop.f32.mrf.mxu0
        %v3903 = vadd.f32 0.0, %v3902
        %3904 = vmatmul.bf16.gmra.mxu0 %v3780
        %v3905 = vpop.f32.mrf.mxu0
        %v3906 = vadd.f32 0.0, %v3905
        %v3907 = vpop.f32.mrf.mxu0
        %v3908 = vadd.f32 0.0, %v3907
        %3909 = vmatmul.bf16.gmra.mxu0 %v3782
        %v3910 = vpop.f32.mrf.mxu0
        %v3911 = vadd.f32 0.0, %v3910
        %v3912 = vpop.f32.mrf.mxu0
        %v3913 = vadd.f32 0.0, %v3912
        %3914 = vmatmul.bf16.gmra.mxu0 %v3784
        %v3915 = vpop.f32.mrf.mxu0
        %v3916 = vadd.f32 0.0, %v3915
        %v3917 = vpop.f32.mrf.mxu0
        %v3918 = vadd.f32 0.0, %v3917
        %3919 = vmatmul.bf16.gmra.mxu0 %v3786
        %v3920 = vpop.f32.mrf.mxu0
        %v3921 = vadd.f32 0.0, %v3920
        %v3922 = vpop.f32.mrf.mxu0
        %v3923 = vadd.f32 0.0, %v3922
        %3924 = vmatmul.bf16.gmra.mxu0 %v3788
        %v3925 = vpop.f32.mrf.mxu0
        %v3926 = vadd.f32 0.0, %v3925
        %v3927 = vpop.f32.mrf.mxu0
        %v3928 = vadd.f32 0.0, %v3927
        %3929 = vmatmul.bf16.gmra.mxu0 %v3790
        %v3930 = vpop.f32.mrf.mxu0
        %v3931 = vadd.f32 0.0, %v3930
        %v3932 = vpop.f32.mrf.mxu0
        %v3933 = vadd.f32 0.0, %v3932
        %3934 = vmatmul.bf16.gmra.mxu0 %v3792
        %v3935 = vpop.f32.mrf.mxu0
        %v3936 = vadd.f32 0.0, %v3935
        %v3937 = vpop.f32.mrf.mxu0
        %v3938 = vadd.f32 0.0, %v3937
        %3939 = vmatmul.bf16.gmra.mxu0 %v3794
        %v3940 = vpop.f32.mrf.mxu0
        %v3941 = vadd.f32 0.0, %v3940
        %v3942 = vpop.f32.mrf.mxu0
        %v3943 = vadd.f32 0.0, %v3942
        %3944 = vmatmul.bf16.gmra.mxu0 %v3796
        %v3945 = vpop.f32.mrf.mxu0
        %v3946 = vadd.f32 0.0, %v3945
        %v3947 = vpop.f32.mrf.mxu0
        %v3948 = vadd.f32 0.0, %v3947
        %3949 = vmatmul.bf16.gmra.mxu0 %v3798
        %v3950 = vpop.f32.mrf.mxu0
        %v3951 = vadd.f32 0.0, %v3950
        %v3952 = vpop.f32.mrf.mxu0
        %v3953 = vadd.f32 0.0, %v3952
        %3954 = vmatmul.bf16.gmra.mxu0 %v3800
        %v3955 = vpop.f32.mrf.mxu0
        %v3956 = vadd.f32 0.0, %v3955
        %v3957 = vpop.f32.mrf.mxu0
        %v3958 = vadd.f32 0.0, %v3957
        %3959 = vmatmul.bf16.gmra.mxu0 %v3802
        %v3960 = vpop.f32.mrf.mxu0
        %v3961 = vadd.f32 0.0, %v3960
        %v3962 = vpop.f32.mrf.mxu0
        %v3963 = vadd.f32 0.0, %v3962
        %3964 = vmatmul.bf16.gmra.mxu0 %v3804
        %v3965 = vpop.f32.mrf.mxu0
        %v3966 = vadd.f32 0.0, %v3965
        %v3967 = vpop.f32.mrf.mxu0
        %v3968 = vadd.f32 0.0, %v3967
        %3969 = vdwg.mxu0
        %v3971 = vunpack.c.l.b16 %v3604
        %v3972 = vpack.c.b16 %v3712, %v3971
        %vm3973 = vsmask.f32 5376
        %v3975 = vshrl.u32 %v3972, 16
        %v3977 = vrot.slane %v3975, 2
        %v3978 = vshll.u32 %v3972, 16
        %v3980 = vrot.slane %v3978, 3
        %v3981 = vor.u32 %v3977, %v3980
        %v3983 = vshrl.u32 %v3749, 16
        %v3985 = vrot.slane %v3983, 2
        %v3986 = vshll.u32 %v3749, 16
        %v3988 = vrot.slane %v3986, 3
        %v3989 = vor.u32 %v3985, %v3988
        %v3990 = vsel %vm3973, %v3981, %v3989
        %v3992 = vshrl.u32 %v3750, 16
        %v3994 = vrot.slane %v3992, 2
        %v3995 = vshll.u32 %v3750, 16
        %v3997 = vrot.slane %v3995, 3
        %v3998 = vor.u32 %v3994, %v3997
        %v3999 = vsel %vm3973, %v3989, %v3998
        %v4001 = vshrl.u32 %v3751, 16
        %v4003 = vrot.slane %v4001, 2
        %v4004 = vshll.u32 %v3751, 16
        %v4006 = vrot.slane %v4004, 3
        %v4007 = vor.u32 %v4003, %v4006
        %v4008 = vsel %vm3973, %v3998, %v4007
        %v4010 = vshrl.u32 %v3752, 16
        %v4012 = vrot.slane %v4010, 2
        %v4013 = vshll.u32 %v3752, 16
        %v4015 = vrot.slane %v4013, 3
        %v4016 = vor.u32 %v4012, %v4015
        %v4017 = vsel %vm3973, %v4007, %v4016
        %v4019 = vshrl.u32 %v3753, 16
        %v4021 = vrot.slane %v4019, 2
        %v4022 = vshll.u32 %v3753, 16
        %v4024 = vrot.slane %v4022, 3
        %v4025 = vor.u32 %v4021, %v4024
        %v4026 = vsel %vm3973, %v4016, %v4025
        %v4028 = vshrl.u32 %v3754, 16
        %v4030 = vrot.slane %v4028, 2
        %v4031 = vshll.u32 %v3754, 16
        %v4033 = vrot.slane %v4031, 3
        %v4034 = vor.u32 %v4030, %v4033
        %v4035 = vsel %vm3973, %v4025, %v4034
        %v4037 = vshrl.u32 %v3755, 16
        %v4039 = vrot.slane %v4037, 2
        %v4040 = vshll.u32 %v3755, 16
        %v4042 = vrot.slane %v4040, 3
        %v4043 = vor.u32 %v4039, %v4042
        %v4044 = vsel %vm3973, %v4034, %v4043
        %v4046 = vshrl.u32 %v3756, 16
        %v4048 = vrot.slane %v4046, 2
        %v4049 = vshll.u32 %v3756, 16
        %v4051 = vrot.slane %v4049, 3
        %v4052 = vor.u32 %v4048, %v4051
        %v4053 = vsel %vm3973, %v4043, %v4052
        %v4055 = vshrl.u32 %v3757, 16
        %v4057 = vrot.slane %v4055, 2
        %v4058 = vshll.u32 %v3757, 16
        %v4060 = vrot.slane %v4058, 3
        %v4061 = vor.u32 %v4057, %v4060
        %v4062 = vsel %vm3973, %v4052, %v4061
        %v4064 = vshrl.u32 %v3758, 16
        %v4066 = vrot.slane %v4064, 2
        %v4067 = vshll.u32 %v3758, 16
        %v4069 = vrot.slane %v4067, 3
        %v4070 = vor.u32 %v4066, %v4069
        %v4071 = vsel %vm3973, %v4061, %v4070
        %v4073 = vshrl.u32 %v3759, 16
        %v4075 = vrot.slane %v4073, 2
        %v4076 = vshll.u32 %v3759, 16
        %v4078 = vrot.slane %v4076, 3
        %v4079 = vor.u32 %v4075, %v4078
        %v4080 = vsel %vm3973, %v4070, %v4079
        %v4082 = vshrl.u32 %v3760, 16
        %v4084 = vrot.slane %v4082, 2
        %v4085 = vshll.u32 %v3760, 16
        %v4087 = vrot.slane %v4085, 3
        %v4088 = vor.u32 %v4084, %v4087
        %v4089 = vsel %vm3973, %v4079, %v4088
        %v4091 = vshrl.u32 %v3761, 16
        %v4093 = vrot.slane %v4091, 2
        %v4094 = vshll.u32 %v3761, 16
        %v4096 = vrot.slane %v4094, 3
        %v4097 = vor.u32 %v4093, %v4096
        %v4098 = vsel %vm3973, %v4088, %v4097
        %v4100 = vshrl.u32 %v3762, 16
        %v4102 = vrot.slane %v4100, 2
        %v4103 = vshll.u32 %v3762, 16
        %v4105 = vrot.slane %v4103, 3
        %v4106 = vor.u32 %v4102, %v4105
        %v4107 = vsel %vm3973, %v4097, %v4106
        %v4109 = vshrl.u32 %v3763, 16
        %v4111 = vrot.slane %v4109, 2
        %v4112 = vshll.u32 %v3763, 16
        %v4114 = vrot.slane %v4112, 3
        %v4115 = vor.u32 %v4111, %v4114
        %v4116 = vsel %vm3973, %v4106, %v4115
        %v4118 = vshrl.u32 %v3764, 16
        %v4120 = vrot.slane %v4118, 2
        %v4121 = vshll.u32 %v3764, 16
        %v4123 = vrot.slane %v4121, 3
        %v4124 = vor.u32 %v4120, %v4123
        %v4125 = vsel %vm3973, %v4115, %v4124
        %v4127 = vshrl.u32 %v3765, 16
        %v4129 = vrot.slane %v4127, 2
        %v4130 = vshll.u32 %v3765, 16
        %v4132 = vrot.slane %v4130, 3
        %v4133 = vor.u32 %v4129, %v4132
        %v4134 = vsel %vm3973, %v4124, %v4133
        %v4136 = vshrl.u32 %v3766, 16
        %v4138 = vrot.slane %v4136, 2
        %v4139 = vshll.u32 %v3766, 16
        %v4141 = vrot.slane %v4139, 3
        %v4142 = vor.u32 %v4138, %v4141
        %v4143 = vsel %vm3973, %v4133, %v4142
        %v4178 = vunpack.c.l.b16 %v3641
        %v4179 = vunpack.c.l.b16 %v3642
        %v4180 = vunpack.c.l.b16 %v3643
        %v4181 = vunpack.c.l.b16 %v3644
        %v4182 = vunpack.c.l.b16 %v3645
        %v4183 = vunpack.c.l.b16 %v3646
        %v4184 = vunpack.c.l.b16 %v3647
        %v4185 = vunpack.c.l.b16 %v3648
        %v4186 = vunpack.c.l.b16 %v3649
        %v4187 = vunpack.c.l.b16 %v3650
        %v4188 = vunpack.c.l.b16 %v3651
        %v4189 = vunpack.c.l.b16 %v3652
        %v4190 = vunpack.c.l.b16 %v3653
        %v4191 = vunpack.c.l.b16 %v3654
        %v4192 = vunpack.c.l.b16 %v3655
        %v4193 = vunpack.c.l.b16 %v3656
        %v4194 = vpack.c.b16 %v4179, %v4178
        %v4195 = vpack.c.b16 %v4181, %v4180
        %v4196 = vpack.c.b16 %v4183, %v4182
        %v4197 = vpack.c.b16 %v4185, %v4184
        %v4198 = vpack.c.b16 %v4187, %v4186
        %v4199 = vpack.c.b16 %v4189, %v4188
        %v4200 = vpack.c.b16 %v4191, %v4190
        %v4201 = vpack.c.b16 %v4193, %v4192
        %4210 = vmatpush.bf16.msra.mxu0 %v4201
        %4211 = vmatpush.bf16.msra.mxu0 %v4200
        %4212 = vmatpush.bf16.msra.mxu0 %v4199
        %4213 = vmatpush.bf16.msra.mxu0 %v4198
        %4214 = vmatpush.bf16.msra.mxu0 %v4197
        %4215 = vmatpush.bf16.msra.mxu0 %v4196
        %4216 = vmatpush.bf16.msra.mxu0 %v4195
        %4217 = vmatpush.bf16.msra.mxu0 %v4194
        %4218 = vmatmul.bf16.gmra.mxu0 %v3990
        %v4219 = vpop.f32.mrf.mxu0
        %v4220 = vadd.f32 %v3881, %v4219
        %v4221 = vpop.f32.mrf.mxu0
        %v4222 = vadd.f32 %v3883, %v4221
        %4223 = vmatmul.bf16.gmra.mxu0 %v3999
        %v4224 = vpop.f32.mrf.mxu0
        %v4225 = vadd.f32 %v3886, %v4224
        %v4226 = vpop.f32.mrf.mxu0
        %v4227 = vadd.f32 %v3888, %v4226
        %4228 = vmatmul.bf16.gmra.mxu0 %v4008
        %v4229 = vpop.f32.mrf.mxu0
        %v4230 = vadd.f32 %v3891, %v4229
        %v4231 = vpop.f32.mrf.mxu0
        %v4232 = vadd.f32 %v3893, %v4231
        %4233 = vmatmul.bf16.gmra.mxu0 %v4017
        %v4234 = vpop.f32.mrf.mxu0
        %v4235 = vadd.f32 %v3896, %v4234
        %v4236 = vpop.f32.mrf.mxu0
        %v4237 = vadd.f32 %v3898, %v4236
        %4238 = vmatmul.bf16.gmra.mxu0 %v4026
        %v4239 = vpop.f32.mrf.mxu0
        %v4240 = vadd.f32 %v3901, %v4239
        %v4241 = vpop.f32.mrf.mxu0
        %v4242 = vadd.f32 %v3903, %v4241
        %4243 = vmatmul.bf16.gmra.mxu0 %v4035
        %v4244 = vpop.f32.mrf.mxu0
        %v4245 = vadd.f32 %v3906, %v4244
        %v4246 = vpop.f32.mrf.mxu0
        %v4247 = vadd.f32 %v3908, %v4246
        %4248 = vmatmul.bf16.gmra.mxu0 %v4044
        %v4249 = vpop.f32.mrf.mxu0
        %v4250 = vadd.f32 %v3911, %v4249
        %v4251 = vpop.f32.mrf.mxu0
        %v4252 = vadd.f32 %v3913, %v4251
        %4253 = vmatmul.bf16.gmra.mxu0 %v4053
        %v4254 = vpop.f32.mrf.mxu0
        %v4255 = vadd.f32 %v3916, %v4254
        %v4256 = vpop.f32.mrf.mxu0
        %v4257 = vadd.f32 %v3918, %v4256
        %4258 = vmatmul.bf16.gmra.mxu0 %v4062
        %v4259 = vpop.f32.mrf.mxu0
        %v4260 = vadd.f32 %v3921, %v4259
        %v4261 = vpop.f32.mrf.mxu0
        %v4262 = vadd.f32 %v3923, %v4261
        %4263 = vmatmul.bf16.gmra.mxu0 %v4071
        %v4264 = vpop.f32.mrf.mxu0
        %v4265 = vadd.f32 %v3926, %v4264
        %v4266 = vpop.f32.mrf.mxu0
        %v4267 = vadd.f32 %v3928, %v4266
        %4268 = vmatmul.bf16.gmra.mxu0 %v4080
        %v4269 = vpop.f32.mrf.mxu0
        %v4270 = vadd.f32 %v3931, %v4269
        %v4271 = vpop.f32.mrf.mxu0
        %v4272 = vadd.f32 %v3933, %v4271
        %4273 = vmatmul.bf16.gmra.mxu0 %v4089
        %v4274 = vpop.f32.mrf.mxu0
        %v4275 = vadd.f32 %v3936, %v4274
        %v4276 = vpop.f32.mrf.mxu0
        %v4277 = vadd.f32 %v3938, %v4276
        %4278 = vmatmul.bf16.gmra.mxu0 %v4098
        %v4279 = vpop.f32.mrf.mxu0
        %v4280 = vadd.f32 %v3941, %v4279
        %v4281 = vpop.f32.mrf.mxu0
        %v4282 = vadd.f32 %v3943, %v4281
        %4283 = vmatmul.bf16.gmra.mxu0 %v4107
        %v4284 = vpop.f32.mrf.mxu0
        %v4285 = vadd.f32 %v3946, %v4284
        %v4286 = vpop.f32.mrf.mxu0
        %v4287 = vadd.f32 %v3948, %v4286
        %4288 = vmatmul.bf16.gmra.mxu0 %v4116
        %v4289 = vpop.f32.mrf.mxu0
        %v4290 = vadd.f32 %v3951, %v4289
        %v4291 = vpop.f32.mrf.mxu0
        %v4292 = vadd.f32 %v3953, %v4291
        %4293 = vmatmul.bf16.gmra.mxu0 %v4125
        %v4294 = vpop.f32.mrf.mxu0
        %v4295 = vadd.f32 %v3956, %v4294
        %v4296 = vpop.f32.mrf.mxu0
        %v4297 = vadd.f32 %v3958, %v4296
        %4298 = vmatmul.bf16.gmra.mxu0 %v4134
        %v4299 = vpop.f32.mrf.mxu0
        %v4300 = vadd.f32 %v3961, %v4299
        %v4301 = vpop.f32.mrf.mxu0
        %v4302 = vadd.f32 %v3963, %v4301
        %4303 = vmatmul.bf16.gmra.mxu0 %v4143
        %v4304 = vpop.f32.mrf.mxu0
        %v4305 = vadd.f32 %v3966, %v4304
        %v4306 = vpop.f32.mrf.mxu0
        %v4307 = vadd.f32 %v3968, %v4306
        %4308 = vdwg.mxu0
        %v4309 = vld [vmem:[#allocation3 + $0x94] sm:$0xf]
        %v4310 = vld [vmem:[%s6 + $0x80] sm:$0xf]
        %v4311 = vld [vmem:[%s6 + $0x84] sm:$0xf]
        %v4312 = vld [vmem:[%s6 + $0x88] sm:$0xf]
        %v4313 = vld [vmem:[%s6 + $0x8c] sm:$0xf]
        %v4314 = vld [vmem:[%s6 + $0x90] sm:$0xf]
        %v4315 = vld [vmem:[%s6 + $0x94] sm:$0xf]
        %v4316 = vld [vmem:[%s6 + $0x98] sm:$0xf]
        %v4317 = vld [vmem:[%s6 + $0x9c] sm:$0xf]
        %v4318 = vld [vmem:[%s6 + $0xa0] sm:$0xf]
        %v4319 = vld [vmem:[%s6 + $0xa4] sm:$0xf]
        %v4320 = vld [vmem:[%s6 + $0xa8] sm:$0xf]
        %v4321 = vld [vmem:[%s6 + $0xac] sm:$0xf]
        %v4322 = vld [vmem:[%s6 + $0xb0] sm:$0xf]
        %v4323 = vld [vmem:[%s6 + $0xb4] sm:$0xf]
        %v4324 = vld [vmem:[%s6 + $0xb8] sm:$0xf]
        %v4325 = vld [vmem:[%s6 + $0xbc] sm:$0xf]
        %v4327 = vunpack.c.l.b16 %v4309
        %v4328 = vpack.c.b16 %v4327, %v4327
        %vm4329 = vsmask.f32 4352
        %v4331 = vshrl.u32 %v3748, 16
        %v4333 = vrot.slane %v4331, 3
        %v4334 = vshll.u32 %v3748, 16
        %v4336 = vrot.slane %v4334, 4
        %v4337 = vor.u32 %v4333, %v4336
        %v4338 = vrot.slane %v3983, 3
        %v4339 = vrot.slane %v3986, 4
        %v4340 = vor.u32 %v4338, %v4339
        %v4341 = vsel %vm4329, %v4337, %v4340
        %v4342 = vrot.slane %v3992, 3
        %v4343 = vrot.slane %v3995, 4
        %v4344 = vor.u32 %v4342, %v4343
        %v4345 = vsel %vm4329, %v4340, %v4344
        %v4346 = vrot.slane %v4001, 3
        %v4347 = vrot.slane %v4004, 4
        %v4348 = vor.u32 %v4346, %v4347
        %v4349 = vsel %vm4329, %v4344, %v4348
        %v4350 = vrot.slane %v4010, 3
        %v4351 = vrot.slane %v4013, 4
        %v4352 = vor.u32 %v4350, %v4351
        %v4353 = vsel %vm4329, %v4348, %v4352
        %v4354 = vrot.slane %v4019, 3
        %v4355 = vrot.slane %v4022, 4
        %v4356 = vor.u32 %v4354, %v4355
        %v4357 = vsel %vm4329, %v4352, %v4356
        %v4358 = vrot.slane %v4028, 3
        %v4359 = vrot.slane %v4031, 4
        %v4360 = vor.u32 %v4358, %v4359
        %v4361 = vsel %vm4329, %v4356, %v4360
        %v4362 = vrot.slane %v4037, 3
        %v4363 = vrot.slane %v4040, 4
        %v4364 = vor.u32 %v4362, %v4363
        %v4365 = vsel %vm4329, %v4360, %v4364
        %v4366 = vrot.slane %v4046, 3
        %v4367 = vrot.slane %v4049, 4
        %v4368 = vor.u32 %v4366, %v4367
        %v4369 = vsel %vm4329, %v4364, %v4368
        %v4370 = vrot.slane %v4055, 3
        %v4371 = vrot.slane %v4058, 4
        %v4372 = vor.u32 %v4370, %v4371
        %v4373 = vsel %vm4329, %v4368, %v4372
        %v4374 = vrot.slane %v4064, 3
        %v4375 = vrot.slane %v4067, 4
        %v4376 = vor.u32 %v4374, %v4375
        %v4377 = vsel %vm4329, %v4372, %v4376
        %v4378 = vrot.slane %v4073, 3
        %v4379 = vrot.slane %v4076, 4
        %v4380 = vor.u32 %v4378, %v4379
        %v4381 = vsel %vm4329, %v4376, %v4380
        %v4382 = vrot.slane %v4082, 3
        %v4383 = vrot.slane %v4085, 4
        %v4384 = vor.u32 %v4382, %v4383
        %v4385 = vsel %vm4329, %v4380, %v4384
        %v4386 = vrot.slane %v4091, 3
        %v4387 = vrot.slane %v4094, 4
        %v4388 = vor.u32 %v4386, %v4387
        %v4389 = vsel %vm4329, %v4384, %v4388
        %v4390 = vrot.slane %v4100, 3
        %v4391 = vrot.slane %v4103, 4
        %v4392 = vor.u32 %v4390, %v4391
        %v4393 = vsel %vm4329, %v4388, %v4392
        %v4394 = vrot.slane %v4109, 3
        %v4395 = vrot.slane %v4112, 4
        %v4396 = vor.u32 %v4394, %v4395
        %v4397 = vsel %vm4329, %v4392, %v4396
        %v4398 = vrot.slane %v4118, 3
        %v4399 = vrot.slane %v4121, 4
        %v4400 = vor.u32 %v4398, %v4399
        %v4401 = vsel %vm4329, %v4396, %v4400
        %v4402 = vrot.slane %v4127, 3
        %v4403 = vrot.slane %v4130, 4
        %v4404 = vor.u32 %v4402, %v4403
        %v4405 = vsel %vm4329, %v4400, %v4404
        %v4407 = vshrl.u32 %v4328, 16
        %v4409 = vrot.slane %v4407, 3
        %v4410 = vshll.u32 %v4328, 16
        %v4412 = vrot.slane %v4410, 4
        %v4413 = vor.u32 %v4409, %v4412
        %v4414 = vsel %vm4329, %v4404, %v4413
        %v4449 = vunpack.c.l.b16 %v4310
        %v4450 = vunpack.c.l.b16 %v4311
        %v4451 = vunpack.c.l.b16 %v4312
        %v4452 = vunpack.c.l.b16 %v4313
        %v4453 = vunpack.c.l.b16 %v4314
        %v4454 = vunpack.c.l.b16 %v4315
        %v4455 = vunpack.c.l.b16 %v4316
        %v4456 = vunpack.c.l.b16 %v4317
        %v4457 = vunpack.c.l.b16 %v4318
        %v4458 = vunpack.c.l.b16 %v4319
        %v4459 = vunpack.c.l.b16 %v4320
        %v4460 = vunpack.c.l.b16 %v4321
        %v4461 = vunpack.c.l.b16 %v4322
        %v4462 = vunpack.c.l.b16 %v4323
        %v4463 = vunpack.c.l.b16 %v4324
        %v4464 = vunpack.c.l.b16 %v4325
        %v4465 = vpack.c.b16 %v4450, %v4449
        %v4466 = vpack.c.b16 %v4452, %v4451
        %v4467 = vpack.c.b16 %v4454, %v4453
        %v4468 = vpack.c.b16 %v4456, %v4455
        %v4469 = vpack.c.b16 %v4458, %v4457
        %v4470 = vpack.c.b16 %v4460, %v4459
        %v4471 = vpack.c.b16 %v4462, %v4461
        %v4472 = vpack.c.b16 %v4464, %v4463
        %4481 = vmatpush.bf16.msra.mxu0 %v4472
        %4482 = vmatpush.bf16.msra.mxu0 %v4471
        %4483 = vmatpush.bf16.msra.mxu0 %v4470
        %4484 = vmatpush.bf16.msra.mxu0 %v4469
        %4485 = vmatpush.bf16.msra.mxu0 %v4468
        %4486 = vmatpush.bf16.msra.mxu0 %v4467
        %4487 = vmatpush.bf16.msra.mxu0 %v4466
        %4488 = vmatpush.bf16.msra.mxu0 %v4465
        %4489 = vmatmul.bf16.gmra.mxu0 %v4341
        %v4490 = vpop.f32.mrf.mxu0
        %v4491 = vadd.f32 0.0, %v4490
        %v4492 = vpop.f32.mrf.mxu0
        %v4493 = vadd.f32 0.0, %v4492
        %4494 = vmatmul.bf16.gmra.mxu0 %v4345
        %v4495 = vpop.f32.mrf.mxu0
        %v4496 = vadd.f32 0.0, %v4495
        %v4497 = vpop.f32.mrf.mxu0
        %v4498 = vadd.f32 0.0, %v4497
        %4499 = vmatmul.bf16.gmra.mxu0 %v4349
        %v4500 = vpop.f32.mrf.mxu0
        %v4501 = vadd.f32 0.0, %v4500
        %v4502 = vpop.f32.mrf.mxu0
        %v4503 = vadd.f32 0.0, %v4502
        %4504 = vmatmul.bf16.gmra.mxu0 %v4353
        %v4505 = vpop.f32.mrf.mxu0
        %v4506 = vadd.f32 0.0, %v4505
        %v4507 = vpop.f32.mrf.mxu0
        %v4508 = vadd.f32 0.0, %v4507
        %4509 = vmatmul.bf16.gmra.mxu0 %v4357
        %v4510 = vpop.f32.mrf.mxu0
        %v4511 = vadd.f32 0.0, %v4510
        %v4512 = vpop.f32.mrf.mxu0
        %v4513 = vadd.f32 0.0, %v4512
        %4514 = vmatmul.bf16.gmra.mxu0 %v4361
        %v4515 = vpop.f32.mrf.mxu0
        %v4516 = vadd.f32 0.0, %v4515
        %v4517 = vpop.f32.mrf.mxu0
        %v4518 = vadd.f32 0.0, %v4517
        %4519 = vmatmul.bf16.gmra.mxu0 %v4365
        %v4520 = vpop.f32.mrf.mxu0
        %v4521 = vadd.f32 0.0, %v4520
        %v4522 = vpop.f32.mrf.mxu0
        %v4523 = vadd.f32 0.0, %v4522
        %4524 = vmatmul.bf16.gmra.mxu0 %v4369
        %v4525 = vpop.f32.mrf.mxu0
        %v4526 = vadd.f32 0.0, %v4525
        %v4527 = vpop.f32.mrf.mxu0
        %v4528 = vadd.f32 0.0, %v4527
        %4529 = vmatmul.bf16.gmra.mxu0 %v4373
        %v4530 = vpop.f32.mrf.mxu0
        %v4531 = vadd.f32 0.0, %v4530
        %v4532 = vpop.f32.mrf.mxu0
        %v4533 = vadd.f32 0.0, %v4532
        %4534 = vmatmul.bf16.gmra.mxu0 %v4377
        %v4535 = vpop.f32.mrf.mxu0
        %v4536 = vadd.f32 0.0, %v4535
        %v4537 = vpop.f32.mrf.mxu0
        %v4538 = vadd.f32 0.0, %v4537
        %4539 = vmatmul.bf16.gmra.mxu0 %v4381
        %v4540 = vpop.f32.mrf.mxu0
        %v4541 = vadd.f32 0.0, %v4540
        %v4542 = vpop.f32.mrf.mxu0
        %v4543 = vadd.f32 0.0, %v4542
        %4544 = vmatmul.bf16.gmra.mxu0 %v4385
        %v4545 = vpop.f32.mrf.mxu0
        %v4546 = vadd.f32 0.0, %v4545
        %v4547 = vpop.f32.mrf.mxu0
        %v4548 = vadd.f32 0.0, %v4547
        %4549 = vmatmul.bf16.gmra.mxu0 %v4389
        %v4550 = vpop.f32.mrf.mxu0
        %v4551 = vadd.f32 0.0, %v4550
        %v4552 = vpop.f32.mrf.mxu0
        %v4553 = vadd.f32 0.0, %v4552
        %4554 = vmatmul.bf16.gmra.mxu0 %v4393
        %v4555 = vpop.f32.mrf.mxu0
        %v4556 = vadd.f32 0.0, %v4555
        %v4557 = vpop.f32.mrf.mxu0
        %v4558 = vadd.f32 0.0, %v4557
        %4559 = vmatmul.bf16.gmra.mxu0 %v4397
        %v4560 = vpop.f32.mrf.mxu0
        %v4561 = vadd.f32 0.0, %v4560
        %v4562 = vpop.f32.mrf.mxu0
        %v4563 = vadd.f32 0.0, %v4562
        %4564 = vmatmul.bf16.gmra.mxu0 %v4401
        %v4565 = vpop.f32.mrf.mxu0
        %v4566 = vadd.f32 0.0, %v4565
        %v4567 = vpop.f32.mrf.mxu0
        %v4568 = vadd.f32 0.0, %v4567
        %4569 = vmatmul.bf16.gmra.mxu0 %v4405
        %v4570 = vpop.f32.mrf.mxu0
        %v4571 = vadd.f32 0.0, %v4570
        %v4572 = vpop.f32.mrf.mxu0
        %v4573 = vadd.f32 0.0, %v4572
        %4574 = vmatmul.bf16.gmra.mxu0 %v4414
        %v4575 = vpop.f32.mrf.mxu0
        %v4576 = vadd.f32 0.0, %v4575
        %v4577 = vpop.f32.mrf.mxu0
        %v4578 = vadd.f32 0.0, %v4577
        %4579 = vdwg.mxu0
        %v4580 = vadd.f32 %v4220, %v4491
        %v4581 = vadd.f32 %v4222, %v4493
        %v4582 = vadd.f32 %v4225, %v4496
        %v4583 = vadd.f32 %v4227, %v4498
        %v4584 = vadd.f32 %v4230, %v4501
        %v4585 = vadd.f32 %v4232, %v4503
        %v4586 = vadd.f32 %v4235, %v4506
        %v4587 = vadd.f32 %v4237, %v4508
        %v4588 = vadd.f32 %v4240, %v4511
        %v4589 = vadd.f32 %v4242, %v4513
        %v4590 = vadd.f32 %v4245, %v4516
        %v4591 = vadd.f32 %v4247, %v4518
        %v4592 = vadd.f32 %v4250, %v4521
        %v4593 = vadd.f32 %v4252, %v4523
        %v4594 = vadd.f32 %v4255, %v4526
        %v4595 = vadd.f32 %v4257, %v4528
        %v4596 = vadd.f32 %v4260, %v4531
        %v4597 = vadd.f32 %v4262, %v4533
        %v4598 = vadd.f32 %v4265, %v4536
        %v4599 = vadd.f32 %v4267, %v4538
        %v4600 = vadd.f32 %v4270, %v4541
        %v4601 = vadd.f32 %v4272, %v4543
        %v4602 = vadd.f32 %v4275, %v4546
        %v4603 = vadd.f32 %v4277, %v4548
        %v4604 = vadd.f32 %v4280, %v4551
        %v4605 = vadd.f32 %v4282, %v4553
        %v4606 = vadd.f32 %v4285, %v4556
        %v4607 = vadd.f32 %v4287, %v4558
        %v4608 = vadd.f32 %v4290, %v4561
        %v4609 = vadd.f32 %v4292, %v4563
        %v4610 = vadd.f32 %v4295, %v4566
        %v4611 = vadd.f32 %v4297, %v4568
        %v4612 = vadd.f32 %v4300, %v4571
        %v4613 = vadd.f32 %v4302, %v4573
        %v4614 = vadd.f32 %v4305, %v4576
        %v4615 = vadd.f32 %v4307, %v4578
        %v4616 = vld [vmem:[#allocation3 + $0xc] sm:$0x8]
        %v4617 = vld [vmem:[#allocation3 + $0x10] sm:$0xf]
        %v4618 = vld [vmem:[#allocation3 + $0x14] sm:$0xf]
        %v4619 = vld [vmem:[#allocation3 + $0x18] sm:$0xf]
        %v4620 = vld [vmem:[#allocation3 + $0x1c] sm:$0xf]
        %v4621 = vld [vmem:[#allocation3 + $0x20] sm:$0xf]
        %v4622 = vld [vmem:[#allocation3 + $0x24] sm:$0xf]
        %v4623 = vld [vmem:[#allocation3 + $0x28] sm:$0xf]
        %v4624 = vld [vmem:[#allocation3 + $0x2c] sm:$0xf]
        %v4625 = vld [vmem:[#allocation3 + $0x30] sm:$0xf]
        %v4626 = vld [vmem:[#allocation3 + $0x34] sm:$0xf]
        %v4627 = vld [vmem:[#allocation3 + $0x38] sm:$0xf]
        %v4628 = vld [vmem:[#allocation3 + $0x3c] sm:$0xf]
        %v4629 = vld [vmem:[#allocation3 + $0x40] sm:$0xf]
        %v4630 = vld [vmem:[#allocation3 + $0x44] sm:$0xf]
        %v4631 = vld [vmem:[#allocation3 + $0x48] sm:$0xf]
        %v4632 = vld [vmem:[#allocation3 + $0x4c] sm:$0xf]
        %v4633 = vld [vmem:[#allocation3 + $0x50] sm:$0xf]
        %v4634 = vld [vmem:[#allocation3 + $0x54] sm:$0xf]
        %v4635 = vld [vmem:[#allocation3 + $0x58] sm:$0xf]
        %v4636 = vld [vmem:[#allocation3 + $0x5c] sm:$0xf]
        %v4637 = vld [vmem:[#allocation3 + $0x60] sm:$0xf]
        %v4638 = vld [vmem:[#allocation3 + $0x64] sm:$0xf]
        %v4639 = vld [vmem:[#allocation3 + $0x68] sm:$0xf]
        %v4640 = vld [vmem:[#allocation3 + $0x6c] sm:$0xf]
        %v4641 = vld [vmem:[#allocation3 + $0x70] sm:$0xf]
        %v4642 = vld [vmem:[#allocation3 + $0x74] sm:$0xf]
        %v4643 = vld [vmem:[#allocation3 + $0x78] sm:$0xf]
        %v4644 = vld [vmem:[#allocation3 + $0x7c] sm:$0xf]
        %v4645 = vld [vmem:[#allocation3 + $0x80] sm:$0xf]
        %v4646 = vld [vmem:[#allocation3 + $0x84] sm:$0xf]
        %v4647 = vld [vmem:[#allocation3 + $0x88] sm:$0xf]
        %v4648 = vld [vmem:[#allocation3 + $0x8c] sm:$0xf]
        %v4649 = vld [vmem:[#allocation3 + $0x90] sm:$0xf]
        %v4650 = vld [vmem:[#allocation3 + $0x94] sm:$0xf]
        %v4651 = vld [vmem:[#allocation3 + $0x98] sm:$0xf]
        %v4652 = vld [vmem:[#allocation3 + $0x9c] sm:$0xf]
        %v4653 = vld [vmem:[%s6 + $0xc0] sm:$0xf]
        %v4654 = vld [vmem:[%s6 + $0xc4] sm:$0xf]
        %v4655 = vld [vmem:[%s6 + $0xc8] sm:$0xf]
        %v4656 = vld [vmem:[%s6 + $0xcc] sm:$0xf]
        %v4657 = vld [vmem:[%s6 + $0xd0] sm:$0xf]
        %v4658 = vld [vmem:[%s6 + $0xd4] sm:$0xf]
        %v4659 = vld [vmem:[%s6 + $0xd8] sm:$0xf]
        %v4660 = vld [vmem:[%s6 + $0xdc] sm:$0xf]
        %v4661 = vld [vmem:[%s6 + $0xe0] sm:$0xf]
        %v4662 = vld [vmem:[%s6 + $0xe4] sm:$0xf]
        %v4663 = vld [vmem:[%s6 + $0xe8] sm:$0xf]
        %v4664 = vld [vmem:[%s6 + $0xec] sm:$0xf]
        %v4665 = vld [vmem:[%s6 + $0xf0] sm:$0xf]
        %v4666 = vld [vmem:[%s6 + $0xf4] sm:$0xf]
        %v4667 = vld [vmem:[%s6 + $0xf8] sm:$0xf]
        %v4668 = vld [vmem:[%s6 + $0xfc] sm:$0xf]
        %v4706 = vunpack.c.l.b16 %v4616
        %v4707 = vunpack.c.l.b16 %v4617
        %v4708 = vunpack.c.l.b16 %v4618
        %v4709 = vunpack.c.l.b16 %v4619
        %v4710 = vunpack.c.l.b16 %v4620
        %v4711 = vunpack.c.l.b16 %v4621
        %v4712 = vunpack.c.l.b16 %v4622
        %v4713 = vunpack.c.l.b16 %v4623
        %v4714 = vunpack.c.l.b16 %v4624
        %v4715 = vunpack.c.l.b16 %v4625
        %v4716 = vunpack.c.l.b16 %v4626
        %v4717 = vunpack.c.l.b16 %v4627
        %v4718 = vunpack.c.l.b16 %v4628
        %v4719 = vunpack.c.l.b16 %v4629
        %v4720 = vunpack.c.l.b16 %v4630
        %v4721 = vunpack.c.l.b16 %v4631
        %v4722 = vunpack.c.l.b16 %v4632
        %v4723 = vunpack.c.l.b16 %v4633
        %v4724 = vunpack.c.l.b16 %v4634
        %v4725 = vunpack.c.l.b16 %v4635
        %v4726 = vunpack.c.l.b16 %v4636
        %v4727 = vunpack.c.l.b16 %v4637
        %v4728 = vunpack.c.l.b16 %v4638
        %v4729 = vunpack.c.l.b16 %v4639
        %v4730 = vunpack.c.l.b16 %v4640
        %v4731 = vunpack.c.l.b16 %v4641
        %v4732 = vunpack.c.l.b16 %v4642
        %v4733 = vunpack.c.l.b16 %v4643
        %v4734 = vunpack.c.l.b16 %v4644
        %v4735 = vunpack.c.l.b16 %v4645
        %v4736 = vunpack.c.l.b16 %v4646
        %v4737 = vunpack.c.l.b16 %v4647
        %v4738 = vunpack.c.l.b16 %v4648
        %v4739 = vunpack.c.l.b16 %v4649
        %v4740 = vunpack.c.l.b16 %v4650
        %v4741 = vunpack.c.l.b16 %v4651
        %v4742 = vunpack.c.l.b16 %v4652
        %v4743 = vpack.c.b16 %v4707, %v4706
        %v4744 = vpack.c.b16 %v4709, %v4708
        %v4745 = vpack.c.b16 %v4711, %v4710
        %v4746 = vpack.c.b16 %v4713, %v4712
        %v4747 = vpack.c.b16 %v4715, %v4714
        %v4748 = vpack.c.b16 %v4717, %v4716
        %v4749 = vpack.c.b16 %v4719, %v4718
        %v4750 = vpack.c.b16 %v4721, %v4720
        %v4751 = vpack.c.b16 %v4723, %v4722
        %v4752 = vpack.c.b16 %v4725, %v4724
        %v4753 = vpack.c.b16 %v4727, %v4726
        %v4754 = vpack.c.b16 %v4729, %v4728
        %v4755 = vpack.c.b16 %v4731, %v4730
        %v4756 = vpack.c.b16 %v4733, %v4732
        %v4757 = vpack.c.b16 %v4735, %v4734
        %v4758 = vpack.c.b16 %v4737, %v4736
        %v4759 = vpack.c.b16 %v4739, %v4738
        %v4760 = vpack.c.b16 %v4741, %v4740
        %v4761 = vpack.c.b16 %v4742, %v4742
        %v4763 = vshrl.u32 %v4743, 16
        %v4765 = vrot.slane %v4763, 3
        %v4766 = vshll.u32 %v4743, 16
        %v4768 = vrot.slane %v4766, 4
        %v4769 = vor.u32 %v4765, %v4768
        %v4771 = vshrl.u32 %v4744, 16
        %v4773 = vrot.slane %v4771, 3
        %v4774 = vshll.u32 %v4744, 16
        %v4776 = vrot.slane %v4774, 4
        %v4777 = vor.u32 %v4773, %v4776
        %v4778 = vsel %vm4329, %v4769, %v4777
        %v4780 = vshrl.u32 %v4745, 16
        %v4782 = vrot.slane %v4780, 3
        %v4783 = vshll.u32 %v4745, 16
        %v4785 = vrot.slane %v4783, 4
        %v4786 = vor.u32 %v4782, %v4785
        %v4787 = vsel %vm4329, %v4777, %v4786
        %v4789 = vshrl.u32 %v4746, 16
        %v4791 = vrot.slane %v4789, 3
        %v4792 = vshll.u32 %v4746, 16
        %v4794 = vrot.slane %v4792, 4
        %v4795 = vor.u32 %v4791, %v4794
        %v4796 = vsel %vm4329, %v4786, %v4795
        %v4798 = vshrl.u32 %v4747, 16
        %v4800 = vrot.slane %v4798, 3
        %v4801 = vshll.u32 %v4747, 16
        %v4803 = vrot.slane %v4801, 4
        %v4804 = vor.u32 %v4800, %v4803
        %v4805 = vsel %vm4329, %v4795, %v4804
        %v4807 = vshrl.u32 %v4748, 16
        %v4809 = vrot.slane %v4807, 3
        %v4810 = vshll.u32 %v4748, 16
        %v4812 = vrot.slane %v4810, 4
        %v4813 = vor.u32 %v4809, %v4812
        %v4814 = vsel %vm4329, %v4804, %v4813
        %v4816 = vshrl.u32 %v4749, 16
        %v4818 = vrot.slane %v4816, 3
        %v4819 = vshll.u32 %v4749, 16
        %v4821 = vrot.slane %v4819, 4
        %v4822 = vor.u32 %v4818, %v4821
        %v4823 = vsel %vm4329, %v4813, %v4822
        %v4825 = vshrl.u32 %v4750, 16
        %v4827 = vrot.slane %v4825, 3
        %v4828 = vshll.u32 %v4750, 16
        %v4830 = vrot.slane %v4828, 4
        %v4831 = vor.u32 %v4827, %v4830
        %v4832 = vsel %vm4329, %v4822, %v4831
        %v4834 = vshrl.u32 %v4751, 16
        %v4836 = vrot.slane %v4834, 3
        %v4837 = vshll.u32 %v4751, 16
        %v4839 = vrot.slane %v4837, 4
        %v4840 = vor.u32 %v4836, %v4839
        %v4841 = vsel %vm4329, %v4831, %v4840
        %v4843 = vshrl.u32 %v4752, 16
        %v4845 = vrot.slane %v4843, 3
        %v4846 = vshll.u32 %v4752, 16
        %v4848 = vrot.slane %v4846, 4
        %v4849 = vor.u32 %v4845, %v4848
        %v4850 = vsel %vm4329, %v4840, %v4849
        %v4852 = vshrl.u32 %v4753, 16
        %v4854 = vrot.slane %v4852, 3
        %v4855 = vshll.u32 %v4753, 16
        %v4857 = vrot.slane %v4855, 4
        %v4858 = vor.u32 %v4854, %v4857
        %v4859 = vsel %vm4329, %v4849, %v4858
        %v4861 = vshrl.u32 %v4754, 16
        %v4863 = vrot.slane %v4861, 3
        %v4864 = vshll.u32 %v4754, 16
        %v4866 = vrot.slane %v4864, 4
        %v4867 = vor.u32 %v4863, %v4866
        %v4868 = vsel %vm4329, %v4858, %v4867
        %v4870 = vshrl.u32 %v4755, 16
        %v4872 = vrot.slane %v4870, 3
        %v4873 = vshll.u32 %v4755, 16
        %v4875 = vrot.slane %v4873, 4
        %v4876 = vor.u32 %v4872, %v4875
        %v4877 = vsel %vm4329, %v4867, %v4876
        %v4879 = vshrl.u32 %v4756, 16
        %v4881 = vrot.slane %v4879, 3
        %v4882 = vshll.u32 %v4756, 16
        %v4884 = vrot.slane %v4882, 4
        %v4885 = vor.u32 %v4881, %v4884
        %v4886 = vsel %vm4329, %v4876, %v4885
        %v4888 = vshrl.u32 %v4757, 16
        %v4890 = vrot.slane %v4888, 3
        %v4891 = vshll.u32 %v4757, 16
        %v4893 = vrot.slane %v4891, 4
        %v4894 = vor.u32 %v4890, %v4893
        %v4895 = vsel %vm4329, %v4885, %v4894
        %v4897 = vshrl.u32 %v4758, 16
        %v4899 = vrot.slane %v4897, 3
        %v4900 = vshll.u32 %v4758, 16
        %v4902 = vrot.slane %v4900, 4
        %v4903 = vor.u32 %v4899, %v4902
        %v4904 = vsel %vm4329, %v4894, %v4903
        %v4906 = vshrl.u32 %v4759, 16
        %v4908 = vrot.slane %v4906, 3
        %v4909 = vshll.u32 %v4759, 16
        %v4911 = vrot.slane %v4909, 4
        %v4912 = vor.u32 %v4908, %v4911
        %v4913 = vsel %vm4329, %v4903, %v4912
        %v4915 = vshrl.u32 %v4760, 16
        %v4917 = vrot.slane %v4915, 3
        %v4918 = vshll.u32 %v4760, 16
        %v4920 = vrot.slane %v4918, 4
        %v4921 = vor.u32 %v4917, %v4920
        %v4922 = vsel %vm4329, %v4912, %v4921
        %v4924 = vshrl.u32 %v4761, 16
        %v4926 = vrot.slane %v4924, 3
        %v4927 = vshll.u32 %v4761, 16
        %v4929 = vrot.slane %v4927, 4
        %v4930 = vor.u32 %v4926, %v4929
        %v4931 = vsel %vm4329, %v4921, %v4930
        %v4966 = vunpack.c.l.b16 %v4653
        %v4967 = vunpack.c.l.b16 %v4654
        %v4968 = vunpack.c.l.b16 %v4655
        %v4969 = vunpack.c.l.b16 %v4656
        %v4970 = vunpack.c.l.b16 %v4657
        %v4971 = vunpack.c.l.b16 %v4658
        %v4972 = vunpack.c.l.b16 %v4659
        %v4973 = vunpack.c.l.b16 %v4660
        %v4974 = vunpack.c.l.b16 %v4661
        %v4975 = vunpack.c.l.b16 %v4662
        %v4976 = vunpack.c.l.b16 %v4663
        %v4977 = vunpack.c.l.b16 %v4664
        %v4978 = vunpack.c.l.b16 %v4665
        %v4979 = vunpack.c.l.b16 %v4666
        %v4980 = vunpack.c.l.b16 %v4667
        %v4981 = vunpack.c.l.b16 %v4668
        %v4982 = vpack.c.b16 %v4967, %v4966
        %v4983 = vpack.c.b16 %v4969, %v4968
        %v4984 = vpack.c.b16 %v4971, %v4970
        %v4985 = vpack.c.b16 %v4973, %v4972
        %v4986 = vpack.c.b16 %v4975, %v4974
        %v4987 = vpack.c.b16 %v4977, %v4976
        %v4988 = vpack.c.b16 %v4979, %v4978
        %v4989 = vpack.c.b16 %v4981, %v4980
        %4998 = vmatpush.bf16.msra.mxu0 %v4989
        %4999 = vmatpush.bf16.msra.mxu0 %v4988
        %5000 = vmatpush.bf16.msra.mxu0 %v4987
        %5001 = vmatpush.bf16.msra.mxu0 %v4986
        %5002 = vmatpush.bf16.msra.mxu0 %v4985
        %5003 = vmatpush.bf16.msra.mxu0 %v4984
        %5004 = vmatpush.bf16.msra.mxu0 %v4983
        %5005 = vmatpush.bf16.msra.mxu0 %v4982
        %5006 = vmatmul.bf16.gmra.mxu0 %v4778
        %v5007 = vpop.f32.mrf.mxu0
        %v5008 = vadd.f32 0.0, %v5007
        %v5009 = vpop.f32.mrf.mxu0
        %v5010 = vadd.f32 0.0, %v5009
        %5011 = vmatmul.bf16.gmra.mxu0 %v4787
        %v5012 = vpop.f32.mrf.mxu0
        %v5013 = vadd.f32 0.0, %v5012
        %v5014 = vpop.f32.mrf.mxu0
        %v5015 = vadd.f32 0.0, %v5014
        %5016 = vmatmul.bf16.gmra.mxu0 %v4796
        %v5017 = vpop.f32.mrf.mxu0
        %v5018 = vadd.f32 0.0, %v5017
        %v5019 = vpop.f32.mrf.mxu0
        %v5020 = vadd.f32 0.0, %v5019
        %5021 = vmatmul.bf16.gmra.mxu0 %v4805
        %v5022 = vpop.f32.mrf.mxu0
        %v5023 = vadd.f32 0.0, %v5022
        %v5024 = vpop.f32.mrf.mxu0
        %v5025 = vadd.f32 0.0, %v5024
        %5026 = vmatmul.bf16.gmra.mxu0 %v4814
        %v5027 = vpop.f32.mrf.mxu0
        %v5028 = vadd.f32 0.0, %v5027
        %v5029 = vpop.f32.mrf.mxu0
        %v5030 = vadd.f32 0.0, %v5029
        %5031 = vmatmul.bf16.gmra.mxu0 %v4823
        %v5032 = vpop.f32.mrf.mxu0
        %v5033 = vadd.f32 0.0, %v5032
        %v5034 = vpop.f32.mrf.mxu0
        %v5035 = vadd.f32 0.0, %v5034
        %5036 = vmatmul.bf16.gmra.mxu0 %v4832
        %v5037 = vpop.f32.mrf.mxu0
        %v5038 = vadd.f32 0.0, %v5037
        %v5039 = vpop.f32.mrf.mxu0
        %v5040 = vadd.f32 0.0, %v5039
        %5041 = vmatmul.bf16.gmra.mxu0 %v4841
        %v5042 = vpop.f32.mrf.mxu0
        %v5043 = vadd.f32 0.0, %v5042
        %v5044 = vpop.f32.mrf.mxu0
        %v5045 = vadd.f32 0.0, %v5044
        %5046 = vmatmul.bf16.gmra.mxu0 %v4850
        %v5047 = vpop.f32.mrf.mxu0
        %v5048 = vadd.f32 0.0, %v5047
        %v5049 = vpop.f32.mrf.mxu0
        %v5050 = vadd.f32 0.0, %v5049
        %5051 = vmatmul.bf16.gmra.mxu0 %v4859
        %v5052 = vpop.f32.mrf.mxu0
        %v5053 = vadd.f32 0.0, %v5052
        %v5054 = vpop.f32.mrf.mxu0
        %v5055 = vadd.f32 0.0, %v5054
        %5056 = vmatmul.bf16.gmra.mxu0 %v4868
        %v5057 = vpop.f32.mrf.mxu0
        %v5058 = vadd.f32 0.0, %v5057
        %v5059 = vpop.f32.mrf.mxu0
        %v5060 = vadd.f32 0.0, %v5059
        %5061 = vmatmul.bf16.gmra.mxu0 %v4877
        %v5062 = vpop.f32.mrf.mxu0
        %v5063 = vadd.f32 0.0, %v5062
        %v5064 = vpop.f32.mrf.mxu0
        %v5065 = vadd.f32 0.0, %v5064
        %5066 = vmatmul.bf16.gmra.mxu0 %v4886
        %v5067 = vpop.f32.mrf.mxu0
        %v5068 = vadd.f32 0.0, %v5067
        %v5069 = vpop.f32.mrf.mxu0
        %v5070 = vadd.f32 0.0, %v5069
        %5071 = vmatmul.bf16.gmra.mxu0 %v4895
        %v5072 = vpop.f32.mrf.mxu0
        %v5073 = vadd.f32 0.0, %v5072
        %v5074 = vpop.f32.mrf.mxu0
        %v5075 = vadd.f32 0.0, %v5074
        %5076 = vmatmul.bf16.gmra.mxu0 %v4904
        %v5077 = vpop.f32.mrf.mxu0
        %v5078 = vadd.f32 0.0, %v5077
        %v5079 = vpop.f32.mrf.mxu0
        %v5080 = vadd.f32 0.0, %v5079
        %5081 = vmatmul.bf16.gmra.mxu0 %v4913
        %v5082 = vpop.f32.mrf.mxu0
        %v5083 = vadd.f32 0.0, %v5082
        %v5084 = vpop.f32.mrf.mxu0
        %v5085 = vadd.f32 0.0, %v5084
        %5086 = vmatmul.bf16.gmra.mxu0 %v4922
        %v5087 = vpop.f32.mrf.mxu0
        %v5088 = vadd.f32 0.0, %v5087
        %v5089 = vpop.f32.mrf.mxu0
        %v5090 = vadd.f32 0.0, %v5089
        %5091 = vmatmul.bf16.gmra.mxu0 %v4931
        %v5092 = vpop.f32.mrf.mxu0
        %v5093 = vadd.f32 0.0, %v5092
        %v5094 = vpop.f32.mrf.mxu0
        %v5095 = vadd.f32 0.0, %v5094
        %5096 = vdwg.mxu0
        %v5097 = vadd.f32 %v4580, %v5008
        %v5098 = vadd.f32 %v4581, %v5010
        %v5099 = vadd.f32 %v4582, %v5013
        %v5100 = vadd.f32 %v4583, %v5015
        %v5101 = vadd.f32 %v4584, %v5018
        %v5102 = vadd.f32 %v4585, %v5020
        %v5103 = vadd.f32 %v4586, %v5023
        %v5104 = vadd.f32 %v4587, %v5025
        %v5105 = vadd.f32 %v4588, %v5028
        %v5106 = vadd.f32 %v4589, %v5030
        %v5107 = vadd.f32 %v4590, %v5033
        %v5108 = vadd.f32 %v4591, %v5035
        %v5109 = vadd.f32 %v4592, %v5038
        %v5110 = vadd.f32 %v4593, %v5040
        %v5111 = vadd.f32 %v4594, %v5043
        %v5112 = vadd.f32 %v4595, %v5045
        %v5113 = vadd.f32 %v4596, %v5048
        %v5114 = vadd.f32 %v4597, %v5050
        %v5115 = vadd.f32 %v4598, %v5053
        %v5116 = vadd.f32 %v4599, %v5055
        %v5117 = vadd.f32 %v4600, %v5058
        %v5118 = vadd.f32 %v4601, %v5060
        %v5119 = vadd.f32 %v4602, %v5063
        %v5120 = vadd.f32 %v4603, %v5065
        %v5121 = vadd.f32 %v4604, %v5068
        %v5122 = vadd.f32 %v4605, %v5070
        %v5123 = vadd.f32 %v4606, %v5073
        %v5124 = vadd.f32 %v4607, %v5075
        %v5125 = vadd.f32 %v4608, %v5078
        %v5126 = vadd.f32 %v4609, %v5080
        %v5127 = vadd.f32 %v4610, %v5083
        %v5128 = vadd.f32 %v4611, %v5085
        %v5129 = vadd.f32 %v4612, %v5088
        %v5130 = vadd.f32 %v4613, %v5090
        %v5131 = vadd.f32 %v4614, %v5093
        %v5132 = vadd.f32 %v4615, %v5095
        %v5133 = vld [vmem:[%s6 + $0x100] sm:$0xf]
        %v5134 = vld [vmem:[%s6 + $0x104] sm:$0xf]
        %v5135 = vld [vmem:[%s6 + $0x108] sm:$0xf]
        %v5136 = vld [vmem:[%s6 + $0x10c] sm:$0xf]
        %v5137 = vld [vmem:[%s6 + $0x110] sm:$0xf]
        %v5138 = vld [vmem:[%s6 + $0x114] sm:$0xf]
        %v5139 = vld [vmem:[%s6 + $0x118] sm:$0xf]
        %v5140 = vld [vmem:[%s6 + $0x11c] sm:$0xf]
        %v5141 = vld [vmem:[%s6 + $0x120] sm:$0xf]
        %v5142 = vld [vmem:[%s6 + $0x124] sm:$0xf]
        %v5143 = vld [vmem:[%s6 + $0x128] sm:$0xf]
        %v5144 = vld [vmem:[%s6 + $0x12c] sm:$0xf]
        %v5145 = vld [vmem:[%s6 + $0x130] sm:$0xf]
        %v5146 = vld [vmem:[%s6 + $0x134] sm:$0xf]
        %v5147 = vld [vmem:[%s6 + $0x138] sm:$0xf]
        %v5148 = vld [vmem:[%s6 + $0x13c] sm:$0xf]
        %v5149 = vpack.c.b16 %v4708, %v4707
        %v5150 = vpack.c.b16 %v4710, %v4709
        %v5151 = vpack.c.b16 %v4712, %v4711
        %v5152 = vpack.c.b16 %v4714, %v4713
        %v5153 = vpack.c.b16 %v4716, %v4715
        %v5154 = vpack.c.b16 %v4718, %v4717
        %v5155 = vpack.c.b16 %v4720, %v4719
        %v5156 = vpack.c.b16 %v4722, %v4721
        %v5157 = vpack.c.b16 %v4724, %v4723
        %v5158 = vpack.c.b16 %v4726, %v4725
        %v5159 = vpack.c.b16 %v4728, %v4727
        %v5160 = vpack.c.b16 %v4730, %v4729
        %v5161 = vpack.c.b16 %v4732, %v4731
        %v5162 = vpack.c.b16 %v4734, %v4733
        %v5163 = vpack.c.b16 %v4736, %v4735
        %v5164 = vpack.c.b16 %v4738, %v4737
        %v5165 = vpack.c.b16 %v4740, %v4739
        %v5166 = vpack.c.b16 %v4742, %v4741
        %v5201 = vunpack.c.l.b16 %v5133
        %v5202 = vunpack.c.l.b16 %v5134
        %v5203 = vunpack.c.l.b16 %v5135
        %v5204 = vunpack.c.l.b16 %v5136
        %v5205 = vunpack.c.l.b16 %v5137
        %v5206 = vunpack.c.l.b16 %v5138
        %v5207 = vunpack.c.l.b16 %v5139
        %v5208 = vunpack.c.l.b16 %v5140
        %v5209 = vunpack.c.l.b16 %v5141
        %v5210 = vunpack.c.l.b16 %v5142
        %v5211 = vunpack.c.l.b16 %v5143
        %v5212 = vunpack.c.l.b16 %v5144
        %v5213 = vunpack.c.l.b16 %v5145
        %v5214 = vunpack.c.l.b16 %v5146
        %v5215 = vunpack.c.l.b16 %v5147
        %v5216 = vunpack.c.l.b16 %v5148
        %v5217 = vpack.c.b16 %v5202, %v5201
        %v5218 = vpack.c.b16 %v5204, %v5203
        %v5219 = vpack.c.b16 %v5206, %v5205
        %v5220 = vpack.c.b16 %v5208, %v5207
        %v5221 = vpack.c.b16 %v5210, %v5209
        %v5222 = vpack.c.b16 %v5212, %v5211
        %v5223 = vpack.c.b16 %v5214, %v5213
        %v5224 = vpack.c.b16 %v5216, %v5215
        %5233 = vmatpush.bf16.msra.mxu0 %v5224
        %5234 = vmatpush.bf16.msra.mxu0 %v5223
        %5235 = vmatpush.bf16.msra.mxu0 %v5222
        %5236 = vmatpush.bf16.msra.mxu0 %v5221
        %5237 = vmatpush.bf16.msra.mxu0 %v5220
        %5238 = vmatpush.bf16.msra.mxu0 %v5219
        %5239 = vmatpush.bf16.msra.mxu0 %v5218
        %5240 = vmatpush.bf16.msra.mxu0 %v5217
        %5241 = vmatmul.bf16.gmra.mxu0 %v5149
        %v5242 = vpop.f32.mrf.mxu0
        %v5243 = vadd.f32 0.0, %v5242
        %v5244 = vpop.f32.mrf.mxu0
        %v5245 = vadd.f32 0.0, %v5244
        %5246 = vmatmul.bf16.gmra.mxu0 %v5150
        %v5247 = vpop.f32.mrf.mxu0
        %v5248 = vadd.f32 0.0, %v5247
        %v5249 = vpop.f32.mrf.mxu0
        %v5250 = vadd.f32 0.0, %v5249
        %5251 = vmatmul.bf16.gmra.mxu0 %v5151
        %v5252 = vpop.f32.mrf.mxu0
        %v5253 = vadd.f32 0.0, %v5252
        %v5254 = vpop.f32.mrf.mxu0
        %v5255 = vadd.f32 0.0, %v5254
        %5256 = vmatmul.bf16.gmra.mxu0 %v5152
        %v5257 = vpop.f32.mrf.mxu0
        %v5258 = vadd.f32 0.0, %v5257
        %v5259 = vpop.f32.mrf.mxu0
        %v5260 = vadd.f32 0.0, %v5259
        %5261 = vmatmul.bf16.gmra.mxu0 %v5153
        %v5262 = vpop.f32.mrf.mxu0
        %v5263 = vadd.f32 0.0, %v5262
        %v5264 = vpop.f32.mrf.mxu0
        %v5265 = vadd.f32 0.0, %v5264
        %5266 = vmatmul.bf16.gmra.mxu0 %v5154
        %v5267 = vpop.f32.mrf.mxu0
        %v5268 = vadd.f32 0.0, %v5267
        %v5269 = vpop.f32.mrf.mxu0
        %v5270 = vadd.f32 0.0, %v5269
        %5271 = vmatmul.bf16.gmra.mxu0 %v5155
        %v5272 = vpop.f32.mrf.mxu0
        %v5273 = vadd.f32 0.0, %v5272
        %v5274 = vpop.f32.mrf.mxu0
        %v5275 = vadd.f32 0.0, %v5274
        %5276 = vmatmul.bf16.gmra.mxu0 %v5156
        %v5277 = vpop.f32.mrf.mxu0
        %v5278 = vadd.f32 0.0, %v5277
        %v5279 = vpop.f32.mrf.mxu0
        %v5280 = vadd.f32 0.0, %v5279
        %5281 = vmatmul.bf16.gmra.mxu0 %v5157
        %v5282 = vpop.f32.mrf.mxu0
        %v5283 = vadd.f32 0.0, %v5282
        %v5284 = vpop.f32.mrf.mxu0
        %v5285 = vadd.f32 0.0, %v5284
        %5286 = vmatmul.bf16.gmra.mxu0 %v5158
        %v5287 = vpop.f32.mrf.mxu0
        %v5288 = vadd.f32 0.0, %v5287
        %v5289 = vpop.f32.mrf.mxu0
        %v5290 = vadd.f32 0.0, %v5289
        %5291 = vmatmul.bf16.gmra.mxu0 %v5159
        %v5292 = vpop.f32.mrf.mxu0
        %v5293 = vadd.f32 0.0, %v5292
        %v5294 = vpop.f32.mrf.mxu0
        %v5295 = vadd.f32 0.0, %v5294
        %5296 = vmatmul.bf16.gmra.mxu0 %v5160
        %v5297 = vpop.f32.mrf.mxu0
        %v5298 = vadd.f32 0.0, %v5297
        %v5299 = vpop.f32.mrf.mxu0
        %v5300 = vadd.f32 0.0, %v5299
        %5301 = vmatmul.bf16.gmra.mxu0 %v5161
        %v5302 = vpop.f32.mrf.mxu0
        %v5303 = vadd.f32 0.0, %v5302
        %v5304 = vpop.f32.mrf.mxu0
        %v5305 = vadd.f32 0.0, %v5304
        %5306 = vmatmul.bf16.gmra.mxu0 %v5162
        %v5307 = vpop.f32.mrf.mxu0
        %v5308 = vadd.f32 0.0, %v5307
        %v5309 = vpop.f32.mrf.mxu0
        %v5310 = vadd.f32 0.0, %v5309
        %5311 = vmatmul.bf16.gmra.mxu0 %v5163
        %v5312 = vpop.f32.mrf.mxu0
        %v5313 = vadd.f32 0.0, %v5312
        %v5314 = vpop.f32.mrf.mxu0
        %v5315 = vadd.f32 0.0, %v5314
        %5316 = vmatmul.bf16.gmra.mxu0 %v5164
        %v5317 = vpop.f32.mrf.mxu0
        %v5318 = vadd.f32 0.0, %v5317
        %v5319 = vpop.f32.mrf.mxu0
        %v5320 = vadd.f32 0.0, %v5319
        %5321 = vmatmul.bf16.gmra.mxu0 %v5165
        %v5322 = vpop.f32.mrf.mxu0
        %v5323 = vadd.f32 0.0, %v5322
        %v5324 = vpop.f32.mrf.mxu0
        %v5325 = vadd.f32 0.0, %v5324
        %5326 = vmatmul.bf16.gmra.mxu0 %v5166
        %v5327 = vpop.f32.mrf.mxu0
        %v5328 = vadd.f32 0.0, %v5327
        %v5329 = vpop.f32.mrf.mxu0
        %v5330 = vadd.f32 0.0, %v5329
        %5331 = vdwg.mxu0
        %v5332 = vadd.f32 %v5097, %v5243
        %v5333 = vadd.f32 %v5098, %v5245
        %v5334 = vadd.f32 %v5099, %v5248
        %v5335 = vadd.f32 %v5100, %v5250
        %v5336 = vadd.f32 %v5101, %v5253
        %v5337 = vadd.f32 %v5102, %v5255
        %v5338 = vadd.f32 %v5103, %v5258
        %v5339 = vadd.f32 %v5104, %v5260
        %v5340 = vadd.f32 %v5105, %v5263
        %v5341 = vadd.f32 %v5106, %v5265
        %v5342 = vadd.f32 %v5107, %v5268
        %v5343 = vadd.f32 %v5108, %v5270
        %v5344 = vadd.f32 %v5109, %v5273
        %v5345 = vadd.f32 %v5110, %v5275
        %v5346 = vadd.f32 %v5111, %v5278
        %v5347 = vadd.f32 %v5112, %v5280
        %v5348 = vadd.f32 %v5113, %v5283
        %v5349 = vadd.f32 %v5114, %v5285
        %v5350 = vadd.f32 %v5115, %v5288
        %v5351 = vadd.f32 %v5116, %v5290
        %v5352 = vadd.f32 %v5117, %v5293
        %v5353 = vadd.f32 %v5118, %v5295
        %v5354 = vadd.f32 %v5119, %v5298
        %v5355 = vadd.f32 %v5120, %v5300
        %v5356 = vadd.f32 %v5121, %v5303
        %v5357 = vadd.f32 %v5122, %v5305
        %v5358 = vadd.f32 %v5123, %v5308
        %v5359 = vadd.f32 %v5124, %v5310
        %v5360 = vadd.f32 %v5125, %v5313
        %v5361 = vadd.f32 %v5126, %v5315
        %v5362 = vadd.f32 %v5127, %v5318
        %v5363 = vadd.f32 %v5128, %v5320
        %v5364 = vadd.f32 %v5129, %v5323
        %v5365 = vadd.f32 %v5130, %v5325
        %v5366 = vadd.f32 %v5131, %v5328
        %v5367 = vadd.f32 %v5132, %v5330
        %v5368 = vld [vmem:[#allocation3 + $0x10] sm:$0xf]
        %v5369 = vld [vmem:[#allocation3 + $0x14] sm:$0xf]
        %v5370 = vld [vmem:[#allocation3 + $0x18] sm:$0xf]
        %v5371 = vld [vmem:[#allocation3 + $0x1c] sm:$0xf]
        %v5372 = vld [vmem:[#allocation3 + $0x20] sm:$0xf]
        %v5373 = vld [vmem:[#allocation3 + $0x24] sm:$0xf]
        %v5374 = vld [vmem:[#allocation3 + $0x28] sm:$0xf]
        %v5375 = vld [vmem:[#allocation3 + $0x2c] sm:$0xf]
        %v5376 = vld [vmem:[#allocation3 + $0x30] sm:$0xf]
        %v5377 = vld [vmem:[#allocation3 + $0x34] sm:$0xf]
        %v5378 = vld [vmem:[#allocation3 + $0x38] sm:$0xf]
        %v5379 = vld [vmem:[#allocation3 + $0x3c] sm:$0xf]
        %v5380 = vld [vmem:[#allocation3 + $0x40] sm:$0xf]
        %v5381 = vld [vmem:[#allocation3 + $0x44] sm:$0xf]
        %v5382 = vld [vmem:[#allocation3 + $0x48] sm:$0xf]
        %v5383 = vld [vmem:[#allocation3 + $0x4c] sm:$0xf]
        %v5384 = vld [vmem:[#allocation3 + $0x50] sm:$0xf]
        %v5385 = vld [vmem:[#allocation3 + $0x54] sm:$0xf]
        %v5386 = vld [vmem:[#allocation3 + $0x58] sm:$0xf]
        %v5387 = vld [vmem:[#allocation3 + $0x5c] sm:$0xf]
        %v5388 = vld [vmem:[#allocation3 + $0x60] sm:$0xf]
        %v5389 = vld [vmem:[#allocation3 + $0x64] sm:$0xf]
        %v5390 = vld [vmem:[#allocation3 + $0x68] sm:$0xf]
        %v5391 = vld [vmem:[#allocation3 + $0x6c] sm:$0xf]
        %v5392 = vld [vmem:[#allocation3 + $0x70] sm:$0xf]
        %v5393 = vld [vmem:[#allocation3 + $0x74] sm:$0xf]
        %v5394 = vld [vmem:[#allocation3 + $0x78] sm:$0xf]
        %v5395 = vld [vmem:[#allocation3 + $0x7c] sm:$0xf]
        %v5396 = vld [vmem:[#allocation3 + $0x80] sm:$0xf]
        %v5397 = vld [vmem:[#allocation3 + $0x84] sm:$0xf]
        %v5398 = vld [vmem:[#allocation3 + $0x88] sm:$0xf]
        %v5399 = vld [vmem:[#allocation3 + $0x8c] sm:$0xf]
        %v5400 = vld [vmem:[#allocation3 + $0x90] sm:$0xf]
        %v5401 = vld [vmem:[#allocation3 + $0x94] sm:$0xf]
        %v5402 = vld [vmem:[#allocation3 + $0x98] sm:$0xf]
        %v5403 = vld [vmem:[#allocation3 + $0x9c] sm:$0xf]
        %v5404 = vld [vmem:[#allocation3 + $0xa0] sm:$0x1]
        %v5405 = vld [vmem:[%s6 + $0x140] sm:$0xf]
        %v5406 = vld [vmem:[%s6 + $0x144] sm:$0xf]
        %v5407 = vld [vmem:[%s6 + $0x148] sm:$0xf]
        %v5408 = vld [vmem:[%s6 + $0x14c] sm:$0xf]
        %v5409 = vld [vmem:[%s6 + $0x150] sm:$0xf]
        %v5410 = vld [vmem:[%s6 + $0x154] sm:$0xf]
        %v5411 = vld [vmem:[%s6 + $0x158] sm:$0xf]
        %v5412 = vld [vmem:[%s6 + $0x15c] sm:$0xf]
        %v5413 = vld [vmem:[%s6 + $0x160] sm:$0xf]
        %v5414 = vld [vmem:[%s6 + $0x164] sm:$0xf]
        %v5415 = vld [vmem:[%s6 + $0x168] sm:$0xf]
        %v5416 = vld [vmem:[%s6 + $0x16c] sm:$0xf]
        %v5417 = vld [vmem:[%s6 + $0x170] sm:$0xf]
        %v5418 = vld [vmem:[%s6 + $0x174] sm:$0xf]
        %v5419 = vld [vmem:[%s6 + $0x178] sm:$0xf]
        %v5420 = vld [vmem:[%s6 + $0x17c] sm:$0xf]
        %v5458 = vunpack.c.l.b16 %v5368
        %v5459 = vunpack.c.l.b16 %v5369
        %v5460 = vunpack.c.l.b16 %v5370
        %v5461 = vunpack.c.l.b16 %v5371
        %v5462 = vunpack.c.l.b16 %v5372
        %v5463 = vunpack.c.l.b16 %v5373
        %v5464 = vunpack.c.l.b16 %v5374
        %v5465 = vunpack.c.l.b16 %v5375
        %v5466 = vunpack.c.l.b16 %v5376
        %v5467 = vunpack.c.l.b16 %v5377
        %v5468 = vunpack.c.l.b16 %v5378
        %v5469 = vunpack.c.l.b16 %v5379
        %v5470 = vunpack.c.l.b16 %v5380
        %v5471 = vunpack.c.l.b16 %v5381
        %v5472 = vunpack.c.l.b16 %v5382
        %v5473 = vunpack.c.l.b16 %v5383
        %v5474 = vunpack.c.l.b16 %v5384
        %v5475 = vunpack.c.l.b16 %v5385
        %v5476 = vunpack.c.l.b16 %v5386
        %v5477 = vunpack.c.l.b16 %v5387
        %v5478 = vunpack.c.l.b16 %v5388
        %v5479 = vunpack.c.l.b16 %v5389
        %v5480 = vunpack.c.l.b16 %v5390
        %v5481 = vunpack.c.l.b16 %v5391
        %v5482 = vunpack.c.l.b16 %v5392
        %v5483 = vunpack.c.l.b16 %v5393
        %v5484 = vunpack.c.l.b16 %v5394
        %v5485 = vunpack.c.l.b16 %v5395
        %v5486 = vunpack.c.l.b16 %v5396
        %v5487 = vunpack.c.l.b16 %v5397
        %v5488 = vunpack.c.l.b16 %v5398
        %v5489 = vunpack.c.l.b16 %v5399
        %v5490 = vunpack.c.l.b16 %v5400
        %v5491 = vunpack.c.l.b16 %v5401
        %v5492 = vunpack.c.l.b16 %v5402
        %v5493 = vunpack.c.l.b16 %v5403
        %v5494 = vunpack.c.l.b16 %v5404
        %v5495 = vpack.c.b16 %v5459, %v5458
        %v5496 = vpack.c.b16 %v5461, %v5460
        %v5497 = vpack.c.b16 %v5463, %v5462
        %v5498 = vpack.c.b16 %v5465, %v5464
        %v5499 = vpack.c.b16 %v5467, %v5466
        %v5500 = vpack.c.b16 %v5469, %v5468
        %v5501 = vpack.c.b16 %v5471, %v5470
        %v5502 = vpack.c.b16 %v5473, %v5472
        %v5503 = vpack.c.b16 %v5475, %v5474
        %v5504 = vpack.c.b16 %v5477, %v5476
        %v5505 = vpack.c.b16 %v5479, %v5478
        %v5506 = vpack.c.b16 %v5481, %v5480
        %v5507 = vpack.c.b16 %v5483, %v5482
        %v5508 = vpack.c.b16 %v5485, %v5484
        %v5509 = vpack.c.b16 %v5487, %v5486
        %v5510 = vpack.c.b16 %v5489, %v5488
        %v5511 = vpack.c.b16 %v5491, %v5490
        %v5512 = vpack.c.b16 %v5493, %v5492
        %v5513 = vpack.c.b16 %v5494, %v5494
        %vm5514 = vsmask.f32 7424
        %v5516 = vshrl.u32 %v5495, 16
        %v5518 = vshll.u32 %v5495, 16
        %v5520 = vrot.slane %v5518, 1
        %v5521 = vor.u32 %v5516, %v5520
        %v5523 = vshll.u32 %v5496, 16
        %v5525 = vrot.slane %v5523, 1
        %v5526 = vsel %vm5514, %v5521, %v5525
        %v5527 = vshrl.u32 %v5496, 16
        %v5529 = vor.u32 %v5527, %v5525
        %v5531 = vshll.u32 %v5497, 16
        %v5533 = vrot.slane %v5531, 1
        %v5534 = vsel %vm5514, %v5529, %v5533
        %v5535 = vshrl.u32 %v5497, 16
        %v5537 = vor.u32 %v5535, %v5533
        %v5539 = vshll.u32 %v5498, 16
        %v5541 = vrot.slane %v5539, 1
        %v5542 = vsel %vm5514, %v5537, %v5541
        %v5543 = vshrl.u32 %v5498, 16
        %v5545 = vor.u32 %v5543, %v5541
        %v5547 = vshll.u32 %v5499, 16
        %v5549 = vrot.slane %v5547, 1
        %v5550 = vsel %vm5514, %v5545, %v5549
        %v5551 = vshrl.u32 %v5499, 16
        %v5553 = vor.u32 %v5551, %v5549
        %v5555 = vshll.u32 %v5500, 16
        %v5557 = vrot.slane %v5555, 1
        %v5558 = vsel %vm5514, %v5553, %v5557
        %v5559 = vshrl.u32 %v5500, 16
        %v5561 = vor.u32 %v5559, %v5557
        %v5563 = vshll.u32 %v5501, 16
        %v5565 = vrot.slane %v5563, 1
        %v5566 = vsel %vm5514, %v5561, %v5565
        %v5567 = vshrl.u32 %v5501, 16
        %v5569 = vor.u32 %v5567, %v5565
        %v5571 = vshll.u32 %v5502, 16
        %v5573 = vrot.slane %v5571, 1
        %v5574 = vsel %vm5514, %v5569, %v5573
        %v5575 = vshrl.u32 %v5502, 16
        %v5577 = vor.u32 %v5575, %v5573
        %v5579 = vshll.u32 %v5503, 16
        %v5581 = vrot.slane %v5579, 1
        %v5582 = vsel %vm5514, %v5577, %v5581
        %v5583 = vshrl.u32 %v5503, 16
        %v5585 = vor.u32 %v5583, %v5581
        %v5587 = vshll.u32 %v5504, 16
        %v5589 = vrot.slane %v5587, 1
        %v5590 = vsel %vm5514, %v5585, %v5589
        %v5591 = vshrl.u32 %v5504, 16
        %v5593 = vor.u32 %v5591, %v5589
        %v5595 = vshll.u32 %v5505, 16
        %v5597 = vrot.slane %v5595, 1
        %v5598 = vsel %vm5514, %v5593, %v5597
        %v5599 = vshrl.u32 %v5505, 16
        %v5601 = vor.u32 %v5599, %v5597
        %v5603 = vshll.u32 %v5506, 16
        %v5605 = vrot.slane %v5603, 1
        %v5606 = vsel %vm5514, %v5601, %v5605
        %v5607 = vshrl.u32 %v5506, 16
        %v5609 = vor.u32 %v5607, %v5605
        %v5611 = vshll.u32 %v5507, 16
        %v5613 = vrot.slane %v5611, 1
        %v5614 = vsel %vm5514, %v5609, %v5613
        %v5615 = vshrl.u32 %v5507, 16
        %v5617 = vor.u32 %v5615, %v5613
        %v5619 = vshll.u32 %v5508, 16
        %v5621 = vrot.slane %v5619, 1
        %v5622 = vsel %vm5514, %v5617, %v5621
        %v5623 = vshrl.u32 %v5508, 16
        %v5625 = vor.u32 %v5623, %v5621
        %v5627 = vshll.u32 %v5509, 16
        %v5629 = vrot.slane %v5627, 1
        %v5630 = vsel %vm5514, %v5625, %v5629
        %v5631 = vshrl.u32 %v5509, 16
        %v5633 = vor.u32 %v5631, %v5629
        %v5635 = vshll.u32 %v5510, 16
        %v5637 = vrot.slane %v5635, 1
        %v5638 = vsel %vm5514, %v5633, %v5637
        %v5639 = vshrl.u32 %v5510, 16
        %v5641 = vor.u32 %v5639, %v5637
        %v5643 = vshll.u32 %v5511, 16
        %v5645 = vrot.slane %v5643, 1
        %v5646 = vsel %vm5514, %v5641, %v5645
        %v5647 = vshrl.u32 %v5511, 16
        %v5649 = vor.u32 %v5647, %v5645
        %v5651 = vshll.u32 %v5512, 16
        %v5653 = vrot.slane %v5651, 1
        %v5654 = vsel %vm5514, %v5649, %v5653
        %v5655 = vshrl.u32 %v5512, 16
        %v5657 = vor.u32 %v5655, %v5653
        %v5659 = vshll.u32 %v5513, 16
        %v5661 = vrot.slane %v5659, 1
        %v5662 = vsel %vm5514, %v5657, %v5661
        %v5697 = vunpack.c.l.b16 %v5405
        %v5698 = vunpack.c.l.b16 %v5406
        %v5699 = vunpack.c.l.b16 %v5407
        %v5700 = vunpack.c.l.b16 %v5408
        %v5701 = vunpack.c.l.b16 %v5409
        %v5702 = vunpack.c.l.b16 %v5410
        %v5703 = vunpack.c.l.b16 %v5411
        %v5704 = vunpack.c.l.b16 %v5412
        %v5705 = vunpack.c.l.b16 %v5413
        %v5706 = vunpack.c.l.b16 %v5414
        %v5707 = vunpack.c.l.b16 %v5415
        %v5708 = vunpack.c.l.b16 %v5416
        %v5709 = vunpack.c.l.b16 %v5417
        %v5710 = vunpack.c.l.b16 %v5418
        %v5711 = vunpack.c.l.b16 %v5419
        %v5712 = vunpack.c.l.b16 %v5420
        %v5713 = vpack.c.b16 %v5698, %v5697
        %v5714 = vpack.c.b16 %v5700, %v5699
        %v5715 = vpack.c.b16 %v5702, %v5701
        %v5716 = vpack.c.b16 %v5704, %v5703
        %v5717 = vpack.c.b16 %v5706, %v5705
        %v5718 = vpack.c.b16 %v5708, %v5707
        %v5719 = vpack.c.b16 %v5710, %v5709
        %v5720 = vpack.c.b16 %v5712, %v5711
        %5729 = vmatpush.bf16.msra.mxu0 %v5720
        %5730 = vmatpush.bf16.msra.mxu0 %v5719
        %5731 = vmatpush.bf16.msra.mxu0 %v5718
        %5732 = vmatpush.bf16.msra.mxu0 %v5717
        %5733 = vmatpush.bf16.msra.mxu0 %v5716
        %5734 = vmatpush.bf16.msra.mxu0 %v5715
        %5735 = vmatpush.bf16.msra.mxu0 %v5714
        %5736 = vmatpush.bf16.msra.mxu0 %v5713
        %5737 = vmatmul.bf16.gmra.mxu0 %v5526
        %v5738 = vpop.f32.mrf.mxu0
        %v5739 = vadd.f32 0.0, %v5738
        %v5740 = vpop.f32.mrf.mxu0
        %v5741 = vadd.f32 0.0, %v5740
        %5742 = vmatmul.bf16.gmra.mxu0 %v5534
        %v5743 = vpop.f32.mrf.mxu0
        %v5744 = vadd.f32 0.0, %v5743
        %v5745 = vpop.f32.mrf.mxu0
        %v5746 = vadd.f32 0.0, %v5745
        %5747 = vmatmul.bf16.gmra.mxu0 %v5542
        %v5748 = vpop.f32.mrf.mxu0
        %v5749 = vadd.f32 0.0, %v5748
        %v5750 = vpop.f32.mrf.mxu0
        %v5751 = vadd.f32 0.0, %v5750
        %5752 = vmatmul.bf16.gmra.mxu0 %v5550
        %v5753 = vpop.f32.mrf.mxu0
        %v5754 = vadd.f32 0.0, %v5753
        %v5755 = vpop.f32.mrf.mxu0
        %v5756 = vadd.f32 0.0, %v5755
        %5757 = vmatmul.bf16.gmra.mxu0 %v5558
        %v5758 = vpop.f32.mrf.mxu0
        %v5759 = vadd.f32 0.0, %v5758
        %v5760 = vpop.f32.mrf.mxu0
        %v5761 = vadd.f32 0.0, %v5760
        %5762 = vmatmul.bf16.gmra.mxu0 %v5566
        %v5763 = vpop.f32.mrf.mxu0
        %v5764 = vadd.f32 0.0, %v5763
        %v5765 = vpop.f32.mrf.mxu0
        %v5766 = vadd.f32 0.0, %v5765
        %5767 = vmatmul.bf16.gmra.mxu0 %v5574
        %v5768 = vpop.f32.mrf.mxu0
        %v5769 = vadd.f32 0.0, %v5768
        %v5770 = vpop.f32.mrf.mxu0
        %v5771 = vadd.f32 0.0, %v5770
        %5772 = vmatmul.bf16.gmra.mxu0 %v5582
        %v5773 = vpop.f32.mrf.mxu0
        %v5774 = vadd.f32 0.0, %v5773
        %v5775 = vpop.f32.mrf.mxu0
        %v5776 = vadd.f32 0.0, %v5775
        %5777 = vmatmul.bf16.gmra.mxu0 %v5590
        %v5778 = vpop.f32.mrf.mxu0
        %v5779 = vadd.f32 0.0, %v5778
        %v5780 = vpop.f32.mrf.mxu0
        %v5781 = vadd.f32 0.0, %v5780
        %5782 = vmatmul.bf16.gmra.mxu0 %v5598
        %v5783 = vpop.f32.mrf.mxu0
        %v5784 = vadd.f32 0.0, %v5783
        %v5785 = vpop.f32.mrf.mxu0
        %v5786 = vadd.f32 0.0, %v5785
        %5787 = vmatmul.bf16.gmra.mxu0 %v5606
        %v5788 = vpop.f32.mrf.mxu0
        %v5789 = vadd.f32 0.0, %v5788
        %v5790 = vpop.f32.mrf.mxu0
        %v5791 = vadd.f32 0.0, %v5790
        %5792 = vmatmul.bf16.gmra.mxu0 %v5614
        %v5793 = vpop.f32.mrf.mxu0
        %v5794 = vadd.f32 0.0, %v5793
        %v5795 = vpop.f32.mrf.mxu0
        %v5796 = vadd.f32 0.0, %v5795
        %5797 = vmatmul.bf16.gmra.mxu0 %v5622
        %v5798 = vpop.f32.mrf.mxu0
        %v5799 = vadd.f32 0.0, %v5798
        %v5800 = vpop.f32.mrf.mxu0
        %v5801 = vadd.f32 0.0, %v5800
        %5802 = vmatmul.bf16.gmra.mxu0 %v5630
        %v5803 = vpop.f32.mrf.mxu0
        %v5804 = vadd.f32 0.0, %v5803
        %v5805 = vpop.f32.mrf.mxu0
        %v5806 = vadd.f32 0.0, %v5805
        %5807 = vmatmul.bf16.gmra.mxu0 %v5638
        %v5808 = vpop.f32.mrf.mxu0
        %v5809 = vadd.f32 0.0, %v5808
        %v5810 = vpop.f32.mrf.mxu0
        %v5811 = vadd.f32 0.0, %v5810
        %5812 = vmatmul.bf16.gmra.mxu0 %v5646
        %v5813 = vpop.f32.mrf.mxu0
        %v5814 = vadd.f32 0.0, %v5813
        %v5815 = vpop.f32.mrf.mxu0
        %v5816 = vadd.f32 0.0, %v5815
        %5817 = vmatmul.bf16.gmra.mxu0 %v5654
        %v5818 = vpop.f32.mrf.mxu0
        %v5819 = vadd.f32 0.0, %v5818
        %v5820 = vpop.f32.mrf.mxu0
        %v5821 = vadd.f32 0.0, %v5820
        %5822 = vmatmul.bf16.gmra.mxu0 %v5662
        %v5823 = vpop.f32.mrf.mxu0
        %v5824 = vadd.f32 0.0, %v5823
        %v5825 = vpop.f32.mrf.mxu0
        %v5826 = vadd.f32 0.0, %v5825
        %5827 = vdwg.mxu0
        %v5828 = vadd.f32 %v5332, %v5739
        %v5829 = vadd.f32 %v5333, %v5741
        %v5830 = vadd.f32 %v5334, %v5744
        %v5831 = vadd.f32 %v5335, %v5746
        %v5832 = vadd.f32 %v5336, %v5749
        %v5833 = vadd.f32 %v5337, %v5751
        %v5834 = vadd.f32 %v5338, %v5754
        %v5835 = vadd.f32 %v5339, %v5756
        %v5836 = vadd.f32 %v5340, %v5759
        %v5837 = vadd.f32 %v5341, %v5761
        %v5838 = vadd.f32 %v5342, %v5764
        %v5839 = vadd.f32 %v5343, %v5766
        %v5840 = vadd.f32 %v5344, %v5769
        %v5841 = vadd.f32 %v5345, %v5771
        %v5842 = vadd.f32 %v5346, %v5774
        %v5843 = vadd.f32 %v5347, %v5776
        %v5844 = vadd.f32 %v5348, %v5779
        %v5845 = vadd.f32 %v5349, %v5781
        %v5846 = vadd.f32 %v5350, %v5784
        %v5847 = vadd.f32 %v5351, %v5786
        %v5848 = vadd.f32 %v5352, %v5789
        %v5849 = vadd.f32 %v5353, %v5791
        %v5850 = vadd.f32 %v5354, %v5794
        %v5851 = vadd.f32 %v5355, %v5796
        %v5852 = vadd.f32 %v5356, %v5799
        %v5853 = vadd.f32 %v5357, %v5801
        %v5854 = vadd.f32 %v5358, %v5804
        %v5855 = vadd.f32 %v5359, %v5806
        %v5856 = vadd.f32 %v5360, %v5809
        %v5857 = vadd.f32 %v5361, %v5811
        %v5858 = vadd.f32 %v5362, %v5814
        %v5859 = vadd.f32 %v5363, %v5816
        %v5860 = vadd.f32 %v5364, %v5819
        %v5861 = vadd.f32 %v5365, %v5821
        %v5862 = vadd.f32 %v5366, %v5824
        %v5863 = vadd.f32 %v5367, %v5826
        %v5864 = vld [vmem:[#allocation3 + $0x18] sm:$0xf]
        %v5865 = vld [vmem:[#allocation3 + $0x1c] sm:$0xf]
        %v5866 = vld [vmem:[#allocation3 + $0x20] sm:$0xf]
        %v5867 = vld [vmem:[#allocation3 + $0x24] sm:$0xf]
        %v5868 = vld [vmem:[#allocation3 + $0x28] sm:$0xf]
        %v5869 = vld [vmem:[#allocation3 + $0x2c] sm:$0xf]
        %v5870 = vld [vmem:[#allocation3 + $0x30] sm:$0xf]
        %v5871 = vld [vmem:[#allocation3 + $0x34] sm:$0xf]
        %v5872 = vld [vmem:[#allocation3 + $0x38] sm:$0xf]
        %v5873 = vld [vmem:[#allocation3 + $0x3c] sm:$0xf]
        %v5874 = vld [vmem:[#allocation3 + $0x40] sm:$0xf]
        %v5875 = vld [vmem:[#allocation3 + $0x44] sm:$0xf]
        %v5876 = vld [vmem:[#allocation3 + $0x48] sm:$0xf]
        %v5877 = vld [vmem:[#allocation3 + $0x4c] sm:$0xf]
        %v5878 = vld [vmem:[#allocation3 + $0x50] sm:$0xf]
        %v5879 = vld [vmem:[#allocation3 + $0x54] sm:$0xf]
        %v5880 = vld [vmem:[#allocation3 + $0x58] sm:$0xf]
        %v5881 = vld [vmem:[#allocation3 + $0x5c] sm:$0xf]
        %v5882 = vld [vmem:[#allocation3 + $0x60] sm:$0xf]
        %v5883 = vld [vmem:[#allocation3 + $0x64] sm:$0xf]
        %v5884 = vld [vmem:[#allocation3 + $0x68] sm:$0xf]
        %v5885 = vld [vmem:[#allocation3 + $0x6c] sm:$0xf]
        %v5886 = vld [vmem:[#allocation3 + $0x70] sm:$0xf]
        %v5887 = vld [vmem:[#allocation3 + $0x74] sm:$0xf]
        %v5888 = vld [vmem:[#allocation3 + $0x78] sm:$0xf]
        %v5889 = vld [vmem:[#allocation3 + $0x7c] sm:$0xf]
        %v5890 = vld [vmem:[#allocation3 + $0x80] sm:$0xf]
        %v5891 = vld [vmem:[#allocation3 + $0x84] sm:$0xf]
        %v5892 = vld [vmem:[#allocation3 + $0x88] sm:$0xf]
        %v5893 = vld [vmem:[#allocation3 + $0x8c] sm:$0xf]
        %v5894 = vld [vmem:[#allocation3 + $0x90] sm:$0xf]
        %v5895 = vld [vmem:[#allocation3 + $0x94] sm:$0xf]
        %v5896 = vld [vmem:[#allocation3 + $0x98] sm:$0xf]
        %v5897 = vld [vmem:[#allocation3 + $0x9c] sm:$0xf]
        %v5898 = vld [vmem:[#allocation3 + $0xa0] sm:$0xf]
        %v5899 = vld [vmem:[#allocation3 + $0xa4] sm:$0xf]
        %v5900 = vld [vmem:[#allocation3 + $0xa8] sm:$0x1]
        %v5901 = vld [vmem:[%s6 + $0x180] sm:$0xf]
        %v5902 = vld [vmem:[%s6 + $0x184] sm:$0xf]
        %v5903 = vld [vmem:[%s6 + $0x188] sm:$0xf]
        %v5904 = vld [vmem:[%s6 + $0x18c] sm:$0xf]
        %v5905 = vld [vmem:[%s6 + $0x190] sm:$0xf]
        %v5906 = vld [vmem:[%s6 + $0x194] sm:$0xf]
        %v5907 = vld [vmem:[%s6 + $0x198] sm:$0xf]
        %v5908 = vld [vmem:[%s6 + $0x19c] sm:$0xf]
        %v5909 = vld [vmem:[%s6 + $0x1a0] sm:$0xf]
        %v5910 = vld [vmem:[%s6 + $0x1a4] sm:$0xf]
        %v5911 = vld [vmem:[%s6 + $0x1a8] sm:$0xf]
        %v5912 = vld [vmem:[%s6 + $0x1ac] sm:$0xf]
        %v5913 = vld [vmem:[%s6 + $0x1b0] sm:$0xf]
        %v5914 = vld [vmem:[%s6 + $0x1b4] sm:$0xf]
        %v5915 = vld [vmem:[%s6 + $0x1b8] sm:$0xf]
        %v5916 = vld [vmem:[%s6 + $0x1bc] sm:$0xf]
        %v5954 = vunpack.c.l.b16 %v5864
        %v5955 = vunpack.c.l.b16 %v5865
        %v5956 = vunpack.c.l.b16 %v5866
        %v5957 = vunpack.c.l.b16 %v5867
        %v5958 = vunpack.c.l.b16 %v5868
        %v5959 = vunpack.c.l.b16 %v5869
        %v5960 = vunpack.c.l.b16 %v5870
        %v5961 = vunpack.c.l.b16 %v5871
        %v5962 = vunpack.c.l.b16 %v5872
        %v5963 = vunpack.c.l.b16 %v5873
        %v5964 = vunpack.c.l.b16 %v5874
        %v5965 = vunpack.c.l.b16 %v5875
        %v5966 = vunpack.c.l.b16 %v5876
        %v5967 = vunpack.c.l.b16 %v5877
        %v5968 = vunpack.c.l.b16 %v5878
        %v5969 = vunpack.c.l.b16 %v5879
        %v5970 = vunpack.c.l.b16 %v5880
        %v5971 = vunpack.c.l.b16 %v5881
        %v5972 = vunpack.c.l.b16 %v5882
        %v5973 = vunpack.c.l.b16 %v5883
        %v5974 = vunpack.c.l.b16 %v5884
        %v5975 = vunpack.c.l.b16 %v5885
        %v5976 = vunpack.c.l.b16 %v5886
        %v5977 = vunpack.c.l.b16 %v5887
        %v5978 = vunpack.c.l.b16 %v5888
        %v5979 = vunpack.c.l.b16 %v5889
        %v5980 = vunpack.c.l.b16 %v5890
        %v5981 = vunpack.c.l.b16 %v5891
        %v5982 = vunpack.c.l.b16 %v5892
        %v5983 = vunpack.c.l.b16 %v5893
        %v5984 = vunpack.c.l.b16 %v5894
        %v5985 = vunpack.c.l.b16 %v5895
        %v5986 = vunpack.c.l.b16 %v5896
        %v5987 = vunpack.c.l.b16 %v5897
        %v5988 = vunpack.c.l.b16 %v5898
        %v5989 = vunpack.c.l.b16 %v5899
        %v5990 = vunpack.c.l.b16 %v5900
        %v5991 = vpack.c.b16 %v5955, %v5954
        %v5992 = vpack.c.b16 %v5957, %v5956
        %v5993 = vpack.c.b16 %v5959, %v5958
        %v5994 = vpack.c.b16 %v5961, %v5960
        %v5995 = vpack.c.b16 %v5963, %v5962
        %v5996 = vpack.c.b16 %v5965, %v5964
        %v5997 = vpack.c.b16 %v5967, %v5966
        %v5998 = vpack.c.b16 %v5969, %v5968
        %v5999 = vpack.c.b16 %v5971, %v5970
        %v6000 = vpack.c.b16 %v5973, %v5972
        %v6001 = vpack.c.b16 %v5975, %v5974
        %v6002 = vpack.c.b16 %v5977, %v5976
        %v6003 = vpack.c.b16 %v5979, %v5978
        %v6004 = vpack.c.b16 %v5981, %v5980
        %v6005 = vpack.c.b16 %v5983, %v5982
        %v6006 = vpack.c.b16 %v5985, %v5984
        %v6007 = vpack.c.b16 %v5987, %v5986
        %v6008 = vpack.c.b16 %v5989, %v5988
        %v6009 = vpack.c.b16 %v5990, %v5990
        %v6011 = vshrl.u32 %v5991, 16
        %v6013 = vshll.u32 %v5991, 16
        %v6015 = vrot.slane %v6013, 1
        %v6016 = vor.u32 %v6011, %v6015
        %v6018 = vshll.u32 %v5992, 16
        %v6020 = vrot.slane %v6018, 1
        %v6021 = vsel %vm5514, %v6016, %v6020
        %v6022 = vshrl.u32 %v5992, 16
        %v6024 = vor.u32 %v6022, %v6020
        %v6026 = vshll.u32 %v5993, 16
        %v6028 = vrot.slane %v6026, 1
        %v6029 = vsel %vm5514, %v6024, %v6028
        %v6030 = vshrl.u32 %v5993, 16
        %v6032 = vor.u32 %v6030, %v6028
        %v6034 = vshll.u32 %v5994, 16
        %v6036 = vrot.slane %v6034, 1
        %v6037 = vsel %vm5514, %v6032, %v6036
        %v6038 = vshrl.u32 %v5994, 16
        %v6040 = vor.u32 %v6038, %v6036
        %v6042 = vshll.u32 %v5995, 16
        %v6044 = vrot.slane %v6042, 1
        %v6045 = vsel %vm5514, %v6040, %v6044
        %v6046 = vshrl.u32 %v5995, 16
        %v6048 = vor.u32 %v6046, %v6044
        %v6050 = vshll.u32 %v5996, 16
        %v6052 = vrot.slane %v6050, 1
        %v6053 = vsel %vm5514, %v6048, %v6052
        %v6054 = vshrl.u32 %v5996, 16
        %v6056 = vor.u32 %v6054, %v6052
        %v6058 = vshll.u32 %v5997, 16
        %v6060 = vrot.slane %v6058, 1
        %v6061 = vsel %vm5514, %v6056, %v6060
        %v6062 = vshrl.u32 %v5997, 16
        %v6064 = vor.u32 %v6062, %v6060
        %v6066 = vshll.u32 %v5998, 16
        %v6068 = vrot.slane %v6066, 1
        %v6069 = vsel %vm5514, %v6064, %v6068
        %v6070 = vshrl.u32 %v5998, 16
        %v6072 = vor.u32 %v6070, %v6068
        %v6074 = vshll.u32 %v5999, 16
        %v6076 = vrot.slane %v6074, 1
        %v6077 = vsel %vm5514, %v6072, %v6076
        %v6078 = vshrl.u32 %v5999, 16
        %v6080 = vor.u32 %v6078, %v6076
        %v6082 = vshll.u32 %v6000, 16
        %v6084 = vrot.slane %v6082, 1
        %v6085 = vsel %vm5514, %v6080, %v6084
        %v6086 = vshrl.u32 %v6000, 16
        %v6088 = vor.u32 %v6086, %v6084
        %v6090 = vshll.u32 %v6001, 16
        %v6092 = vrot.slane %v6090, 1
        %v6093 = vsel %vm5514, %v6088, %v6092
        %v6094 = vshrl.u32 %v6001, 16
        %v6096 = vor.u32 %v6094, %v6092
        %v6098 = vshll.u32 %v6002, 16
        %v6100 = vrot.slane %v6098, 1
        %v6101 = vsel %vm5514, %v6096, %v6100
        %v6102 = vshrl.u32 %v6002, 16
        %v6104 = vor.u32 %v6102, %v6100
        %v6106 = vshll.u32 %v6003, 16
        %v6108 = vrot.slane %v6106, 1
        %v6109 = vsel %vm5514, %v6104, %v6108
        %v6110 = vshrl.u32 %v6003, 16
        %v6112 = vor.u32 %v6110, %v6108
        %v6114 = vshll.u32 %v6004, 16
        %v6116 = vrot.slane %v6114, 1
        %v6117 = vsel %vm5514, %v6112, %v6116
        %v6118 = vshrl.u32 %v6004, 16
        %v6120 = vor.u32 %v6118, %v6116
        %v6122 = vshll.u32 %v6005, 16
        %v6124 = vrot.slane %v6122, 1
        %v6125 = vsel %vm5514, %v6120, %v6124
        %v6126 = vshrl.u32 %v6005, 16
        %v6128 = vor.u32 %v6126, %v6124
        %v6130 = vshll.u32 %v6006, 16
        %v6132 = vrot.slane %v6130, 1
        %v6133 = vsel %vm5514, %v6128, %v6132
        %v6134 = vshrl.u32 %v6006, 16
        %v6136 = vor.u32 %v6134, %v6132
        %v6138 = vshll.u32 %v6007, 16
        %v6140 = vrot.slane %v6138, 1
        %v6141 = vsel %vm5514, %v6136, %v6140
        %v6142 = vshrl.u32 %v6007, 16
        %v6144 = vor.u32 %v6142, %v6140
        %v6146 = vshll.u32 %v6008, 16
        %v6148 = vrot.slane %v6146, 1
        %v6149 = vsel %vm5514, %v6144, %v6148
        %v6150 = vshrl.u32 %v6008, 16
        %v6152 = vor.u32 %v6150, %v6148
        %v6154 = vshll.u32 %v6009, 16
        %v6156 = vrot.slane %v6154, 1
        %v6157 = vsel %vm5514, %v6152, %v6156
        %v6192 = vunpack.c.l.b16 %v5901
        %v6193 = vunpack.c.l.b16 %v5902
        %v6194 = vunpack.c.l.b16 %v5903
        %v6195 = vunpack.c.l.b16 %v5904
        %v6196 = vunpack.c.l.b16 %v5905
        %v6197 = vunpack.c.l.b16 %v5906
        %v6198 = vunpack.c.l.b16 %v5907
        %v6199 = vunpack.c.l.b16 %v5908
        %v6200 = vunpack.c.l.b16 %v5909
        %v6201 = vunpack.c.l.b16 %v5910
        %v6202 = vunpack.c.l.b16 %v5911
        %v6203 = vunpack.c.l.b16 %v5912
        %v6204 = vunpack.c.l.b16 %v5913
        %v6205 = vunpack.c.l.b16 %v5914
        %v6206 = vunpack.c.l.b16 %v5915
        %v6207 = vunpack.c.l.b16 %v5916
        %v6208 = vpack.c.b16 %v6193, %v6192
        %v6209 = vpack.c.b16 %v6195, %v6194
        %v6210 = vpack.c.b16 %v6197, %v6196
        %v6211 = vpack.c.b16 %v6199, %v6198
        %v6212 = vpack.c.b16 %v6201, %v6200
        %v6213 = vpack.c.b16 %v6203, %v6202
        %v6214 = vpack.c.b16 %v6205, %v6204
        %v6215 = vpack.c.b16 %v6207, %v6206
        %6224 = vmatpush.bf16.msra.mxu0 %v6215
        %6225 = vmatpush.bf16.msra.mxu0 %v6214
        %6226 = vmatpush.bf16.msra.mxu0 %v6213
        %6227 = vmatpush.bf16.msra.mxu0 %v6212
        %6228 = vmatpush.bf16.msra.mxu0 %v6211
        %6229 = vmatpush.bf16.msra.mxu0 %v6210
        %6230 = vmatpush.bf16.msra.mxu0 %v6209
        %6231 = vmatpush.bf16.msra.mxu0 %v6208
        %6232 = vmatmul.bf16.gmra.mxu0 %v6021
        %v6233 = vpop.f32.mrf.mxu0
        %v6234 = vadd.f32 0.0, %v6233
        %v6235 = vpop.f32.mrf.mxu0
        %v6236 = vadd.f32 0.0, %v6235
        %6237 = vmatmul.bf16.gmra.mxu0 %v6029
        %v6238 = vpop.f32.mrf.mxu0
        %v6239 = vadd.f32 0.0, %v6238
        %v6240 = vpop.f32.mrf.mxu0
        %v6241 = vadd.f32 0.0, %v6240
        %6242 = vmatmul.bf16.gmra.mxu0 %v6037
        %v6243 = vpop.f32.mrf.mxu0
        %v6244 = vadd.f32 0.0, %v6243
        %v6245 = vpop.f32.mrf.mxu0
        %v6246 = vadd.f32 0.0, %v6245
        %6247 = vmatmul.bf16.gmra.mxu0 %v6045
        %v6248 = vpop.f32.mrf.mxu0
        %v6249 = vadd.f32 0.0, %v6248
        %v6250 = vpop.f32.mrf.mxu0
        %v6251 = vadd.f32 0.0, %v6250
        %6252 = vmatmul.bf16.gmra.mxu0 %v6053
        %v6253 = vpop.f32.mrf.mxu0
        %v6254 = vadd.f32 0.0, %v6253
        %v6255 = vpop.f32.mrf.mxu0
        %v6256 = vadd.f32 0.0, %v6255
        %6257 = vmatmul.bf16.gmra.mxu0 %v6061
        %v6258 = vpop.f32.mrf.mxu0
        %v6259 = vadd.f32 0.0, %v6258
        %v6260 = vpop.f32.mrf.mxu0
        %v6261 = vadd.f32 0.0, %v6260
        %6262 = vmatmul.bf16.gmra.mxu0 %v6069
        %v6263 = vpop.f32.mrf.mxu0
        %v6264 = vadd.f32 0.0, %v6263
        %v6265 = vpop.f32.mrf.mxu0
        %v6266 = vadd.f32 0.0, %v6265
        %6267 = vmatmul.bf16.gmra.mxu0 %v6077
        %v6268 = vpop.f32.mrf.mxu0
        %v6269 = vadd.f32 0.0, %v6268
        %v6270 = vpop.f32.mrf.mxu0
        %v6271 = vadd.f32 0.0, %v6270
        %6272 = vmatmul.bf16.gmra.mxu0 %v6085
        %v6273 = vpop.f32.mrf.mxu0
        %v6274 = vadd.f32 0.0, %v6273
        %v6275 = vpop.f32.mrf.mxu0
        %v6276 = vadd.f32 0.0, %v6275
        %6277 = vmatmul.bf16.gmra.mxu0 %v6093
        %v6278 = vpop.f32.mrf.mxu0
        %v6279 = vadd.f32 0.0, %v6278
        %v6280 = vpop.f32.mrf.mxu0
        %v6281 = vadd.f32 0.0, %v6280
        %6282 = vmatmul.bf16.gmra.mxu0 %v6101
        %v6283 = vpop.f32.mrf.mxu0
        %v6284 = vadd.f32 0.0, %v6283
        %v6285 = vpop.f32.mrf.mxu0
        %v6286 = vadd.f32 0.0, %v6285
        %6287 = vmatmul.bf16.gmra.mxu0 %v6109
        %v6288 = vpop.f32.mrf.mxu0
        %v6289 = vadd.f32 0.0, %v6288
        %v6290 = vpop.f32.mrf.mxu0
        %v6291 = vadd.f32 0.0, %v6290
        %6292 = vmatmul.bf16.gmra.mxu0 %v6117
        %v6293 = vpop.f32.mrf.mxu0
        %v6294 = vadd.f32 0.0, %v6293
        %v6295 = vpop.f32.mrf.mxu0
        %v6296 = vadd.f32 0.0, %v6295
        %6297 = vmatmul.bf16.gmra.mxu0 %v6125
        %v6298 = vpop.f32.mrf.mxu0
        %v6299 = vadd.f32 0.0, %v6298
        %v6300 = vpop.f32.mrf.mxu0
        %v6301 = vadd.f32 0.0, %v6300
        %6302 = vmatmul.bf16.gmra.mxu0 %v6133
        %v6303 = vpop.f32.mrf.mxu0
        %v6304 = vadd.f32 0.0, %v6303
        %v6305 = vpop.f32.mrf.mxu0
        %v6306 = vadd.f32 0.0, %v6305
        %6307 = vmatmul.bf16.gmra.mxu0 %v6141
        %v6308 = vpop.f32.mrf.mxu0
        %v6309 = vadd.f32 0.0, %v6308
        %v6310 = vpop.f32.mrf.mxu0
        %v6311 = vadd.f32 0.0, %v6310
        %6312 = vmatmul.bf16.gmra.mxu0 %v6149
        %v6313 = vpop.f32.mrf.mxu0
        %v6314 = vadd.f32 0.0, %v6313
        %v6315 = vpop.f32.mrf.mxu0
        %v6316 = vadd.f32 0.0, %v6315
        %6317 = vmatmul.bf16.gmra.mxu0 %v6157
        %v6318 = vpop.f32.mrf.mxu0
        %v6319 = vadd.f32 0.0, %v6318
        %v6320 = vpop.f32.mrf.mxu0
        %v6321 = vadd.f32 0.0, %v6320
        %6322 = vdwg.mxu0
        %v6323 = vadd.f32 %v5828, %v6234
        %v6324 = vadd.f32 %v5829, %v6236
        %v6325 = vadd.f32 %v5830, %v6239
        %v6326 = vadd.f32 %v5831, %v6241
        %v6327 = vadd.f32 %v5832, %v6244
        %v6328 = vadd.f32 %v5833, %v6246
        %v6329 = vadd.f32 %v5834, %v6249
        %v6330 = vadd.f32 %v5835, %v6251
        %v6331 = vadd.f32 %v5836, %v6254
        %v6332 = vadd.f32 %v5837, %v6256
        %v6333 = vadd.f32 %v5838, %v6259
        %v6334 = vadd.f32 %v5839, %v6261
        %v6335 = vadd.f32 %v5840, %v6264
        %v6336 = vadd.f32 %v5841, %v6266
        %v6337 = vadd.f32 %v5842, %v6269
        %v6338 = vadd.f32 %v5843, %v6271
        %v6339 = vadd.f32 %v5844, %v6274
        %v6340 = vadd.f32 %v5845, %v6276
        %v6341 = vadd.f32 %v5846, %v6279
        %v6342 = vadd.f32 %v5847, %v6281
        %v6343 = vadd.f32 %v5848, %v6284
        %v6344 = vadd.f32 %v5849, %v6286
        %v6345 = vadd.f32 %v5850, %v6289
        %v6346 = vadd.f32 %v5851, %v6291
        %v6347 = vadd.f32 %v5852, %v6294
        %v6348 = vadd.f32 %v5853, %v6296
        %v6349 = vadd.f32 %v5854, %v6299
        %v6350 = vadd.f32 %v5855, %v6301
        %v6351 = vadd.f32 %v5856, %v6304
        %v6352 = vadd.f32 %v5857, %v6306
        %v6353 = vadd.f32 %v5858, %v6309
        %v6354 = vadd.f32 %v5859, %v6311
        %v6355 = vadd.f32 %v5860, %v6314
        %v6356 = vadd.f32 %v5861, %v6316
        %v6357 = vadd.f32 %v5862, %v6319
        %v6358 = vadd.f32 %v5863, %v6321
        %v6359 = vld [vmem:[#allocation3 + $0x18] sm:$0xe]
        %v6360 = vld [vmem:[%s6 + $0x1c0] sm:$0xf]
        %v6361 = vld [vmem:[%s6 + $0x1c4] sm:$0xf]
        %v6362 = vld [vmem:[%s6 + $0x1c8] sm:$0xf]
        %v6363 = vld [vmem:[%s6 + $0x1cc] sm:$0xf]
        %v6364 = vld [vmem:[%s6 + $0x1d0] sm:$0xf]
        %v6365 = vld [vmem:[%s6 + $0x1d4] sm:$0xf]
        %v6366 = vld [vmem:[%s6 + $0x1d8] sm:$0xf]
        %v6367 = vld [vmem:[%s6 + $0x1dc] sm:$0xf]
        %v6368 = vld [vmem:[%s6 + $0x1e0] sm:$0xf]
        %v6369 = vld [vmem:[%s6 + $0x1e4] sm:$0xf]
        %v6370 = vld [vmem:[%s6 + $0x1e8] sm:$0xf]
        %v6371 = vld [vmem:[%s6 + $0x1ec] sm:$0xf]
        %v6372 = vld [vmem:[%s6 + $0x1f0] sm:$0xf]
        %v6373 = vld [vmem:[%s6 + $0x1f4] sm:$0xf]
        %v6374 = vld [vmem:[%s6 + $0x1f8] sm:$0xf]
        %v6375 = vld [vmem:[%s6 + $0x1fc] sm:$0xf]
        %v6377 = vunpack.c.l.b16 %v6359
        %v6378 = vpack.c.b16 %v5955, %v6377
        %vm6379 = vcmask 1046528
        %v6380 = vrot.slane %v6378, 1
        %v6381 = vrot.slane %v5992, 1
        %v6382 = vsel %vm6379, %v6380, %v6381
        %v6383 = vrot.slane %v5993, 1
        %v6384 = vsel %vm6379, %v6381, %v6383
        %v6385 = vrot.slane %v5994, 1
        %v6386 = vsel %vm6379, %v6383, %v6385
        %v6387 = vrot.slane %v5995, 1
        %v6388 = vsel %vm6379, %v6385, %v6387
        %v6389 = vrot.slane %v5996, 1
        %v6390 = vsel %vm6379, %v6387, %v6389
        %v6391 = vrot.slane %v5997, 1
        %v6392 = vsel %vm6379, %v6389, %v6391
        %v6393 = vrot.slane %v5998, 1
        %v6394 = vsel %vm6379, %v6391, %v6393
        %v6395 = vrot.slane %v5999, 1
        %v6396 = vsel %vm6379, %v6393, %v6395
        %v6397 = vrot.slane %v6000, 1
        %v6398 = vsel %vm6379, %v6395, %v6397
        %v6399 = vrot.slane %v6001, 1
        %v6400 = vsel %vm6379, %v6397, %v6399
        %v6401 = vrot.slane %v6002, 1
        %v6402 = vsel %vm6379, %v6399, %v6401
        %v6403 = vrot.slane %v6003, 1
        %v6404 = vsel %vm6379, %v6401, %v6403
        %v6405 = vrot.slane %v6004, 1
        %v6406 = vsel %vm6379, %v6403, %v6405
        %v6407 = vrot.slane %v6005, 1
        %v6408 = vsel %vm6379, %v6405, %v6407
        %v6409 = vrot.slane %v6006, 1
        %v6410 = vsel %vm6379, %v6407, %v6409
        %v6411 = vrot.slane %v6007, 1
        %v6412 = vsel %vm6379, %v6409, %v6411
        %v6413 = vrot.slane %v6008, 1
        %v6414 = vsel %vm6379, %v6411, %v6413
        %v6415 = vrot.slane %v6009, 1
        %v6416 = vsel %vm6379, %v6413, %v6415
        %v6451 = vunpack.c.l.b16 %v6360
        %v6452 = vunpack.c.l.b16 %v6361
        %v6453 = vunpack.c.l.b16 %v6362
        %v6454 = vunpack.c.l.b16 %v6363
        %v6455 = vunpack.c.l.b16 %v6364
        %v6456 = vunpack.c.l.b16 %v6365
        %v6457 = vunpack.c.l.b16 %v6366
        %v6458 = vunpack.c.l.b16 %v6367
        %v6459 = vunpack.c.l.b16 %v6368
        %v6460 = vunpack.c.l.b16 %v6369
        %v6461 = vunpack.c.l.b16 %v6370
        %v6462 = vunpack.c.l.b16 %v6371
        %v6463 = vunpack.c.l.b16 %v6372
        %v6464 = vunpack.c.l.b16 %v6373
        %v6465 = vunpack.c.l.b16 %v6374
        %v6466 = vunpack.c.l.b16 %v6375
        %v6467 = vpack.c.b16 %v6452, %v6451
        %v6468 = vpack.c.b16 %v6454, %v6453
        %v6469 = vpack.c.b16 %v6456, %v6455
        %v6470 = vpack.c.b16 %v6458, %v6457
        %v6471 = vpack.c.b16 %v6460, %v6459
        %v6472 = vpack.c.b16 %v6462, %v6461
        %v6473 = vpack.c.b16 %v6464, %v6463
        %v6474 = vpack.c.b16 %v6466, %v6465
        %6483 = vmatpush.bf16.msra.mxu0 %v6474
        %6484 = vmatpush.bf16.msra.mxu0 %v6473
        %6485 = vmatpush.bf16.msra.mxu0 %v6472
        %6486 = vmatpush.bf16.msra.mxu0 %v6471
        %6487 = vmatpush.bf16.msra.mxu0 %v6470
        %6488 = vmatpush.bf16.msra.mxu0 %v6469
        %6489 = vmatpush.bf16.msra.mxu0 %v6468
        %6490 = vmatpush.bf16.msra.mxu0 %v6467
        %6491 = vmatmul.bf16.gmra.mxu0 %v6382
        %v6492 = vpop.f32.mrf.mxu0
        %v6493 = vadd.f32 0.0, %v6492
        %v6494 = vpop.f32.mrf.mxu0
        %v6495 = vadd.f32 0.0, %v6494
        %6496 = vmatmul.bf16.gmra.mxu0 %v6384
        %v6497 = vpop.f32.mrf.mxu0
        %v6498 = vadd.f32 0.0, %v6497
        %v6499 = vpop.f32.mrf.mxu0
        %v6500 = vadd.f32 0.0, %v6499
        %6501 = vmatmul.bf16.gmra.mxu0 %v6386
        %v6502 = vpop.f32.mrf.mxu0
        %v6503 = vadd.f32 0.0, %v6502
        %v6504 = vpop.f32.mrf.mxu0
        %v6505 = vadd.f32 0.0, %v6504
        %6506 = vmatmul.bf16.gmra.mxu0 %v6388
        %v6507 = vpop.f32.mrf.mxu0
        %v6508 = vadd.f32 0.0, %v6507
        %v6509 = vpop.f32.mrf.mxu0
        %v6510 = vadd.f32 0.0, %v6509
        %6511 = vmatmul.bf16.gmra.mxu0 %v6390
        %v6512 = vpop.f32.mrf.mxu0
        %v6513 = vadd.f32 0.0, %v6512
        %v6514 = vpop.f32.mrf.mxu0
        %v6515 = vadd.f32 0.0, %v6514
        %6516 = vmatmul.bf16.gmra.mxu0 %v6392
        %v6517 = vpop.f32.mrf.mxu0
        %v6518 = vadd.f32 0.0, %v6517
        %v6519 = vpop.f32.mrf.mxu0
        %v6520 = vadd.f32 0.0, %v6519
        %6521 = vmatmul.bf16.gmra.mxu0 %v6394
        %v6522 = vpop.f32.mrf.mxu0
        %v6523 = vadd.f32 0.0, %v6522
        %v6524 = vpop.f32.mrf.mxu0
        %v6525 = vadd.f32 0.0, %v6524
        %6526 = vmatmul.bf16.gmra.mxu0 %v6396
        %v6527 = vpop.f32.mrf.mxu0
        %v6528 = vadd.f32 0.0, %v6527
        %v6529 = vpop.f32.mrf.mxu0
        %v6530 = vadd.f32 0.0, %v6529
        %6531 = vmatmul.bf16.gmra.mxu0 %v6398
        %v6532 = vpop.f32.mrf.mxu0
        %v6533 = vadd.f32 0.0, %v6532
        %v6534 = vpop.f32.mrf.mxu0
        %v6535 = vadd.f32 0.0, %v6534
        %6536 = vmatmul.bf16.gmra.mxu0 %v6400
        %v6537 = vpop.f32.mrf.mxu0
        %v6538 = vadd.f32 0.0, %v6537
        %v6539 = vpop.f32.mrf.mxu0
        %v6540 = vadd.f32 0.0, %v6539
        %6541 = vmatmul.bf16.gmra.mxu0 %v6402
        %v6542 = vpop.f32.mrf.mxu0
        %v6543 = vadd.f32 0.0, %v6542
        %v6544 = vpop.f32.mrf.mxu0
        %v6545 = vadd.f32 0.0, %v6544
        %6546 = vmatmul.bf16.gmra.mxu0 %v6404
        %v6547 = vpop.f32.mrf.mxu0
        %v6548 = vadd.f32 0.0, %v6547
        %v6549 = vpop.f32.mrf.mxu0
        %v6550 = vadd.f32 0.0, %v6549
        %6551 = vmatmul.bf16.gmra.mxu0 %v6406
        %v6552 = vpop.f32.mrf.mxu0
        %v6553 = vadd.f32 0.0, %v6552
        %v6554 = vpop.f32.mrf.mxu0
        %v6555 = vadd.f32 0.0, %v6554
        %6556 = vmatmul.bf16.gmra.mxu0 %v6408
        %v6557 = vpop.f32.mrf.mxu0
        %v6558 = vadd.f32 0.0, %v6557
        %v6559 = vpop.f32.mrf.mxu0
        %v6560 = vadd.f32 0.0, %v6559
        %6561 = vmatmul.bf16.gmra.mxu0 %v6410
        %v6562 = vpop.f32.mrf.mxu0
        %v6563 = vadd.f32 0.0, %v6562
        %v6564 = vpop.f32.mrf.mxu0
        %v6565 = vadd.f32 0.0, %v6564
        %6566 = vmatmul.bf16.gmra.mxu0 %v6412
        %v6567 = vpop.f32.mrf.mxu0
        %v6568 = vadd.f32 0.0, %v6567
        %v6569 = vpop.f32.mrf.mxu0
        %v6570 = vadd.f32 0.0, %v6569
        %6571 = vmatmul.bf16.gmra.mxu0 %v6414
        %v6572 = vpop.f32.mrf.mxu0
        %v6573 = vadd.f32 0.0, %v6572
        %v6574 = vpop.f32.mrf.mxu0
        %v6575 = vadd.f32 0.0, %v6574
        %6576 = vmatmul.bf16.gmra.mxu0 %v6416
        %v6577 = vpop.f32.mrf.mxu0
        %v6578 = vadd.f32 0.0, %v6577
        %v6579 = vpop.f32.mrf.mxu0
        %v6580 = vadd.f32 0.0, %v6579
        %6581 = vdwg.mxu0
        %v6582 = vadd.f32 %v6323, %v6493
        %v6583 = vadd.f32 %v6324, %v6495
        %v6584 = vadd.f32 %v6325, %v6498
        %v6585 = vadd.f32 %v6326, %v6500
        %v6586 = vadd.f32 %v6327, %v6503
        %v6587 = vadd.f32 %v6328, %v6505
        %v6588 = vadd.f32 %v6329, %v6508
        %v6589 = vadd.f32 %v6330, %v6510
        %v6590 = vadd.f32 %v6331, %v6513
        %v6591 = vadd.f32 %v6332, %v6515
        %v6592 = vadd.f32 %v6333, %v6518
        %v6593 = vadd.f32 %v6334, %v6520
        %v6594 = vadd.f32 %v6335, %v6523
        %v6595 = vadd.f32 %v6336, %v6525
        %v6596 = vadd.f32 %v6337, %v6528
        %v6597 = vadd.f32 %v6338, %v6530
        %v6598 = vadd.f32 %v6339, %v6533
        %v6599 = vadd.f32 %v6340, %v6535
        %v6600 = vadd.f32 %v6341, %v6538
        %v6601 = vadd.f32 %v6342, %v6540
        %v6602 = vadd.f32 %v6343, %v6543
        %v6603 = vadd.f32 %v6344, %v6545
        %v6604 = vadd.f32 %v6345, %v6548
        %v6605 = vadd.f32 %v6346, %v6550
        %v6606 = vadd.f32 %v6347, %v6553
        %v6607 = vadd.f32 %v6348, %v6555
        %v6608 = vadd.f32 %v6349, %v6558
        %v6609 = vadd.f32 %v6350, %v6560
        %v6610 = vadd.f32 %v6351, %v6563
        %v6611 = vadd.f32 %v6352, %v6565
        %v6612 = vadd.f32 %v6353, %v6568
        %v6613 = vadd.f32 %v6354, %v6570
        %v6614 = vadd.f32 %v6355, %v6573
        %v6615 = vadd.f32 %v6356, %v6575
        %v6616 = vadd.f32 %v6357, %v6578
        %v6617 = vadd.f32 %v6358, %v6580
        %v6618 = vld [vmem:[#allocation3 + $0xa8] sm:$0x3]
        %v6619 = vld [vmem:[%s6 + $0x200] sm:$0xf]
        %v6620 = vld [vmem:[%s6 + $0x204] sm:$0xf]
        %v6621 = vld [vmem:[%s6 + $0x208] sm:$0xf]
        %v6622 = vld [vmem:[%s6 + $0x20c] sm:$0xf]
        %v6623 = vld [vmem:[%s6 + $0x210] sm:$0xf]
        %v6624 = vld [vmem:[%s6 + $0x214] sm:$0xf]
        %v6625 = vld [vmem:[%s6 + $0x218] sm:$0xf]
        %v6626 = vld [vmem:[%s6 + $0x21c] sm:$0xf]
        %v6627 = vld [vmem:[%s6 + $0x220] sm:$0xf]
        %v6628 = vld [vmem:[%s6 + $0x224] sm:$0xf]
        %v6629 = vld [vmem:[%s6 + $0x228] sm:$0xf]
        %v6630 = vld [vmem:[%s6 + $0x22c] sm:$0xf]
        %v6631 = vld [vmem:[%s6 + $0x230] sm:$0xf]
        %v6632 = vld [vmem:[%s6 + $0x234] sm:$0xf]
        %v6633 = vld [vmem:[%s6 + $0x238] sm:$0xf]
        %v6634 = vld [vmem:[%s6 + $0x23c] sm:$0xf]
        %v6636 = vunpack.c.l.b16 %v6618
        %v6637 = vpack.c.b16 %v6636, %v6636
        %vm6638 = vsmask.f32 6400
        %v6640 = vshrl.u32 %v6378, 16
        %v6642 = vrot.slane %v6640, 1
        %v6643 = vshll.u32 %v6378, 16
        %v6645 = vrot.slane %v6643, 2
        %v6646 = vor.u32 %v6642, %v6645
        %v6647 = vrot.slane %v6022, 1
        %v6648 = vrot.slane %v6018, 2
        %v6649 = vor.u32 %v6647, %v6648
        %v6650 = vsel %vm6638, %v6646, %v6649
        %v6651 = vrot.slane %v6030, 1
        %v6652 = vrot.slane %v6026, 2
        %v6653 = vor.u32 %v6651, %v6652
        %v6654 = vsel %vm6638, %v6649, %v6653
        %v6655 = vrot.slane %v6038, 1
        %v6656 = vrot.slane %v6034, 2
        %v6657 = vor.u32 %v6655, %v6656
        %v6658 = vsel %vm6638, %v6653, %v6657
        %v6659 = vrot.slane %v6046, 1
        %v6660 = vrot.slane %v6042, 2
        %v6661 = vor.u32 %v6659, %v6660
        %v6662 = vsel %vm6638, %v6657, %v6661
        %v6663 = vrot.slane %v6054, 1
        %v6664 = vrot.slane %v6050, 2
        %v6665 = vor.u32 %v6663, %v6664
        %v6666 = vsel %vm6638, %v6661, %v6665
        %v6667 = vrot.slane %v6062, 1
        %v6668 = vrot.slane %v6058, 2
        %v6669 = vor.u32 %v6667, %v6668
        %v6670 = vsel %vm6638, %v6665, %v6669
        %v6671 = vrot.slane %v6070, 1
        %v6672 = vrot.slane %v6066, 2
        %v6673 = vor.u32 %v6671, %v6672
        %v6674 = vsel %vm6638, %v6669, %v6673
        %v6675 = vrot.slane %v6078, 1
        %v6676 = vrot.slane %v6074, 2
        %v6677 = vor.u32 %v6675, %v6676
        %v6678 = vsel %vm6638, %v6673, %v6677
        %v6679 = vrot.slane %v6086, 1
        %v6680 = vrot.slane %v6082, 2
        %v6681 = vor.u32 %v6679, %v6680
        %v6682 = vsel %vm6638, %v6677, %v6681
        %v6683 = vrot.slane %v6094, 1
        %v6684 = vrot.slane %v6090, 2
        %v6685 = vor.u32 %v6683, %v6684
        %v6686 = vsel %vm6638, %v6681, %v6685
        %v6687 = vrot.slane %v6102, 1
        %v6688 = vrot.slane %v6098, 2
        %v6689 = vor.u32 %v6687, %v6688
        %v6690 = vsel %vm6638, %v6685, %v6689
        %v6691 = vrot.slane %v6110, 1
        %v6692 = vrot.slane %v6106, 2
        %v6693 = vor.u32 %v6691, %v6692
        %v6694 = vsel %vm6638, %v6689, %v6693
        %v6695 = vrot.slane %v6118, 1
        %v6696 = vrot.slane %v6114, 2
        %v6697 = vor.u32 %v6695, %v6696
        %v6698 = vsel %vm6638, %v6693, %v6697
        %v6699 = vrot.slane %v6126, 1
        %v6700 = vrot.slane %v6122, 2
        %v6701 = vor.u32 %v6699, %v6700
        %v6702 = vsel %vm6638, %v6697, %v6701
        %v6703 = vrot.slane %v6134, 1
        %v6704 = vrot.slane %v6130, 2
        %v6705 = vor.u32 %v6703, %v6704
        %v6706 = vsel %vm6638, %v6701, %v6705
        %v6707 = vrot.slane %v6142, 1
        %v6708 = vrot.slane %v6138, 2
        %v6709 = vor.u32 %v6707, %v6708
        %v6710 = vsel %vm6638, %v6705, %v6709
        %v6711 = vrot.slane %v6150, 1
        %v6712 = vrot.slane %v6146, 2
        %v6713 = vor.u32 %v6711, %v6712
        %v6714 = vsel %vm6638, %v6709, %v6713
        %v6716 = vshrl.u32 %v6637, 16
        %v6718 = vrot.slane %v6716, 1
        %v6719 = vshll.u32 %v6637, 16
        %v6721 = vrot.slane %v6719, 2
        %v6722 = vor.u32 %v6718, %v6721
        %v6723 = vsel %vm6638, %v6713, %v6722
        %v6758 = vunpack.c.l.b16 %v6619
        %v6759 = vunpack.c.l.b16 %v6620
        %v6760 = vunpack.c.l.b16 %v6621
        %v6761 = vunpack.c.l.b16 %v6622
        %v6762 = vunpack.c.l.b16 %v6623
        %v6763 = vunpack.c.l.b16 %v6624
        %v6764 = vunpack.c.l.b16 %v6625
        %v6765 = vunpack.c.l.b16 %v6626
        %v6766 = vunpack.c.l.b16 %v6627
        %v6767 = vunpack.c.l.b16 %v6628
        %v6768 = vunpack.c.l.b16 %v6629
        %v6769 = vunpack.c.l.b16 %v6630
        %v6770 = vunpack.c.l.b16 %v6631
        %v6771 = vunpack.c.l.b16 %v6632
        %v6772 = vunpack.c.l.b16 %v6633
        %v6773 = vunpack.c.l.b16 %v6634
        %v6774 = vpack.c.b16 %v6759, %v6758
        %v6775 = vpack.c.b16 %v6761, %v6760
        %v6776 = vpack.c.b16 %v6763, %v6762
        %v6777 = vpack.c.b16 %v6765, %v6764
        %v6778 = vpack.c.b16 %v6767, %v6766
        %v6779 = vpack.c.b16 %v6769, %v6768
        %v6780 = vpack.c.b16 %v6771, %v6770
        %v6781 = vpack.c.b16 %v6773, %v6772
        %6790 = vmatpush.bf16.msra.mxu0 %v6781
        %6791 = vmatpush.bf16.msra.mxu0 %v6780
        %6792 = vmatpush.bf16.msra.mxu0 %v6779
        %6793 = vmatpush.bf16.msra.mxu0 %v6778
        %6794 = vmatpush.bf16.msra.mxu0 %v6777
        %6795 = vmatpush.bf16.msra.mxu0 %v6776
        %6796 = vmatpush.bf16.msra.mxu0 %v6775
        %6797 = vmatpush.bf16.msra.mxu0 %v6774
        %6798 = vmatmul.bf16.gmra.mxu0 %v6650
        %v6799 = vpop.f32.mrf.mxu0
        %v6800 = vadd.f32 0.0, %v6799
        %v6801 = vpop.f32.mrf.mxu0
        %v6802 = vadd.f32 0.0, %v6801
        %6803 = vmatmul.bf16.gmra.mxu0 %v6654
        %v6804 = vpop.f32.mrf.mxu0
        %v6805 = vadd.f32 0.0, %v6804
        %v6806 = vpop.f32.mrf.mxu0
        %v6807 = vadd.f32 0.0, %v6806
        %6808 = vmatmul.bf16.gmra.mxu0 %v6658
        %v6809 = vpop.f32.mrf.mxu0
        %v6810 = vadd.f32 0.0, %v6809
        %v6811 = vpop.f32.mrf.mxu0
        %v6812 = vadd.f32 0.0, %v6811
        %6813 = vmatmul.bf16.gmra.mxu0 %v6662
        %v6814 = vpop.f32.mrf.mxu0
        %v6815 = vadd.f32 0.0, %v6814
        %v6816 = vpop.f32.mrf.mxu0
        %v6817 = vadd.f32 0.0, %v6816
        %6818 = vmatmul.bf16.gmra.mxu0 %v6666
        %v6819 = vpop.f32.mrf.mxu0
        %v6820 = vadd.f32 0.0, %v6819
        %v6821 = vpop.f32.mrf.mxu0
        %v6822 = vadd.f32 0.0, %v6821
        %6823 = vmatmul.bf16.gmra.mxu0 %v6670
        %v6824 = vpop.f32.mrf.mxu0
        %v6825 = vadd.f32 0.0, %v6824
        %v6826 = vpop.f32.mrf.mxu0
        %v6827 = vadd.f32 0.0, %v6826
        %6828 = vmatmul.bf16.gmra.mxu0 %v6674
        %v6829 = vpop.f32.mrf.mxu0
        %v6830 = vadd.f32 0.0, %v6829
        %v6831 = vpop.f32.mrf.mxu0
        %v6832 = vadd.f32 0.0, %v6831
        %6833 = vmatmul.bf16.gmra.mxu0 %v6678
        %v6834 = vpop.f32.mrf.mxu0
        %v6835 = vadd.f32 0.0, %v6834
        %v6836 = vpop.f32.mrf.mxu0
        %v6837 = vadd.f32 0.0, %v6836
        %6838 = vmatmul.bf16.gmra.mxu0 %v6682
        %v6839 = vpop.f32.mrf.mxu0
        %v6840 = vadd.f32 0.0, %v6839
        %v6841 = vpop.f32.mrf.mxu0
        %v6842 = vadd.f32 0.0, %v6841
        %6843 = vmatmul.bf16.gmra.mxu0 %v6686
        %v6844 = vpop.f32.mrf.mxu0
        %v6845 = vadd.f32 0.0, %v6844
        %v6846 = vpop.f32.mrf.mxu0
        %v6847 = vadd.f32 0.0, %v6846
        %6848 = vmatmul.bf16.gmra.mxu0 %v6690
        %v6849 = vpop.f32.mrf.mxu0
        %v6850 = vadd.f32 0.0, %v6849
        %v6851 = vpop.f32.mrf.mxu0
        %v6852 = vadd.f32 0.0, %v6851
        %6853 = vmatmul.bf16.gmra.mxu0 %v6694
        %v6854 = vpop.f32.mrf.mxu0
        %v6855 = vadd.f32 0.0, %v6854
        %v6856 = vpop.f32.mrf.mxu0
        %v6857 = vadd.f32 0.0, %v6856
        %6858 = vmatmul.bf16.gmra.mxu0 %v6698
        %v6859 = vpop.f32.mrf.mxu0
        %v6860 = vadd.f32 0.0, %v6859
        %v6861 = vpop.f32.mrf.mxu0
        %v6862 = vadd.f32 0.0, %v6861
        %6863 = vmatmul.bf16.gmra.mxu0 %v6702
        %v6864 = vpop.f32.mrf.mxu0
        %v6865 = vadd.f32 0.0, %v6864
        %v6866 = vpop.f32.mrf.mxu0
        %v6867 = vadd.f32 0.0, %v6866
        %6868 = vmatmul.bf16.gmra.mxu0 %v6706
        %v6869 = vpop.f32.mrf.mxu0
        %v6870 = vadd.f32 0.0, %v6869
        %v6871 = vpop.f32.mrf.mxu0
        %v6872 = vadd.f32 0.0, %v6871
        %6873 = vmatmul.bf16.gmra.mxu0 %v6710
        %v6874 = vpop.f32.mrf.mxu0
        %v6875 = vadd.f32 0.0, %v6874
        %v6876 = vpop.f32.mrf.mxu0
        %v6877 = vadd.f32 0.0, %v6876
        %6878 = vmatmul.bf16.gmra.mxu0 %v6714
        %v6879 = vpop.f32.mrf.mxu0
        %v6880 = vadd.f32 0.0, %v6879
        %v6881 = vpop.f32.mrf.mxu0
        %v6882 = vadd.f32 0.0, %v6881
        %6883 = vmatmul.bf16.gmra.mxu0 %v6723
        %v6884 = vpop.f32.mrf.mxu0
        %v6885 = vadd.f32 0.0, %v6884
        %v6886 = vpop.f32.mrf.mxu0
        %v6887 = vadd.f32 0.0, %v6886
        %6888 = vdwg.mxu0
        %v6889 = vadd.f32 %v6582, %v6800
        %v6890 = vadd.f32 %v6583, %v6802
        %v6891 = vadd.f32 %v6584, %v6805
        %v6892 = vadd.f32 %v6585, %v6807
        %v6893 = vadd.f32 %v6586, %v6810
        %v6894 = vadd.f32 %v6587, %v6812
        %v6895 = vadd.f32 %v6588, %v6815
        %v6896 = vadd.f32 %v6589, %v6817
        %v6897 = vadd.f32 %v6590, %v6820
        %v6898 = vadd.f32 %v6591, %v6822
        %v6899 = vadd.f32 %v6592, %v6825
        %v6900 = vadd.f32 %v6593, %v6827
        %v6901 = vadd.f32 %v6594, %v6830
        %v6902 = vadd.f32 %v6595, %v6832
        %v6903 = vadd.f32 %v6596, %v6835
        %v6904 = vadd.f32 %v6597, %v6837
        %v6905 = vadd.f32 %v6598, %v6840
        %v6906 = vadd.f32 %v6599, %v6842
        %v6907 = vadd.f32 %v6600, %v6845
        %v6908 = vadd.f32 %v6601, %v6847
        %v6909 = vadd.f32 %v6602, %v6850
        %v6910 = vadd.f32 %v6603, %v6852
        %v6911 = vadd.f32 %v6604, %v6855
        %v6912 = vadd.f32 %v6605, %v6857
        %v6913 = vadd.f32 %v6606, %v6860
        %v6914 = vadd.f32 %v6607, %v6862
        %v6915 = vadd.f32 %v6608, %v6865
        %v6916 = vadd.f32 %v6609, %v6867
        %v6917 = vadd.f32 %v6610, %v6870
        %v6918 = vadd.f32 %v6611, %v6872
        %v6919 = vadd.f32 %v6612, %v6875
        %v6920 = vadd.f32 %v6613, %v6877
        %v6921 = vadd.f32 %v6614, %v6880
        %v6922 = vadd.f32 %v6615, %v6882
        %v6923 = vadd.f32 %v6616, %v6885
        %v6924 = vadd.f32 %v6617, %v6887
        %v6925 = vld [vmem:[%s7] sm:$0x1]
        %v6927 = vperm.slane %v6925, 0
        %v6929 = vmul.f32 %v6889, %v6927
        %v6930 = vmul.f32 %v6890, %v6927
        %v6931 = vmul.f32 %v6891, %v6927
        %v6932 = vmul.f32 %v6892, %v6927
        %v6933 = vmul.f32 %v6893, %v6927
        %v6934 = vmul.f32 %v6894, %v6927
        %v6935 = vmul.f32 %v6895, %v6927
        %v6936 = vmul.f32 %v6896, %v6927
        %v6937 = vmul.f32 %v6897, %v6927
        %v6938 = vmul.f32 %v6898, %v6927
        %v6939 = vmul.f32 %v6899, %v6927
        %v6940 = vmul.f32 %v6900, %v6927
        %v6941 = vmul.f32 %v6901, %v6927
        %v6942 = vmul.f32 %v6902, %v6927
        %v6943 = vmul.f32 %v6903, %v6927
        %v6944 = vmul.f32 %v6904, %v6927
        %v6945 = vmul.f32 %v6905, %v6927
        %v6946 = vmul.f32 %v6906, %v6927
        %v6947 = vmul.f32 %v6907, %v6927
        %v6948 = vmul.f32 %v6908, %v6927
        %v6949 = vmul.f32 %v6909, %v6927
        %v6950 = vmul.f32 %v6910, %v6927
        %v6951 = vmul.f32 %v6911, %v6927
        %v6952 = vmul.f32 %v6912, %v6927
        %v6953 = vmul.f32 %v6913, %v6927
        %v6954 = vmul.f32 %v6914, %v6927
        %v6955 = vmul.f32 %v6915, %v6927
        %v6956 = vmul.f32 %v6916, %v6927
        %v6957 = vmul.f32 %v6917, %v6927
        %v6958 = vmul.f32 %v6918, %v6927
        %v6959 = vmul.f32 %v6919, %v6927
        %v6960 = vmul.f32 %v6920, %v6927
        %v6961 = vmul.f32 %v6921, %v6927
        %v6962 = vmul.f32 %v6922, %v6927
        %v6963 = vmul.f32 %v6923, %v6927
        %v6964 = vmul.f32 %v6924, %v6927
        %v6965 = vld [vmem:[%s8] sm:$0x1]
        %v6967 = vperm.slane %v6965, 0
        %v6969 = vadd.f32 %v6929, %v6967
        %v6970 = vadd.f32 %v6930, %v6967
        %v6971 = vadd.f32 %v6931, %v6967
        %v6972 = vadd.f32 %v6932, %v6967
        %v6973 = vadd.f32 %v6933, %v6967
        %v6974 = vadd.f32 %v6934, %v6967
        %v6975 = vadd.f32 %v6935, %v6967
        %v6976 = vadd.f32 %v6936, %v6967
        %v6977 = vadd.f32 %v6937, %v6967
        %v6978 = vadd.f32 %v6938, %v6967
        %v6979 = vadd.f32 %v6939, %v6967
        %v6980 = vadd.f32 %v6940, %v6967
        %v6981 = vadd.f32 %v6941, %v6967
        %v6982 = vadd.f32 %v6942, %v6967
        %v6983 = vadd.f32 %v6943, %v6967
        %v6984 = vadd.f32 %v6944, %v6967
        %v6985 = vadd.f32 %v6945, %v6967
        %v6986 = vadd.f32 %v6946, %v6967
        %v6987 = vadd.f32 %v6947, %v6967
        %v6988 = vadd.f32 %v6948, %v6967
        %v6989 = vadd.f32 %v6949, %v6967
        %v6990 = vadd.f32 %v6950, %v6967
        %v6991 = vadd.f32 %v6951, %v6967
        %v6992 = vadd.f32 %v6952, %v6967
        %v6993 = vadd.f32 %v6953, %v6967
        %v6994 = vadd.f32 %v6954, %v6967
        %v6995 = vadd.f32 %v6955, %v6967
        %v6996 = vadd.f32 %v6956, %v6967
        %v6997 = vadd.f32 %v6957, %v6967
        %v6998 = vadd.f32 %v6958, %v6967
        %v6999 = vadd.f32 %v6959, %v6967
        %v7000 = vadd.f32 %v6960, %v6967
        %v7001 = vadd.f32 %v6961, %v6967
        %v7002 = vadd.f32 %v6962, %v6967
        %v7003 = vadd.f32 %v6963, %v6967
        %v7004 = vadd.f32 %v6964, %v6967
        %vm7005 = vcmp.ge.f32.partialorder %v6969, 0.0
        %vm7006 = vcmp.ge.f32.partialorder %v6970, 0.0
        %vm7007 = vcmp.ge.f32.partialorder %v6971, 0.0
        %vm7008 = vcmp.ge.f32.partialorder %v6972, 0.0
        %vm7009 = vcmp.ge.f32.partialorder %v6973, 0.0
        %vm7010 = vcmp.ge.f32.partialorder %v6974, 0.0
        %vm7011 = vcmp.ge.f32.partialorder %v6975, 0.0
        %vm7012 = vcmp.ge.f32.partialorder %v6976, 0.0
        %vm7013 = vcmp.ge.f32.partialorder %v6977, 0.0
        %vm7014 = vcmp.ge.f32.partialorder %v6978, 0.0
        %vm7015 = vcmp.ge.f32.partialorder %v6979, 0.0
        %vm7016 = vcmp.ge.f32.partialorder %v6980, 0.0
        %vm7017 = vcmp.ge.f32.partialorder %v6981, 0.0
        %vm7018 = vcmp.ge.f32.partialorder %v6982, 0.0
        %vm7019 = vcmp.ge.f32.partialorder %v6983, 0.0
        %vm7020 = vcmp.ge.f32.partialorder %v6984, 0.0
        %vm7021 = vcmp.ge.f32.partialorder %v6985, 0.0
        %vm7022 = vcmp.ge.f32.partialorder %v6986, 0.0
        %vm7023 = vcmp.ge.f32.partialorder %v6987, 0.0
        %vm7024 = vcmp.ge.f32.partialorder %v6988, 0.0
        %vm7025 = vcmp.ge.f32.partialorder %v6989, 0.0
        %vm7026 = vcmp.ge.f32.partialorder %v6990, 0.0
        %vm7027 = vcmp.ge.f32.partialorder %v6991, 0.0
        %vm7028 = vcmp.ge.f32.partialorder %v6992, 0.0
        %vm7029 = vcmp.ge.f32.partialorder %v6993, 0.0
        %vm7030 = vcmp.ge.f32.partialorder %v6994, 0.0
        %vm7031 = vcmp.ge.f32.partialorder %v6995, 0.0
        %vm7032 = vcmp.ge.f32.partialorder %v6996, 0.0
        %vm7033 = vcmp.ge.f32.partialorder %v6997, 0.0
        %vm7034 = vcmp.ge.f32.partialorder %v6998, 0.0
        %vm7035 = vcmp.ge.f32.partialorder %v6999, 0.0
        %vm7036 = vcmp.ge.f32.partialorder %v7000, 0.0
        %vm7037 = vcmp.ge.f32.partialorder %v7001, 0.0
        %vm7038 = vcmp.ge.f32.partialorder %v7002, 0.0
        %vm7039 = vcmp.ge.f32.partialorder %v7003, 0.0
        %vm7040 = vcmp.ge.f32.partialorder %v7004, 0.0
        %v7041 = vmul.f32 %v6969, 0.05
        %v7042 = vmul.f32 %v6970, 0.05
        %v7043 = vmul.f32 %v6971, 0.05
        %v7044 = vmul.f32 %v6972, 0.05
        %v7045 = vmul.f32 %v6973, 0.05
        %v7046 = vmul.f32 %v6974, 0.05
        %v7047 = vmul.f32 %v6975, 0.05
        %v7048 = vmul.f32 %v6976, 0.05
        %v7049 = vmul.f32 %v6977, 0.05
        %v7050 = vmul.f32 %v6978, 0.05
        %v7051 = vmul.f32 %v6979, 0.05
        %v7052 = vmul.f32 %v6980, 0.05
        %v7053 = vmul.f32 %v6981, 0.05
        %v7054 = vmul.f32 %v6982, 0.05
        %v7055 = vmul.f32 %v6983, 0.05
        %v7056 = vmul.f32 %v6984, 0.05
        %v7057 = vmul.f32 %v6985, 0.05
        %v7058 = vmul.f32 %v6986, 0.05
        %v7059 = vmul.f32 %v6987, 0.05
        %v7060 = vmul.f32 %v6988, 0.05
        %v7061 = vmul.f32 %v6989, 0.05
        %v7062 = vmul.f32 %v6990, 0.05
        %v7063 = vmul.f32 %v6991, 0.05
        %v7064 = vmul.f32 %v6992, 0.05
        %v7065 = vmul.f32 %v6993, 0.05
        %v7066 = vmul.f32 %v6994, 0.05
        %v7067 = vmul.f32 %v6995, 0.05
        %v7068 = vmul.f32 %v6996, 0.05
        %v7069 = vmul.f32 %v6997, 0.05
        %v7070 = vmul.f32 %v6998, 0.05
        %v7071 = vmul.f32 %v6999, 0.05
        %v7072 = vmul.f32 %v7000, 0.05
        %v7073 = vmul.f32 %v7001, 0.05
        %v7074 = vmul.f32 %v7002, 0.05
        %v7075 = vmul.f32 %v7003, 0.05
        %v7076 = vmul.f32 %v7004, 0.05
        %v7077 = vsel %vm7005, %v6969, %v7041
        %v7078 = vsel %vm7006, %v6970, %v7042
        %v7079 = vsel %vm7007, %v6971, %v7043
        %v7080 = vsel %vm7008, %v6972, %v7044
        %v7081 = vsel %vm7009, %v6973, %v7045
        %v7082 = vsel %vm7010, %v6974, %v7046
        %v7083 = vsel %vm7011, %v6975, %v7047
        %v7084 = vsel %vm7012, %v6976, %v7048
        %v7085 = vsel %vm7013, %v6977, %v7049
        %v7086 = vsel %vm7014, %v6978, %v7050
        %v7087 = vsel %vm7015, %v6979, %v7051
        %v7088 = vsel %vm7016, %v6980, %v7052
        %v7089 = vsel %vm7017, %v6981, %v7053
        %v7090 = vsel %vm7018, %v6982, %v7054
        %v7091 = vsel %vm7019, %v6983, %v7055
        %v7092 = vsel %vm7020, %v6984, %v7056
        %v7093 = vsel %vm7021, %v6985, %v7057
        %v7094 = vsel %vm7022, %v6986, %v7058
        %v7095 = vsel %vm7023, %v6987, %v7059
        %v7096 = vsel %vm7024, %v6988, %v7060
        %v7097 = vsel %vm7025, %v6989, %v7061
        %v7098 = vsel %vm7026, %v6990, %v7062
        %v7099 = vsel %vm7027, %v6991, %v7063
        %v7100 = vsel %vm7028, %v6992, %v7064
        %v7101 = vsel %vm7029, %v6993, %v7065
        %v7102 = vsel %vm7030, %v6994, %v7066
        %v7103 = vsel %vm7031, %v6995, %v7067
        %v7104 = vsel %vm7032, %v6996, %v7068
        %v7105 = vsel %vm7033, %v6997, %v7069
        %v7106 = vsel %vm7034, %v6998, %v7070
        %v7107 = vsel %vm7035, %v6999, %v7071
        %v7108 = vsel %vm7036, %v7000, %v7072
        %v7109 = vsel %vm7037, %v7001, %v7073
        %v7110 = vsel %vm7038, %v7002, %v7074
        %v7111 = vsel %vm7039, %v7003, %v7075
        %v7112 = vsel %vm7040, %v7004, %v7076
        %v7113 = vld [vmem:[#allocation4] sm:$0xff]
        %v7114 = vld [vmem:[#allocation4 + $0x8] sm:$0xff]
        %v7115 = vld [vmem:[#allocation4 + $0x10] sm:$0xff]
        %v7116 = vld [vmem:[#allocation4 + $0x18] sm:$0xff]
        %v7117 = vld [vmem:[#allocation4 + $0x20] sm:$0xff]
        %v7118 = vld [vmem:[#allocation4 + $0x28] sm:$0xff]
        %v7119 = vld [vmem:[#allocation4 + $0x30] sm:$0xff]
        %v7120 = vld [vmem:[#allocation4 + $0x38] sm:$0xff]
        %v7121 = vld [vmem:[#allocation4 + $0x40] sm:$0xff]
        %v7122 = vld [vmem:[#allocation4 + $0x48] sm:$0xff]
        %v7123 = vld [vmem:[#allocation4 + $0x50] sm:$0xff]
        %v7124 = vld [vmem:[#allocation4 + $0x58] sm:$0xff]
        %v7125 = vld [vmem:[#allocation4 + $0x60] sm:$0xff]
        %v7126 = vld [vmem:[#allocation4 + $0x68] sm:$0xff]
        %v7127 = vld [vmem:[#allocation4 + $0x70] sm:$0xff]
        %v7128 = vld [vmem:[#allocation4 + $0x78] sm:$0xff]
        %v7129 = vld [vmem:[#allocation4 + $0x80] sm:$0xff]
        %v7130 = vld [vmem:[#allocation4 + $0x88] sm:$0xff]
        %v7131 = vld [vmem:[#allocation4 + $0x90] sm:$0xff]
        %v7132 = vld [vmem:[#allocation4 + $0x98] sm:$0xff]
        %v7133 = vld [vmem:[#allocation4 + $0xa0] sm:$0xff]
        %v7134 = vld [vmem:[#allocation4 + $0xa8] sm:$0xff]
        %v7135 = vld [vmem:[#allocation4 + $0xb0] sm:$0xff]
        %v7136 = vld [vmem:[#allocation4 + $0xb8] sm:$0xff]
        %v7137 = vld [vmem:[#allocation4 + $0xc0] sm:$0xff]
        %v7138 = vld [vmem:[#allocation4 + $0xc8] sm:$0xff]
        %v7139 = vld [vmem:[#allocation4 + $0xd0] sm:$0xff]
        %v7140 = vld [vmem:[#allocation4 + $0xd8] sm:$0xff]
        %v7141 = vld [vmem:[#allocation4 + $0xe0] sm:$0xff]
        %v7142 = vld [vmem:[#allocation4 + $0xe8] sm:$0xff]
        %v7143 = vld [vmem:[#allocation4 + $0xf0] sm:$0xff]
        %v7144 = vld [vmem:[#allocation4 + $0xf8] sm:$0xff]
        %v7145 = vld [vmem:[#allocation4 + $0x100] sm:$0xff]
        %v7146 = vld [vmem:[#allocation4 + $0x108] sm:$0xff]
        %v7147 = vld [vmem:[#allocation4 + $0x110] sm:$0xff]
        %v7148 = vld [vmem:[#allocation4 + $0x118] sm:$0xff]
        %v7149 = vadd.f32 %v7077, %v7113
        %v7150 = vadd.f32 %v7078, %v7114
        %v7151 = vadd.f32 %v7079, %v7115
        %v7152 = vadd.f32 %v7080, %v7116
        %v7153 = vadd.f32 %v7081, %v7117
        %v7154 = vadd.f32 %v7082, %v7118
        %v7155 = vadd.f32 %v7083, %v7119
        %v7156 = vadd.f32 %v7084, %v7120
        %v7157 = vadd.f32 %v7085, %v7121
        %v7158 = vadd.f32 %v7086, %v7122
        %v7159 = vadd.f32 %v7087, %v7123
        %v7160 = vadd.f32 %v7088, %v7124
        %v7161 = vadd.f32 %v7089, %v7125
        %v7162 = vadd.f32 %v7090, %v7126
        %v7163 = vadd.f32 %v7091, %v7127
        %v7164 = vadd.f32 %v7092, %v7128
        %v7165 = vadd.f32 %v7093, %v7129
        %v7166 = vadd.f32 %v7094, %v7130
        %v7167 = vadd.f32 %v7095, %v7131
        %v7168 = vadd.f32 %v7096, %v7132
        %v7169 = vadd.f32 %v7097, %v7133
        %v7170 = vadd.f32 %v7098, %v7134
        %v7171 = vadd.f32 %v7099, %v7135
        %v7172 = vadd.f32 %v7100, %v7136
        %v7173 = vadd.f32 %v7101, %v7137
        %v7174 = vadd.f32 %v7102, %v7138
        %v7175 = vadd.f32 %v7103, %v7139
        %v7176 = vadd.f32 %v7104, %v7140
        %v7177 = vadd.f32 %v7105, %v7141
        %v7178 = vadd.f32 %v7106, %v7142
        %v7179 = vadd.f32 %v7107, %v7143
        %v7180 = vadd.f32 %v7108, %v7144
        %v7181 = vadd.f32 %v7109, %v7145
        %v7182 = vadd.f32 %v7110, %v7146
        %v7183 = vadd.f32 %v7111, %v7147
        %v7184 = vadd.f32 %v7112, %v7148
        %7185 = vst [vmem:[%s352] sm:$0xff] %v7149
        %7186 = vst [vmem:[%s352 + $0x8] sm:$0xff] %v7150
        %7187 = vst [vmem:[%s352 + $0x10] sm:$0xff] %v7151
        %7188 = vst [vmem:[%s352 + $0x18] sm:$0xff] %v7152
        %7189 = vst [vmem:[%s352 + $0x20] sm:$0xff] %v7153
        %7190 = vst [vmem:[%s352 + $0x28] sm:$0xff] %v7154
        %7191 = vst [vmem:[%s352 + $0x30] sm:$0xff] %v7155
        %7192 = vst [vmem:[%s352 + $0x38] sm:$0xff] %v7156
        %7193 = vst [vmem:[%s352 + $0x40] sm:$0xff] %v7157
        %7194 = vst [vmem:[%s352 + $0x48] sm:$0xff] %v7158
        %7195 = vst [vmem:[%s352 + $0x50] sm:$0xff] %v7159
        %7196 = vst [vmem:[%s352 + $0x58] sm:$0xff] %v7160
        %7197 = vst [vmem:[%s352 + $0x60] sm:$0xff] %v7161
        %7198 = vst [vmem:[%s352 + $0x68] sm:$0xff] %v7162
        %7199 = vst [vmem:[%s352 + $0x70] sm:$0xff] %v7163
        %7200 = vst [vmem:[%s352 + $0x78] sm:$0xff] %v7164
        %7201 = vst [vmem:[%s352 + $0x80] sm:$0xff] %v7165
        %7202 = vst [vmem:[%s352 + $0x88] sm:$0xff] %v7166
        %7203 = vst [vmem:[%s352 + $0x90] sm:$0xff] %v7167
        %7204 = vst [vmem:[%s352 + $0x98] sm:$0xff] %v7168
        %7205 = vst [vmem:[%s352 + $0xa0] sm:$0xff] %v7169
        %7206 = vst [vmem:[%s352 + $0xa8] sm:$0xff] %v7170
        %7207 = vst [vmem:[%s352 + $0xb0] sm:$0xff] %v7171
        %7208 = vst [vmem:[%s352 + $0xb8] sm:$0xff] %v7172
        %7209 = vst [vmem:[%s352 + $0xc0] sm:$0xff] %v7173
        %7210 = vst [vmem:[%s352 + $0xc8] sm:$0xff] %v7174
        %7211 = vst [vmem:[%s352 + $0xd0] sm:$0xff] %v7175
        %7212 = vst [vmem:[%s352 + $0xd8] sm:$0xff] %v7176
        %7213 = vst [vmem:[%s352 + $0xe0] sm:$0xff] %v7177
        %7214 = vst [vmem:[%s352 + $0xe8] sm:$0xff] %v7178
        %7215 = vst [vmem:[%s352 + $0xf0] sm:$0xff] %v7179
        %7216 = vst [vmem:[%s352 + $0xf8] sm:$0xff] %v7180
        %7217 = vst [vmem:[%s352 + $0x100] sm:$0xff] %v7181
        %7218 = vst [vmem:[%s352 + $0x108] sm:$0xff] %v7182
        %7219 = vst [vmem:[%s352 + $0x110] sm:$0xff] %v7183
        %7220 = vst [vmem:[%s352 + $0x118] sm:$0xff] %v7184
        %s7221 = sand.u32 %s247, 1
        %s7222 = scalar_lea.sflag [#allocation6], %s7221
        %s7223 = sand.u32 %s247, 1
        %s7224 = smul.addr %s7223, 288
        %s7225 = scalar_lea.vmem [#allocation5], %s7224
        // Predicated region
        $region61: #{tpu_custom_call.1} parent=59 // pred_check
          %p7226 = pneg %p257
        $region62: #{tpu_custom_call.1} parent=59 // pred_check_branch
          %7228 = sbr.rel (%p7226) target = $region64
        $region63: #{tpu_custom_call.1} parent=59 // pred_region
          %7230 = vsyncadd %s7222, 0
          %s7231 = smul.addr %s24, 36
          %s7232 = smul.addr %s7231, 8
          %s7233 = scalar_lea.hbm %s10, %s7232
          %s7234 = sshll.u32 %s7225, 4
          %s7235 = int_to_ptr.vmem [resolvable:$true] %s7234
          %s7236 = sshll.u32 %s7233, 4
          %s7237 = int_to_ptr.hbm [resolvable:$true] %s7236
          %7242 = dma.vmem_to_hbm [thread:$0]  %s7235, 4608, %s7237, %s7222, 128, 128, 8
        $region64: #{tpu_custom_call.1} parent=59 // pred_fallthru
          _
      $region60: #{tpu_custom_call.1} parent=5 // pred_fallthru
        _
      %p7243 = scmp.le.s32.totalorder 2, %s19
      // Predicated region
      $region65: #{tpu_custom_call.1} parent=5 // pred_check
        %p7244 = pneg %p7243
      $region66: #{tpu_custom_call.1} parent=5 // pred_check_branch
        %7246 = sbr.rel (%p7244) target = $region68
      $region67: #{tpu_custom_call.1} parent=5 // pred_region
        %s7247 = ssub.s32 %s19, 2
        // Predicated region
        $region69: #{tpu_custom_call.1} parent=67 // pred_check
          %p7248 = pneg %p263
        $region70: #{tpu_custom_call.1} parent=67 // pred_check_branch
          %7250 = sbr.rel (%p7248) target = $region72
        $region71: #{tpu_custom_call.1} parent=67 // pred_region
          %s7251 = sand.u32 %s248, 1
          %s7252 = scalar_lea.sflag [#allocation6], %s7251
          %s7253 = sand.u32 %s248, 1
          %s7254 = smul.addr %s7253, 288
          %s7255 = scalar_lea.vmem [#allocation5], %s7254
          %7257 = dma.done %s7252, 4608
        $region72: #{tpu_custom_call.1} parent=67 // pred_fallthru
          _
      $region68: #{tpu_custom_call.1} parent=5 // pred_fallthru
        _
    $region6: #{tpu_custom_call.1} parent=1 // loop_footer
      %s23 = sadd.s32 1, %s19
    $region7: #{tpu_custom_call.1} parent=1 // loop_footer_branch
      %18 = sbr.rel target = $region3
    $region8: #{tpu_custom_call.1} parent=1 // loop_exit
      _
    %7258 = vsyncpa [#allocation6], 1
    %s7259 = scalar_lea.sflag [#allocation6], 1
    %7260 = vsyncpa %s7259, 1

</llo_original>
